<compile_context>
chip_gen: v6e
topology: v6e:2x2x1
jax: 0.10.0
libtpu: 0.0.40
codegen_flags: <defaults>
</compile_context>

<pallas_src>
import functools
import math

import numpy as np
import jax
import jax.numpy as jnp
from jax.experimental import pallas as pl
from jax.experimental.pallas import tpu as pltpu


# ----------------------------------------------------------------------------
# Glue: window partition / reverse / shift-mask / relative position index
# (exact replication of the PyTorch module's reshape/permute/slice semantics)
# ----------------------------------------------------------------------------
def window_partition(x, window_size):
    t, h, w = window_size
    B, T, H, W, C = x.shape
    x = x.reshape(B, T // t, t, H // h, h, W // w, w, C)
    return jnp.transpose(x, (0, 1, 3, 5, 2, 4, 6, 7)).reshape(-1, t * h * w, C)


def window_reverse(windows, window_size, B, T, H, W):
    # Literal replication of the reference PyTorch window_reverse, including its
    # (t, w, h) view ordering (a no-op when the window's h == w, as used here).
    t, h, w = window_size
    x = windows.reshape(B, T // t, H // h, W // w, t, w, h, -1)
    return jnp.transpose(x, (0, 1, 4, 2, 5, 3, 6, 7)).reshape(B, T, H, W, -1)


def _np_window_partition(x, window_size):
    t, h, w = window_size
    B, T, H, W, C = x.shape
    x = x.reshape(B, T // t, t, H // h, h, W // w, w, C)
    return x.transpose(0, 1, 3, 5, 2, 4, 6, 7).reshape(-1, t * h * w, C)


def compute_mask(Tp, Hp, Wp, window_size, shift_size):
    img_mask = np.zeros((1, Tp, Hp, Wp, 1), dtype=np.float32)
    cnt = 0
    for d in (slice(-window_size[0]),
              slice(-window_size[0], -shift_size[0]),
              slice(-shift_size[0], None)):
        for h in (slice(-window_size[1]),
                  slice(-window_size[1], -shift_size[1]),
                  slice(-shift_size[1], None)):
            for w in (slice(-window_size[2]),
                      slice(-window_size[2], -shift_size[2]),
                      slice(-shift_size[2], None)):
                img_mask[:, d, h, w, :] = cnt
                cnt += 1
    mask_windows = _np_window_partition(img_mask, window_size).squeeze(-1)   # (nW, N)
    attn_mask = mask_windows[:, None, :] - mask_windows[:, :, None]          # (nW, N, N)
    return np.where(attn_mask != 0, -100.0, 0.0).astype(np.float32)


def relative_position_index(window_size):
    t, h, w = window_size
    coords = np.stack(np.meshgrid(np.arange(t), np.arange(h), np.arange(w), indexing="ij"))
    coords_flatten = coords.reshape(3, -1)
    rel = coords_flatten[:, :, None] - coords_flatten[:, None, :]
    rel = rel.transpose(1, 2, 0).astype(np.int64)
    rel[:, :, 0] += t - 1
    rel[:, :, 1] += h - 1
    rel[:, :, 2] += w - 1
    rel[:, :, 0] *= (2 * h - 1) * (2 * w - 1)
    rel[:, :, 1] *= (2 * w - 1)
    return rel.sum(-1)                                                       # (N, N)


# ----------------------------------------------------------------------------
# Pallas kernel: Wb windows of N tokens per grid step, all heads lane-packed
# ----------------------------------------------------------------------------
def window_attn_kernel(x_ref, wqkv_ref, bm_ref, headmask_ref, wproj_ref, bproj_ref,
                       o_ref, *, n_win, n_tok, channels, num_heads, mxu_dtype):
    Wb, N, C = n_win, n_tok, channels
    HN = num_heads * N
    md = mxu_dtype

    # QKV projection: one (Wb*N, C) @ (C, 3C) matmul.  qk scale already folded into
    # the Q columns of the weight in the wrapper.
    xf = x_ref[...].reshape(Wb * N, C)
    qkv = jnp.dot(xf.astype(md), wqkv_ref[...].astype(md),
                  preferred_element_type=jnp.float32)                      # (Wb*N, 3C) f32
    # NOTE: with C=32 these column slices cut inside one 128-lane tile; for any real
    # deployment make C a multiple of 128 and lane-align the q/k/v column groups.
    q = qkv[:, :C].reshape(Wb, N, C)
    k = qkv[:, C:2 * C].reshape(Wb, N, C)
    v = qkv[:, 2 * C:].reshape(Wb, N, C)

    # Lane-pack heads: replicate K/V to heads*N token rows (broadcast, no concat
    # copies) and zero cross-head channels with the 0/1 head-selection mask, so one
    # full-C contraction yields per-head scores (lane-dense HN = heads*N).
    hm = headmask_ref[...].astype(md)                                       # (HN, C) 0/1
    k_pk = jnp.broadcast_to(k.astype(md)[:, None], (Wb, num_heads, N, C)
                            ).reshape(Wb, HN, C) * hm                       # (Wb, HN, C)
    v_pk = jnp.broadcast_to(v.astype(md)[:, None], (Wb, num_heads, N, C)
                            ).reshape(Wb, HN, C) * hm                       # (Wb, HN, C)

    # Scores for all heads at once + fused rel-pos bias (+ shift mask), stored bf16.
    s = jnp.einsum("wnc,wmc->wnm", q.astype(md), k_pk,
                   preferred_element_type=jnp.float32)                      # (Wb, N, HN) f32
    s = s + bm_ref[...].astype(jnp.float32)

    # Per-head row max (static unrolled loop over heads): keeps exp bounded and
    # guarantees each per-(row, head) denominator >= 1, making the approximate
    # reciprocal below safe even at production score magnitudes.
    e_parts = []
    for h in range(num_heads):
        sh = s[:, :, h * N:(h + 1) * N]
        e_parts.append(jnp.exp(sh - jnp.max(sh, axis=-1, keepdims=True)))
    e = jnp.concatenate(e_parts, axis=-1)                                   # (Wb, N, HN) f32

    # Unnormalized PV (heads land directly in their channel slots), then normalize
    # AFTER the matmul: the per-(row, head) denominator is broadcast onto channels
    # via a matmul with the same 0/1 head mask and divided with an EUP reciprocal.
    e_m = e.astype(md)
    pv = jnp.einsum("wnm,wmc->wnc", e_m, v_pk,
                    preferred_element_type=jnp.float32)                     # (Wb, N, C)
    denom = jnp.dot(e_m.reshape(Wb * N, HN), hm,
                    preferred_element_type=jnp.float32)                     # (Wb*N, C)
    out = pv.reshape(Wb * N, C) * pl.reciprocal(denom, approx=True)

    # Output projection (one row-batched matmul) + bias.
    out = jnp.dot(out.astype(md), wproj_ref[...].astype(md),
                  preferred_element_type=jnp.float32) + bproj_ref[...]
    o_ref[...] = out.reshape(Wb, N, C).astype(o_ref.dtype)


# ----------------------------------------------------------------------------
# Tiling / VMEM helpers
# ----------------------------------------------------------------------------
def _choose_windows_per_step(nW, B_, N, C, num_heads, max_step_bytes=8 * 1024 * 1024):
    """Largest divisor of nW whose dominant per-step f32 working set (scores/e,
    packed K/V, qkv) fits `max_step_bytes` (conservative for v7x's 64 MiB VMEM once
    double-buffered I/O and invariants are added), while keeping >= 2 grid steps for
    v7x megacore sharding / pipeline overlap."""
    HN = num_heads * N
    best = 1
    for Wb in range(1, nW + 1):
        if nW % Wb:
            continue
        step_bytes = Wb * (3 * N * HN + 2 * HN * C + 8 * N * C) * 4
        if step_bytes > max_step_bytes:
            continue
        if B_ // Wb >= 2:
            best = Wb
    return best


def _vmem_limit_bytes(Wb, N, C, num_heads, bias_rows):
    """Estimate scoped VMEM from the actual block sizes, clamped to 75% of the
    reported capacity (v5e/v6e: 128 MiB, v7x: 64 MiB)."""
    HN = num_heads * N
    f32, bf16 = 4, 2
    io = Wb * N * C * f32                                           # one x / out block
    invariants = (3 * C * C + C * C + C) * f32 + HN * C * bf16      # weights + head mask
    bias = bias_rows * N * HN * bf16                                # fused bias block
    inter = (8 * Wb * N * C + 2 * Wb * HN * C + 3 * Wb * N * HN) * f32
    est = 4 * io + invariants + 2 * bias + 2 * inter                # dbl-buffered IO + headroom
    try:
        cap = pltpu.get_tpu_info().vmem_capacity_bytes
    except Exception:
        cap = 64 * 1024 * 1024
    return int(min(max(est, 32 * 1024 * 1024), (cap * 3) // 4))


# ----------------------------------------------------------------------------
# pallas_call wrapper
# ----------------------------------------------------------------------------
def window_attention_pallas(x_windows, wqkv_scaled, bias_mask, head_mask, wproj, bproj,
                            num_heads, *, windows_per_step, n_windows_per_batch,
                            mxu_dtype=jnp.bfloat16):
    B_, N, C = x_windows.shape
    Wb = windows_per_step
    nW = n_windows_per_batch
    assert nW % Wb == 0 and B_ % Wb == 0, (B_, nW, Wb)
    HN = num_heads * N
    Bm = bias_mask.shape[0]                     # nW (shifted) or 1 (no-shift path)
    assert Bm in (1, nW), (Bm, nW)
    n_bias_blocks = 1 if Bm == 1 else Bm // Wb

    kernel = functools.partial(window_attn_kernel, n_win=Wb, n_tok=N, channels=C,
                               num_heads=num_heads, mxu_dtype=mxu_dtype)

    def build_and_call(single_buffer_invariants):
        def inv_spec(shape, idx_map):
            # Grid-invariant operand: single buffer (double buffering only doubles
            # its VMEM footprint with zero overlap benefit).
            if single_buffer_invariants:
                return pl.BlockSpec(shape, idx_map, pipeline_mode=pl.Buffered(1))
            return pl.BlockSpec(shape, idx_map)

        if Bm == 1:                                   # no-shift: one bias for all windows
            bias_spec = inv_spec((1, N, HN), lambda b: (0, 0, 0))
        elif n_bias_blocks == 1:                      # Wb == nW: bias index is constant
            bias_spec = inv_spec((Wb, N, HN), lambda b: (0, 0, 0))
        else:                                         # Wb < nW: cycle through the period
            bias_spec = pl.BlockSpec((Wb, N, HN), lambda b: (b % n_bias_blocks, 0, 0))

        return pl.pallas_call(
            kernel,
            out_shape=jax.ShapeDtypeStruct((B_, N, C), x_windows.dtype),
            grid=(B_ // Wb,),                         # >= 2 steps whenever possible (megacore)
            in_specs=[
                pl.BlockSpec((Wb, N, C), lambda b: (b, 0, 0)),   # x: block of Wb windows
                inv_spec((C, 3 * C), lambda b: (0, 0)),          # qkv weight (scale folded)
                bias_spec,                                       # fused bias (+mask), bf16
                inv_spec((HN, C), lambda b: (0, 0)),             # 0/1 head mask, bf16
                inv_spec((C, C), lambda b: (0, 0)),              # proj weight
                inv_spec((1, C), lambda b: (0, 0)),              # proj bias
            ],
            out_specs=pl.BlockSpec((Wb, N, C), lambda b: (b, 0, 0)),
            compiler_params=pltpu.CompilerParams(
                dimension_semantics=("parallel",),
                vmem_limit_bytes=_vmem_limit_bytes(Wb, N, C, num_heads,
                                                   bias_rows=min(Bm, Wb))),
        )(x_windows, wqkv_scaled, bias_mask, head_mask, wproj, bproj)

    try:
        return build_and_call(True)
    except Exception:
        # Fallback for Pallas versions without single-buffer pipeline_mode support.
        return build_and_call(False)


# ----------------------------------------------------------------------------
# Pure-JAX reference for the window attention (PyTorch WindowAttention3D math)
# ----------------------------------------------------------------------------
def window_attention_ref(x_windows, wqkv, wproj, bproj, rel_bias, attn_mask,
                         num_heads, scale):
    B_, N, C = x_windows.shape
    hd = C // num_heads
    qkv = jnp.einsum("bnc,cd->bnd", x_windows, wqkv).reshape(B_, N, 3, num_heads, hd)
    qkv = jnp.transpose(qkv, (2, 0, 3, 1, 4))
    q, k, v = qkv[0] * scale, qkv[1], qkv[2]
    attn = jnp.einsum("bhnd,bhmd->bhnm", q, k) + rel_bias[None]
    if attn_mask is not None:
        nW = attn_mask.shape[0]
        attn = attn + jnp.tile(attn_mask, (B_ // nW, 1, 1))[:, None, :, :]
    attn = jax.nn.softmax(attn, axis=-1)
    out = jnp.einsum("bhnm,bhmd->bhnd", attn, v)
    out = jnp.transpose(out, (0, 2, 1, 3)).reshape(B_, N, C)
    return jnp.einsum("bnc,cd->bnd", out, wproj) + bproj


# ----------------------------------------------------------------------------
# Full forward (ShiftedWindows_MSA_3D.forward)
# ----------------------------------------------------------------------------
def shifted_windows_msa_3d(x, params, window_size, shift_size, n_heads,
                           attn_impl="pallas", mxu_dtype=jnp.bfloat16):
    B, T, H, W, C = x.shape

    # get_window_size
    ws = list(window_size)
    ss = list(shift_size)
    for i, dim in enumerate((T, H, W)):
        if dim <= window_size[i]:
            ws[i] = dim
            ss[i] = 0
    ws, ss = tuple(ws), tuple(ss)

    pad_d1 = (ws[0] - T % ws[0]) % ws[0]
    pad_b = (ws[1] - H % ws[1]) % ws[1]
    pad_r = (ws[2] - W % ws[2]) % ws[2]
    x = jnp.pad(x, ((0, 0), (0, pad_d1), (0, pad_b), (0, pad_r), (0, 0)))
    _, Tp, Hp, Wp, _ = x.shape

    N = ws[0] * ws[1] * ws[2]
    nW = (Tp // ws[0]) * (Hp // ws[1]) * (Wp // ws[2])
    shifted = any(i > 0 for i in ss)

    if shifted:
        attn_mask = compute_mask(Tp, Hp, Wp, ws, ss)          # np (nW, N, N)
        shifted_x = jnp.roll(x, shift=(-ss[0], -ss[1], -ss[2]), axis=(1, 2, 3))
    else:
        attn_mask = None
        shifted_x = x

    x_windows = window_partition(shifted_x, ws)               # (B*nW, N, C)

    rel_idx = relative_position_index(ws)                     # np (N, N)
    rel_bias = params["rpb_table"][rel_idx.reshape(-1)].reshape(N, N, n_heads)
    rel_bias = jnp.transpose(rel_bias, (2, 0, 1))             # (heads, N, N)

    hd = C // n_heads
    scale = hd ** (-0.5)

    if attn_impl == "pallas":
        # Fold qk scale into the Q columns of the QKV weight once (param transform).
        wqkv_scaled = jnp.concatenate(
            [params["wqkv"][:, :C] * scale, params["wqkv"][:, C:]], axis=1)

        # Lane-packed rel-pos bias (+ shift mask): [win, i, h*N + j], stored bf16
        # (0 / -100 mask values are exact in bf16; rel-pos bias tolerates bf16).
        rb_pk = jnp.transpose(rel_bias, (1, 0, 2)).reshape(N, n_heads * N)   # (N, HN)
        if shifted:
            mask_pk = jnp.tile(jnp.asarray(attn_mask), (1, 1, n_heads))      # (nW, N, HN)
            bias_mask = (rb_pk[None] + mask_pk).astype(jnp.bfloat16)         # (nW, N, HN)
        else:
            bias_mask = rb_pk[None].astype(jnp.bfloat16)                     # (1, N, HN)

        # 0/1 head-selection mask: [h*N + j, h'*hd + d] = (h == h'), bf16 (exact).
        head_mask = jnp.asarray(
            (np.arange(n_heads * N)[:, None] // N == np.arange(C)[None, :] // hd),
            dtype=jnp.bfloat16)                                              # (HN, C)

        Wb = _choose_windows_per_step(nW, x_windows.shape[0], N, C, n_heads)
        attn_windows = window_attention_pallas(
            x_windows, wqkv_scaled, bias_mask, head_mask,
            params["wproj"], params["bproj"], n_heads,
            windows_per_step=Wb, n_windows_per_batch=nW, mxu_dtype=mxu_dtype)
    else:
        am = jnp.asarray(attn_mask) if shifted else None
        attn_windows = window_attention_ref(
            x_windows, params["wqkv"], params["wproj"], params["bproj"],
            rel_bias, am, n_heads, scale)

    shifted_x = window_reverse(attn_windows, ws, B, Tp, Hp, Wp)

    if shifted:
        x = jnp.roll(shifted_x, shift=(ss[0], ss[1], ss[2]), axis=(1, 2, 3))
    else:
        x = shifted_x
    if pad_d1 > 0 or pad_r > 0 or pad_b > 0:
        x = x[:, :T, :H, :W, :]
    return x


# ----------------------------------------------------------------------------
# Main
# ----------------------------------------------------------------------------
if __name__ == "__main__":
    B, T, H, W, C = 2, 4, 8, 8, 32
    window_size = (2, 4, 4)
    shift_size = (1, 2, 2)
    n_heads = 4
    t, h, w = window_size

    key = jax.random.PRNGKey(0)
    kx, k1, k2, k3, k4 = jax.random.split(key, 5)

    x = jax.random.normal(kx, (B, T, H, W, C), dtype=jnp.float32)

    # Deterministic synthetic parameters (shapes from WindowAttention3D.__init__).
    # qkv: Linear(C, 3C, bias=False) stored as (C, 3C) for x @ W; proj: Linear(C, C)+bias;
    # relative_position_bias_table: ((2t-1)(2h-1)(2w-1), n_heads).
    params = {
        "wqkv": jax.random.normal(k1, (C, 3 * C), jnp.float32) * (1.0 / math.sqrt(C)),
        "wproj": jax.random.normal(k2, (C, C), jnp.float32) * (1.0 / math.sqrt(C)),
        "bproj": jax.random.normal(k3, (1, C), jnp.float32) * 0.01,
        "rpb_table": jax.random.truncated_normal(
            k4, -2.0, 2.0,
            ((2 * t - 1) * (2 * h - 1) * (2 * w - 1), n_heads), jnp.float32) * 0.02,
    }

    # Default (performance) path: bf16 MXU inputs, f32 accumulation / softmax.
    out = shifted_windows_msa_3d(x, params, window_size, shift_size, n_heads,
                                 attn_impl="pallas")
    out = jax.block_until_ready(out)
    assert out.shape == (B, T, H, W, C), out.shape

    # Pure-JAX reference of the same math.
    out_ref = shifted_windows_msa_3d(x, params, window_size, shift_size, n_heads,
                                     attn_impl="reference")
    out_ref = jax.block_until_ready(out_ref)

    # bf16 MXU path: loose tolerance (bf16 operand rounding, f32 accumulate/softmax).
    np.testing.assert_allclose(np.asarray(out), np.asarray(out_ref),
                               rtol=5e-2, atol=5e-2)

    # f32 MXU path: tight structural check of the same kernel.
    out_f32 = shifted_windows_msa_3d(x, params, window_size, shift_size, n_heads,
                                     attn_impl="pallas", mxu_dtype=jnp.float32)
    out_f32 = jax.block_until_ready(out_f32)
    np.testing.assert_allclose(np.asarray(out_f32), np.asarray(out_ref),
                               rtol=5e-3, atol=5e-3)

    print("KERNEL_OK")
</pallas_src>

<mosaic_0001>
module attributes {stable_mosaic.version = 11 : i64} {
  func.func @window_attn_kernel(%arg0: i32, %arg1: memref<8x32x32xf32, #tpu.memory_space<vmem>>, %arg2: memref<32x96xf32, #tpu.memory_space<vmem>>, %arg3: memref<8x32x128xbf16, #tpu.memory_space<vmem>>, %arg4: memref<128x32xbf16, #tpu.memory_space<vmem>>, %arg5: memref<32x32xf32, #tpu.memory_space<vmem>>, %arg6: memref<1x32xf32, #tpu.memory_space<vmem>>, %arg7: memref<8x32x32xf32, #tpu.memory_space<vmem>>) attributes {dimension_semantics = [#tpu.dimension_semantics<parallel>], iteration_bounds = array<i64: 2>, scalar_prefetch = 0 : i64, scratch_operands = 0 : i64, tpu.core_type = #tpu.core_type<tc>, window_params = [{transform_indices = @transform_0, window_bounds = array<i64: 8, 32, 32>}, {pipeline_mode = #tpu.pipeline_mode<synchronous>, transform_indices = @transform_1, window_bounds = array<i64: 32, 96>}, {pipeline_mode = #tpu.pipeline_mode<synchronous>, transform_indices = @transform_2, window_bounds = array<i64: 8, 32, 128>}, {pipeline_mode = #tpu.pipeline_mode<synchronous>, transform_indices = @transform_3, window_bounds = array<i64: 128, 32>}, {pipeline_mode = #tpu.pipeline_mode<synchronous>, transform_indices = @transform_4, window_bounds = array<i64: 32, 32>}, {pipeline_mode = #tpu.pipeline_mode<synchronous>, transform_indices = @transform_5, window_bounds = array<i64: 1, 32>}, {transform_indices = @transform_6, window_bounds = array<i64: 8, 32, 32>}]} {
    %c0 = arith.constant 0 : index
    %c0_0 = arith.constant 0 : index
    %c0_1 = arith.constant 0 : index
    %0 = vector.load %arg1[%c0, %c0_0, %c0_1] : memref<8x32x32xf32, #tpu.memory_space<vmem>>, vector<8x32x32xf32>
    %1 = vector.shape_cast %0 : vector<8x32x32xf32> to vector<256x32xf32>
    %2 = arith.truncf %1 : vector<256x32xf32> to vector<256x32xbf16>
    %c0_2 = arith.constant 0 : index
    %c0_3 = arith.constant 0 : index
    %3 = vector.load %arg2[%c0_2, %c0_3] : memref<32x96xf32, #tpu.memory_space<vmem>>, vector<32x96xf32>
    %4 = arith.truncf %3 : vector<32x96xf32> to vector<32x96xbf16>
    %cst = arith.constant dense<0.000000e+00> : vector<256x96xf32>
    %5 = tpu.matmul %2, %4, %cst {dimension_numbers = #tpu.dot_dimension_numbers<[1], [0], [0], [1], [0, 0, 1, 1], [], []>} : vector<256x32xbf16>, vector<32x96xbf16>, vector<256x96xf32> -> vector<256x96xf32>
    %6 = vector.extract_strided_slice %5 {offsets = [0, 0], sizes = [256, 32], strides = [1, 1]} : vector<256x96xf32> to vector<256x32xf32>
    %7 = vector.shape_cast %6 : vector<256x32xf32> to vector<8x32x32xf32>
    %8 = vector.extract_strided_slice %5 {offsets = [0, 32], sizes = [256, 32], strides = [1, 1]} : vector<256x96xf32> to vector<256x32xf32>
    %9 = vector.shape_cast %8 : vector<256x32xf32> to vector<8x32x32xf32>
    %10 = vector.extract_strided_slice %5 {offsets = [0, 64], sizes = [256, 32], strides = [1, 1]} : vector<256x96xf32> to vector<256x32xf32>
    %11 = vector.shape_cast %10 : vector<256x32xf32> to vector<8x32x32xf32>
    %c0_4 = arith.constant 0 : index
    %c0_5 = arith.constant 0 : index
    %12 = vector.load %arg4[%c0_4, %c0_5] : memref<128x32xbf16, #tpu.memory_space<vmem>>, vector<128x32xbf16>
    %13 = arith.truncf %9 : vector<8x32x32xf32> to vector<8x32x32xbf16>
    %14 = vector.shape_cast %13 : vector<8x32x32xbf16> to vector<8x1x32x32xbf16>
    %15 = vector.shape_cast %14 : vector<8x1x32x32xbf16> to vector<8x1x32x32xbf16>
    %16 = vector.broadcast %15 : vector<8x1x32x32xbf16> to vector<8x4x32x32xbf16>
    %17 = vector.shape_cast %16 : vector<8x4x32x32xbf16> to vector<8x128x32xbf16>
    %18 = vector.shape_cast %12 : vector<128x32xbf16> to vector<1x128x32xbf16>
    %19 = vector.broadcast %18 : vector<1x128x32xbf16> to vector<8x128x32xbf16>
    %20 = arith.mulf %17, %19 : vector<8x128x32xbf16>
    %21 = arith.truncf %11 : vector<8x32x32xf32> to vector<8x32x32xbf16>
    %22 = vector.shape_cast %21 : vector<8x32x32xbf16> to vector<8x1x32x32xbf16>
    %23 = vector.shape_cast %22 : vector<8x1x32x32xbf16> to vector<8x1x32x32xbf16>
    %24 = vector.broadcast %23 : vector<8x1x32x32xbf16> to vector<8x4x32x32xbf16>
    %25 = vector.shape_cast %24 : vector<8x4x32x32xbf16> to vector<8x128x32xbf16>
    %26 = vector.shape_cast %12 : vector<128x32xbf16> to vector<1x128x32xbf16>
    %27 = vector.broadcast %26 : vector<1x128x32xbf16> to vector<8x128x32xbf16>
    %28 = arith.mulf %25, %27 : vector<8x128x32xbf16>
    %29 = arith.truncf %7 : vector<8x32x32xf32> to vector<8x32x32xbf16>
    "tpu.trace_start"() <{level = 10 : i32, message = "wnc,wmc->wnm"}> : () -> ()
    %cst_6 = arith.constant dense<0.000000e+00> : vector<8x32x128xf32>
    %30 = tpu.matmul %29, %20, %cst_6 {dimension_numbers = #tpu.dot_dimension_numbers<[2], [2], [1], [1], [0, 0, 0, 1, 1, 1], [0], [0]>} : vector<8x32x32xbf16>, vector<8x128x32xbf16>, vector<8x32x128xf32> -> vector<8x32x128xf32>
    "tpu.trace_stop"() : () -> ()
    %c0_7 = arith.constant 0 : index
    %c0_8 = arith.constant 0 : index
    %c0_9 = arith.constant 0 : index
    %31 = vector.load %arg3[%c0_7, %c0_8, %c0_9] : memref<8x32x128xbf16, #tpu.memory_space<vmem>>, vector<8x32x128xbf16>
    %32 = arith.extf %31 : vector<8x32x128xbf16> to vector<8x32x128xf32>
    %33 = arith.addf %30, %32 : vector<8x32x128xf32>
    %34 = vector.extract_strided_slice %33 {offsets = [0, 0, 0], sizes = [8, 32, 32], strides = [1, 1, 1]} : vector<8x32x128xf32> to vector<8x32x32xf32>
    %cst_10 = arith.constant dense<0xFF800000> : vector<8x32xf32>
    %35 = vector.multi_reduction <maximumf>, %34, %cst_10 [2] : vector<8x32x32xf32> to vector<8x32xf32>
    %36 = vector.shape_cast %35 : vector<8x32xf32> to vector<8x32x1xf32>
    %37 = vector.broadcast %36 : vector<8x32x1xf32> to vector<8x32x32xf32>
    %38 = arith.subf %34, %37 : vector<8x32x32xf32>
    %39 = math.exp %38 : vector<8x32x32xf32>
    %40 = vector.extract_strided_slice %33 {offsets = [0, 0, 32], sizes = [8, 32, 32], strides = [1, 1, 1]} : vector<8x32x128xf32> to vector<8x32x32xf32>
    %cst_11 = arith.constant dense<0xFF800000> : vector<8x32xf32>
    %41 = vector.multi_reduction <maximumf>, %40, %cst_11 [2] : vector<8x32x32xf32> to vector<8x32xf32>
    %42 = vector.shape_cast %41 : vector<8x32xf32> to vector<8x32x1xf32>
    %43 = vector.broadcast %42 : vector<8x32x1xf32> to vector<8x32x32xf32>
    %44 = arith.subf %40, %43 : vector<8x32x32xf32>
    %45 = math.exp %44 : vector<8x32x32xf32>
    %46 = vector.extract_strided_slice %33 {offsets = [0, 0, 64], sizes = [8, 32, 32], strides = [1, 1, 1]} : vector<8x32x128xf32> to vector<8x32x32xf32>
    %cst_12 = arith.constant dense<0xFF800000> : vector<8x32xf32>
    %47 = vector.multi_reduction <maximumf>, %46, %cst_12 [2] : vector<8x32x32xf32> to vector<8x32xf32>
    %48 = vector.shape_cast %47 : vector<8x32xf32> to vector<8x32x1xf32>
    %49 = vector.broadcast %48 : vector<8x32x1xf32> to vector<8x32x32xf32>
    %50 = arith.subf %46, %49 : vector<8x32x32xf32>
    %51 = math.exp %50 : vector<8x32x32xf32>
    %52 = vector.extract_strided_slice %33 {offsets = [0, 0, 96], sizes = [8, 32, 32], strides = [1, 1, 1]} : vector<8x32x128xf32> to vector<8x32x32xf32>
    %cst_13 = arith.constant dense<0xFF800000> : vector<8x32xf32>
    %53 = vector.multi_reduction <maximumf>, %52, %cst_13 [2] : vector<8x32x32xf32> to vector<8x32xf32>
    %54 = vector.shape_cast %53 : vector<8x32xf32> to vector<8x32x1xf32>
    %55 = vector.broadcast %54 : vector<8x32x1xf32> to vector<8x32x32xf32>
    %56 = arith.subf %52, %55 : vector<8x32x32xf32>
    %57 = math.exp %56 : vector<8x32x32xf32>
    %58 = tpu.concatenate %39, %45, %51, %57 in 2 : vector<8x32x32xf32>, vector<8x32x32xf32>, vector<8x32x32xf32>, vector<8x32x32xf32> -> vector<8x32x128xf32>
    %59 = arith.truncf %58 : vector<8x32x128xf32> to vector<8x32x128xbf16>
    "tpu.trace_start"() <{level = 10 : i32, message = "wnm,wmc->wnc"}> : () -> ()
    %cst_14 = arith.constant dense<0.000000e+00> : vector<8x32x32xf32>
    %60 = tpu.matmul %59, %28, %cst_14 {dimension_numbers = #tpu.dot_dimension_numbers<[2], [1], [1], [2], [0, 0, 0, 1, 1, 2], [0], [0]>} : vector<8x32x128xbf16>, vector<8x128x32xbf16>, vector<8x32x32xf32> -> vector<8x32x32xf32>
    "tpu.trace_stop"() : () -> ()
    %61 = vector.shape_cast %59 : vector<8x32x128xbf16> to vector<256x128xbf16>
    %cst_15 = arith.constant dense<0.000000e+00> : vector<256x32xf32>
    %62 = tpu.matmul %61, %12, %cst_15 {dimension_numbers = #tpu.dot_dimension_numbers<[1], [0], [0], [1], [0, 0, 1, 1], [], []>} : vector<256x128xbf16>, vector<128x32xbf16>, vector<256x32xf32> -> vector<256x32xf32>
    %63 = vector.shape_cast %60 : vector<8x32x32xf32> to vector<256x32xf32>
    %64 = tpu.reciprocal %62 {approx = true} : vector<256x32xf32> -> vector<256x32xf32>
    %65 = arith.mulf %63, %64 : vector<256x32xf32>
    %66 = arith.truncf %65 : vector<256x32xf32> to vector<256x32xbf16>
    %c0_16 = arith.constant 0 : index
    %c0_17 = arith.constant 0 : index
    %67 = vector.load %arg5[%c0_16, %c0_17] : memref<32x32xf32, #tpu.memory_space<vmem>>, vector<32x32xf32>
    %68 = arith.truncf %67 : vector<32x32xf32> to vector<32x32xbf16>
    %cst_18 = arith.constant dense<0.000000e+00> : vector<256x32xf32>
    %69 = tpu.matmul %66, %68, %cst_18 {dimension_numbers = #tpu.dot_dimension_numbers<[1], [0], [0], [1], [0, 0, 1, 1], [], []>} : vector<256x32xbf16>, vector<32x32xbf16>, vector<256x32xf32> -> vector<256x32xf32>
    %c0_19 = arith.constant 0 : index
    %c0_20 = arith.constant 0 : index
    %70 = vector.load %arg6[%c0_19, %c0_20] : memref<1x32xf32, #tpu.memory_space<vmem>>, vector<1x32xf32>
    %71 = vector.broadcast %70 : vector<1x32xf32> to vector<256x32xf32>
    %72 = arith.addf %69, %71 : vector<256x32xf32>
    %73 = vector.shape_cast %72 : vector<256x32xf32> to vector<8x32x32xf32>
    %c0_21 = arith.constant 0 : index
    %c0_22 = arith.constant 0 : index
    %c0_23 = arith.constant 0 : index
    %74 = vector.load %arg7[%c0_21, %c0_22, %c0_23] : memref<8x32x32xf32, #tpu.memory_space<vmem>>, vector<8x32x32xf32>
    tpu.vector_store %arg7[%c0_21, %c0_22, %c0_23], %73 {strides = array<i32>} : memref<8x32x32xf32, #tpu.memory_space<vmem>>, vector<8x32x32xf32>,
    return
  }
  func.func @transform_0(%arg0: i32) -> (i32, i32, i32) {
    %c0_i32 = arith.constant 0 : i32
    %c0_i32_0 = arith.constant 0 : i32
    %c0_i32_1 = arith.constant 0 : i32
    return %arg0, %c0_i32, %c0_i32_0 : i32, i32, i32
  }
  func.func @transform_1(%arg0: i32) -> (i32, i32) {
    %c0_i32 = arith.constant 0 : i32
    %c0_i32_0 = arith.constant 0 : i32
    %c0_i32_1 = arith.constant 0 : i32
    return %c0_i32, %c0_i32_0 : i32, i32
  }
  func.func @transform_2(%arg0: i32) -> (i32, i32, i32) {
    %c0_i32 = arith.constant 0 : i32
    %c0_i32_0 = arith.constant 0 : i32
    %c0_i32_1 = arith.constant 0 : i32
    %c0_i32_2 = arith.constant 0 : i32
    return %c0_i32, %c0_i32_0, %c0_i32_1 : i32, i32, i32
  }
  func.func @transform_3(%arg0: i32) -> (i32, i32) {
    %c0_i32 = arith.constant 0 : i32
    %c0_i32_0 = arith.constant 0 : i32
    %c0_i32_1 = arith.constant 0 : i32
    return %c0_i32, %c0_i32_0 : i32, i32
  }
  func.func @transform_4(%arg0: i32) -> (i32, i32) {
    %c0_i32 = arith.constant 0 : i32
    %c0_i32_0 = arith.constant 0 : i32
    %c0_i32_1 = arith.constant 0 : i32
    return %c0_i32, %c0_i32_0 : i32, i32
  }
  func.func @transform_5(%arg0: i32) -> (i32, i32) {
    %c0_i32 = arith.constant 0 : i32
    %c0_i32_0 = arith.constant 0 : i32
    %c0_i32_1 = arith.constant 0 : i32
    return %c0_i32, %c0_i32_0 : i32, i32
  }
  func.func @transform_6(%arg0: i32) -> (i32, i32, i32) {
    %c0_i32 = arith.constant 0 : i32
    %c0_i32_0 = arith.constant 0 : i32
    %c0_i32_1 = arith.constant 0 : i32
    return %arg0, %c0_i32, %c0_i32_0 : i32, i32, i32
  }
}

module attributes {stable_mosaic.version = 11 : i64} {
  func.func @window_attn_kernel(%arg0: i32, %arg1: memref<8x32x32xf32, #tpu.memory_space<vmem>>, %arg2: memref<32x96xf32, #tpu.memory_space<vmem>>, %arg3: memref<8x32x128xbf16, #tpu.memory_space<vmem>>, %arg4: memref<128x32xbf16, #tpu.memory_space<vmem>>, %arg5: memref<32x32xf32, #tpu.memory_space<vmem>>, %arg6: memref<1x32xf32, #tpu.memory_space<vmem>>, %arg7: memref<8x32x32xf32, #tpu.memory_space<vmem>>) attributes {dimension_semantics = [#tpu.dimension_semantics<parallel>], iteration_bounds = array<i64: 2>, scalar_prefetch = 0 : i64, scratch_operands = 0 : i64, tpu.core_type = #tpu.core_type<tc>, window_params = [{transform_indices = @transform_0, window_bounds = array<i64: 8, 32, 32>}, {pipeline_mode = #tpu.pipeline_mode<synchronous>, transform_indices = @transform_1, window_bounds = array<i64: 32, 96>}, {pipeline_mode = #tpu.pipeline_mode<synchronous>, transform_indices = @transform_2, window_bounds = array<i64: 8, 32, 128>}, {pipeline_mode = #tpu.pipeline_mode<synchronous>, transform_indices = @transform_3, window_bounds = array<i64: 128, 32>}, {pipeline_mode = #tpu.pipeline_mode<synchronous>, transform_indices = @transform_4, window_bounds = array<i64: 32, 32>}, {pipeline_mode = #tpu.pipeline_mode<synchronous>, transform_indices = @transform_5, window_bounds = array<i64: 1, 32>}, {transform_indices = @transform_6, window_bounds = array<i64: 8, 32, 32>}]} {
    %c0 = arith.constant 0 : index
    %c0_0 = arith.constant 0 : index
    %c0_1 = arith.constant 0 : index
    %0 = vector.load %arg1[%c0, %c0_0, %c0_1] : memref<8x32x32xf32, #tpu.memory_space<vmem>>, vector<8x32x32xf32>
    %1 = vector.shape_cast %0 : vector<8x32x32xf32> to vector<256x32xf32>
    %2 = arith.truncf %1 : vector<256x32xf32> to vector<256x32xbf16>
    %c0_2 = arith.constant 0 : index
    %c0_3 = arith.constant 0 : index
    %3 = vector.load %arg2[%c0_2, %c0_3] : memref<32x96xf32, #tpu.memory_space<vmem>>, vector<32x96xf32>
    %4 = arith.truncf %3 : vector<32x96xf32> to vector<32x96xbf16>
    %cst = arith.constant dense<0.000000e+00> : vector<256x96xf32>
    %5 = tpu.matmul %2, %4, %cst {dimension_numbers = #tpu.dot_dimension_numbers<[1], [0], [0], [1], [0, 0, 1, 1], [], []>} : vector<256x32xbf16>, vector<32x96xbf16>, vector<256x96xf32> -> vector<256x96xf32>
    %6 = vector.extract_strided_slice %5 {offsets = [0, 0], sizes = [256, 32], strides = [1, 1]} : vector<256x96xf32> to vector<256x32xf32>
    %7 = vector.shape_cast %6 : vector<256x32xf32> to vector<8x32x32xf32>
    %8 = vector.extract_strided_slice %5 {offsets = [0, 32], sizes = [256, 32], strides = [1, 1]} : vector<256x96xf32> to vector<256x32xf32>
    %9 = vector.shape_cast %8 : vector<256x32xf32> to vector<8x32x32xf32>
    %10 = vector.extract_strided_slice %5 {offsets = [0, 64], sizes = [256, 32], strides = [1, 1]} : vector<256x96xf32> to vector<256x32xf32>
    %11 = vector.shape_cast %10 : vector<256x32xf32> to vector<8x32x32xf32>
    %c0_4 = arith.constant 0 : index
    %c0_5 = arith.constant 0 : index
    %12 = vector.load %arg4[%c0_4, %c0_5] : memref<128x32xbf16, #tpu.memory_space<vmem>>, vector<128x32xbf16>
    %13 = arith.truncf %9 : vector<8x32x32xf32> to vector<8x32x32xbf16>
    %14 = vector.shape_cast %13 : vector<8x32x32xbf16> to vector<8x1x32x32xbf16>
    %15 = vector.shape_cast %14 : vector<8x1x32x32xbf16> to vector<8x1x32x32xbf16>
    %16 = vector.broadcast %15 : vector<8x1x32x32xbf16> to vector<8x4x32x32xbf16>
    %17 = vector.shape_cast %16 : vector<8x4x32x32xbf16> to vector<8x128x32xbf16>
    %18 = vector.shape_cast %12 : vector<128x32xbf16> to vector<1x128x32xbf16>
    %19 = vector.broadcast %18 : vector<1x128x32xbf16> to vector<8x128x32xbf16>
    %20 = arith.mulf %17, %19 : vector<8x128x32xbf16>
    %21 = arith.truncf %11 : vector<8x32x32xf32> to vector<8x32x32xbf16>
    %22 = vector.shape_cast %21 : vector<8x32x32xbf16> to vector<8x1x32x32xbf16>
    %23 = vector.shape_cast %22 : vector<8x1x32x32xbf16> to vector<8x1x32x32xbf16>
    %24 = vector.broadcast %23 : vector<8x1x32x32xbf16> to vector<8x4x32x32xbf16>
    %25 = vector.shape_cast %24 : vector<8x4x32x32xbf16> to vector<8x128x32xbf16>
    %26 = vector.shape_cast %12 : vector<128x32xbf16> to vector<1x128x32xbf16>
    %27 = vector.broadcast %26 : vector<1x128x32xbf16> to vector<8x128x32xbf16>
    %28 = arith.mulf %25, %27 : vector<8x128x32xbf16>
    %29 = arith.truncf %7 : vector<8x32x32xf32> to vector<8x32x32xbf16>
    "tpu.trace_start"() <{level = 10 : i32, message = "wnc,wmc->wnm"}> : () -> ()
    %cst_6 = arith.constant dense<0.000000e+00> : vector<8x32x128xf32>
    %30 = tpu.matmul %29, %20, %cst_6 {dimension_numbers = #tpu.dot_dimension_numbers<[2], [2], [1], [1], [0, 0, 0, 1, 1, 1], [0], [0]>} : vector<8x32x32xbf16>, vector<8x128x32xbf16>, vector<8x32x128xf32> -> vector<8x32x128xf32>
    "tpu.trace_stop"() : () -> ()
    %c0_7 = arith.constant 0 : index
    %c0_8 = arith.constant 0 : index
    %c0_9 = arith.constant 0 : index
    %31 = vector.load %arg3[%c0_7, %c0_8, %c0_9] : memref<8x32x128xbf16, #tpu.memory_space<vmem>>, vector<8x32x128xbf16>
    %32 = arith.extf %31 : vector<8x32x128xbf16> to vector<8x32x128xf32>
    %33 = arith.addf %30, %32 : vector<8x32x128xf32>
    %34 = vector.extract_strided_slice %33 {offsets = [0, 0, 0], sizes = [8, 32, 32], strides = [1, 1, 1]} : vector<8x32x128xf32> to vector<8x32x32xf32>
    %cst_10 = arith.constant dense<0xFF800000> : vector<8x32xf32>
    %35 = vector.multi_reduction <maximumf>, %34, %cst_10 [2] : vector<8x32x32xf32> to vector<8x32xf32>
    %36 = vector.shape_cast %35 : vector<8x32xf32> to vector<8x32x1xf32>
    %37 = vector.broadcast %36 : vector<8x32x1xf32> to vector<8x32x32xf32>
    %38 = arith.subf %34, %37 : vector<8x32x32xf32>
    %39 = math.exp %38 : vector<8x32x32xf32>
    %40 = vector.extract_strided_slice %33 {offsets = [0, 0, 32], sizes = [8, 32, 32], strides = [1, 1, 1]} : vector<8x32x128xf32> to vector<8x32x32xf32>
    %cst_11 = arith.constant dense<0xFF800000> : vector<8x32xf32>
    %41 = vector.multi_reduction <maximumf>, %40, %cst_11 [2] : vector<8x32x32xf32> to vector<8x32xf32>
    %42 = vector.shape_cast %41 : vector<8x32xf32> to vector<8x32x1xf32>
    %43 = vector.broadcast %42 : vector<8x32x1xf32> to vector<8x32x32xf32>
    %44 = arith.subf %40, %43 : vector<8x32x32xf32>
    %45 = math.exp %44 : vector<8x32x32xf32>
    %46 = vector.extract_strided_slice %33 {offsets = [0, 0, 64], sizes = [8, 32, 32], strides = [1, 1, 1]} : vector<8x32x128xf32> to vector<8x32x32xf32>
    %cst_12 = arith.constant dense<0xFF800000> : vector<8x32xf32>
    %47 = vector.multi_reduction <maximumf>, %46, %cst_12 [2] : vector<8x32x32xf32> to vector<8x32xf32>
    %48 = vector.shape_cast %47 : vector<8x32xf32> to vector<8x32x1xf32>
    %49 = vector.broadcast %48 : vector<8x32x1xf32> to vector<8x32x32xf32>
    %50 = arith.subf %46, %49 : vector<8x32x32xf32>
    %51 = math.exp %50 : vector<8x32x32xf32>
    %52 = vector.extract_strided_slice %33 {offsets = [0, 0, 96], sizes = [8, 32, 32], strides = [1, 1, 1]} : vector<8x32x128xf32> to vector<8x32x32xf32>
    %cst_13 = arith.constant dense<0xFF800000> : vector<8x32xf32>
    %53 = vector.multi_reduction <maximumf>, %52, %cst_13 [2] : vector<8x32x32xf32> to vector<8x32xf32>
    %54 = vector.shape_cast %53 : vector<8x32xf32> to vector<8x32x1xf32>
    %55 = vector.broadcast %54 : vector<8x32x1xf32> to vector<8x32x32xf32>
    %56 = arith.subf %52, %55 : vector<8x32x32xf32>
    %57 = math.exp %56 : vector<8x32x32xf32>
    %58 = tpu.concatenate %39, %45, %51, %57 in 2 : vector<8x32x32xf32>, vector<8x32x32xf32>, vector<8x32x32xf32>, vector<8x32x32xf32> -> vector<8x32x128xf32>
    %59 = arith.truncf %58 : vector<8x32x128xf32> to vector<8x32x128xbf16>
    "tpu.trace_start"() <{level = 10 : i32, message = "wnm,wmc->wnc"}> : () -> ()
    %cst_14 = arith.constant dense<0.000000e+00> : vector<8x32x32xf32>
    %60 = tpu.matmul %59, %28, %cst_14 {dimension_numbers = #tpu.dot_dimension_numbers<[2], [1], [1], [2], [0, 0, 0, 1, 1, 2], [0], [0]>} : vector<8x32x128xbf16>, vector<8x128x32xbf16>, vector<8x32x32xf32> -> vector<8x32x32xf32>
    "tpu.trace_stop"() : () -> ()
    %61 = vector.shape_cast %59 : vector<8x32x128xbf16> to vector<256x128xbf16>
    %cst_15 = arith.constant dense<0.000000e+00> : vector<256x32xf32>
    %62 = tpu.matmul %61, %12, %cst_15 {dimension_numbers = #tpu.dot_dimension_numbers<[1], [0], [0], [1], [0, 0, 1, 1], [], []>} : vector<256x128xbf16>, vector<128x32xbf16>, vector<256x32xf32> -> vector<256x32xf32>
    %63 = vector.shape_cast %60 : vector<8x32x32xf32> to vector<256x32xf32>
    %64 = tpu.reciprocal %62 {approx = true} : vector<256x32xf32> -> vector<256x32xf32>
    %65 = arith.mulf %63, %64 : vector<256x32xf32>
    %66 = arith.truncf %65 : vector<256x32xf32> to vector<256x32xbf16>
    %c0_16 = arith.constant 0 : index
    %c0_17 = arith.constant 0 : index
    %67 = vector.load %arg5[%c0_16, %c0_17] : memref<32x32xf32, #tpu.memory_space<vmem>>, vector<32x32xf32>
    %68 = arith.truncf %67 : vector<32x32xf32> to vector<32x32xbf16>
    %cst_18 = arith.constant dense<0.000000e+00> : vector<256x32xf32>
    %69 = tpu.matmul %66, %68, %cst_18 {dimension_numbers = #tpu.dot_dimension_numbers<[1], [0], [0], [1], [0, 0, 1, 1], [], []>} : vector<256x32xbf16>, vector<32x32xbf16>, vector<256x32xf32> -> vector<256x32xf32>
    %c0_19 = arith.constant 0 : index
    %c0_20 = arith.constant 0 : index
    %70 = vector.load %arg6[%c0_19, %c0_20] : memref<1x32xf32, #tpu.memory_space<vmem>>, vector<1x32xf32>
    %71 = vector.broadcast %70 : vector<1x32xf32> to vector<256x32xf32>
    %72 = arith.addf %69, %71 : vector<256x32xf32>
    %73 = vector.shape_cast %72 : vector<256x32xf32> to vector<8x32x32xf32>
    %c0_21 = arith.constant 0 : index
    %c0_22 = arith.constant 0 : index
    %c0_23 = arith.constant 0 : index
    %74 = vector.load %arg7[%c0_21, %c0_22, %c0_23] : memref<8x32x32xf32, #tpu.memory_space<vmem>>, vector<8x32x32xf32>
    tpu.vector_store %arg7[%c0_21, %c0_22, %c0_23], %73 {strides = array<i32>} : memref<8x32x32xf32, #tpu.memory_space<vmem>>, vector<8x32x32xf32>,
    return
  }
  func.func @transform_0(%arg0: i32) -> (i32, i32, i32) {
    %c0_i32 = arith.constant 0 : i32
    %c0_i32_0 = arith.constant 0 : i32
    %c0_i32_1 = arith.constant 0 : i32
    return %arg0, %c0_i32, %c0_i32_0 : i32, i32, i32
  }
  func.func @transform_1(%arg0: i32) -> (i32, i32) {
    %c0_i32 = arith.constant 0 : i32
    %c0_i32_0 = arith.constant 0 : i32
    %c0_i32_1 = arith.constant 0 : i32
    return %c0_i32, %c0_i32_0 : i32, i32
  }
  func.func @transform_2(%arg0: i32) -> (i32, i32, i32) {
    %c0_i32 = arith.constant 0 : i32
    %c0_i32_0 = arith.constant 0 : i32
    %c0_i32_1 = arith.constant 0 : i32
    %c0_i32_2 = arith.constant 0 : i32
    return %c0_i32, %c0_i32_0, %c0_i32_1 : i32, i32, i32
  }
  func.func @transform_3(%arg0: i32) -> (i32, i32) {
    %c0_i32 = arith.constant 0 : i32
    %c0_i32_0 = arith.constant 0 : i32
    %c0_i32_1 = arith.constant 0 : i32
    return %c0_i32, %c0_i32_0 : i32, i32
  }
  func.func @transform_4(%arg0: i32) -> (i32, i32) {
    %c0_i32 = arith.constant 0 : i32
    %c0_i32_0 = arith.constant 0 : i32
    %c0_i32_1 = arith.constant 0 : i32
    return %c0_i32, %c0_i32_0 : i32, i32
  }
  func.func @transform_5(%arg0: i32) -> (i32, i32) {
    %c0_i32 = arith.constant 0 : i32
    %c0_i32_0 = arith.constant 0 : i32
    %c0_i32_1 = arith.constant 0 : i32
    return %c0_i32, %c0_i32_0 : i32, i32
  }
  func.func @transform_6(%arg0: i32) -> (i32, i32, i32) {
    %c0_i32 = arith.constant 0 : i32
    %c0_i32_0 = arith.constant 0 : i32
    %c0_i32_1 = arith.constant 0 : i32
    return %arg0, %c0_i32, %c0_i32_0 : i32, i32, i32
  }
}

</mosaic_0001>

<llo_original>
// kernel: tpu_custom_call.1
$region0: #{tpu_custom_call.1}
  #allocation0 [shape = 'u32[]', space=smem, size = 0x4, offset = 0x4, fixed_abs, tag = 'smem constant byte address 0x4 - core index']
  #allocation1 [shape = 'u32[144,128]{1,0:T(1,128)}', space=vmem, size = 0x12000, scoped, tag = 'internal scratch']
  %s0 = inlined_call_operand.hbm [shape: f32[16,32,32], index: 0, kind: input, shape index: {}]
  %s1 = inlined_call_operand.vmem [shape: f32[32,96], index: 1, kind: input, shape index: {}]
  %s2 = inlined_call_operand.hbm [shape: bf16[8,32,128], index: 2, kind: input, shape index: {}]
  %s3 = inlined_call_operand.vmem [shape: bf16[128,32], index: 3, kind: input, shape index: {}]
  %s4 = inlined_call_operand.vmem [shape: f32[32,32], index: 4, kind: input, shape index: {}]
  %s5 = inlined_call_operand.vmem [shape: f32[1,32], index: 5, kind: input, shape index: {}]
  %s6 = inlined_call_operand.hbm [shape: f32[16,32,32], index: 6, kind: output, shape index: {}]
  %s7 = sld [smem:[#allocation0]]
  $region65: #{tpu_custom_call.1} parent=0
    _
  %s9 = ssub.s32 1, %s7
  %s10 = scalar_select 0, %s9, %s7
  $region1: #{tpu_custom_call.1} parent=0
    #allocation2 [shape = 'u8[262144]{0}', space=vmem, size = 0x40000, scoped, tag = 'input window, operand 0']
    #allocation3 [shape = 's32[2]{0}', space=sflag, size = 0x8, scoped, tag = 'scoped memory for tpu_custom_call.1']
    #allocation4 [shape = 's32[2]{0}', space=sflag, size = 0x8, scoped, tag = 'scoped memory for tpu_custom_call.1']
    #allocation5 [shape = 'u8[65536]{0}', space=vmem, size = 0x10000, scoped, tag = 'input window, operand 2, single buffered']
    #allocation6 [shape = 's32[1]{0}', space=sflag, size = 0x4, scoped, tag = 'scoped memory for tpu_custom_call.1']
    #allocation7 [shape = 'u8[262144]{0}', space=vmem, size = 0x40000, scoped, tag = 'output window, operand 0']
    %11 = vsyncpa [#allocation3], 0
    %s12 = scalar_lea.sflag [#allocation3], 1
    %13 = vsyncpa %s12, 0
    %14 = vsyncpa [#allocation6], 0
    %15 = vsyncpa [#allocation4], 0
    %s16 = scalar_lea.sflag [#allocation4], 1
    %17 = vsyncpa %s16, 0
    loop: start=0, step=1, limit=4
    $region2: #{tpu_custom_call.1} parent=1 // loop_pre_header
      _
    $region3: #{tpu_custom_call.1} parent=1 // loop_header
      %s19 = sphi 0, %s23
      %p20 = scmp.ge.s32.totalorder %s19, 4
      %s29 = sphi 0, %s31
      %s32 = sphi 0, %s29
      %s33 = sphi 0, %s32
      %s49 = sphi 0, %s33
      %s53 = sphi 0, %s53
      %s55 = sphi 0, %s53
      %s56 = sphi 0, %s55
      %s70 = sphi 0, %s56
      %s74 = sphi 0, %s74
      %s76 = sphi 0, %s74
      %s77 = sphi 0, %s76
      %s91 = sphi 0, %s77
      %s95 = sphi 0, %s95
      %s97 = sphi 0, %s95
      %s98 = sphi 0, %s97
      %s112 = sphi 0, %s98
      %s116 = sphi 0, %s116
      %s118 = sphi 0, %s116
      %s119 = sphi 0, %s118
      %s133 = sphi 0, %s119
      %s137 = sphi 0, %s137
      %s139 = sphi 0, %s137
      %s140 = sphi 0, %s139
      %s154 = sphi 0, %s140
      %s160 = sphi 0, %s162
      %s163 = sphi 0, %s160
      %s164 = sphi 0, %s163
      %s180 = sphi 0, %s164
    $region4: #{tpu_custom_call.1} parent=1 // loop_header_branch
      %22 = sbr.rel (%p20) target = $region8
    $region5: #{tpu_custom_call.1} parent=1 // loop_body
      %s24 = ssub.s32 %s19, 1
      %s25 = ssub.s32 %s19, 2
      %s26 = sadd.s32 %s19, 1
      %s27 = ssub.s32 %s19, %s26
      %p28 = scmp.eq.s32.totalorder %s27, 0
      %s30 = sadd.s32 %s29, 1
      %s31 = scalar_select %p28, %s29, %s30
      %p34 = pneg %p28
      %p35 = scmp.eq.s32.totalorder %s19, 1
      %p36 = por %p34, %p35
      %p37 = scmp.ne.s32.totalorder %s29, %s32
      %p38 = scmp.eq.s32.totalorder %s19, 0
      %p39 = por %p37, %p38
      %p40 = scmp.ne.s32.totalorder %s29, %s32
      %p41 = scmp.eq.s32.totalorder %s24, 1
      %p42 = por %p40, %p41
      %p43 = scmp.ne.s32.totalorder %s32, %s33
      %p44 = scmp.eq.s32.totalorder %s24, 0
      %p45 = por %p43, %p44
      %p46 = scmp.ne.s32.totalorder %s32, %s33
      %p47 = scmp.eq.s32.totalorder %s25, 1
      %p48 = por %p46, %p47
      %p50 = scmp.ne.s32.totalorder %s33, %s49
      %p51 = scmp.eq.s32.totalorder %s25, 0
      %p52 = por %p50, %p51
      %s54 = sadd.s32 %s53, 1
      %p57 = scmp.eq.s32.totalorder %s19, 1
      %p58 = scmp.ne.s32.totalorder %s53, %s55
      %p59 = scmp.eq.s32.totalorder %s19, 0
      %p60 = por %p58, %p59
      %p61 = scmp.ne.s32.totalorder %s53, %s55
      %p62 = scmp.eq.s32.totalorder %s24, 1
      %p63 = por %p61, %p62
      %p64 = scmp.ne.s32.totalorder %s55, %s56
      %p65 = scmp.eq.s32.totalorder %s24, 0
      %p66 = por %p64, %p65
      %p67 = scmp.ne.s32.totalorder %s55, %s56
      %p68 = scmp.eq.s32.totalorder %s25, 1
      %p69 = por %p67, %p68
      %p71 = scmp.ne.s32.totalorder %s56, %s70
      %p72 = scmp.eq.s32.totalorder %s25, 0
      %p73 = por %p71, %p72
      %s75 = sadd.s32 %s74, 1
      %p78 = scmp.eq.s32.totalorder %s19, 1
      %p79 = scmp.ne.s32.totalorder %s74, %s76
      %p80 = scmp.eq.s32.totalorder %s19, 0
      %p81 = por %p79, %p80
      %p82 = scmp.ne.s32.totalorder %s74, %s76
      %p83 = scmp.eq.s32.totalorder %s24, 1
      %p84 = por %p82, %p83
      %p85 = scmp.ne.s32.totalorder %s76, %s77
      %p86 = scmp.eq.s32.totalorder %s24, 0
      %p87 = por %p85, %p86
      %p88 = scmp.ne.s32.totalorder %s76, %s77
      %p89 = scmp.eq.s32.totalorder %s25, 1
      %p90 = por %p88, %p89
      %p92 = scmp.ne.s32.totalorder %s77, %s91
      %p93 = scmp.eq.s32.totalorder %s25, 0
      %p94 = por %p92, %p93
      %s96 = sadd.s32 %s95, 1
      %p99 = scmp.eq.s32.totalorder %s19, 1
      %p100 = scmp.ne.s32.totalorder %s95, %s97
      %p101 = scmp.eq.s32.totalorder %s19, 0
      %p102 = por %p100, %p101
      %p103 = scmp.ne.s32.totalorder %s95, %s97
      %p104 = scmp.eq.s32.totalorder %s24, 1
      %p105 = por %p103, %p104
      %p106 = scmp.ne.s32.totalorder %s97, %s98
      %p107 = scmp.eq.s32.totalorder %s24, 0
      %p108 = por %p106, %p107
      %p109 = scmp.ne.s32.totalorder %s97, %s98
      %p110 = scmp.eq.s32.totalorder %s25, 1
      %p111 = por %p109, %p110
      %p113 = scmp.ne.s32.totalorder %s98, %s112
      %p114 = scmp.eq.s32.totalorder %s25, 0
      %p115 = por %p113, %p114
      %s117 = sadd.s32 %s116, 1
      %p120 = scmp.eq.s32.totalorder %s19, 1
      %p121 = scmp.ne.s32.totalorder %s116, %s118
      %p122 = scmp.eq.s32.totalorder %s19, 0
      %p123 = por %p121, %p122
      %p124 = scmp.ne.s32.totalorder %s116, %s118
      %p125 = scmp.eq.s32.totalorder %s24, 1
      %p126 = por %p124, %p125
      %p127 = scmp.ne.s32.totalorder %s118, %s119
      %p128 = scmp.eq.s32.totalorder %s24, 0
      %p129 = por %p127, %p128
      %p130 = scmp.ne.s32.totalorder %s118, %s119
      %p131 = scmp.eq.s32.totalorder %s25, 1
      %p132 = por %p130, %p131
      %p134 = scmp.ne.s32.totalorder %s119, %s133
      %p135 = scmp.eq.s32.totalorder %s25, 0
      %p136 = por %p134, %p135
      %s138 = sadd.s32 %s137, 1
      %p141 = scmp.eq.s32.totalorder %s19, 1
      %p142 = scmp.ne.s32.totalorder %s137, %s139
      %p143 = scmp.eq.s32.totalorder %s19, 0
      %p144 = por %p142, %p143
      %p145 = scmp.ne.s32.totalorder %s137, %s139
      %p146 = scmp.eq.s32.totalorder %s24, 1
      %p147 = por %p145, %p146
      %p148 = scmp.ne.s32.totalorder %s139, %s140
      %p149 = scmp.eq.s32.totalorder %s24, 0
      %p150 = por %p148, %p149
      %p151 = scmp.ne.s32.totalorder %s139, %s140
      %p152 = scmp.eq.s32.totalorder %s25, 1
      %p153 = por %p151, %p152
      %p155 = scmp.ne.s32.totalorder %s140, %s154
      %p156 = scmp.eq.s32.totalorder %s25, 0
      %p157 = por %p155, %p156
      %s158 = ssub.s32 %s19, %s26
      %p159 = scmp.eq.s32.totalorder %s158, 0
      %s161 = sadd.s32 %s160, 1
      %s162 = scalar_select %p159, %s160, %s161
      %p165 = pneg %p159
      %p166 = scmp.eq.s32.totalorder %s19, 1
      %p167 = por %p165, %p166
      %p168 = scmp.ne.s32.totalorder %s160, %s163
      %p169 = scmp.eq.s32.totalorder %s19, 0
      %p170 = por %p168, %p169
      %p171 = scmp.ne.s32.totalorder %s160, %s163
      %p172 = scmp.eq.s32.totalorder %s24, 1
      %p173 = por %p171, %p172
      %p174 = scmp.ne.s32.totalorder %s163, %s164
      %p175 = scmp.eq.s32.totalorder %s24, 0
      %p176 = por %p174, %p175
      %p177 = scmp.ne.s32.totalorder %s163, %s164
      %p178 = scmp.eq.s32.totalorder %s25, 1
      %p179 = por %p177, %p178
      %p181 = scmp.ne.s32.totalorder %s164, %s180
      %p182 = scmp.eq.s32.totalorder %s25, 0
      %p183 = por %p181, %p182
      %p184 = scmp.le.s32.totalorder 1, %s19
      %p185 = scmp.lt.s32.totalorder %s19, 3
      %p186 = pnand %p184, %p185
      %p187 = pneg %p186
      // Predicated region
      $region9: #{tpu_custom_call.1} parent=5 // pred_check
        _
      $region10: #{tpu_custom_call.1} parent=5 // pred_check_branch
        %189 = sbr.rel (%p186) target = $region12
      $region11: #{tpu_custom_call.1} parent=5 // pred_region
        %s190 = ssub.s32 %s19, 1
        // Predicated region
        $region13: #{tpu_custom_call.1} parent=11 // pred_check
          %p191 = pneg %p66
        $region14: #{tpu_custom_call.1} parent=11 // pred_check_branch
          %193 = sbr.rel (%p191) target = $region16
        $region15: #{tpu_custom_call.1} parent=11 // pred_region
          _
        $region16: #{tpu_custom_call.1} parent=11 // pred_fallthru
          _
        // Predicated region
        $region17: #{tpu_custom_call.1} parent=11 // pred_check
          %p194 = pneg %p87
        $region18: #{tpu_custom_call.1} parent=11 // pred_check_branch
          %196 = sbr.rel (%p194) target = $region20
        $region19: #{tpu_custom_call.1} parent=11 // pred_region
          %s198 = ssub.s32 2048, 2048
          %199 = vsyncadd [#allocation6], %s198
          %s200 = sshll.u32 [#allocation5], 4
          %s201 = int_to_ptr.vmem [resolvable:$true] %s200
          %206 = dma.hbm_to_vmem [thread:$0]  %s2, 2048, %s201, [#allocation6], 64, 64, 4
        $region20: #{tpu_custom_call.1} parent=11 // pred_fallthru
          _
        // Predicated region
        $region21: #{tpu_custom_call.1} parent=11 // pred_check
          %p207 = pneg %p108
        $region22: #{tpu_custom_call.1} parent=11 // pred_check_branch
          %209 = sbr.rel (%p207) target = $region24
        $region23: #{tpu_custom_call.1} parent=11 // pred_region
          _
        $region24: #{tpu_custom_call.1} parent=11 // pred_fallthru
          _
        // Predicated region
        $region25: #{tpu_custom_call.1} parent=11 // pred_check
          %p210 = pneg %p129
        $region26: #{tpu_custom_call.1} parent=11 // pred_check_branch
          %212 = sbr.rel (%p210) target = $region28
        $region27: #{tpu_custom_call.1} parent=11 // pred_region
          _
        $region28: #{tpu_custom_call.1} parent=11 // pred_fallthru
          _
        // Predicated region
        $region29: #{tpu_custom_call.1} parent=11 // pred_check
          %p213 = pneg %p150
        $region30: #{tpu_custom_call.1} parent=11 // pred_check_branch
          %215 = sbr.rel (%p213) target = $region32
        $region31: #{tpu_custom_call.1} parent=11 // pred_region
          _
        $region32: #{tpu_custom_call.1} parent=11 // pred_fallthru
          _
      $region12: #{tpu_custom_call.1} parent=5 // pred_fallthru
        _
      %p216 = scmp.lt.s32.totalorder %s19, 2
      // Predicated region
      $region33: #{tpu_custom_call.1} parent=5 // pred_check
        %p217 = pneg %p216
      $region34: #{tpu_custom_call.1} parent=5 // pred_check_branch
        %219 = sbr.rel (%p217) target = $region36
      $region35: #{tpu_custom_call.1} parent=5 // pred_region
        // Predicated region
        $region37: #{tpu_custom_call.1} parent=35 // pred_check
          %p220 = pneg %p39
        $region38: #{tpu_custom_call.1} parent=35 // pred_check_branch
          %222 = sbr.rel (%p220) target = $region40
        $region39: #{tpu_custom_call.1} parent=35 // pred_region
          %s223 = sand.u32 %s29, 1
          %s224 = scalar_lea.sflag [#allocation3], %s223
          %s225 = sand.u32 %s29, 1
          %s226 = smul.addr %s225, 256
          %s227 = scalar_lea.vmem [#allocation2], %s226
          %s228 = smul.u32 8, %s19
          %s230 = ssub.s32 4096, 4096
          %231 = vsyncadd %s224, %s230
          %s232 = smul.addr %s228, 4
          %s233 = smul.addr %s232, 128
          %s234 = scalar_lea.hbm %s0, %s233
          %s235 = sshll.u32 %s227, 4
          %s236 = int_to_ptr.vmem [resolvable:$true] %s235
          %241 = dma.hbm_to_vmem [thread:$0]  %s234, 4096, %s236, %s224, 128, 128, 8
        $region40: #{tpu_custom_call.1} parent=35 // pred_fallthru
          _
      $region36: #{tpu_custom_call.1} parent=5 // pred_fallthru
        _
      %p242 = scmp.le.s32.totalorder 1, %s19
      %p243 = scmp.lt.s32.totalorder %s19, 3
      %p244 = pnand %p242, %p243
      %p245 = pneg %p244
      // Predicated region
      $region41: #{tpu_custom_call.1} parent=5 // pred_check
        _
      $region42: #{tpu_custom_call.1} parent=5 // pred_check_branch
        %247 = sbr.rel (%p244) target = $region44
      $region43: #{tpu_custom_call.1} parent=5 // pred_region
        %s248 = ssub.s32 %s19, 1
        %s249 = sand.u32 %s32, 1
        %s250 = scalar_lea.sflag [#allocation3], %s249
        %s251 = sand.u32 %s32, 1
        %s252 = smul.addr %s251, 256
        %s253 = scalar_lea.vmem [#allocation2], %s252
        // Predicated region
        $region45: #{tpu_custom_call.1} parent=43 // pred_check
          %p254 = pneg %p45
        $region46: #{tpu_custom_call.1} parent=43 // pred_check_branch
          %256 = sbr.rel (%p254) target = $region48
        $region47: #{tpu_custom_call.1} parent=43 // pred_region
          %257 = dma.done %s250, 4096
        $region48: #{tpu_custom_call.1} parent=43 // pred_fallthru
          _
        // Predicated region
        $region49: #{tpu_custom_call.1} parent=43 // pred_check
          %p258 = pneg %p87
        $region50: #{tpu_custom_call.1} parent=43 // pred_check_branch
          %260 = sbr.rel (%p258) target = $region52
        $region51: #{tpu_custom_call.1} parent=43 // pred_region
          %261 = dma.done [#allocation6], 2048
        $region52: #{tpu_custom_call.1} parent=43 // pred_fallthru
          _
        %s262 = sand.u32 %s32, 1
        %s263 = scalar_lea.sflag [#allocation3], %s262
        %s264 = sand.u32 %s32, 1
        %s265 = smul.addr %s264, 256
        %s266 = scalar_lea.vmem [#allocation2], %s265
        %p267 = pneg %p45
        %p268 = pneg %p42
        %p269 = pneg %p66
        %p270 = pneg %p63
        %p271 = pneg %p87
        %p272 = pneg %p84
        %p273 = pneg %p108
        %p274 = pneg %p105
        %p275 = pneg %p129
        %p276 = pneg %p126
        %p277 = pneg %p150
        %p278 = pneg %p147
        %p279 = pneg %p176
        %p280 = pneg %p173
        %s281 = sand.u32 %s163, 1
        %s282 = scalar_lea.sflag [#allocation4], %s281
        %s283 = sand.u32 %s163, 1
        %s284 = smul.addr %s283, 256
        %s285 = scalar_lea.vmem [#allocation7], %s284
        %s286 = smul.u32 8, %s24
        %s287 = smul.u32 8, %s24
        %v289 = vld [vmem:[%s253] sm:$0xff]
        %v290 = vld [vmem:[%s253 + $0x8] sm:$0xff]
        %v291 = vld [vmem:[%s253 + $0x10] sm:$0xff]
        %v292 = vld [vmem:[%s253 + $0x18] sm:$0xff]
        %v293 = vld [vmem:[%s253 + $0x20] sm:$0xff]
        %v294 = vld [vmem:[%s253 + $0x28] sm:$0xff]
        %v295 = vld [vmem:[%s253 + $0x30] sm:$0xff]
        %v296 = vld [vmem:[%s253 + $0x38] sm:$0xff]
        %v297 = vld [vmem:[%s253 + $0x40] sm:$0xff]
        %v298 = vld [vmem:[%s253 + $0x48] sm:$0xff]
        %v299 = vld [vmem:[%s253 + $0x50] sm:$0xff]
        %v300 = vld [vmem:[%s253 + $0x58] sm:$0xff]
        %v301 = vld [vmem:[%s253 + $0x60] sm:$0xff]
        %v302 = vld [vmem:[%s253 + $0x68] sm:$0xff]
        %v303 = vld [vmem:[%s253 + $0x70] sm:$0xff]
        %v304 = vld [vmem:[%s253 + $0x78] sm:$0xff]
        %v305 = vld [vmem:[%s253 + $0x80] sm:$0xff]
        %v306 = vld [vmem:[%s253 + $0x88] sm:$0xff]
        %v307 = vld [vmem:[%s253 + $0x90] sm:$0xff]
        %v308 = vld [vmem:[%s253 + $0x98] sm:$0xff]
        %v309 = vld [vmem:[%s253 + $0xa0] sm:$0xff]
        %v310 = vld [vmem:[%s253 + $0xa8] sm:$0xff]
        %v311 = vld [vmem:[%s253 + $0xb0] sm:$0xff]
        %v312 = vld [vmem:[%s253 + $0xb8] sm:$0xff]
        %v313 = vld [vmem:[%s253 + $0xc0] sm:$0xff]
        %v314 = vld [vmem:[%s253 + $0xc8] sm:$0xff]
        %v315 = vld [vmem:[%s253 + $0xd0] sm:$0xff]
        %v316 = vld [vmem:[%s253 + $0xd8] sm:$0xff]
        %v317 = vld [vmem:[%s253 + $0xe0] sm:$0xff]
        %v318 = vld [vmem:[%s253 + $0xe8] sm:$0xff]
        %v319 = vld [vmem:[%s253 + $0xf0] sm:$0xff]
        %v320 = vld [vmem:[%s253 + $0xf8] sm:$0xff]
        %v321 = vpack.c.bf16 %v290, %v289
        %v322 = vpack.c.bf16 %v292, %v291
        %v323 = vpack.c.bf16 %v294, %v293
        %v324 = vpack.c.bf16 %v296, %v295
        %v325 = vpack.c.bf16 %v298, %v297
        %v326 = vpack.c.bf16 %v300, %v299
        %v327 = vpack.c.bf16 %v302, %v301
        %v328 = vpack.c.bf16 %v304, %v303
        %v329 = vpack.c.bf16 %v306, %v305
        %v330 = vpack.c.bf16 %v308, %v307
        %v331 = vpack.c.bf16 %v310, %v309
        %v332 = vpack.c.bf16 %v312, %v311
        %v333 = vpack.c.bf16 %v314, %v313
        %v334 = vpack.c.bf16 %v316, %v315
        %v335 = vpack.c.bf16 %v318, %v317
        %v336 = vpack.c.bf16 %v320, %v319
        %v337 = vld [vmem:[%s1] sm:$0xff]
        %v338 = vld [vmem:[%s1 + $0x8] sm:$0xff]
        %v339 = vld [vmem:[%s1 + $0x10] sm:$0xff]
        %v340 = vld [vmem:[%s1 + $0x18] sm:$0xff]
        %v341 = vpack.c.bf16 %v338, %v337
        %v342 = vpack.c.bf16 %v340, %v339
        %vm343 = vcmask 261120
        %v345 = vsel %vm343, %v321, 0
        %v348 = vsel %vm343, %v322, 0
        %v351 = vsel %vm343, %v323, 0
        %v354 = vsel %vm343, %v324, 0
        %v357 = vsel %vm343, %v325, 0
        %v360 = vsel %vm343, %v326, 0
        %v363 = vsel %vm343, %v327, 0
        %v366 = vsel %vm343, %v328, 0
        %v369 = vsel %vm343, %v329, 0
        %v372 = vsel %vm343, %v330, 0
        %v375 = vsel %vm343, %v331, 0
        %v378 = vsel %vm343, %v332, 0
        %v381 = vsel %vm343, %v333, 0
        %v384 = vsel %vm343, %v334, 0
        %v387 = vsel %vm343, %v335, 0
        %v390 = vsel %vm343, %v336, 0
        %392 = vmatprep.subr.bf16.mxu0 0
        %393 = vmatpush1.bf16.msra.mxu0 0
        %394 = vmatprep.subr.bf16.mxu0 0
        %395 = vmatpush1.bf16.msra.mxu0 0
        %396 = vmatprep.subr.bf16.mxu0 0
        %397 = vmatpush1.bf16.msra.mxu0 0
        %398 = vmatprep.subr.bf16.mxu0 0
        %399 = vmatpush1.bf16.msra.mxu0 0
        %400 = vmatprep.subr.bf16.mxu0 0
        %401 = vmatpush1.bf16.msra.mxu0 0
        %402 = vmatprep.subr.bf16.mxu0 0
        %403 = vmatpush1.bf16.msra.mxu0 0
        %404 = vmatprep.subr.bf16.mxu0 0
        %405 = vmatpush1.bf16.msra.mxu0 %v342
        %406 = vmatprep.subr.bf16.mxu0 0
        %407 = vmatpush1.bf16.msra.mxu0 %v341
        %408 = vmatprep.subr.bf16.mxu0 0
        %409 = vmatpush2.bf16.msra.mxu0 0
        %410 = vmatprep.subr.bf16.mxu0 0
        %411 = vmatpush2.bf16.msra.mxu0 0
        %412 = vmatprep.subr.bf16.mxu0 0
        %413 = vmatpush2.bf16.msra.mxu0 0
        %414 = vmatprep.subr.bf16.mxu0 0
        %415 = vmatpush2.bf16.msra.mxu0 0
        %416 = vmatprep.subr.bf16.mxu0 0
        %417 = vmatpush2.bf16.msra.mxu0 0
        %418 = vmatprep.subr.bf16.mxu0 0
        %419 = vmatpush2.bf16.msra.mxu0 0
        %420 = vmatprep.subr.bf16.mxu0 0
        %421 = vmatpush2.bf16.msra.mxu0 0
        %422 = vmatprep.subr.bf16.mxu0 0
        %423 = vmatpush2.bf16.msra.mxu0 0
        %424 = vmatprep.mubr.bf16.mxu0 0
        %425 = vmatmul.mubr.bf16.gmra.mxu0 %v345
        %v426 = vpop.f32.mrf.mxu0
        %v427 = vadd.f32 0.0, %v426
        %v428 = vpop.f32.mrf.mxu0
        %v429 = vpop.f32.mrf.mxu0
        %v430 = vadd.f32 0.0, %v429
        %v431 = vpop.f32.mrf.mxu0
        %432 = vmatprep.mubr.bf16.mxu0 0
        %433 = vmatmul.mubr.bf16.gmra.mxu0 %v348
        %v434 = vpop.f32.mrf.mxu0
        %v435 = vadd.f32 0.0, %v434
        %v436 = vpop.f32.mrf.mxu0
        %v437 = vpop.f32.mrf.mxu0
        %v438 = vadd.f32 0.0, %v437
        %v439 = vpop.f32.mrf.mxu0
        %440 = vmatprep.mubr.bf16.mxu0 0
        %441 = vmatmul.mubr.bf16.gmra.mxu0 %v351
        %v442 = vpop.f32.mrf.mxu0
        %v443 = vadd.f32 0.0, %v442
        %v444 = vpop.f32.mrf.mxu0
        %v445 = vpop.f32.mrf.mxu0
        %v446 = vadd.f32 0.0, %v445
        %v447 = vpop.f32.mrf.mxu0
        %448 = vmatprep.mubr.bf16.mxu0 0
        %449 = vmatmul.mubr.bf16.gmra.mxu0 %v354
        %v450 = vpop.f32.mrf.mxu0
        %v451 = vadd.f32 0.0, %v450
        %v452 = vpop.f32.mrf.mxu0
        %v453 = vpop.f32.mrf.mxu0
        %v454 = vadd.f32 0.0, %v453
        %v455 = vpop.f32.mrf.mxu0
        %456 = vmatprep.mubr.bf16.mxu0 0
        %457 = vmatmul.mubr.bf16.gmra.mxu0 %v357
        %v458 = vpop.f32.mrf.mxu0
        %v459 = vadd.f32 0.0, %v458
        %v460 = vpop.f32.mrf.mxu0
        %v461 = vpop.f32.mrf.mxu0
        %v462 = vadd.f32 0.0, %v461
        %v463 = vpop.f32.mrf.mxu0
        %464 = vmatprep.mubr.bf16.mxu0 0
        %465 = vmatmul.mubr.bf16.gmra.mxu0 %v360
        %v466 = vpop.f32.mrf.mxu0
        %v467 = vadd.f32 0.0, %v466
        %v468 = vpop.f32.mrf.mxu0
        %v469 = vpop.f32.mrf.mxu0
        %v470 = vadd.f32 0.0, %v469
        %v471 = vpop.f32.mrf.mxu0
        %472 = vmatprep.mubr.bf16.mxu0 0
        %473 = vmatmul.mubr.bf16.gmra.mxu0 %v363
        %v474 = vpop.f32.mrf.mxu0
        %v475 = vadd.f32 0.0, %v474
        %v476 = vpop.f32.mrf.mxu0
        %v477 = vpop.f32.mrf.mxu0
        %v478 = vadd.f32 0.0, %v477
        %v479 = vpop.f32.mrf.mxu0
        %480 = vmatprep.mubr.bf16.mxu0 0
        %481 = vmatmul.mubr.bf16.gmra.mxu0 %v366
        %v482 = vpop.f32.mrf.mxu0
        %v483 = vadd.f32 0.0, %v482
        %v484 = vpop.f32.mrf.mxu0
        %v485 = vpop.f32.mrf.mxu0
        %v486 = vadd.f32 0.0, %v485
        %v487 = vpop.f32.mrf.mxu0
        %488 = vmatprep.mubr.bf16.mxu0 0
        %489 = vmatmul.mubr.bf16.gmra.mxu0 %v369
        %v490 = vpop.f32.mrf.mxu0
        %v491 = vadd.f32 0.0, %v490
        %v492 = vpop.f32.mrf.mxu0
        %v493 = vpop.f32.mrf.mxu0
        %v494 = vadd.f32 0.0, %v493
        %v495 = vpop.f32.mrf.mxu0
        %496 = vmatprep.mubr.bf16.mxu0 0
        %497 = vmatmul.mubr.bf16.gmra.mxu0 %v372
        %v498 = vpop.f32.mrf.mxu0
        %v499 = vadd.f32 0.0, %v498
        %v500 = vpop.f32.mrf.mxu0
        %v501 = vpop.f32.mrf.mxu0
        %v502 = vadd.f32 0.0, %v501
        %v503 = vpop.f32.mrf.mxu0
        %504 = vmatprep.mubr.bf16.mxu0 0
        %505 = vmatmul.mubr.bf16.gmra.mxu0 %v375
        %v506 = vpop.f32.mrf.mxu0
        %v507 = vadd.f32 0.0, %v506
        %v508 = vpop.f32.mrf.mxu0
        %v509 = vpop.f32.mrf.mxu0
        %v510 = vadd.f32 0.0, %v509
        %v511 = vpop.f32.mrf.mxu0
        %512 = vmatprep.mubr.bf16.mxu0 0
        %513 = vmatmul.mubr.bf16.gmra.mxu0 %v378
        %v514 = vpop.f32.mrf.mxu0
        %v515 = vadd.f32 0.0, %v514
        %v516 = vpop.f32.mrf.mxu0
        %v517 = vpop.f32.mrf.mxu0
        %v518 = vadd.f32 0.0, %v517
        %v519 = vpop.f32.mrf.mxu0
        %520 = vmatprep.mubr.bf16.mxu0 0
        %521 = vmatmul.mubr.bf16.gmra.mxu0 %v381
        %v522 = vpop.f32.mrf.mxu0
        %v523 = vadd.f32 0.0, %v522
        %v524 = vpop.f32.mrf.mxu0
        %v525 = vpop.f32.mrf.mxu0
        %v526 = vadd.f32 0.0, %v525
        %v527 = vpop.f32.mrf.mxu0
        %528 = vmatprep.mubr.bf16.mxu0 0
        %529 = vmatmul.mubr.bf16.gmra.mxu0 %v384
        %v530 = vpop.f32.mrf.mxu0
        %v531 = vadd.f32 0.0, %v530
        %v532 = vpop.f32.mrf.mxu0
        %v533 = vpop.f32.mrf.mxu0
        %v534 = vadd.f32 0.0, %v533
        %v535 = vpop.f32.mrf.mxu0
        %536 = vmatprep.mubr.bf16.mxu0 0
        %537 = vmatmul.mubr.bf16.gmra.mxu0 %v387
        %v538 = vpop.f32.mrf.mxu0
        %v539 = vadd.f32 0.0, %v538
        %v540 = vpop.f32.mrf.mxu0
        %v541 = vpop.f32.mrf.mxu0
        %v542 = vadd.f32 0.0, %v541
        %v543 = vpop.f32.mrf.mxu0
        %544 = vmatprep.mubr.bf16.mxu0 0
        %545 = vmatmul.mubr.bf16.gmra.mxu0 %v390
        %v546 = vpop.f32.mrf.mxu0
        %v547 = vadd.f32 0.0, %v546
        %v548 = vpop.f32.mrf.mxu0
        %v549 = vpop.f32.mrf.mxu0
        %v550 = vadd.f32 0.0, %v549
        %v551 = vpop.f32.mrf.mxu0
        %552 = vdwg.mxu0
        %v553 = vld [vmem:[%s3] sm:$0xf]
        %v554 = vld [vmem:[%s3 + $0x4] sm:$0xf]
        %v555 = vld [vmem:[%s3 + $0x8] sm:$0xf]
        %v556 = vld [vmem:[%s3 + $0xc] sm:$0xf]
        %v557 = vld [vmem:[%s3 + $0x10] sm:$0xf]
        %v558 = vld [vmem:[%s3 + $0x14] sm:$0xf]
        %v559 = vld [vmem:[%s3 + $0x18] sm:$0xf]
        %v560 = vld [vmem:[%s3 + $0x1c] sm:$0xf]
        %v561 = vld [vmem:[%s3 + $0x20] sm:$0xf]
        %v562 = vld [vmem:[%s3 + $0x24] sm:$0xf]
        %v563 = vld [vmem:[%s3 + $0x28] sm:$0xf]
        %v564 = vld [vmem:[%s3 + $0x2c] sm:$0xf]
        %v565 = vld [vmem:[%s3 + $0x30] sm:$0xf]
        %v566 = vld [vmem:[%s3 + $0x34] sm:$0xf]
        %v567 = vld [vmem:[%s3 + $0x38] sm:$0xf]
        %v568 = vld [vmem:[%s3 + $0x3c] sm:$0xf]
        %v569 = vpack.c.bf16 %v430, %v427
        %v570 = vpack.c.bf16 %v438, %v435
        %v571 = vpack.c.bf16 %v446, %v443
        %v572 = vpack.c.bf16 %v454, %v451
        %v573 = vpack.c.bf16 %v462, %v459
        %v574 = vpack.c.bf16 %v470, %v467
        %v575 = vpack.c.bf16 %v478, %v475
        %v576 = vpack.c.bf16 %v486, %v483
        %v577 = vpack.c.bf16 %v494, %v491
        %v578 = vpack.c.bf16 %v502, %v499
        %v579 = vpack.c.bf16 %v510, %v507
        %v580 = vpack.c.bf16 %v518, %v515
        %v581 = vpack.c.bf16 %v526, %v523
        %v582 = vpack.c.bf16 %v534, %v531
        %v583 = vpack.c.bf16 %v542, %v539
        %v584 = vpack.c.bf16 %v550, %v547
        %v601 = vunpack.c.l.b16 %v553
        %v602 = vunpack.c.l.b16 %v554
        %v603 = vunpack.c.l.b16 %v555
        %v604 = vunpack.c.l.b16 %v556
        %v605 = vunpack.c.l.b16 %v557
        %v606 = vunpack.c.l.b16 %v558
        %v607 = vunpack.c.l.b16 %v559
        %v608 = vunpack.c.l.b16 %v560
        %v609 = vunpack.c.l.b16 %v561
        %v610 = vunpack.c.l.b16 %v562
        %v611 = vunpack.c.l.b16 %v563
        %v612 = vunpack.c.l.b16 %v564
        %v613 = vunpack.c.l.b16 %v565
        %v614 = vunpack.c.l.b16 %v566
        %v615 = vunpack.c.l.b16 %v567
        %v616 = vunpack.c.l.b16 %v568
        %v617 = vpack.c.b16 %v602, %v601
        %v618 = vpack.c.b16 %v604, %v603
        %v619 = vpack.c.b16 %v606, %v605
        %v620 = vpack.c.b16 %v608, %v607
        %v621 = vpack.c.b16 %v610, %v609
        %v622 = vpack.c.b16 %v612, %v611
        %v623 = vpack.c.b16 %v614, %v613
        %v624 = vpack.c.b16 %v616, %v615
        %625 = vrot.lane.b32.xlu0 %v617, 32
        %v626 = vpop.permute.xlu0 %625
        %627 = vrot.lane.b32.xlu0 %v618, 32
        %v628 = vpop.permute.xlu0 %627
        %629 = vrot.lane.b32.xlu0 %v619, 32
        %v630 = vpop.permute.xlu0 %629
        %631 = vrot.lane.b32.xlu0 %v620, 32
        %v632 = vpop.permute.xlu0 %631
        %633 = vrot.lane.b32.xlu0 %v621, 32
        %v634 = vpop.permute.xlu0 %633
        %635 = vrot.lane.b32.xlu0 %v622, 32
        %v636 = vpop.permute.xlu0 %635
        %637 = vrot.lane.b32.xlu0 %v623, 32
        %v638 = vpop.permute.xlu0 %637
        %639 = vrot.lane.b32.xlu0 %v624, 32
        %v640 = vpop.permute.xlu0 %639
        %v649 = vmul.bf16 %v569, %v626
        %v650 = vmul.bf16 %v570, %v628
        %v651 = vmul.bf16 %v569, %v630
        %v652 = vmul.bf16 %v570, %v632
        %v653 = vmul.bf16 %v569, %v634
        %v654 = vmul.bf16 %v570, %v636
        %v655 = vmul.bf16 %v569, %v638
        %v656 = vmul.bf16 %v570, %v640
        %v657 = vmul.bf16 %v571, %v626
        %v658 = vmul.bf16 %v572, %v628
        %v659 = vmul.bf16 %v571, %v630
        %v660 = vmul.bf16 %v572, %v632
        %v661 = vmul.bf16 %v571, %v634
        %v662 = vmul.bf16 %v572, %v636
        %v663 = vmul.bf16 %v571, %v638
        %v664 = vmul.bf16 %v572, %v640
        %v665 = vmul.bf16 %v573, %v626
        %v666 = vmul.bf16 %v574, %v628
        %v667 = vmul.bf16 %v573, %v630
        %v668 = vmul.bf16 %v574, %v632
        %v669 = vmul.bf16 %v573, %v634
        %v670 = vmul.bf16 %v574, %v636
        %v671 = vmul.bf16 %v573, %v638
        %v672 = vmul.bf16 %v574, %v640
        %v673 = vmul.bf16 %v575, %v626
        %v674 = vmul.bf16 %v576, %v628
        %v675 = vmul.bf16 %v575, %v630
        %v676 = vmul.bf16 %v576, %v632
        %v677 = vmul.bf16 %v575, %v634
        %v678 = vmul.bf16 %v576, %v636
        %v679 = vmul.bf16 %v575, %v638
        %v680 = vmul.bf16 %v576, %v640
        %v681 = vmul.bf16 %v577, %v626
        %v682 = vmul.bf16 %v578, %v628
        %v683 = vmul.bf16 %v577, %v630
        %v684 = vmul.bf16 %v578, %v632
        %v685 = vmul.bf16 %v577, %v634
        %v686 = vmul.bf16 %v578, %v636
        %v687 = vmul.bf16 %v577, %v638
        %v688 = vmul.bf16 %v578, %v640
        %v689 = vmul.bf16 %v579, %v626
        %v690 = vmul.bf16 %v580, %v628
        %v691 = vmul.bf16 %v579, %v630
        %v692 = vmul.bf16 %v580, %v632
        %v693 = vmul.bf16 %v579, %v634
        %v694 = vmul.bf16 %v580, %v636
        %v695 = vmul.bf16 %v579, %v638
        %v696 = vmul.bf16 %v580, %v640
        %v697 = vmul.bf16 %v581, %v626
        %v698 = vmul.bf16 %v582, %v628
        %v699 = vmul.bf16 %v581, %v630
        %v700 = vmul.bf16 %v582, %v632
        %v701 = vmul.bf16 %v581, %v634
        %v702 = vmul.bf16 %v582, %v636
        %v703 = vmul.bf16 %v581, %v638
        %v704 = vmul.bf16 %v582, %v640
        %v705 = vmul.bf16 %v583, %v626
        %v706 = vmul.bf16 %v584, %v628
        %v707 = vmul.bf16 %v583, %v630
        %v708 = vmul.bf16 %v584, %v632
        %v709 = vmul.bf16 %v583, %v634
        %v710 = vmul.bf16 %v584, %v636
        %v711 = vmul.bf16 %v583, %v638
        %v712 = vmul.bf16 %v584, %v640
        %713 = vrot.lane.b32.xlu0 %v617, 64
        %v714 = vpop.permute.xlu0 %713
        %715 = vrot.lane.b32.xlu0 %v618, 64
        %v716 = vpop.permute.xlu0 %715
        %717 = vrot.lane.b32.xlu0 %v619, 64
        %v718 = vpop.permute.xlu0 %717
        %719 = vrot.lane.b32.xlu0 %v620, 64
        %v720 = vpop.permute.xlu0 %719
        %721 = vrot.lane.b32.xlu0 %v621, 64
        %v722 = vpop.permute.xlu0 %721
        %723 = vrot.lane.b32.xlu0 %v622, 64
        %v724 = vpop.permute.xlu0 %723
        %725 = vrot.lane.b32.xlu0 %v623, 64
        %v726 = vpop.permute.xlu0 %725
        %727 = vrot.lane.b32.xlu0 %v624, 64
        %v728 = vpop.permute.xlu0 %727
        %v737 = vmul.bf16 %v569, %v714
        %v738 = vmul.bf16 %v570, %v716
        %v739 = vmul.bf16 %v569, %v718
        %v740 = vmul.bf16 %v570, %v720
        %v741 = vmul.bf16 %v569, %v722
        %v742 = vmul.bf16 %v570, %v724
        %v743 = vmul.bf16 %v569, %v726
        %v744 = vmul.bf16 %v570, %v728
        %v745 = vmul.bf16 %v571, %v714
        %v746 = vmul.bf16 %v572, %v716
        %v747 = vmul.bf16 %v571, %v718
        %v748 = vmul.bf16 %v572, %v720
        %v749 = vmul.bf16 %v571, %v722
        %v750 = vmul.bf16 %v572, %v724
        %v751 = vmul.bf16 %v571, %v726
        %v752 = vmul.bf16 %v572, %v728
        %v753 = vmul.bf16 %v573, %v714
        %v754 = vmul.bf16 %v574, %v716
        %v755 = vmul.bf16 %v573, %v718
        %v756 = vmul.bf16 %v574, %v720
        %v757 = vmul.bf16 %v573, %v722
        %v758 = vmul.bf16 %v574, %v724
        %v759 = vmul.bf16 %v573, %v726
        %v760 = vmul.bf16 %v574, %v728
        %v761 = vmul.bf16 %v575, %v714
        %v762 = vmul.bf16 %v576, %v716
        %v763 = vmul.bf16 %v575, %v718
        %v764 = vmul.bf16 %v576, %v720
        %v765 = vmul.bf16 %v575, %v722
        %v766 = vmul.bf16 %v576, %v724
        %v767 = vmul.bf16 %v575, %v726
        %v768 = vmul.bf16 %v576, %v728
        %v769 = vmul.bf16 %v577, %v714
        %v770 = vmul.bf16 %v578, %v716
        %v771 = vmul.bf16 %v577, %v718
        %v772 = vmul.bf16 %v578, %v720
        %v773 = vmul.bf16 %v577, %v722
        %v774 = vmul.bf16 %v578, %v724
        %v775 = vmul.bf16 %v577, %v726
        %v776 = vmul.bf16 %v578, %v728
        %v777 = vmul.bf16 %v579, %v714
        %v778 = vmul.bf16 %v580, %v716
        %v779 = vmul.bf16 %v579, %v718
        %v780 = vmul.bf16 %v580, %v720
        %v781 = vmul.bf16 %v579, %v722
        %v782 = vmul.bf16 %v580, %v724
        %v783 = vmul.bf16 %v579, %v726
        %v784 = vmul.bf16 %v580, %v728
        %v785 = vmul.bf16 %v581, %v714
        %v786 = vmul.bf16 %v582, %v716
        %v787 = vmul.bf16 %v581, %v718
        %v788 = vmul.bf16 %v582, %v720
        %v789 = vmul.bf16 %v581, %v722
        %v790 = vmul.bf16 %v582, %v724
        %v791 = vmul.bf16 %v581, %v726
        %v792 = vmul.bf16 %v582, %v728
        %v793 = vmul.bf16 %v583, %v714
        %v794 = vmul.bf16 %v584, %v716
        %v795 = vmul.bf16 %v583, %v718
        %v796 = vmul.bf16 %v584, %v720
        %v797 = vmul.bf16 %v583, %v722
        %v798 = vmul.bf16 %v584, %v724
        %v799 = vmul.bf16 %v583, %v726
        %v800 = vmul.bf16 %v584, %v728
        %v801 = vld [vmem:[#allocation5] sm:$0xf]
        %v802 = vld [vmem:[#allocation5 + $0x4] sm:$0xf]
        %v803 = vld [vmem:[#allocation5 + $0x8] sm:$0xf]
        %v804 = vld [vmem:[#allocation5 + $0xc] sm:$0xf]
        %v805 = vld [vmem:[#allocation5 + $0x10] sm:$0xf]
        %v806 = vld [vmem:[#allocation5 + $0x14] sm:$0xf]
        %v807 = vld [vmem:[#allocation5 + $0x18] sm:$0xf]
        %v808 = vld [vmem:[#allocation5 + $0x1c] sm:$0xf]
        %v809 = vld [vmem:[#allocation5 + $0x20] sm:$0xf]
        %v810 = vld [vmem:[#allocation5 + $0x24] sm:$0xf]
        %v811 = vld [vmem:[#allocation5 + $0x28] sm:$0xf]
        %v812 = vld [vmem:[#allocation5 + $0x2c] sm:$0xf]
        %v813 = vld [vmem:[#allocation5 + $0x30] sm:$0xf]
        %v814 = vld [vmem:[#allocation5 + $0x34] sm:$0xf]
        %v815 = vld [vmem:[#allocation5 + $0x38] sm:$0xf]
        %v816 = vld [vmem:[#allocation5 + $0x3c] sm:$0xf]
        %v817 = vld [vmem:[#allocation5 + $0x40] sm:$0xf]
        %v818 = vld [vmem:[#allocation5 + $0x44] sm:$0xf]
        %v819 = vld [vmem:[#allocation5 + $0x48] sm:$0xf]
        %v820 = vld [vmem:[#allocation5 + $0x4c] sm:$0xf]
        %v821 = vld [vmem:[#allocation5 + $0x50] sm:$0xf]
        %v822 = vld [vmem:[#allocation5 + $0x54] sm:$0xf]
        %v823 = vld [vmem:[#allocation5 + $0x58] sm:$0xf]
        %v824 = vld [vmem:[#allocation5 + $0x5c] sm:$0xf]
        %v825 = vld [vmem:[#allocation5 + $0x60] sm:$0xf]
        %v826 = vld [vmem:[#allocation5 + $0x64] sm:$0xf]
        %v827 = vld [vmem:[#allocation5 + $0x68] sm:$0xf]
        %v828 = vld [vmem:[#allocation5 + $0x6c] sm:$0xf]
        %v829 = vld [vmem:[#allocation5 + $0x70] sm:$0xf]
        %v830 = vld [vmem:[#allocation5 + $0x74] sm:$0xf]
        %v831 = vld [vmem:[#allocation5 + $0x78] sm:$0xf]
        %v832 = vld [vmem:[#allocation5 + $0x7c] sm:$0xf]
        %v833 = vunpack.c.l.bf16 %v801
        %v834 = vunpack.c.l.bf16 %v802
        %v835 = vunpack.c.l.bf16 %v803
        %v836 = vunpack.c.l.bf16 %v804
        %v837 = vunpack.c.l.bf16 %v805
        %v838 = vunpack.c.l.bf16 %v806
        %v839 = vunpack.c.l.bf16 %v807
        %v840 = vunpack.c.l.bf16 %v808
        %v841 = vunpack.c.l.bf16 %v809
        %v842 = vunpack.c.l.bf16 %v810
        %v843 = vunpack.c.l.bf16 %v811
        %v844 = vunpack.c.l.bf16 %v812
        %v845 = vunpack.c.l.bf16 %v813
        %v846 = vunpack.c.l.bf16 %v814
        %v847 = vunpack.c.l.bf16 %v815
        %v848 = vunpack.c.l.bf16 %v816
        %v849 = vunpack.c.l.bf16 %v817
        %v850 = vunpack.c.l.bf16 %v818
        %v851 = vunpack.c.l.bf16 %v819
        %v852 = vunpack.c.l.bf16 %v820
        %v853 = vunpack.c.l.bf16 %v821
        %v854 = vunpack.c.l.bf16 %v822
        %v855 = vunpack.c.l.bf16 %v823
        %v856 = vunpack.c.l.bf16 %v824
        %v857 = vunpack.c.l.bf16 %v825
        %v858 = vunpack.c.l.bf16 %v826
        %v859 = vunpack.c.l.bf16 %v827
        %v860 = vunpack.c.l.bf16 %v828
        %v861 = vunpack.c.l.bf16 %v829
        %v862 = vunpack.c.l.bf16 %v830
        %v863 = vunpack.c.l.bf16 %v831
        %v864 = vunpack.c.l.bf16 %v832
        %873 = vrot.lane.b32.xlu0 %v649, 96
        %v874 = vpop.permute.xlu0 %873
        %875 = vrot.lane.b32.xlu0 %v650, 96
        %v876 = vpop.permute.xlu0 %875
        %877 = vrot.lane.b32.xlu0 %v651, 96
        %v878 = vpop.permute.xlu0 %877
        %879 = vrot.lane.b32.xlu0 %v652, 96
        %v880 = vpop.permute.xlu0 %879
        %881 = vrot.lane.b32.xlu0 %v653, 96
        %v882 = vpop.permute.xlu0 %881
        %883 = vrot.lane.b32.xlu0 %v654, 96
        %v884 = vpop.permute.xlu0 %883
        %885 = vrot.lane.b32.xlu0 %v655, 96
        %v886 = vpop.permute.xlu0 %885
        %887 = vrot.lane.b32.xlu0 %v656, 96
        %v888 = vpop.permute.xlu0 %887
        %v890 = vsel %vm343, %v569, 0
        %v893 = vsel %vm343, %v570, 0
        %v896 = vsel %vm343, %v874, 0
        %v899 = vsel %vm343, %v876, 0
        %v902 = vsel %vm343, %v878, 0
        %v905 = vsel %vm343, %v880, 0
        %v908 = vsel %vm343, %v882, 0
        %v911 = vsel %vm343, %v884, 0
        %v914 = vsel %vm343, %v886, 0
        %v917 = vsel %vm343, %v888, 0
        %919 = vmatprep.subr.bf16.mxu0 0
        %920 = vmatpush1.bf16.xpose.msra.mxu0 %v917
        %921 = vmatprep.subr.bf16.mxu0 0
        %922 = vmatpush1.bf16.xpose.msra.mxu0 %v914
        %923 = vmatprep.subr.bf16.mxu0 0
        %924 = vmatpush1.bf16.xpose.msra.mxu0 %v911
        %925 = vmatprep.subr.bf16.mxu0 0
        %926 = vmatpush1.bf16.xpose.msra.mxu0 %v908
        %927 = vmatprep.subr.bf16.mxu0 0
        %928 = vmatpush1.bf16.xpose.msra.mxu0 %v905
        %929 = vmatprep.subr.bf16.mxu0 0
        %930 = vmatpush1.bf16.xpose.msra.mxu0 %v902
        %931 = vmatprep.subr.bf16.mxu0 0
        %932 = vmatpush1.bf16.xpose.msra.mxu0 %v899
        %933 = vmatprep.subr.bf16.mxu0 0
        %934 = vmatpush1.bf16.xpose.msra.mxu0 %v896
        %935 = vmatprep.subr.bf16.mxu0 0
        %936 = vmatpush2.bf16.xpose.msra.mxu0 0
        %937 = vmatprep.subr.bf16.mxu0 0
        %938 = vmatpush2.bf16.xpose.msra.mxu0 0
        %939 = vmatprep.subr.bf16.mxu0 0
        %940 = vmatpush2.bf16.xpose.msra.mxu0 0
        %941 = vmatprep.subr.bf16.mxu0 0
        %942 = vmatpush2.bf16.xpose.msra.mxu0 0
        %943 = vmatprep.subr.bf16.mxu0 0
        %944 = vmatpush2.bf16.xpose.msra.mxu0 0
        %945 = vmatprep.subr.bf16.mxu0 0
        %946 = vmatpush2.bf16.xpose.msra.mxu0 0
        %947 = vmatprep.subr.bf16.mxu0 0
        %948 = vmatpush2.bf16.xpose.msra.mxu0 0
        %949 = vmatprep.subr.bf16.mxu0 0
        %950 = vmatpush2.bf16.xpose.msra.mxu0 0
        %951 = vmatprep.mubr.bf16.mxu0 0
        %952 = vmatmul.mubr.bf16.gmra.mxu0 %v890
        %v953 = vpop.f32.mrf.mxu0
        %v954 = vadd.f32 %v833, %v953
        %v955 = vpop.f32.mrf.mxu0
        %v956 = vpop.f32.mrf.mxu0
        %v957 = vadd.f32 %v834, %v956
        %v958 = vpop.f32.mrf.mxu0
        %959 = vmatprep.mubr.bf16.mxu0 0
        %960 = vmatmul.mubr.bf16.gmra.mxu0 %v893
        %v961 = vpop.f32.mrf.mxu0
        %v962 = vadd.f32 %v835, %v961
        %v963 = vpop.f32.mrf.mxu0
        %v964 = vpop.f32.mrf.mxu0
        %v965 = vadd.f32 %v836, %v964
        %v966 = vpop.f32.mrf.mxu0
        %967 = vdwg.mxu0
        %976 = vrot.lane.b32.xlu0 %v657, 96
        %v977 = vpop.permute.xlu0 %976
        %978 = vrot.lane.b32.xlu0 %v658, 96
        %v979 = vpop.permute.xlu0 %978
        %980 = vrot.lane.b32.xlu0 %v659, 96
        %v981 = vpop.permute.xlu0 %980
        %982 = vrot.lane.b32.xlu0 %v660, 96
        %v983 = vpop.permute.xlu0 %982
        %984 = vrot.lane.b32.xlu0 %v661, 96
        %v985 = vpop.permute.xlu0 %984
        %986 = vrot.lane.b32.xlu0 %v662, 96
        %v987 = vpop.permute.xlu0 %986
        %988 = vrot.lane.b32.xlu0 %v663, 96
        %v989 = vpop.permute.xlu0 %988
        %990 = vrot.lane.b32.xlu0 %v664, 96
        %v991 = vpop.permute.xlu0 %990
        %v993 = vsel %vm343, %v571, 0
        %v996 = vsel %vm343, %v572, 0
        %v999 = vsel %vm343, %v977, 0
        %v1002 = vsel %vm343, %v979, 0
        %v1005 = vsel %vm343, %v981, 0
        %v1008 = vsel %vm343, %v983, 0
        %v1011 = vsel %vm343, %v985, 0
        %v1014 = vsel %vm343, %v987, 0
        %v1017 = vsel %vm343, %v989, 0
        %v1020 = vsel %vm343, %v991, 0
        %1022 = vmatprep.subr.bf16.mxu0 0
        %1023 = vmatpush1.bf16.xpose.msra.mxu0 %v1020
        %1024 = vmatprep.subr.bf16.mxu0 0
        %1025 = vmatpush1.bf16.xpose.msra.mxu0 %v1017
        %1026 = vmatprep.subr.bf16.mxu0 0
        %1027 = vmatpush1.bf16.xpose.msra.mxu0 %v1014
        %1028 = vmatprep.subr.bf16.mxu0 0
        %1029 = vmatpush1.bf16.xpose.msra.mxu0 %v1011
        %1030 = vmatprep.subr.bf16.mxu0 0
        %1031 = vmatpush1.bf16.xpose.msra.mxu0 %v1008
        %1032 = vmatprep.subr.bf16.mxu0 0
        %1033 = vmatpush1.bf16.xpose.msra.mxu0 %v1005
        %1034 = vmatprep.subr.bf16.mxu0 0
        %1035 = vmatpush1.bf16.xpose.msra.mxu0 %v1002
        %1036 = vmatprep.subr.bf16.mxu0 0
        %1037 = vmatpush1.bf16.xpose.msra.mxu0 %v999
        %1038 = vmatprep.subr.bf16.mxu0 0
        %1039 = vmatpush2.bf16.xpose.msra.mxu0 0
        %1040 = vmatprep.subr.bf16.mxu0 0
        %1041 = vmatpush2.bf16.xpose.msra.mxu0 0
        %1042 = vmatprep.subr.bf16.mxu0 0
        %1043 = vmatpush2.bf16.xpose.msra.mxu0 0
        %1044 = vmatprep.subr.bf16.mxu0 0
        %1045 = vmatpush2.bf16.xpose.msra.mxu0 0
        %1046 = vmatprep.subr.bf16.mxu0 0
        %1047 = vmatpush2.bf16.xpose.msra.mxu0 0
        %1048 = vmatprep.subr.bf16.mxu0 0
        %1049 = vmatpush2.bf16.xpose.msra.mxu0 0
        %1050 = vmatprep.subr.bf16.mxu0 0
        %1051 = vmatpush2.bf16.xpose.msra.mxu0 0
        %1052 = vmatprep.subr.bf16.mxu0 0
        %1053 = vmatpush2.bf16.xpose.msra.mxu0 0
        %1054 = vmatprep.mubr.bf16.mxu0 0
        %1055 = vmatmul.mubr.bf16.gmra.mxu0 %v993
        %v1056 = vpop.f32.mrf.mxu0
        %v1057 = vadd.f32 %v837, %v1056
        %v1058 = vpop.f32.mrf.mxu0
        %v1059 = vpop.f32.mrf.mxu0
        %v1060 = vadd.f32 %v838, %v1059
        %v1061 = vpop.f32.mrf.mxu0
        %1062 = vmatprep.mubr.bf16.mxu0 0
        %1063 = vmatmul.mubr.bf16.gmra.mxu0 %v996
        %v1064 = vpop.f32.mrf.mxu0
        %v1065 = vadd.f32 %v839, %v1064
        %v1066 = vpop.f32.mrf.mxu0
        %v1067 = vpop.f32.mrf.mxu0
        %v1068 = vadd.f32 %v840, %v1067
        %v1069 = vpop.f32.mrf.mxu0
        %1070 = vdwg.mxu0
        %1079 = vrot.lane.b32.xlu0 %v665, 96
        %v1080 = vpop.permute.xlu0 %1079
        %1081 = vrot.lane.b32.xlu0 %v666, 96
        %v1082 = vpop.permute.xlu0 %1081
        %1083 = vrot.lane.b32.xlu0 %v667, 96
        %v1084 = vpop.permute.xlu0 %1083
        %1085 = vrot.lane.b32.xlu0 %v668, 96
        %v1086 = vpop.permute.xlu0 %1085
        %1087 = vrot.lane.b32.xlu0 %v669, 96
        %v1088 = vpop.permute.xlu0 %1087
        %1089 = vrot.lane.b32.xlu0 %v670, 96
        %v1090 = vpop.permute.xlu0 %1089
        %1091 = vrot.lane.b32.xlu0 %v671, 96
        %v1092 = vpop.permute.xlu0 %1091
        %1093 = vrot.lane.b32.xlu0 %v672, 96
        %v1094 = vpop.permute.xlu0 %1093
        %v1096 = vsel %vm343, %v573, 0
        %v1099 = vsel %vm343, %v574, 0
        %v1102 = vsel %vm343, %v1080, 0
        %v1105 = vsel %vm343, %v1082, 0
        %v1108 = vsel %vm343, %v1084, 0
        %v1111 = vsel %vm343, %v1086, 0
        %v1114 = vsel %vm343, %v1088, 0
        %v1117 = vsel %vm343, %v1090, 0
        %v1120 = vsel %vm343, %v1092, 0
        %v1123 = vsel %vm343, %v1094, 0
        %1125 = vmatprep.subr.bf16.mxu0 0
        %1126 = vmatpush1.bf16.xpose.msra.mxu0 %v1123
        %1127 = vmatprep.subr.bf16.mxu0 0
        %1128 = vmatpush1.bf16.xpose.msra.mxu0 %v1120
        %1129 = vmatprep.subr.bf16.mxu0 0
        %1130 = vmatpush1.bf16.xpose.msra.mxu0 %v1117
        %1131 = vmatprep.subr.bf16.mxu0 0
        %1132 = vmatpush1.bf16.xpose.msra.mxu0 %v1114
        %1133 = vmatprep.subr.bf16.mxu0 0
        %1134 = vmatpush1.bf16.xpose.msra.mxu0 %v1111
        %1135 = vmatprep.subr.bf16.mxu0 0
        %1136 = vmatpush1.bf16.xpose.msra.mxu0 %v1108
        %1137 = vmatprep.subr.bf16.mxu0 0
        %1138 = vmatpush1.bf16.xpose.msra.mxu0 %v1105
        %1139 = vmatprep.subr.bf16.mxu0 0
        %1140 = vmatpush1.bf16.xpose.msra.mxu0 %v1102
        %1141 = vmatprep.subr.bf16.mxu0 0
        %1142 = vmatpush2.bf16.xpose.msra.mxu0 0
        %1143 = vmatprep.subr.bf16.mxu0 0
        %1144 = vmatpush2.bf16.xpose.msra.mxu0 0
        %1145 = vmatprep.subr.bf16.mxu0 0
        %1146 = vmatpush2.bf16.xpose.msra.mxu0 0
        %1147 = vmatprep.subr.bf16.mxu0 0
        %1148 = vmatpush2.bf16.xpose.msra.mxu0 0
        %1149 = vmatprep.subr.bf16.mxu0 0
        %1150 = vmatpush2.bf16.xpose.msra.mxu0 0
        %1151 = vmatprep.subr.bf16.mxu0 0
        %1152 = vmatpush2.bf16.xpose.msra.mxu0 0
        %1153 = vmatprep.subr.bf16.mxu0 0
        %1154 = vmatpush2.bf16.xpose.msra.mxu0 0
        %1155 = vmatprep.subr.bf16.mxu0 0
        %1156 = vmatpush2.bf16.xpose.msra.mxu0 0
        %1157 = vmatprep.mubr.bf16.mxu0 0
        %1158 = vmatmul.mubr.bf16.gmra.mxu0 %v1096
        %v1159 = vpop.f32.mrf.mxu0
        %v1160 = vadd.f32 %v841, %v1159
        %v1161 = vpop.f32.mrf.mxu0
        %v1162 = vpop.f32.mrf.mxu0
        %v1163 = vadd.f32 %v842, %v1162
        %v1164 = vpop.f32.mrf.mxu0
        %1165 = vmatprep.mubr.bf16.mxu0 0
        %1166 = vmatmul.mubr.bf16.gmra.mxu0 %v1099
        %v1167 = vpop.f32.mrf.mxu0
        %v1168 = vadd.f32 %v843, %v1167
        %v1169 = vpop.f32.mrf.mxu0
        %v1170 = vpop.f32.mrf.mxu0
        %v1171 = vadd.f32 %v844, %v1170
        %v1172 = vpop.f32.mrf.mxu0
        %1173 = vdwg.mxu0
        %1182 = vrot.lane.b32.xlu0 %v673, 96
        %v1183 = vpop.permute.xlu0 %1182
        %1184 = vrot.lane.b32.xlu0 %v674, 96
        %v1185 = vpop.permute.xlu0 %1184
        %1186 = vrot.lane.b32.xlu0 %v675, 96
        %v1187 = vpop.permute.xlu0 %1186
        %1188 = vrot.lane.b32.xlu0 %v676, 96
        %v1189 = vpop.permute.xlu0 %1188
        %1190 = vrot.lane.b32.xlu0 %v677, 96
        %v1191 = vpop.permute.xlu0 %1190
        %1192 = vrot.lane.b32.xlu0 %v678, 96
        %v1193 = vpop.permute.xlu0 %1192
        %1194 = vrot.lane.b32.xlu0 %v679, 96
        %v1195 = vpop.permute.xlu0 %1194
        %1196 = vrot.lane.b32.xlu0 %v680, 96
        %v1197 = vpop.permute.xlu0 %1196
        %v1199 = vsel %vm343, %v575, 0
        %v1202 = vsel %vm343, %v576, 0
        %v1205 = vsel %vm343, %v1183, 0
        %v1208 = vsel %vm343, %v1185, 0
        %v1211 = vsel %vm343, %v1187, 0
        %v1214 = vsel %vm343, %v1189, 0
        %v1217 = vsel %vm343, %v1191, 0
        %v1220 = vsel %vm343, %v1193, 0
        %v1223 = vsel %vm343, %v1195, 0
        %v1226 = vsel %vm343, %v1197, 0
        %1228 = vmatprep.subr.bf16.mxu0 0
        %1229 = vmatpush1.bf16.xpose.msra.mxu0 %v1226
        %1230 = vmatprep.subr.bf16.mxu0 0
        %1231 = vmatpush1.bf16.xpose.msra.mxu0 %v1223
        %1232 = vmatprep.subr.bf16.mxu0 0
        %1233 = vmatpush1.bf16.xpose.msra.mxu0 %v1220
        %1234 = vmatprep.subr.bf16.mxu0 0
        %1235 = vmatpush1.bf16.xpose.msra.mxu0 %v1217
        %1236 = vmatprep.subr.bf16.mxu0 0
        %1237 = vmatpush1.bf16.xpose.msra.mxu0 %v1214
        %1238 = vmatprep.subr.bf16.mxu0 0
        %1239 = vmatpush1.bf16.xpose.msra.mxu0 %v1211
        %1240 = vmatprep.subr.bf16.mxu0 0
        %1241 = vmatpush1.bf16.xpose.msra.mxu0 %v1208
        %1242 = vmatprep.subr.bf16.mxu0 0
        %1243 = vmatpush1.bf16.xpose.msra.mxu0 %v1205
        %1244 = vmatprep.subr.bf16.mxu0 0
        %1245 = vmatpush2.bf16.xpose.msra.mxu0 0
        %1246 = vmatprep.subr.bf16.mxu0 0
        %1247 = vmatpush2.bf16.xpose.msra.mxu0 0
        %1248 = vmatprep.subr.bf16.mxu0 0
        %1249 = vmatpush2.bf16.xpose.msra.mxu0 0
        %1250 = vmatprep.subr.bf16.mxu0 0
        %1251 = vmatpush2.bf16.xpose.msra.mxu0 0
        %1252 = vmatprep.subr.bf16.mxu0 0
        %1253 = vmatpush2.bf16.xpose.msra.mxu0 0
        %1254 = vmatprep.subr.bf16.mxu0 0
        %1255 = vmatpush2.bf16.xpose.msra.mxu0 0
        %1256 = vmatprep.subr.bf16.mxu0 0
        %1257 = vmatpush2.bf16.xpose.msra.mxu0 0
        %1258 = vmatprep.subr.bf16.mxu0 0
        %1259 = vmatpush2.bf16.xpose.msra.mxu0 0
        %1260 = vmatprep.mubr.bf16.mxu0 0
        %1261 = vmatmul.mubr.bf16.gmra.mxu0 %v1199
        %v1262 = vpop.f32.mrf.mxu0
        %v1263 = vadd.f32 %v845, %v1262
        %v1264 = vpop.f32.mrf.mxu0
        %v1265 = vpop.f32.mrf.mxu0
        %v1266 = vadd.f32 %v846, %v1265
        %v1267 = vpop.f32.mrf.mxu0
        %1268 = vmatprep.mubr.bf16.mxu0 0
        %1269 = vmatmul.mubr.bf16.gmra.mxu0 %v1202
        %v1270 = vpop.f32.mrf.mxu0
        %v1271 = vadd.f32 %v847, %v1270
        %v1272 = vpop.f32.mrf.mxu0
        %v1273 = vpop.f32.mrf.mxu0
        %v1274 = vadd.f32 %v848, %v1273
        %v1275 = vpop.f32.mrf.mxu0
        %1276 = vdwg.mxu0
        %1285 = vrot.lane.b32.xlu0 %v681, 96
        %v1286 = vpop.permute.xlu0 %1285
        %1287 = vrot.lane.b32.xlu0 %v682, 96
        %v1288 = vpop.permute.xlu0 %1287
        %1289 = vrot.lane.b32.xlu0 %v683, 96
        %v1290 = vpop.permute.xlu0 %1289
        %1291 = vrot.lane.b32.xlu0 %v684, 96
        %v1292 = vpop.permute.xlu0 %1291
        %1293 = vrot.lane.b32.xlu0 %v685, 96
        %v1294 = vpop.permute.xlu0 %1293
        %1295 = vrot.lane.b32.xlu0 %v686, 96
        %v1296 = vpop.permute.xlu0 %1295
        %1297 = vrot.lane.b32.xlu0 %v687, 96
        %v1298 = vpop.permute.xlu0 %1297
        %1299 = vrot.lane.b32.xlu0 %v688, 96
        %v1300 = vpop.permute.xlu0 %1299
        %v1302 = vsel %vm343, %v577, 0
        %v1305 = vsel %vm343, %v578, 0
        %v1308 = vsel %vm343, %v1286, 0
        %v1311 = vsel %vm343, %v1288, 0
        %v1314 = vsel %vm343, %v1290, 0
        %v1317 = vsel %vm343, %v1292, 0
        %v1320 = vsel %vm343, %v1294, 0
        %v1323 = vsel %vm343, %v1296, 0
        %v1326 = vsel %vm343, %v1298, 0
        %v1329 = vsel %vm343, %v1300, 0
        %1331 = vmatprep.subr.bf16.mxu0 0
        %1332 = vmatpush1.bf16.xpose.msra.mxu0 %v1329
        %1333 = vmatprep.subr.bf16.mxu0 0
        %1334 = vmatpush1.bf16.xpose.msra.mxu0 %v1326
        %1335 = vmatprep.subr.bf16.mxu0 0
        %1336 = vmatpush1.bf16.xpose.msra.mxu0 %v1323
        %1337 = vmatprep.subr.bf16.mxu0 0
        %1338 = vmatpush1.bf16.xpose.msra.mxu0 %v1320
        %1339 = vmatprep.subr.bf16.mxu0 0
        %1340 = vmatpush1.bf16.xpose.msra.mxu0 %v1317
        %1341 = vmatprep.subr.bf16.mxu0 0
        %1342 = vmatpush1.bf16.xpose.msra.mxu0 %v1314
        %1343 = vmatprep.subr.bf16.mxu0 0
        %1344 = vmatpush1.bf16.xpose.msra.mxu0 %v1311
        %1345 = vmatprep.subr.bf16.mxu0 0
        %1346 = vmatpush1.bf16.xpose.msra.mxu0 %v1308
        %1347 = vmatprep.subr.bf16.mxu0 0
        %1348 = vmatpush2.bf16.xpose.msra.mxu0 0
        %1349 = vmatprep.subr.bf16.mxu0 0
        %1350 = vmatpush2.bf16.xpose.msra.mxu0 0
        %1351 = vmatprep.subr.bf16.mxu0 0
        %1352 = vmatpush2.bf16.xpose.msra.mxu0 0
        %1353 = vmatprep.subr.bf16.mxu0 0
        %1354 = vmatpush2.bf16.xpose.msra.mxu0 0
        %1355 = vmatprep.subr.bf16.mxu0 0
        %1356 = vmatpush2.bf16.xpose.msra.mxu0 0
        %1357 = vmatprep.subr.bf16.mxu0 0
        %1358 = vmatpush2.bf16.xpose.msra.mxu0 0
        %1359 = vmatprep.subr.bf16.mxu0 0
        %1360 = vmatpush2.bf16.xpose.msra.mxu0 0
        %1361 = vmatprep.subr.bf16.mxu0 0
        %1362 = vmatpush2.bf16.xpose.msra.mxu0 0
        %1363 = vmatprep.mubr.bf16.mxu0 0
        %1364 = vmatmul.mubr.bf16.gmra.mxu0 %v1302
        %v1365 = vpop.f32.mrf.mxu0
        %v1366 = vadd.f32 %v849, %v1365
        %v1367 = vpop.f32.mrf.mxu0
        %v1368 = vpop.f32.mrf.mxu0
        %v1369 = vadd.f32 %v850, %v1368
        %v1370 = vpop.f32.mrf.mxu0
        %1371 = vmatprep.mubr.bf16.mxu0 0
        %1372 = vmatmul.mubr.bf16.gmra.mxu0 %v1305
        %v1373 = vpop.f32.mrf.mxu0
        %v1374 = vadd.f32 %v851, %v1373
        %v1375 = vpop.f32.mrf.mxu0
        %v1376 = vpop.f32.mrf.mxu0
        %v1377 = vadd.f32 %v852, %v1376
        %v1378 = vpop.f32.mrf.mxu0
        %1379 = vdwg.mxu0
        %1388 = vrot.lane.b32.xlu0 %v689, 96
        %v1389 = vpop.permute.xlu0 %1388
        %1390 = vrot.lane.b32.xlu0 %v690, 96
        %v1391 = vpop.permute.xlu0 %1390
        %1392 = vrot.lane.b32.xlu0 %v691, 96
        %v1393 = vpop.permute.xlu0 %1392
        %1394 = vrot.lane.b32.xlu0 %v692, 96
        %v1395 = vpop.permute.xlu0 %1394
        %1396 = vrot.lane.b32.xlu0 %v693, 96
        %v1397 = vpop.permute.xlu0 %1396
        %1398 = vrot.lane.b32.xlu0 %v694, 96
        %v1399 = vpop.permute.xlu0 %1398
        %1400 = vrot.lane.b32.xlu0 %v695, 96
        %v1401 = vpop.permute.xlu0 %1400
        %1402 = vrot.lane.b32.xlu0 %v696, 96
        %v1403 = vpop.permute.xlu0 %1402
        %v1405 = vsel %vm343, %v579, 0
        %v1408 = vsel %vm343, %v580, 0
        %v1411 = vsel %vm343, %v1389, 0
        %v1414 = vsel %vm343, %v1391, 0
        %v1417 = vsel %vm343, %v1393, 0
        %v1420 = vsel %vm343, %v1395, 0
        %v1423 = vsel %vm343, %v1397, 0
        %v1426 = vsel %vm343, %v1399, 0
        %v1429 = vsel %vm343, %v1401, 0
        %v1432 = vsel %vm343, %v1403, 0
        %1434 = vmatprep.subr.bf16.mxu0 0
        %1435 = vmatpush1.bf16.xpose.msra.mxu0 %v1432
        %1436 = vmatprep.subr.bf16.mxu0 0
        %1437 = vmatpush1.bf16.xpose.msra.mxu0 %v1429
        %1438 = vmatprep.subr.bf16.mxu0 0
        %1439 = vmatpush1.bf16.xpose.msra.mxu0 %v1426
        %1440 = vmatprep.subr.bf16.mxu0 0
        %1441 = vmatpush1.bf16.xpose.msra.mxu0 %v1423
        %1442 = vmatprep.subr.bf16.mxu0 0
        %1443 = vmatpush1.bf16.xpose.msra.mxu0 %v1420
        %1444 = vmatprep.subr.bf16.mxu0 0
        %1445 = vmatpush1.bf16.xpose.msra.mxu0 %v1417
        %1446 = vmatprep.subr.bf16.mxu0 0
        %1447 = vmatpush1.bf16.xpose.msra.mxu0 %v1414
        %1448 = vmatprep.subr.bf16.mxu0 0
        %1449 = vmatpush1.bf16.xpose.msra.mxu0 %v1411
        %1450 = vmatprep.subr.bf16.mxu0 0
        %1451 = vmatpush2.bf16.xpose.msra.mxu0 0
        %1452 = vmatprep.subr.bf16.mxu0 0
        %1453 = vmatpush2.bf16.xpose.msra.mxu0 0
        %1454 = vmatprep.subr.bf16.mxu0 0
        %1455 = vmatpush2.bf16.xpose.msra.mxu0 0
        %1456 = vmatprep.subr.bf16.mxu0 0
        %1457 = vmatpush2.bf16.xpose.msra.mxu0 0
        %1458 = vmatprep.subr.bf16.mxu0 0
        %1459 = vmatpush2.bf16.xpose.msra.mxu0 0
        %1460 = vmatprep.subr.bf16.mxu0 0
        %1461 = vmatpush2.bf16.xpose.msra.mxu0 0
        %1462 = vmatprep.subr.bf16.mxu0 0
        %1463 = vmatpush2.bf16.xpose.msra.mxu0 0
        %1464 = vmatprep.subr.bf16.mxu0 0
        %1465 = vmatpush2.bf16.xpose.msra.mxu0 0
        %1466 = vmatprep.mubr.bf16.mxu0 0
        %1467 = vmatmul.mubr.bf16.gmra.mxu0 %v1405
        %v1468 = vpop.f32.mrf.mxu0
        %v1469 = vadd.f32 %v853, %v1468
        %v1470 = vpop.f32.mrf.mxu0
        %v1471 = vpop.f32.mrf.mxu0
        %v1472 = vadd.f32 %v854, %v1471
        %v1473 = vpop.f32.mrf.mxu0
        %1474 = vmatprep.mubr.bf16.mxu0 0
        %1475 = vmatmul.mubr.bf16.gmra.mxu0 %v1408
        %v1476 = vpop.f32.mrf.mxu0
        %v1477 = vadd.f32 %v855, %v1476
        %v1478 = vpop.f32.mrf.mxu0
        %v1479 = vpop.f32.mrf.mxu0
        %v1480 = vadd.f32 %v856, %v1479
        %v1481 = vpop.f32.mrf.mxu0
        %1482 = vdwg.mxu0
        %1491 = vrot.lane.b32.xlu0 %v697, 96
        %v1492 = vpop.permute.xlu0 %1491
        %1493 = vrot.lane.b32.xlu0 %v698, 96
        %v1494 = vpop.permute.xlu0 %1493
        %1495 = vrot.lane.b32.xlu0 %v699, 96
        %v1496 = vpop.permute.xlu0 %1495
        %1497 = vrot.lane.b32.xlu0 %v700, 96
        %v1498 = vpop.permute.xlu0 %1497
        %1499 = vrot.lane.b32.xlu0 %v701, 96
        %v1500 = vpop.permute.xlu0 %1499
        %1501 = vrot.lane.b32.xlu0 %v702, 96
        %v1502 = vpop.permute.xlu0 %1501
        %1503 = vrot.lane.b32.xlu0 %v703, 96
        %v1504 = vpop.permute.xlu0 %1503
        %1505 = vrot.lane.b32.xlu0 %v704, 96
        %v1506 = vpop.permute.xlu0 %1505
        %v1508 = vsel %vm343, %v581, 0
        %v1511 = vsel %vm343, %v582, 0
        %v1514 = vsel %vm343, %v1492, 0
        %v1517 = vsel %vm343, %v1494, 0
        %v1520 = vsel %vm343, %v1496, 0
        %v1523 = vsel %vm343, %v1498, 0
        %v1526 = vsel %vm343, %v1500, 0
        %v1529 = vsel %vm343, %v1502, 0
        %v1532 = vsel %vm343, %v1504, 0
        %v1535 = vsel %vm343, %v1506, 0
        %1537 = vmatprep.subr.bf16.mxu0 0
        %1538 = vmatpush1.bf16.xpose.msra.mxu0 %v1535
        %1539 = vmatprep.subr.bf16.mxu0 0
        %1540 = vmatpush1.bf16.xpose.msra.mxu0 %v1532
        %1541 = vmatprep.subr.bf16.mxu0 0
        %1542 = vmatpush1.bf16.xpose.msra.mxu0 %v1529
        %1543 = vmatprep.subr.bf16.mxu0 0
        %1544 = vmatpush1.bf16.xpose.msra.mxu0 %v1526
        %1545 = vmatprep.subr.bf16.mxu0 0
        %1546 = vmatpush1.bf16.xpose.msra.mxu0 %v1523
        %1547 = vmatprep.subr.bf16.mxu0 0
        %1548 = vmatpush1.bf16.xpose.msra.mxu0 %v1520
        %1549 = vmatprep.subr.bf16.mxu0 0
        %1550 = vmatpush1.bf16.xpose.msra.mxu0 %v1517
        %1551 = vmatprep.subr.bf16.mxu0 0
        %1552 = vmatpush1.bf16.xpose.msra.mxu0 %v1514
        %1553 = vmatprep.subr.bf16.mxu0 0
        %1554 = vmatpush2.bf16.xpose.msra.mxu0 0
        %1555 = vmatprep.subr.bf16.mxu0 0
        %1556 = vmatpush2.bf16.xpose.msra.mxu0 0
        %1557 = vmatprep.subr.bf16.mxu0 0
        %1558 = vmatpush2.bf16.xpose.msra.mxu0 0
        %1559 = vmatprep.subr.bf16.mxu0 0
        %1560 = vmatpush2.bf16.xpose.msra.mxu0 0
        %1561 = vmatprep.subr.bf16.mxu0 0
        %1562 = vmatpush2.bf16.xpose.msra.mxu0 0
        %1563 = vmatprep.subr.bf16.mxu0 0
        %1564 = vmatpush2.bf16.xpose.msra.mxu0 0
        %1565 = vmatprep.subr.bf16.mxu0 0
        %1566 = vmatpush2.bf16.xpose.msra.mxu0 0
        %1567 = vmatprep.subr.bf16.mxu0 0
        %1568 = vmatpush2.bf16.xpose.msra.mxu0 0
        %1569 = vmatprep.mubr.bf16.mxu0 0
        %1570 = vmatmul.mubr.bf16.gmra.mxu0 %v1508
        %v1571 = vpop.f32.mrf.mxu0
        %v1572 = vadd.f32 %v857, %v1571
        %v1573 = vpop.f32.mrf.mxu0
        %v1574 = vpop.f32.mrf.mxu0
        %v1575 = vadd.f32 %v858, %v1574
        %v1576 = vpop.f32.mrf.mxu0
        %1577 = vmatprep.mubr.bf16.mxu0 0
        %1578 = vmatmul.mubr.bf16.gmra.mxu0 %v1511
        %v1579 = vpop.f32.mrf.mxu0
        %v1580 = vadd.f32 %v859, %v1579
        %v1581 = vpop.f32.mrf.mxu0
        %v1582 = vpop.f32.mrf.mxu0
        %v1583 = vadd.f32 %v860, %v1582
        %v1584 = vpop.f32.mrf.mxu0
        %1585 = vdwg.mxu0
        %1594 = vrot.lane.b32.xlu0 %v705, 96
        %v1595 = vpop.permute.xlu0 %1594
        %1596 = vrot.lane.b32.xlu0 %v706, 96
        %v1597 = vpop.permute.xlu0 %1596
        %1598 = vrot.lane.b32.xlu0 %v707, 96
        %v1599 = vpop.permute.xlu0 %1598
        %1600 = vrot.lane.b32.xlu0 %v708, 96
        %v1601 = vpop.permute.xlu0 %1600
        %1602 = vrot.lane.b32.xlu0 %v709, 96
        %v1603 = vpop.permute.xlu0 %1602
        %1604 = vrot.lane.b32.xlu0 %v710, 96
        %v1605 = vpop.permute.xlu0 %1604
        %1606 = vrot.lane.b32.xlu0 %v711, 96
        %v1607 = vpop.permute.xlu0 %1606
        %1608 = vrot.lane.b32.xlu0 %v712, 96
        %v1609 = vpop.permute.xlu0 %1608
        %v1611 = vsel %vm343, %v583, 0
        %v1614 = vsel %vm343, %v584, 0
        %v1617 = vsel %vm343, %v1595, 0
        %v1620 = vsel %vm343, %v1597, 0
        %v1623 = vsel %vm343, %v1599, 0
        %v1626 = vsel %vm343, %v1601, 0
        %v1629 = vsel %vm343, %v1603, 0
        %v1632 = vsel %vm343, %v1605, 0
        %v1635 = vsel %vm343, %v1607, 0
        %v1638 = vsel %vm343, %v1609, 0
        %1640 = vmatprep.subr.bf16.mxu0 0
        %1641 = vmatpush1.bf16.xpose.msra.mxu0 %v1638
        %1642 = vmatprep.subr.bf16.mxu0 0
        %1643 = vmatpush1.bf16.xpose.msra.mxu0 %v1635
        %1644 = vmatprep.subr.bf16.mxu0 0
        %1645 = vmatpush1.bf16.xpose.msra.mxu0 %v1632
        %1646 = vmatprep.subr.bf16.mxu0 0
        %1647 = vmatpush1.bf16.xpose.msra.mxu0 %v1629
        %1648 = vmatprep.subr.bf16.mxu0 0
        %1649 = vmatpush1.bf16.xpose.msra.mxu0 %v1626
        %1650 = vmatprep.subr.bf16.mxu0 0
        %1651 = vmatpush1.bf16.xpose.msra.mxu0 %v1623
        %1652 = vmatprep.subr.bf16.mxu0 0
        %1653 = vmatpush1.bf16.xpose.msra.mxu0 %v1620
        %1654 = vmatprep.subr.bf16.mxu0 0
        %1655 = vmatpush1.bf16.xpose.msra.mxu0 %v1617
        %1656 = vmatprep.subr.bf16.mxu0 0
        %1657 = vmatpush2.bf16.xpose.msra.mxu0 0
        %1658 = vmatprep.subr.bf16.mxu0 0
        %1659 = vmatpush2.bf16.xpose.msra.mxu0 0
        %1660 = vmatprep.subr.bf16.mxu0 0
        %1661 = vmatpush2.bf16.xpose.msra.mxu0 0
        %1662 = vmatprep.subr.bf16.mxu0 0
        %1663 = vmatpush2.bf16.xpose.msra.mxu0 0
        %1664 = vmatprep.subr.bf16.mxu0 0
        %1665 = vmatpush2.bf16.xpose.msra.mxu0 0
        %1666 = vmatprep.subr.bf16.mxu0 0
        %1667 = vmatpush2.bf16.xpose.msra.mxu0 0
        %1668 = vmatprep.subr.bf16.mxu0 0
        %1669 = vmatpush2.bf16.xpose.msra.mxu0 0
        %1670 = vmatprep.subr.bf16.mxu0 0
        %1671 = vmatpush2.bf16.xpose.msra.mxu0 0
        %1672 = vmatprep.mubr.bf16.mxu0 0
        %1673 = vmatmul.mubr.bf16.gmra.mxu0 %v1611
        %v1674 = vpop.f32.mrf.mxu0
        %v1675 = vadd.f32 %v861, %v1674
        %v1676 = vpop.f32.mrf.mxu0
        %v1677 = vpop.f32.mrf.mxu0
        %v1678 = vadd.f32 %v862, %v1677
        %v1679 = vpop.f32.mrf.mxu0
        %1680 = vmatprep.mubr.bf16.mxu0 0
        %1681 = vmatmul.mubr.bf16.gmra.mxu0 %v1614
        %v1682 = vpop.f32.mrf.mxu0
        %v1683 = vadd.f32 %v863, %v1682
        %v1684 = vpop.f32.mrf.mxu0
        %v1685 = vpop.f32.mrf.mxu0
        %v1686 = vadd.f32 %v864, %v1685
        %v1687 = vpop.f32.mrf.mxu0
        %1688 = vdwg.mxu0
        %v1689 = vsel %vm343, %v954, -inf
        %1690 = vmax.xlane.f32.xlu0 %v1689
        %v1691 = vpop.xlane.xlu0 %1690
        %v1692 = vsel %vm343, %v957, -inf
        %1693 = vmax.xlane.f32.xlu0 %v1692
        %v1694 = vpop.xlane.xlu0 %1693
        %v1695 = vsel %vm343, %v962, -inf
        %1696 = vmax.xlane.f32.xlu0 %v1695
        %v1697 = vpop.xlane.xlu0 %1696
        %v1698 = vsel %vm343, %v965, -inf
        %1699 = vmax.xlane.f32.xlu0 %v1698
        %v1700 = vpop.xlane.xlu0 %1699
        %v1701 = vsel %vm343, %v1057, -inf
        %1702 = vmax.xlane.f32.xlu0 %v1701
        %v1703 = vpop.xlane.xlu0 %1702
        %v1704 = vsel %vm343, %v1060, -inf
        %1705 = vmax.xlane.f32.xlu0 %v1704
        %v1706 = vpop.xlane.xlu0 %1705
        %v1707 = vsel %vm343, %v1065, -inf
        %1708 = vmax.xlane.f32.xlu0 %v1707
        %v1709 = vpop.xlane.xlu0 %1708
        %v1710 = vsel %vm343, %v1068, -inf
        %1711 = vmax.xlane.f32.xlu0 %v1710
        %v1712 = vpop.xlane.xlu0 %1711
        %v1713 = vsel %vm343, %v1160, -inf
        %1714 = vmax.xlane.f32.xlu0 %v1713
        %v1715 = vpop.xlane.xlu0 %1714
        %v1716 = vsel %vm343, %v1163, -inf
        %1717 = vmax.xlane.f32.xlu0 %v1716
        %v1718 = vpop.xlane.xlu0 %1717
        %v1719 = vsel %vm343, %v1168, -inf
        %1720 = vmax.xlane.f32.xlu0 %v1719
        %v1721 = vpop.xlane.xlu0 %1720
        %v1722 = vsel %vm343, %v1171, -inf
        %1723 = vmax.xlane.f32.xlu0 %v1722
        %v1724 = vpop.xlane.xlu0 %1723
        %v1725 = vsel %vm343, %v1263, -inf
        %1726 = vmax.xlane.f32.xlu0 %v1725
        %v1727 = vpop.xlane.xlu0 %1726
        %v1728 = vsel %vm343, %v1266, -inf
        %1729 = vmax.xlane.f32.xlu0 %v1728
        %v1730 = vpop.xlane.xlu0 %1729
        %v1731 = vsel %vm343, %v1271, -inf
        %1732 = vmax.xlane.f32.xlu0 %v1731
        %v1733 = vpop.xlane.xlu0 %1732
        %v1734 = vsel %vm343, %v1274, -inf
        %1735 = vmax.xlane.f32.xlu0 %v1734
        %v1736 = vpop.xlane.xlu0 %1735
        %v1737 = vsel %vm343, %v1366, -inf
        %1738 = vmax.xlane.f32.xlu0 %v1737
        %v1739 = vpop.xlane.xlu0 %1738
        %v1740 = vsel %vm343, %v1369, -inf
        %1741 = vmax.xlane.f32.xlu0 %v1740
        %v1742 = vpop.xlane.xlu0 %1741
        %v1743 = vsel %vm343, %v1374, -inf
        %1744 = vmax.xlane.f32.xlu0 %v1743
        %v1745 = vpop.xlane.xlu0 %1744
        %v1746 = vsel %vm343, %v1377, -inf
        %1747 = vmax.xlane.f32.xlu0 %v1746
        %v1748 = vpop.xlane.xlu0 %1747
        %v1749 = vsel %vm343, %v1469, -inf
        %1750 = vmax.xlane.f32.xlu0 %v1749
        %v1751 = vpop.xlane.xlu0 %1750
        %v1752 = vsel %vm343, %v1472, -inf
        %1753 = vmax.xlane.f32.xlu0 %v1752
        %v1754 = vpop.xlane.xlu0 %1753
        %v1755 = vsel %vm343, %v1477, -inf
        %1756 = vmax.xlane.f32.xlu0 %v1755
        %v1757 = vpop.xlane.xlu0 %1756
        %v1758 = vsel %vm343, %v1480, -inf
        %1759 = vmax.xlane.f32.xlu0 %v1758
        %v1760 = vpop.xlane.xlu0 %1759
        %v1761 = vsel %vm343, %v1572, -inf
        %1762 = vmax.xlane.f32.xlu0 %v1761
        %v1763 = vpop.xlane.xlu0 %1762
        %v1764 = vsel %vm343, %v1575, -inf
        %1765 = vmax.xlane.f32.xlu0 %v1764
        %v1766 = vpop.xlane.xlu0 %1765
        %v1767 = vsel %vm343, %v1580, -inf
        %1768 = vmax.xlane.f32.xlu0 %v1767
        %v1769 = vpop.xlane.xlu0 %1768
        %v1770 = vsel %vm343, %v1583, -inf
        %1771 = vmax.xlane.f32.xlu0 %v1770
        %v1772 = vpop.xlane.xlu0 %1771
        %v1773 = vsel %vm343, %v1675, -inf
        %1774 = vmax.xlane.f32.xlu0 %v1773
        %v1775 = vpop.xlane.xlu0 %1774
        %v1776 = vsel %vm343, %v1678, -inf
        %1777 = vmax.xlane.f32.xlu0 %v1776
        %v1778 = vpop.xlane.xlu0 %1777
        %v1779 = vsel %vm343, %v1683, -inf
        %1780 = vmax.xlane.f32.xlu0 %v1779
        %v1781 = vpop.xlane.xlu0 %1780
        %v1782 = vsel %vm343, %v1686, -inf
        %1783 = vmax.xlane.f32.xlu0 %v1782
        %v1784 = vpop.xlane.xlu0 %1783
        %v1785 = vsub.f32 %v954, %v1691
        %v1786 = vsub.f32 %v957, %v1694
        %v1787 = vsub.f32 %v962, %v1697
        %v1788 = vsub.f32 %v965, %v1700
        %v1789 = vsub.f32 %v1057, %v1703
        %v1790 = vsub.f32 %v1060, %v1706
        %v1791 = vsub.f32 %v1065, %v1709
        %v1792 = vsub.f32 %v1068, %v1712
        %v1793 = vsub.f32 %v1160, %v1715
        %v1794 = vsub.f32 %v1163, %v1718
        %v1795 = vsub.f32 %v1168, %v1721
        %v1796 = vsub.f32 %v1171, %v1724
        %v1797 = vsub.f32 %v1263, %v1727
        %v1798 = vsub.f32 %v1266, %v1730
        %v1799 = vsub.f32 %v1271, %v1733
        %v1800 = vsub.f32 %v1274, %v1736
        %v1801 = vsub.f32 %v1366, %v1739
        %v1802 = vsub.f32 %v1369, %v1742
        %v1803 = vsub.f32 %v1374, %v1745
        %v1804 = vsub.f32 %v1377, %v1748
        %v1805 = vsub.f32 %v1469, %v1751
        %v1806 = vsub.f32 %v1472, %v1754
        %v1807 = vsub.f32 %v1477, %v1757
        %v1808 = vsub.f32 %v1480, %v1760
        %v1809 = vsub.f32 %v1572, %v1763
        %v1810 = vsub.f32 %v1575, %v1766
        %v1811 = vsub.f32 %v1580, %v1769
        %v1812 = vsub.f32 %v1583, %v1772
        %v1813 = vsub.f32 %v1675, %v1775
        %v1814 = vsub.f32 %v1678, %v1778
        %v1815 = vsub.f32 %v1683, %v1781
        %v1816 = vsub.f32 %v1686, %v1784
        %v1817 = vmul.f32 %v1785, 1.442695
        %v1818 = vpow.pop %v1817
        %v1819 = vmul.f32 %v1786, 1.442695
        %v1820 = vpow.pop %v1819
        %v1821 = vmul.f32 %v1787, 1.442695
        %v1822 = vpow.pop %v1821
        %v1823 = vmul.f32 %v1788, 1.442695
        %v1824 = vpow.pop %v1823
        %v1825 = vmul.f32 %v1789, 1.442695
        %v1826 = vpow.pop %v1825
        %v1827 = vmul.f32 %v1790, 1.442695
        %v1828 = vpow.pop %v1827
        %v1829 = vmul.f32 %v1791, 1.442695
        %v1830 = vpow.pop %v1829
        %v1831 = vmul.f32 %v1792, 1.442695
        %v1832 = vpow.pop %v1831
        %v1833 = vmul.f32 %v1793, 1.442695
        %v1834 = vpow.pop %v1833
        %v1835 = vmul.f32 %v1794, 1.442695
        %v1836 = vpow.pop %v1835
        %v1837 = vmul.f32 %v1795, 1.442695
        %v1838 = vpow.pop %v1837
        %v1839 = vmul.f32 %v1796, 1.442695
        %v1840 = vpow.pop %v1839
        %v1841 = vmul.f32 %v1797, 1.442695
        %v1842 = vpow.pop %v1841
        %v1843 = vmul.f32 %v1798, 1.442695
        %v1844 = vpow.pop %v1843
        %v1845 = vmul.f32 %v1799, 1.442695
        %v1846 = vpow.pop %v1845
        %v1847 = vmul.f32 %v1800, 1.442695
        %v1848 = vpow.pop %v1847
        %v1849 = vmul.f32 %v1801, 1.442695
        %v1850 = vpow.pop %v1849
        %v1851 = vmul.f32 %v1802, 1.442695
        %v1852 = vpow.pop %v1851
        %v1853 = vmul.f32 %v1803, 1.442695
        %v1854 = vpow.pop %v1853
        %v1855 = vmul.f32 %v1804, 1.442695
        %v1856 = vpow.pop %v1855
        %v1857 = vmul.f32 %v1805, 1.442695
        %v1858 = vpow.pop %v1857
        %v1859 = vmul.f32 %v1806, 1.442695
        %v1860 = vpow.pop %v1859
        %v1861 = vmul.f32 %v1807, 1.442695
        %v1862 = vpow.pop %v1861
        %v1863 = vmul.f32 %v1808, 1.442695
        %v1864 = vpow.pop %v1863
        %v1865 = vmul.f32 %v1809, 1.442695
        %v1866 = vpow.pop %v1865
        %v1867 = vmul.f32 %v1810, 1.442695
        %v1868 = vpow.pop %v1867
        %v1869 = vmul.f32 %v1811, 1.442695
        %v1870 = vpow.pop %v1869
        %v1871 = vmul.f32 %v1812, 1.442695
        %v1872 = vpow.pop %v1871
        %v1873 = vmul.f32 %v1813, 1.442695
        %v1874 = vpow.pop %v1873
        %v1875 = vmul.f32 %v1814, 1.442695
        %v1876 = vpow.pop %v1875
        %v1877 = vmul.f32 %v1815, 1.442695
        %v1878 = vpow.pop %v1877
        %v1879 = vmul.f32 %v1816, 1.442695
        %v1880 = vpow.pop %v1879
        %vm1881 = vcmask 523520
        %v1882 = vsel %vm1881, %v954, -inf
        %1883 = vmax.xlane.f32.xlu0 %v1882
        %v1884 = vpop.xlane.xlu0 %1883
        %v1885 = vsel %vm1881, %v957, -inf
        %1886 = vmax.xlane.f32.xlu0 %v1885
        %v1887 = vpop.xlane.xlu0 %1886
        %v1888 = vsel %vm1881, %v962, -inf
        %1889 = vmax.xlane.f32.xlu0 %v1888
        %v1890 = vpop.xlane.xlu0 %1889
        %v1891 = vsel %vm1881, %v965, -inf
        %1892 = vmax.xlane.f32.xlu0 %v1891
        %v1893 = vpop.xlane.xlu0 %1892
        %v1894 = vsel %vm1881, %v1057, -inf
        %1895 = vmax.xlane.f32.xlu0 %v1894
        %v1896 = vpop.xlane.xlu0 %1895
        %v1897 = vsel %vm1881, %v1060, -inf
        %1898 = vmax.xlane.f32.xlu0 %v1897
        %v1899 = vpop.xlane.xlu0 %1898
        %v1900 = vsel %vm1881, %v1065, -inf
        %1901 = vmax.xlane.f32.xlu0 %v1900
        %v1902 = vpop.xlane.xlu0 %1901
        %v1903 = vsel %vm1881, %v1068, -inf
        %1904 = vmax.xlane.f32.xlu0 %v1903
        %v1905 = vpop.xlane.xlu0 %1904
        %v1906 = vsel %vm1881, %v1160, -inf
        %1907 = vmax.xlane.f32.xlu0 %v1906
        %v1908 = vpop.xlane.xlu0 %1907
        %v1909 = vsel %vm1881, %v1163, -inf
        %1910 = vmax.xlane.f32.xlu0 %v1909
        %v1911 = vpop.xlane.xlu0 %1910
        %v1912 = vsel %vm1881, %v1168, -inf
        %1913 = vmax.xlane.f32.xlu0 %v1912
        %v1914 = vpop.xlane.xlu0 %1913
        %v1915 = vsel %vm1881, %v1171, -inf
        %1916 = vmax.xlane.f32.xlu0 %v1915
        %v1917 = vpop.xlane.xlu0 %1916
        %v1918 = vsel %vm1881, %v1263, -inf
        %1919 = vmax.xlane.f32.xlu0 %v1918
        %v1920 = vpop.xlane.xlu0 %1919
        %v1921 = vsel %vm1881, %v1266, -inf
        %1922 = vmax.xlane.f32.xlu0 %v1921
        %v1923 = vpop.xlane.xlu0 %1922
        %v1924 = vsel %vm1881, %v1271, -inf
        %1925 = vmax.xlane.f32.xlu0 %v1924
        %v1926 = vpop.xlane.xlu0 %1925
        %v1927 = vsel %vm1881, %v1274, -inf
        %1928 = vmax.xlane.f32.xlu0 %v1927
        %v1929 = vpop.xlane.xlu0 %1928
        %v1930 = vsel %vm1881, %v1366, -inf
        %1931 = vmax.xlane.f32.xlu0 %v1930
        %v1932 = vpop.xlane.xlu0 %1931
        %v1933 = vsel %vm1881, %v1369, -inf
        %1934 = vmax.xlane.f32.xlu0 %v1933
        %v1935 = vpop.xlane.xlu0 %1934
        %v1936 = vsel %vm1881, %v1374, -inf
        %1937 = vmax.xlane.f32.xlu0 %v1936
        %v1938 = vpop.xlane.xlu0 %1937
        %v1939 = vsel %vm1881, %v1377, -inf
        %1940 = vmax.xlane.f32.xlu0 %v1939
        %v1941 = vpop.xlane.xlu0 %1940
        %v1942 = vsel %vm1881, %v1469, -inf
        %1943 = vmax.xlane.f32.xlu0 %v1942
        %v1944 = vpop.xlane.xlu0 %1943
        %v1945 = vsel %vm1881, %v1472, -inf
        %1946 = vmax.xlane.f32.xlu0 %v1945
        %v1947 = vpop.xlane.xlu0 %1946
        %v1948 = vsel %vm1881, %v1477, -inf
        %1949 = vmax.xlane.f32.xlu0 %v1948
        %v1950 = vpop.xlane.xlu0 %1949
        %v1951 = vsel %vm1881, %v1480, -inf
        %1952 = vmax.xlane.f32.xlu0 %v1951
        %v1953 = vpop.xlane.xlu0 %1952
        %v1954 = vsel %vm1881, %v1572, -inf
        %1955 = vmax.xlane.f32.xlu0 %v1954
        %v1956 = vpop.xlane.xlu0 %1955
        %v1957 = vsel %vm1881, %v1575, -inf
        %1958 = vmax.xlane.f32.xlu0 %v1957
        %v1959 = vpop.xlane.xlu0 %1958
        %v1960 = vsel %vm1881, %v1580, -inf
        %1961 = vmax.xlane.f32.xlu0 %v1960
        %v1962 = vpop.xlane.xlu0 %1961
        %v1963 = vsel %vm1881, %v1583, -inf
        %1964 = vmax.xlane.f32.xlu0 %v1963
        %v1965 = vpop.xlane.xlu0 %1964
        %v1966 = vsel %vm1881, %v1675, -inf
        %1967 = vmax.xlane.f32.xlu0 %v1966
        %v1968 = vpop.xlane.xlu0 %1967
        %v1969 = vsel %vm1881, %v1678, -inf
        %1970 = vmax.xlane.f32.xlu0 %v1969
        %v1971 = vpop.xlane.xlu0 %1970
        %v1972 = vsel %vm1881, %v1683, -inf
        %1973 = vmax.xlane.f32.xlu0 %v1972
        %v1974 = vpop.xlane.xlu0 %1973
        %v1975 = vsel %vm1881, %v1686, -inf
        %1976 = vmax.xlane.f32.xlu0 %v1975
        %v1977 = vpop.xlane.xlu0 %1976
        %v1978 = vsub.f32 %v954, %v1884
        %v1979 = vsub.f32 %v957, %v1887
        %v1980 = vsub.f32 %v962, %v1890
        %v1981 = vsub.f32 %v965, %v1893
        %v1982 = vsub.f32 %v1057, %v1896
        %v1983 = vsub.f32 %v1060, %v1899
        %v1984 = vsub.f32 %v1065, %v1902
        %v1985 = vsub.f32 %v1068, %v1905
        %v1986 = vsub.f32 %v1160, %v1908
        %v1987 = vsub.f32 %v1163, %v1911
        %v1988 = vsub.f32 %v1168, %v1914
        %v1989 = vsub.f32 %v1171, %v1917
        %v1990 = vsub.f32 %v1263, %v1920
        %v1991 = vsub.f32 %v1266, %v1923
        %v1992 = vsub.f32 %v1271, %v1926
        %v1993 = vsub.f32 %v1274, %v1929
        %v1994 = vsub.f32 %v1366, %v1932
        %v1995 = vsub.f32 %v1369, %v1935
        %v1996 = vsub.f32 %v1374, %v1938
        %v1997 = vsub.f32 %v1377, %v1941
        %v1998 = vsub.f32 %v1469, %v1944
        %v1999 = vsub.f32 %v1472, %v1947
        %v2000 = vsub.f32 %v1477, %v1950
        %v2001 = vsub.f32 %v1480, %v1953
        %v2002 = vsub.f32 %v1572, %v1956
        %v2003 = vsub.f32 %v1575, %v1959
        %v2004 = vsub.f32 %v1580, %v1962
        %v2005 = vsub.f32 %v1583, %v1965
        %v2006 = vsub.f32 %v1675, %v1968
        %v2007 = vsub.f32 %v1678, %v1971
        %v2008 = vsub.f32 %v1683, %v1974
        %v2009 = vsub.f32 %v1686, %v1977
        %v2010 = vmul.f32 %v1978, 1.442695
        %v2011 = vpow.pop %v2010
        %v2012 = vmul.f32 %v1979, 1.442695
        %v2013 = vpow.pop %v2012
        %v2014 = vmul.f32 %v1980, 1.442695
        %v2015 = vpow.pop %v2014
        %v2016 = vmul.f32 %v1981, 1.442695
        %v2017 = vpow.pop %v2016
        %v2018 = vmul.f32 %v1982, 1.442695
        %v2019 = vpow.pop %v2018
        %v2020 = vmul.f32 %v1983, 1.442695
        %v2021 = vpow.pop %v2020
        %v2022 = vmul.f32 %v1984, 1.442695
        %v2023 = vpow.pop %v2022
        %v2024 = vmul.f32 %v1985, 1.442695
        %v2025 = vpow.pop %v2024
        %v2026 = vmul.f32 %v1986, 1.442695
        %v2027 = vpow.pop %v2026
        %v2028 = vmul.f32 %v1987, 1.442695
        %v2029 = vpow.pop %v2028
        %v2030 = vmul.f32 %v1988, 1.442695
        %v2031 = vpow.pop %v2030
        %v2032 = vmul.f32 %v1989, 1.442695
        %v2033 = vpow.pop %v2032
        %v2034 = vmul.f32 %v1990, 1.442695
        %v2035 = vpow.pop %v2034
        %v2036 = vmul.f32 %v1991, 1.442695
        %v2037 = vpow.pop %v2036
        %v2038 = vmul.f32 %v1992, 1.442695
        %v2039 = vpow.pop %v2038
        %v2040 = vmul.f32 %v1993, 1.442695
        %v2041 = vpow.pop %v2040
        %v2042 = vmul.f32 %v1994, 1.442695
        %v2043 = vpow.pop %v2042
        %v2044 = vmul.f32 %v1995, 1.442695
        %v2045 = vpow.pop %v2044
        %v2046 = vmul.f32 %v1996, 1.442695
        %v2047 = vpow.pop %v2046
        %v2048 = vmul.f32 %v1997, 1.442695
        %v2049 = vpow.pop %v2048
        %v2050 = vmul.f32 %v1998, 1.442695
        %v2051 = vpow.pop %v2050
        %v2052 = vmul.f32 %v1999, 1.442695
        %v2053 = vpow.pop %v2052
        %v2054 = vmul.f32 %v2000, 1.442695
        %v2055 = vpow.pop %v2054
        %v2056 = vmul.f32 %v2001, 1.442695
        %v2057 = vpow.pop %v2056
        %v2058 = vmul.f32 %v2002, 1.442695
        %v2059 = vpow.pop %v2058
        %v2060 = vmul.f32 %v2003, 1.442695
        %v2061 = vpow.pop %v2060
        %v2062 = vmul.f32 %v2004, 1.442695
        %v2063 = vpow.pop %v2062
        %v2064 = vmul.f32 %v2005, 1.442695
        %v2065 = vpow.pop %v2064
        %v2066 = vmul.f32 %v2006, 1.442695
        %v2067 = vpow.pop %v2066
        %v2068 = vmul.f32 %v2007, 1.442695
        %v2069 = vpow.pop %v2068
        %v2070 = vmul.f32 %v2008, 1.442695
        %v2071 = vpow.pop %v2070
        %v2072 = vmul.f32 %v2009, 1.442695
        %v2073 = vpow.pop %v2072
        %vm2074 = vcmask 785920
        %v2075 = vsel %vm2074, %v954, -inf
        %2076 = vmax.xlane.f32.xlu0 %v2075
        %v2077 = vpop.xlane.xlu0 %2076
        %v2078 = vsel %vm2074, %v957, -inf
        %2079 = vmax.xlane.f32.xlu0 %v2078
        %v2080 = vpop.xlane.xlu0 %2079
        %v2081 = vsel %vm2074, %v962, -inf
        %2082 = vmax.xlane.f32.xlu0 %v2081
        %v2083 = vpop.xlane.xlu0 %2082
        %v2084 = vsel %vm2074, %v965, -inf
        %2085 = vmax.xlane.f32.xlu0 %v2084
        %v2086 = vpop.xlane.xlu0 %2085
        %v2087 = vsel %vm2074, %v1057, -inf
        %2088 = vmax.xlane.f32.xlu0 %v2087
        %v2089 = vpop.xlane.xlu0 %2088
        %v2090 = vsel %vm2074, %v1060, -inf
        %2091 = vmax.xlane.f32.xlu0 %v2090
        %v2092 = vpop.xlane.xlu0 %2091
        %v2093 = vsel %vm2074, %v1065, -inf
        %2094 = vmax.xlane.f32.xlu0 %v2093
        %v2095 = vpop.xlane.xlu0 %2094
        %v2096 = vsel %vm2074, %v1068, -inf
        %2097 = vmax.xlane.f32.xlu0 %v2096
        %v2098 = vpop.xlane.xlu0 %2097
        %v2099 = vsel %vm2074, %v1160, -inf
        %2100 = vmax.xlane.f32.xlu0 %v2099
        %v2101 = vpop.xlane.xlu0 %2100
        %v2102 = vsel %vm2074, %v1163, -inf
        %2103 = vmax.xlane.f32.xlu0 %v2102
        %v2104 = vpop.xlane.xlu0 %2103
        %v2105 = vsel %vm2074, %v1168, -inf
        %2106 = vmax.xlane.f32.xlu0 %v2105
        %v2107 = vpop.xlane.xlu0 %2106
        %v2108 = vsel %vm2074, %v1171, -inf
        %2109 = vmax.xlane.f32.xlu0 %v2108
        %v2110 = vpop.xlane.xlu0 %2109
        %v2111 = vsel %vm2074, %v1263, -inf
        %2112 = vmax.xlane.f32.xlu0 %v2111
        %v2113 = vpop.xlane.xlu0 %2112
        %v2114 = vsel %vm2074, %v1266, -inf
        %2115 = vmax.xlane.f32.xlu0 %v2114
        %v2116 = vpop.xlane.xlu0 %2115
        %v2117 = vsel %vm2074, %v1271, -inf
        %2118 = vmax.xlane.f32.xlu0 %v2117
        %v2119 = vpop.xlane.xlu0 %2118
        %v2120 = vsel %vm2074, %v1274, -inf
        %2121 = vmax.xlane.f32.xlu0 %v2120
        %v2122 = vpop.xlane.xlu0 %2121
        %v2123 = vsel %vm2074, %v1366, -inf
        %2124 = vmax.xlane.f32.xlu0 %v2123
        %v2125 = vpop.xlane.xlu0 %2124
        %v2126 = vsel %vm2074, %v1369, -inf
        %2127 = vmax.xlane.f32.xlu0 %v2126
        %v2128 = vpop.xlane.xlu0 %2127
        %v2129 = vsel %vm2074, %v1374, -inf
        %2130 = vmax.xlane.f32.xlu0 %v2129
        %v2131 = vpop.xlane.xlu0 %2130
        %v2132 = vsel %vm2074, %v1377, -inf
        %2133 = vmax.xlane.f32.xlu0 %v2132
        %v2134 = vpop.xlane.xlu0 %2133
        %v2135 = vsel %vm2074, %v1469, -inf
        %2136 = vmax.xlane.f32.xlu0 %v2135
        %v2137 = vpop.xlane.xlu0 %2136
        %v2138 = vsel %vm2074, %v1472, -inf
        %2139 = vmax.xlane.f32.xlu0 %v2138
        %v2140 = vpop.xlane.xlu0 %2139
        %v2141 = vsel %vm2074, %v1477, -inf
        %2142 = vmax.xlane.f32.xlu0 %v2141
        %v2143 = vpop.xlane.xlu0 %2142
        %v2144 = vsel %vm2074, %v1480, -inf
        %2145 = vmax.xlane.f32.xlu0 %v2144
        %v2146 = vpop.xlane.xlu0 %2145
        %v2147 = vsel %vm2074, %v1572, -inf
        %2148 = vmax.xlane.f32.xlu0 %v2147
        %v2149 = vpop.xlane.xlu0 %2148
        %v2150 = vsel %vm2074, %v1575, -inf
        %2151 = vmax.xlane.f32.xlu0 %v2150
        %v2152 = vpop.xlane.xlu0 %2151
        %v2153 = vsel %vm2074, %v1580, -inf
        %2154 = vmax.xlane.f32.xlu0 %v2153
        %v2155 = vpop.xlane.xlu0 %2154
        %v2156 = vsel %vm2074, %v1583, -inf
        %2157 = vmax.xlane.f32.xlu0 %v2156
        %v2158 = vpop.xlane.xlu0 %2157
        %v2159 = vsel %vm2074, %v1675, -inf
        %2160 = vmax.xlane.f32.xlu0 %v2159
        %v2161 = vpop.xlane.xlu0 %2160
        %v2162 = vsel %vm2074, %v1678, -inf
        %2163 = vmax.xlane.f32.xlu0 %v2162
        %v2164 = vpop.xlane.xlu0 %2163
        %v2165 = vsel %vm2074, %v1683, -inf
        %2166 = vmax.xlane.f32.xlu0 %v2165
        %v2167 = vpop.xlane.xlu0 %2166
        %v2168 = vsel %vm2074, %v1686, -inf
        %2169 = vmax.xlane.f32.xlu0 %v2168
        %v2170 = vpop.xlane.xlu0 %2169
        %v2171 = vsub.f32 %v954, %v2077
        %v2172 = vsub.f32 %v957, %v2080
        %v2173 = vsub.f32 %v962, %v2083
        %v2174 = vsub.f32 %v965, %v2086
        %v2175 = vsub.f32 %v1057, %v2089
        %v2176 = vsub.f32 %v1060, %v2092
        %v2177 = vsub.f32 %v1065, %v2095
        %v2178 = vsub.f32 %v1068, %v2098
        %v2179 = vsub.f32 %v1160, %v2101
        %v2180 = vsub.f32 %v1163, %v2104
        %v2181 = vsub.f32 %v1168, %v2107
        %v2182 = vsub.f32 %v1171, %v2110
        %v2183 = vsub.f32 %v1263, %v2113
        %v2184 = vsub.f32 %v1266, %v2116
        %v2185 = vsub.f32 %v1271, %v2119
        %v2186 = vsub.f32 %v1274, %v2122
        %v2187 = vsub.f32 %v1366, %v2125
        %v2188 = vsub.f32 %v1369, %v2128
        %v2189 = vsub.f32 %v1374, %v2131
        %v2190 = vsub.f32 %v1377, %v2134
        %v2191 = vsub.f32 %v1469, %v2137
        %v2192 = vsub.f32 %v1472, %v2140
        %v2193 = vsub.f32 %v1477, %v2143
        %v2194 = vsub.f32 %v1480, %v2146
        %v2195 = vsub.f32 %v1572, %v2149
        %v2196 = vsub.f32 %v1575, %v2152
        %v2197 = vsub.f32 %v1580, %v2155
        %v2198 = vsub.f32 %v1583, %v2158
        %v2199 = vsub.f32 %v1675, %v2161
        %v2200 = vsub.f32 %v1678, %v2164
        %v2201 = vsub.f32 %v1683, %v2167
        %v2202 = vsub.f32 %v1686, %v2170
        %v2203 = vmul.f32 %v2171, 1.442695
        %v2204 = vpow.pop %v2203
        %v2205 = vmul.f32 %v2172, 1.442695
        %v2206 = vpow.pop %v2205
        %v2207 = vmul.f32 %v2173, 1.442695
        %v2208 = vpow.pop %v2207
        %v2209 = vmul.f32 %v2174, 1.442695
        %v2210 = vpow.pop %v2209
        %v2211 = vmul.f32 %v2175, 1.442695
        %v2212 = vpow.pop %v2211
        %v2213 = vmul.f32 %v2176, 1.442695
        %v2214 = vpow.pop %v2213
        %v2215 = vmul.f32 %v2177, 1.442695
        %v2216 = vpow.pop %v2215
        %v2217 = vmul.f32 %v2178, 1.442695
        %v2218 = vpow.pop %v2217
        %v2219 = vmul.f32 %v2179, 1.442695
        %v2220 = vpow.pop %v2219
        %v2221 = vmul.f32 %v2180, 1.442695
        %v2222 = vpow.pop %v2221
        %v2223 = vmul.f32 %v2181, 1.442695
        %v2224 = vpow.pop %v2223
        %v2225 = vmul.f32 %v2182, 1.442695
        %v2226 = vpow.pop %v2225
        %v2227 = vmul.f32 %v2183, 1.442695
        %v2228 = vpow.pop %v2227
        %v2229 = vmul.f32 %v2184, 1.442695
        %v2230 = vpow.pop %v2229
        %v2231 = vmul.f32 %v2185, 1.442695
        %v2232 = vpow.pop %v2231
        %v2233 = vmul.f32 %v2186, 1.442695
        %v2234 = vpow.pop %v2233
        %v2235 = vmul.f32 %v2187, 1.442695
        %v2236 = vpow.pop %v2235
        %v2237 = vmul.f32 %v2188, 1.442695
        %v2238 = vpow.pop %v2237
        %v2239 = vmul.f32 %v2189, 1.442695
        %v2240 = vpow.pop %v2239
        %v2241 = vmul.f32 %v2190, 1.442695
        %v2242 = vpow.pop %v2241
        %v2243 = vmul.f32 %v2191, 1.442695
        %v2244 = vpow.pop %v2243
        %v2245 = vmul.f32 %v2192, 1.442695
        %v2246 = vpow.pop %v2245
        %v2247 = vmul.f32 %v2193, 1.442695
        %v2248 = vpow.pop %v2247
        %v2249 = vmul.f32 %v2194, 1.442695
        %v2250 = vpow.pop %v2249
        %v2251 = vmul.f32 %v2195, 1.442695
        %v2252 = vpow.pop %v2251
        %v2253 = vmul.f32 %v2196, 1.442695
        %v2254 = vpow.pop %v2253
        %v2255 = vmul.f32 %v2197, 1.442695
        %v2256 = vpow.pop %v2255
        %v2257 = vmul.f32 %v2198, 1.442695
        %v2258 = vpow.pop %v2257
        %v2259 = vmul.f32 %v2199, 1.442695
        %v2260 = vpow.pop %v2259
        %v2261 = vmul.f32 %v2200, 1.442695
        %v2262 = vpow.pop %v2261
        %v2263 = vmul.f32 %v2201, 1.442695
        %v2264 = vpow.pop %v2263
        %v2265 = vmul.f32 %v2202, 1.442695
        %v2266 = vpow.pop %v2265
        %vm2267 = vcmask 1048320
        %v2268 = vsel %vm2267, %v954, -inf
        %2269 = vmax.xlane.f32.xlu0 %v2268
        %v2270 = vpop.xlane.xlu0 %2269
        %v2271 = vsel %vm2267, %v957, -inf
        %2272 = vmax.xlane.f32.xlu0 %v2271
        %v2273 = vpop.xlane.xlu0 %2272
        %v2274 = vsel %vm2267, %v962, -inf
        %2275 = vmax.xlane.f32.xlu0 %v2274
        %v2276 = vpop.xlane.xlu0 %2275
        %v2277 = vsel %vm2267, %v965, -inf
        %2278 = vmax.xlane.f32.xlu0 %v2277
        %v2279 = vpop.xlane.xlu0 %2278
        %v2280 = vsel %vm2267, %v1057, -inf
        %2281 = vmax.xlane.f32.xlu0 %v2280
        %v2282 = vpop.xlane.xlu0 %2281
        %v2283 = vsel %vm2267, %v1060, -inf
        %2284 = vmax.xlane.f32.xlu0 %v2283
        %v2285 = vpop.xlane.xlu0 %2284
        %v2286 = vsel %vm2267, %v1065, -inf
        %2287 = vmax.xlane.f32.xlu0 %v2286
        %v2288 = vpop.xlane.xlu0 %2287
        %v2289 = vsel %vm2267, %v1068, -inf
        %2290 = vmax.xlane.f32.xlu0 %v2289
        %v2291 = vpop.xlane.xlu0 %2290
        %v2292 = vsel %vm2267, %v1160, -inf
        %2293 = vmax.xlane.f32.xlu0 %v2292
        %v2294 = vpop.xlane.xlu0 %2293
        %v2295 = vsel %vm2267, %v1163, -inf
        %2296 = vmax.xlane.f32.xlu0 %v2295
        %v2297 = vpop.xlane.xlu0 %2296
        %v2298 = vsel %vm2267, %v1168, -inf
        %2299 = vmax.xlane.f32.xlu0 %v2298
        %v2300 = vpop.xlane.xlu0 %2299
        %v2301 = vsel %vm2267, %v1171, -inf
        %2302 = vmax.xlane.f32.xlu0 %v2301
        %v2303 = vpop.xlane.xlu0 %2302
        %v2304 = vsel %vm2267, %v1263, -inf
        %2305 = vmax.xlane.f32.xlu0 %v2304
        %v2306 = vpop.xlane.xlu0 %2305
        %v2307 = vsel %vm2267, %v1266, -inf
        %2308 = vmax.xlane.f32.xlu0 %v2307
        %v2309 = vpop.xlane.xlu0 %2308
        %v2310 = vsel %vm2267, %v1271, -inf
        %2311 = vmax.xlane.f32.xlu0 %v2310
        %v2312 = vpop.xlane.xlu0 %2311
        %v2313 = vsel %vm2267, %v1274, -inf
        %2314 = vmax.xlane.f32.xlu0 %v2313
        %v2315 = vpop.xlane.xlu0 %2314
        %v2316 = vsel %vm2267, %v1366, -inf
        %2317 = vmax.xlane.f32.xlu0 %v2316
        %v2318 = vpop.xlane.xlu0 %2317
        %v2319 = vsel %vm2267, %v1369, -inf
        %2320 = vmax.xlane.f32.xlu0 %v2319
        %v2321 = vpop.xlane.xlu0 %2320
        %v2322 = vsel %vm2267, %v1374, -inf
        %2323 = vmax.xlane.f32.xlu0 %v2322
        %v2324 = vpop.xlane.xlu0 %2323
        %v2325 = vsel %vm2267, %v1377, -inf
        %2326 = vmax.xlane.f32.xlu0 %v2325
        %v2327 = vpop.xlane.xlu0 %2326
        %v2328 = vsel %vm2267, %v1469, -inf
        %2329 = vmax.xlane.f32.xlu0 %v2328
        %v2330 = vpop.xlane.xlu0 %2329
        %v2331 = vsel %vm2267, %v1472, -inf
        %2332 = vmax.xlane.f32.xlu0 %v2331
        %v2333 = vpop.xlane.xlu0 %2332
        %v2334 = vsel %vm2267, %v1477, -inf
        %2335 = vmax.xlane.f32.xlu0 %v2334
        %v2336 = vpop.xlane.xlu0 %2335
        %v2337 = vsel %vm2267, %v1480, -inf
        %2338 = vmax.xlane.f32.xlu0 %v2337
        %v2339 = vpop.xlane.xlu0 %2338
        %v2340 = vsel %vm2267, %v1572, -inf
        %2341 = vmax.xlane.f32.xlu0 %v2340
        %v2342 = vpop.xlane.xlu0 %2341
        %v2343 = vsel %vm2267, %v1575, -inf
        %2344 = vmax.xlane.f32.xlu0 %v2343
        %v2345 = vpop.xlane.xlu0 %2344
        %v2346 = vsel %vm2267, %v1580, -inf
        %2347 = vmax.xlane.f32.xlu0 %v2346
        %v2348 = vpop.xlane.xlu0 %2347
        %v2349 = vsel %vm2267, %v1583, -inf
        %2350 = vmax.xlane.f32.xlu0 %v2349
        %v2351 = vpop.xlane.xlu0 %2350
        %v2352 = vsel %vm2267, %v1675, -inf
        %2353 = vmax.xlane.f32.xlu0 %v2352
        %v2354 = vpop.xlane.xlu0 %2353
        %v2355 = vsel %vm2267, %v1678, -inf
        %2356 = vmax.xlane.f32.xlu0 %v2355
        %v2357 = vpop.xlane.xlu0 %2356
        %v2358 = vsel %vm2267, %v1683, -inf
        %2359 = vmax.xlane.f32.xlu0 %v2358
        %v2360 = vpop.xlane.xlu0 %2359
        %v2361 = vsel %vm2267, %v1686, -inf
        %2362 = vmax.xlane.f32.xlu0 %v2361
        %v2363 = vpop.xlane.xlu0 %2362
        %v2364 = vsub.f32 %v954, %v2270
        %v2365 = vsub.f32 %v957, %v2273
        %v2366 = vsub.f32 %v962, %v2276
        %v2367 = vsub.f32 %v965, %v2279
        %v2368 = vsub.f32 %v1057, %v2282
        %v2369 = vsub.f32 %v1060, %v2285
        %v2370 = vsub.f32 %v1065, %v2288
        %v2371 = vsub.f32 %v1068, %v2291
        %v2372 = vsub.f32 %v1160, %v2294
        %v2373 = vsub.f32 %v1163, %v2297
        %v2374 = vsub.f32 %v1168, %v2300
        %v2375 = vsub.f32 %v1171, %v2303
        %v2376 = vsub.f32 %v1263, %v2306
        %v2377 = vsub.f32 %v1266, %v2309
        %v2378 = vsub.f32 %v1271, %v2312
        %v2379 = vsub.f32 %v1274, %v2315
        %v2380 = vsub.f32 %v1366, %v2318
        %v2381 = vsub.f32 %v1369, %v2321
        %v2382 = vsub.f32 %v1374, %v2324
        %v2383 = vsub.f32 %v1377, %v2327
        %v2384 = vsub.f32 %v1469, %v2330
        %v2385 = vsub.f32 %v1472, %v2333
        %v2386 = vsub.f32 %v1477, %v2336
        %v2387 = vsub.f32 %v1480, %v2339
        %v2388 = vsub.f32 %v1572, %v2342
        %v2389 = vsub.f32 %v1575, %v2345
        %v2390 = vsub.f32 %v1580, %v2348
        %v2391 = vsub.f32 %v1583, %v2351
        %v2392 = vsub.f32 %v1675, %v2354
        %v2393 = vsub.f32 %v1678, %v2357
        %v2394 = vsub.f32 %v1683, %v2360
        %v2395 = vsub.f32 %v1686, %v2363
        %v2396 = vmul.f32 %v2364, 1.442695
        %v2397 = vpow.pop %v2396
        %v2398 = vmul.f32 %v2365, 1.442695
        %v2399 = vpow.pop %v2398
        %v2400 = vmul.f32 %v2366, 1.442695
        %v2401 = vpow.pop %v2400
        %v2402 = vmul.f32 %v2367, 1.442695
        %v2403 = vpow.pop %v2402
        %v2404 = vmul.f32 %v2368, 1.442695
        %v2405 = vpow.pop %v2404
        %v2406 = vmul.f32 %v2369, 1.442695
        %v2407 = vpow.pop %v2406
        %v2408 = vmul.f32 %v2370, 1.442695
        %v2409 = vpow.pop %v2408
        %v2410 = vmul.f32 %v2371, 1.442695
        %v2411 = vpow.pop %v2410
        %v2412 = vmul.f32 %v2372, 1.442695
        %v2413 = vpow.pop %v2412
        %v2414 = vmul.f32 %v2373, 1.442695
        %v2415 = vpow.pop %v2414
        %v2416 = vmul.f32 %v2374, 1.442695
        %v2417 = vpow.pop %v2416
        %v2418 = vmul.f32 %v2375, 1.442695
        %v2419 = vpow.pop %v2418
        %v2420 = vmul.f32 %v2376, 1.442695
        %v2421 = vpow.pop %v2420
        %v2422 = vmul.f32 %v2377, 1.442695
        %v2423 = vpow.pop %v2422
        %v2424 = vmul.f32 %v2378, 1.442695
        %v2425 = vpow.pop %v2424
        %v2426 = vmul.f32 %v2379, 1.442695
        %v2427 = vpow.pop %v2426
        %v2428 = vmul.f32 %v2380, 1.442695
        %v2429 = vpow.pop %v2428
        %v2430 = vmul.f32 %v2381, 1.442695
        %v2431 = vpow.pop %v2430
        %v2432 = vmul.f32 %v2382, 1.442695
        %v2433 = vpow.pop %v2432
        %v2434 = vmul.f32 %v2383, 1.442695
        %v2435 = vpow.pop %v2434
        %v2436 = vmul.f32 %v2384, 1.442695
        %v2437 = vpow.pop %v2436
        %v2438 = vmul.f32 %v2385, 1.442695
        %v2439 = vpow.pop %v2438
        %v2440 = vmul.f32 %v2386, 1.442695
        %v2441 = vpow.pop %v2440
        %v2442 = vmul.f32 %v2387, 1.442695
        %v2443 = vpow.pop %v2442
        %v2444 = vmul.f32 %v2388, 1.442695
        %v2445 = vpow.pop %v2444
        %v2446 = vmul.f32 %v2389, 1.442695
        %v2447 = vpow.pop %v2446
        %v2448 = vmul.f32 %v2390, 1.442695
        %v2449 = vpow.pop %v2448
        %v2450 = vmul.f32 %v2391, 1.442695
        %v2451 = vpow.pop %v2450
        %v2452 = vmul.f32 %v2392, 1.442695
        %v2453 = vpow.pop %v2452
        %v2454 = vmul.f32 %v2393, 1.442695
        %v2455 = vpow.pop %v2454
        %v2456 = vmul.f32 %v2394, 1.442695
        %v2457 = vpow.pop %v2456
        %v2458 = vmul.f32 %v2395, 1.442695
        %v2459 = vpow.pop %v2458
        %v2460 = vsel %vm343, %v1818, %v2011
        %v2461 = vsel %vm343, %v1820, %v2013
        %v2462 = vsel %vm343, %v1822, %v2015
        %v2463 = vsel %vm343, %v1824, %v2017
        %v2464 = vsel %vm343, %v1826, %v2019
        %v2465 = vsel %vm343, %v1828, %v2021
        %v2466 = vsel %vm343, %v1830, %v2023
        %v2467 = vsel %vm343, %v1832, %v2025
        %v2468 = vsel %vm343, %v1834, %v2027
        %v2469 = vsel %vm343, %v1836, %v2029
        %v2470 = vsel %vm343, %v1838, %v2031
        %v2471 = vsel %vm343, %v1840, %v2033
        %v2472 = vsel %vm343, %v1842, %v2035
        %v2473 = vsel %vm343, %v1844, %v2037
        %v2474 = vsel %vm343, %v1846, %v2039
        %v2475 = vsel %vm343, %v1848, %v2041
        %v2476 = vsel %vm343, %v1850, %v2043
        %v2477 = vsel %vm343, %v1852, %v2045
        %v2478 = vsel %vm343, %v1854, %v2047
        %v2479 = vsel %vm343, %v1856, %v2049
        %v2480 = vsel %vm343, %v1858, %v2051
        %v2481 = vsel %vm343, %v1860, %v2053
        %v2482 = vsel %vm343, %v1862, %v2055
        %v2483 = vsel %vm343, %v1864, %v2057
        %v2484 = vsel %vm343, %v1866, %v2059
        %v2485 = vsel %vm343, %v1868, %v2061
        %v2486 = vsel %vm343, %v1870, %v2063
        %v2487 = vsel %vm343, %v1872, %v2065
        %v2488 = vsel %vm343, %v1874, %v2067
        %v2489 = vsel %vm343, %v1876, %v2069
        %v2490 = vsel %vm343, %v1878, %v2071
        %v2491 = vsel %vm343, %v1880, %v2073
        %vm2492 = vcmask 523264
        %v2493 = vsel %vm2492, %v2460, %v2204
        %v2494 = vsel %vm2492, %v2461, %v2206
        %v2495 = vsel %vm2492, %v2462, %v2208
        %v2496 = vsel %vm2492, %v2463, %v2210
        %v2497 = vsel %vm2492, %v2464, %v2212
        %v2498 = vsel %vm2492, %v2465, %v2214
        %v2499 = vsel %vm2492, %v2466, %v2216
        %v2500 = vsel %vm2492, %v2467, %v2218
        %v2501 = vsel %vm2492, %v2468, %v2220
        %v2502 = vsel %vm2492, %v2469, %v2222
        %v2503 = vsel %vm2492, %v2470, %v2224
        %v2504 = vsel %vm2492, %v2471, %v2226
        %v2505 = vsel %vm2492, %v2472, %v2228
        %v2506 = vsel %vm2492, %v2473, %v2230
        %v2507 = vsel %vm2492, %v2474, %v2232
        %v2508 = vsel %vm2492, %v2475, %v2234
        %v2509 = vsel %vm2492, %v2476, %v2236
        %v2510 = vsel %vm2492, %v2477, %v2238
        %v2511 = vsel %vm2492, %v2478, %v2240
        %v2512 = vsel %vm2492, %v2479, %v2242
        %v2513 = vsel %vm2492, %v2480, %v2244
        %v2514 = vsel %vm2492, %v2481, %v2246
        %v2515 = vsel %vm2492, %v2482, %v2248
        %v2516 = vsel %vm2492, %v2483, %v2250
        %v2517 = vsel %vm2492, %v2484, %v2252
        %v2518 = vsel %vm2492, %v2485, %v2254
        %v2519 = vsel %vm2492, %v2486, %v2256
        %v2520 = vsel %vm2492, %v2487, %v2258
        %v2521 = vsel %vm2492, %v2488, %v2260
        %v2522 = vsel %vm2492, %v2489, %v2262
        %v2523 = vsel %vm2492, %v2490, %v2264
        %v2524 = vsel %vm2492, %v2491, %v2266
        %vm2525 = vcmask 785408
        %v2526 = vsel %vm2525, %v2493, %v2397
        %v2527 = vsel %vm2525, %v2494, %v2399
        %v2528 = vsel %vm2525, %v2495, %v2401
        %v2529 = vsel %vm2525, %v2496, %v2403
        %v2530 = vsel %vm2525, %v2497, %v2405
        %v2531 = vsel %vm2525, %v2498, %v2407
        %v2532 = vsel %vm2525, %v2499, %v2409
        %v2533 = vsel %vm2525, %v2500, %v2411
        %v2534 = vsel %vm2525, %v2501, %v2413
        %v2535 = vsel %vm2525, %v2502, %v2415
        %v2536 = vsel %vm2525, %v2503, %v2417
        %v2537 = vsel %vm2525, %v2504, %v2419
        %v2538 = vsel %vm2525, %v2505, %v2421
        %v2539 = vsel %vm2525, %v2506, %v2423
        %v2540 = vsel %vm2525, %v2507, %v2425
        %v2541 = vsel %vm2525, %v2508, %v2427
        %v2542 = vsel %vm2525, %v2509, %v2429
        %v2543 = vsel %vm2525, %v2510, %v2431
        %v2544 = vsel %vm2525, %v2511, %v2433
        %v2545 = vsel %vm2525, %v2512, %v2435
        %v2546 = vsel %vm2525, %v2513, %v2437
        %v2547 = vsel %vm2525, %v2514, %v2439
        %v2548 = vsel %vm2525, %v2515, %v2441
        %v2549 = vsel %vm2525, %v2516, %v2443
        %v2550 = vsel %vm2525, %v2517, %v2445
        %v2551 = vsel %vm2525, %v2518, %v2447
        %v2552 = vsel %vm2525, %v2519, %v2449
        %v2553 = vsel %vm2525, %v2520, %v2451
        %v2554 = vsel %vm2525, %v2521, %v2453
        %v2555 = vsel %vm2525, %v2522, %v2455
        %v2556 = vsel %vm2525, %v2523, %v2457
        %v2557 = vsel %vm2525, %v2524, %v2459
        %v2558 = vpack.c.bf16 %v2527, %v2526
        %v2559 = vpack.c.bf16 %v2529, %v2528
        %v2560 = vpack.c.bf16 %v2531, %v2530
        %v2561 = vpack.c.bf16 %v2533, %v2532
        %v2562 = vpack.c.bf16 %v2535, %v2534
        %v2563 = vpack.c.bf16 %v2537, %v2536
        %v2564 = vpack.c.bf16 %v2539, %v2538
        %v2565 = vpack.c.bf16 %v2541, %v2540
        %v2566 = vpack.c.bf16 %v2543, %v2542
        %v2567 = vpack.c.bf16 %v2545, %v2544
        %v2568 = vpack.c.bf16 %v2547, %v2546
        %v2569 = vpack.c.bf16 %v2549, %v2548
        %v2570 = vpack.c.bf16 %v2551, %v2550
        %v2571 = vpack.c.bf16 %v2553, %v2552
        %v2572 = vpack.c.bf16 %v2555, %v2554
        %v2573 = vpack.c.bf16 %v2557, %v2556
        %2582 = vrot.lane.b32.xlu0 %v737, 64
        %v2583 = vpop.permute.xlu0 %2582
        %2584 = vrot.lane.b32.xlu0 %v738, 64
        %v2585 = vpop.permute.xlu0 %2584
        %2586 = vrot.lane.b32.xlu0 %v739, 64
        %v2587 = vpop.permute.xlu0 %2586
        %2588 = vrot.lane.b32.xlu0 %v740, 64
        %v2589 = vpop.permute.xlu0 %2588
        %2590 = vrot.lane.b32.xlu0 %v741, 64
        %v2591 = vpop.permute.xlu0 %2590
        %2592 = vrot.lane.b32.xlu0 %v742, 64
        %v2593 = vpop.permute.xlu0 %2592
        %2594 = vrot.lane.b32.xlu0 %v743, 64
        %v2595 = vpop.permute.xlu0 %2594
        %2596 = vrot.lane.b32.xlu0 %v744, 64
        %v2597 = vpop.permute.xlu0 %2596
        %2606 = vmatprep.subr.bf16.mxu0 0
        %2607 = vmatpush1.bf16.msra.mxu0 %v2597
        %2608 = vmatprep.subr.bf16.mxu0 0
        %2609 = vmatpush1.bf16.msra.mxu0 %v2595
        %2610 = vmatprep.subr.bf16.mxu0 0
        %2611 = vmatpush1.bf16.msra.mxu0 %v2593
        %2612 = vmatprep.subr.bf16.mxu0 0
        %2613 = vmatpush1.bf16.msra.mxu0 %v2591
        %2614 = vmatprep.subr.bf16.mxu0 0
        %2615 = vmatpush1.bf16.msra.mxu0 %v2589
        %2616 = vmatprep.subr.bf16.mxu0 0
        %2617 = vmatpush1.bf16.msra.mxu0 %v2587
        %2618 = vmatprep.subr.bf16.mxu0 0
        %2619 = vmatpush1.bf16.msra.mxu0 %v2585
        %2620 = vmatprep.subr.bf16.mxu0 0
        %2621 = vmatpush1.bf16.msra.mxu0 %v2583
        %2622 = vmatprep.subr.bf16.mxu0 0
        %2623 = vmatpush2.bf16.msra.mxu0 0
        %2624 = vmatprep.subr.bf16.mxu0 0
        %2625 = vmatpush2.bf16.msra.mxu0 0
        %2626 = vmatprep.subr.bf16.mxu0 0
        %2627 = vmatpush2.bf16.msra.mxu0 0
        %2628 = vmatprep.subr.bf16.mxu0 0
        %2629 = vmatpush2.bf16.msra.mxu0 0
        %2630 = vmatprep.subr.bf16.mxu0 0
        %2631 = vmatpush2.bf16.msra.mxu0 0
        %2632 = vmatprep.subr.bf16.mxu0 0
        %2633 = vmatpush2.bf16.msra.mxu0 0
        %2634 = vmatprep.subr.bf16.mxu0 0
        %2635 = vmatpush2.bf16.msra.mxu0 0
        %2636 = vmatprep.subr.bf16.mxu0 0
        %2637 = vmatpush2.bf16.msra.mxu0 0
        %2638 = vmatprep.mubr.bf16.mxu0 0
        %2639 = vmatmul.mubr.bf16.gmra.mxu0 %v2558
        %v2640 = vpop.f32.mrf.mxu0
        %v2641 = vadd.f32 0.0, %v2640
        %v2642 = vpop.f32.mrf.mxu0
        %v2643 = vpop.f32.mrf.mxu0
        %v2644 = vadd.f32 0.0, %v2643
        %v2645 = vpop.f32.mrf.mxu0
        %2646 = vmatprep.mubr.bf16.mxu0 0
        %2647 = vmatmul.mubr.bf16.gmra.mxu0 %v2559
        %v2648 = vpop.f32.mrf.mxu0
        %v2649 = vadd.f32 0.0, %v2648
        %v2650 = vpop.f32.mrf.mxu0
        %v2651 = vpop.f32.mrf.mxu0
        %v2652 = vadd.f32 0.0, %v2651
        %v2653 = vpop.f32.mrf.mxu0
        %2654 = vdwg.mxu0
        %2663 = vrot.lane.b32.xlu0 %v745, 64
        %v2664 = vpop.permute.xlu0 %2663
        %2665 = vrot.lane.b32.xlu0 %v746, 64
        %v2666 = vpop.permute.xlu0 %2665
        %2667 = vrot.lane.b32.xlu0 %v747, 64
        %v2668 = vpop.permute.xlu0 %2667
        %2669 = vrot.lane.b32.xlu0 %v748, 64
        %v2670 = vpop.permute.xlu0 %2669
        %2671 = vrot.lane.b32.xlu0 %v749, 64
        %v2672 = vpop.permute.xlu0 %2671
        %2673 = vrot.lane.b32.xlu0 %v750, 64
        %v2674 = vpop.permute.xlu0 %2673
        %2675 = vrot.lane.b32.xlu0 %v751, 64
        %v2676 = vpop.permute.xlu0 %2675
        %2677 = vrot.lane.b32.xlu0 %v752, 64
        %v2678 = vpop.permute.xlu0 %2677
        %2687 = vmatprep.subr.bf16.mxu0 0
        %2688 = vmatpush1.bf16.msra.mxu0 %v2678
        %2689 = vmatprep.subr.bf16.mxu0 0
        %2690 = vmatpush1.bf16.msra.mxu0 %v2676
        %2691 = vmatprep.subr.bf16.mxu0 0
        %2692 = vmatpush1.bf16.msra.mxu0 %v2674
        %2693 = vmatprep.subr.bf16.mxu0 0
        %2694 = vmatpush1.bf16.msra.mxu0 %v2672
        %2695 = vmatprep.subr.bf16.mxu0 0
        %2696 = vmatpush1.bf16.msra.mxu0 %v2670
        %2697 = vmatprep.subr.bf16.mxu0 0
        %2698 = vmatpush1.bf16.msra.mxu0 %v2668
        %2699 = vmatprep.subr.bf16.mxu0 0
        %2700 = vmatpush1.bf16.msra.mxu0 %v2666
        %2701 = vmatprep.subr.bf16.mxu0 0
        %2702 = vmatpush1.bf16.msra.mxu0 %v2664
        %2703 = vmatprep.subr.bf16.mxu0 0
        %2704 = vmatpush2.bf16.msra.mxu0 0
        %2705 = vmatprep.subr.bf16.mxu0 0
        %2706 = vmatpush2.bf16.msra.mxu0 0
        %2707 = vmatprep.subr.bf16.mxu0 0
        %2708 = vmatpush2.bf16.msra.mxu0 0
        %2709 = vmatprep.subr.bf16.mxu0 0
        %2710 = vmatpush2.bf16.msra.mxu0 0
        %2711 = vmatprep.subr.bf16.mxu0 0
        %2712 = vmatpush2.bf16.msra.mxu0 0
        %2713 = vmatprep.subr.bf16.mxu0 0
        %2714 = vmatpush2.bf16.msra.mxu0 0
        %2715 = vmatprep.subr.bf16.mxu0 0
        %2716 = vmatpush2.bf16.msra.mxu0 0
        %2717 = vmatprep.subr.bf16.mxu0 0
        %2718 = vmatpush2.bf16.msra.mxu0 0
        %2719 = vmatprep.mubr.bf16.mxu0 0
        %2720 = vmatmul.mubr.bf16.gmra.mxu0 %v2560
        %v2721 = vpop.f32.mrf.mxu0
        %v2722 = vadd.f32 0.0, %v2721
        %v2723 = vpop.f32.mrf.mxu0
        %v2724 = vpop.f32.mrf.mxu0
        %v2725 = vadd.f32 0.0, %v2724
        %v2726 = vpop.f32.mrf.mxu0
        %2727 = vmatprep.mubr.bf16.mxu0 0
        %2728 = vmatmul.mubr.bf16.gmra.mxu0 %v2561
        %v2729 = vpop.f32.mrf.mxu0
        %v2730 = vadd.f32 0.0, %v2729
        %v2731 = vpop.f32.mrf.mxu0
        %v2732 = vpop.f32.mrf.mxu0
        %v2733 = vadd.f32 0.0, %v2732
        %v2734 = vpop.f32.mrf.mxu0
        %2735 = vdwg.mxu0
        %2744 = vrot.lane.b32.xlu0 %v753, 64
        %v2745 = vpop.permute.xlu0 %2744
        %2746 = vrot.lane.b32.xlu0 %v754, 64
        %v2747 = vpop.permute.xlu0 %2746
        %2748 = vrot.lane.b32.xlu0 %v755, 64
        %v2749 = vpop.permute.xlu0 %2748
        %2750 = vrot.lane.b32.xlu0 %v756, 64
        %v2751 = vpop.permute.xlu0 %2750
        %2752 = vrot.lane.b32.xlu0 %v757, 64
        %v2753 = vpop.permute.xlu0 %2752
        %2754 = vrot.lane.b32.xlu0 %v758, 64
        %v2755 = vpop.permute.xlu0 %2754
        %2756 = vrot.lane.b32.xlu0 %v759, 64
        %v2757 = vpop.permute.xlu0 %2756
        %2758 = vrot.lane.b32.xlu0 %v760, 64
        %v2759 = vpop.permute.xlu0 %2758
        %2768 = vmatprep.subr.bf16.mxu0 0
        %2769 = vmatpush1.bf16.msra.mxu0 %v2759
        %2770 = vmatprep.subr.bf16.mxu0 0
        %2771 = vmatpush1.bf16.msra.mxu0 %v2757
        %2772 = vmatprep.subr.bf16.mxu0 0
        %2773 = vmatpush1.bf16.msra.mxu0 %v2755
        %2774 = vmatprep.subr.bf16.mxu0 0
        %2775 = vmatpush1.bf16.msra.mxu0 %v2753
        %2776 = vmatprep.subr.bf16.mxu0 0
        %2777 = vmatpush1.bf16.msra.mxu0 %v2751
        %2778 = vmatprep.subr.bf16.mxu0 0
        %2779 = vmatpush1.bf16.msra.mxu0 %v2749
        %2780 = vmatprep.subr.bf16.mxu0 0
        %2781 = vmatpush1.bf16.msra.mxu0 %v2747
        %2782 = vmatprep.subr.bf16.mxu0 0
        %2783 = vmatpush1.bf16.msra.mxu0 %v2745
        %2784 = vmatprep.subr.bf16.mxu0 0
        %2785 = vmatpush2.bf16.msra.mxu0 0
        %2786 = vmatprep.subr.bf16.mxu0 0
        %2787 = vmatpush2.bf16.msra.mxu0 0
        %2788 = vmatprep.subr.bf16.mxu0 0
        %2789 = vmatpush2.bf16.msra.mxu0 0
        %2790 = vmatprep.subr.bf16.mxu0 0
        %2791 = vmatpush2.bf16.msra.mxu0 0
        %2792 = vmatprep.subr.bf16.mxu0 0
        %2793 = vmatpush2.bf16.msra.mxu0 0
        %2794 = vmatprep.subr.bf16.mxu0 0
        %2795 = vmatpush2.bf16.msra.mxu0 0
        %2796 = vmatprep.subr.bf16.mxu0 0
        %2797 = vmatpush2.bf16.msra.mxu0 0
        %2798 = vmatprep.subr.bf16.mxu0 0
        %2799 = vmatpush2.bf16.msra.mxu0 0
        %2800 = vmatprep.mubr.bf16.mxu0 0
        %2801 = vmatmul.mubr.bf16.gmra.mxu0 %v2562
        %v2802 = vpop.f32.mrf.mxu0
        %v2803 = vadd.f32 0.0, %v2802
        %v2804 = vpop.f32.mrf.mxu0
        %v2805 = vpop.f32.mrf.mxu0
        %v2806 = vadd.f32 0.0, %v2805
        %v2807 = vpop.f32.mrf.mxu0
        %2808 = vmatprep.mubr.bf16.mxu0 0
        %2809 = vmatmul.mubr.bf16.gmra.mxu0 %v2563
        %v2810 = vpop.f32.mrf.mxu0
        %v2811 = vadd.f32 0.0, %v2810
        %v2812 = vpop.f32.mrf.mxu0
        %v2813 = vpop.f32.mrf.mxu0
        %v2814 = vadd.f32 0.0, %v2813
        %v2815 = vpop.f32.mrf.mxu0
        %2816 = vdwg.mxu0
        %2825 = vrot.lane.b32.xlu0 %v761, 64
        %v2826 = vpop.permute.xlu0 %2825
        %2827 = vrot.lane.b32.xlu0 %v762, 64
        %v2828 = vpop.permute.xlu0 %2827
        %2829 = vrot.lane.b32.xlu0 %v763, 64
        %v2830 = vpop.permute.xlu0 %2829
        %2831 = vrot.lane.b32.xlu0 %v764, 64
        %v2832 = vpop.permute.xlu0 %2831
        %2833 = vrot.lane.b32.xlu0 %v765, 64
        %v2834 = vpop.permute.xlu0 %2833
        %2835 = vrot.lane.b32.xlu0 %v766, 64
        %v2836 = vpop.permute.xlu0 %2835
        %2837 = vrot.lane.b32.xlu0 %v767, 64
        %v2838 = vpop.permute.xlu0 %2837
        %2839 = vrot.lane.b32.xlu0 %v768, 64
        %v2840 = vpop.permute.xlu0 %2839
        %2849 = vmatprep.subr.bf16.mxu0 0
        %2850 = vmatpush1.bf16.msra.mxu0 %v2840
        %2851 = vmatprep.subr.bf16.mxu0 0
        %2852 = vmatpush1.bf16.msra.mxu0 %v2838
        %2853 = vmatprep.subr.bf16.mxu0 0
        %2854 = vmatpush1.bf16.msra.mxu0 %v2836
        %2855 = vmatprep.subr.bf16.mxu0 0
        %2856 = vmatpush1.bf16.msra.mxu0 %v2834
        %2857 = vmatprep.subr.bf16.mxu0 0
        %2858 = vmatpush1.bf16.msra.mxu0 %v2832
        %2859 = vmatprep.subr.bf16.mxu0 0
        %2860 = vmatpush1.bf16.msra.mxu0 %v2830
        %2861 = vmatprep.subr.bf16.mxu0 0
        %2862 = vmatpush1.bf16.msra.mxu0 %v2828
        %2863 = vmatprep.subr.bf16.mxu0 0
        %2864 = vmatpush1.bf16.msra.mxu0 %v2826
        %2865 = vmatprep.subr.bf16.mxu0 0
        %2866 = vmatpush2.bf16.msra.mxu0 0
        %2867 = vmatprep.subr.bf16.mxu0 0
        %2868 = vmatpush2.bf16.msra.mxu0 0
        %2869 = vmatprep.subr.bf16.mxu0 0
        %2870 = vmatpush2.bf16.msra.mxu0 0
        %2871 = vmatprep.subr.bf16.mxu0 0
        %2872 = vmatpush2.bf16.msra.mxu0 0
        %2873 = vmatprep.subr.bf16.mxu0 0
        %2874 = vmatpush2.bf16.msra.mxu0 0
        %2875 = vmatprep.subr.bf16.mxu0 0
        %2876 = vmatpush2.bf16.msra.mxu0 0
        %2877 = vmatprep.subr.bf16.mxu0 0
        %2878 = vmatpush2.bf16.msra.mxu0 0
        %2879 = vmatprep.subr.bf16.mxu0 0
        %2880 = vmatpush2.bf16.msra.mxu0 0
        %2881 = vmatprep.mubr.bf16.mxu0 0
        %2882 = vmatmul.mubr.bf16.gmra.mxu0 %v2564
        %v2883 = vpop.f32.mrf.mxu0
        %v2884 = vadd.f32 0.0, %v2883
        %v2885 = vpop.f32.mrf.mxu0
        %v2886 = vpop.f32.mrf.mxu0
        %v2887 = vadd.f32 0.0, %v2886
        %v2888 = vpop.f32.mrf.mxu0
        %2889 = vmatprep.mubr.bf16.mxu0 0
        %2890 = vmatmul.mubr.bf16.gmra.mxu0 %v2565
        %v2891 = vpop.f32.mrf.mxu0
        %v2892 = vadd.f32 0.0, %v2891
        %v2893 = vpop.f32.mrf.mxu0
        %v2894 = vpop.f32.mrf.mxu0
        %v2895 = vadd.f32 0.0, %v2894
        %v2896 = vpop.f32.mrf.mxu0
        %2897 = vdwg.mxu0
        %2906 = vrot.lane.b32.xlu0 %v769, 64
        %v2907 = vpop.permute.xlu0 %2906
        %2908 = vrot.lane.b32.xlu0 %v770, 64
        %v2909 = vpop.permute.xlu0 %2908
        %2910 = vrot.lane.b32.xlu0 %v771, 64
        %v2911 = vpop.permute.xlu0 %2910
        %2912 = vrot.lane.b32.xlu0 %v772, 64
        %v2913 = vpop.permute.xlu0 %2912
        %2914 = vrot.lane.b32.xlu0 %v773, 64
        %v2915 = vpop.permute.xlu0 %2914
        %2916 = vrot.lane.b32.xlu0 %v774, 64
        %v2917 = vpop.permute.xlu0 %2916
        %2918 = vrot.lane.b32.xlu0 %v775, 64
        %v2919 = vpop.permute.xlu0 %2918
        %2920 = vrot.lane.b32.xlu0 %v776, 64
        %v2921 = vpop.permute.xlu0 %2920
        %2930 = vmatprep.subr.bf16.mxu0 0
        %2931 = vmatpush1.bf16.msra.mxu0 %v2921
        %2932 = vmatprep.subr.bf16.mxu0 0
        %2933 = vmatpush1.bf16.msra.mxu0 %v2919
        %2934 = vmatprep.subr.bf16.mxu0 0
        %2935 = vmatpush1.bf16.msra.mxu0 %v2917
        %2936 = vmatprep.subr.bf16.mxu0 0
        %2937 = vmatpush1.bf16.msra.mxu0 %v2915
        %2938 = vmatprep.subr.bf16.mxu0 0
        %2939 = vmatpush1.bf16.msra.mxu0 %v2913
        %2940 = vmatprep.subr.bf16.mxu0 0
        %2941 = vmatpush1.bf16.msra.mxu0 %v2911
        %2942 = vmatprep.subr.bf16.mxu0 0
        %2943 = vmatpush1.bf16.msra.mxu0 %v2909
        %2944 = vmatprep.subr.bf16.mxu0 0
        %2945 = vmatpush1.bf16.msra.mxu0 %v2907
        %2946 = vmatprep.subr.bf16.mxu0 0
        %2947 = vmatpush2.bf16.msra.mxu0 0
        %2948 = vmatprep.subr.bf16.mxu0 0
        %2949 = vmatpush2.bf16.msra.mxu0 0
        %2950 = vmatprep.subr.bf16.mxu0 0
        %2951 = vmatpush2.bf16.msra.mxu0 0
        %2952 = vmatprep.subr.bf16.mxu0 0
        %2953 = vmatpush2.bf16.msra.mxu0 0
        %2954 = vmatprep.subr.bf16.mxu0 0
        %2955 = vmatpush2.bf16.msra.mxu0 0
        %2956 = vmatprep.subr.bf16.mxu0 0
        %2957 = vmatpush2.bf16.msra.mxu0 0
        %2958 = vmatprep.subr.bf16.mxu0 0
        %2959 = vmatpush2.bf16.msra.mxu0 0
        %2960 = vmatprep.subr.bf16.mxu0 0
        %2961 = vmatpush2.bf16.msra.mxu0 0
        %2962 = vmatprep.mubr.bf16.mxu0 0
        %2963 = vmatmul.mubr.bf16.gmra.mxu0 %v2566
        %v2964 = vpop.f32.mrf.mxu0
        %v2965 = vadd.f32 0.0, %v2964
        %v2966 = vpop.f32.mrf.mxu0
        %v2967 = vpop.f32.mrf.mxu0
        %v2968 = vadd.f32 0.0, %v2967
        %v2969 = vpop.f32.mrf.mxu0
        %2970 = vmatprep.mubr.bf16.mxu0 0
        %2971 = vmatmul.mubr.bf16.gmra.mxu0 %v2567
        %v2972 = vpop.f32.mrf.mxu0
        %v2973 = vadd.f32 0.0, %v2972
        %v2974 = vpop.f32.mrf.mxu0
        %v2975 = vpop.f32.mrf.mxu0
        %v2976 = vadd.f32 0.0, %v2975
        %v2977 = vpop.f32.mrf.mxu0
        %2978 = vdwg.mxu0
        %2987 = vrot.lane.b32.xlu0 %v777, 64
        %v2988 = vpop.permute.xlu0 %2987
        %2989 = vrot.lane.b32.xlu0 %v778, 64
        %v2990 = vpop.permute.xlu0 %2989
        %2991 = vrot.lane.b32.xlu0 %v779, 64
        %v2992 = vpop.permute.xlu0 %2991
        %2993 = vrot.lane.b32.xlu0 %v780, 64
        %v2994 = vpop.permute.xlu0 %2993
        %2995 = vrot.lane.b32.xlu0 %v781, 64
        %v2996 = vpop.permute.xlu0 %2995
        %2997 = vrot.lane.b32.xlu0 %v782, 64
        %v2998 = vpop.permute.xlu0 %2997
        %2999 = vrot.lane.b32.xlu0 %v783, 64
        %v3000 = vpop.permute.xlu0 %2999
        %3001 = vrot.lane.b32.xlu0 %v784, 64
        %v3002 = vpop.permute.xlu0 %3001
        %3011 = vmatprep.subr.bf16.mxu0 0
        %3012 = vmatpush1.bf16.msra.mxu0 %v3002
        %3013 = vmatprep.subr.bf16.mxu0 0
        %3014 = vmatpush1.bf16.msra.mxu0 %v3000
        %3015 = vmatprep.subr.bf16.mxu0 0
        %3016 = vmatpush1.bf16.msra.mxu0 %v2998
        %3017 = vmatprep.subr.bf16.mxu0 0
        %3018 = vmatpush1.bf16.msra.mxu0 %v2996
        %3019 = vmatprep.subr.bf16.mxu0 0
        %3020 = vmatpush1.bf16.msra.mxu0 %v2994
        %3021 = vmatprep.subr.bf16.mxu0 0
        %3022 = vmatpush1.bf16.msra.mxu0 %v2992
        %3023 = vmatprep.subr.bf16.mxu0 0
        %3024 = vmatpush1.bf16.msra.mxu0 %v2990
        %3025 = vmatprep.subr.bf16.mxu0 0
        %3026 = vmatpush1.bf16.msra.mxu0 %v2988
        %3027 = vmatprep.subr.bf16.mxu0 0
        %3028 = vmatpush2.bf16.msra.mxu0 0
        %3029 = vmatprep.subr.bf16.mxu0 0
        %3030 = vmatpush2.bf16.msra.mxu0 0
        %3031 = vmatprep.subr.bf16.mxu0 0
        %3032 = vmatpush2.bf16.msra.mxu0 0
        %3033 = vmatprep.subr.bf16.mxu0 0
        %3034 = vmatpush2.bf16.msra.mxu0 0
        %3035 = vmatprep.subr.bf16.mxu0 0
        %3036 = vmatpush2.bf16.msra.mxu0 0
        %3037 = vmatprep.subr.bf16.mxu0 0
        %3038 = vmatpush2.bf16.msra.mxu0 0
        %3039 = vmatprep.subr.bf16.mxu0 0
        %3040 = vmatpush2.bf16.msra.mxu0 0
        %3041 = vmatprep.subr.bf16.mxu0 0
        %3042 = vmatpush2.bf16.msra.mxu0 0
        %3043 = vmatprep.mubr.bf16.mxu0 0
        %3044 = vmatmul.mubr.bf16.gmra.mxu0 %v2568
        %v3045 = vpop.f32.mrf.mxu0
        %v3046 = vadd.f32 0.0, %v3045
        %v3047 = vpop.f32.mrf.mxu0
        %v3048 = vpop.f32.mrf.mxu0
        %v3049 = vadd.f32 0.0, %v3048
        %v3050 = vpop.f32.mrf.mxu0
        %3051 = vmatprep.mubr.bf16.mxu0 0
        %3052 = vmatmul.mubr.bf16.gmra.mxu0 %v2569
        %v3053 = vpop.f32.mrf.mxu0
        %v3054 = vadd.f32 0.0, %v3053
        %v3055 = vpop.f32.mrf.mxu0
        %v3056 = vpop.f32.mrf.mxu0
        %v3057 = vadd.f32 0.0, %v3056
        %v3058 = vpop.f32.mrf.mxu0
        %3059 = vdwg.mxu0
        %3068 = vrot.lane.b32.xlu0 %v785, 64
        %v3069 = vpop.permute.xlu0 %3068
        %3070 = vrot.lane.b32.xlu0 %v786, 64
        %v3071 = vpop.permute.xlu0 %3070
        %3072 = vrot.lane.b32.xlu0 %v787, 64
        %v3073 = vpop.permute.xlu0 %3072
        %3074 = vrot.lane.b32.xlu0 %v788, 64
        %v3075 = vpop.permute.xlu0 %3074
        %3076 = vrot.lane.b32.xlu0 %v789, 64
        %v3077 = vpop.permute.xlu0 %3076
        %3078 = vrot.lane.b32.xlu0 %v790, 64
        %v3079 = vpop.permute.xlu0 %3078
        %3080 = vrot.lane.b32.xlu0 %v791, 64
        %v3081 = vpop.permute.xlu0 %3080
        %3082 = vrot.lane.b32.xlu0 %v792, 64
        %v3083 = vpop.permute.xlu0 %3082
        %3092 = vmatprep.subr.bf16.mxu0 0
        %3093 = vmatpush1.bf16.msra.mxu0 %v3083
        %3094 = vmatprep.subr.bf16.mxu0 0
        %3095 = vmatpush1.bf16.msra.mxu0 %v3081
        %3096 = vmatprep.subr.bf16.mxu0 0
        %3097 = vmatpush1.bf16.msra.mxu0 %v3079
        %3098 = vmatprep.subr.bf16.mxu0 0
        %3099 = vmatpush1.bf16.msra.mxu0 %v3077
        %3100 = vmatprep.subr.bf16.mxu0 0
        %3101 = vmatpush1.bf16.msra.mxu0 %v3075
        %3102 = vmatprep.subr.bf16.mxu0 0
        %3103 = vmatpush1.bf16.msra.mxu0 %v3073
        %3104 = vmatprep.subr.bf16.mxu0 0
        %3105 = vmatpush1.bf16.msra.mxu0 %v3071
        %3106 = vmatprep.subr.bf16.mxu0 0
        %3107 = vmatpush1.bf16.msra.mxu0 %v3069
        %3108 = vmatprep.subr.bf16.mxu0 0
        %3109 = vmatpush2.bf16.msra.mxu0 0
        %3110 = vmatprep.subr.bf16.mxu0 0
        %3111 = vmatpush2.bf16.msra.mxu0 0
        %3112 = vmatprep.subr.bf16.mxu0 0
        %3113 = vmatpush2.bf16.msra.mxu0 0
        %3114 = vmatprep.subr.bf16.mxu0 0
        %3115 = vmatpush2.bf16.msra.mxu0 0
        %3116 = vmatprep.subr.bf16.mxu0 0
        %3117 = vmatpush2.bf16.msra.mxu0 0
        %3118 = vmatprep.subr.bf16.mxu0 0
        %3119 = vmatpush2.bf16.msra.mxu0 0
        %3120 = vmatprep.subr.bf16.mxu0 0
        %3121 = vmatpush2.bf16.msra.mxu0 0
        %3122 = vmatprep.subr.bf16.mxu0 0
        %3123 = vmatpush2.bf16.msra.mxu0 0
        %3124 = vmatprep.mubr.bf16.mxu0 0
        %3125 = vmatmul.mubr.bf16.gmra.mxu0 %v2570
        %v3126 = vpop.f32.mrf.mxu0
        %v3127 = vadd.f32 0.0, %v3126
        %v3128 = vpop.f32.mrf.mxu0
        %v3129 = vpop.f32.mrf.mxu0
        %v3130 = vadd.f32 0.0, %v3129
        %v3131 = vpop.f32.mrf.mxu0
        %3132 = vmatprep.mubr.bf16.mxu0 0
        %3133 = vmatmul.mubr.bf16.gmra.mxu0 %v2571
        %v3134 = vpop.f32.mrf.mxu0
        %v3135 = vadd.f32 0.0, %v3134
        %v3136 = vpop.f32.mrf.mxu0
        %v3137 = vpop.f32.mrf.mxu0
        %v3138 = vadd.f32 0.0, %v3137
        %v3139 = vpop.f32.mrf.mxu0
        %3140 = vdwg.mxu0
        %3149 = vrot.lane.b32.xlu0 %v793, 64
        %v3150 = vpop.permute.xlu0 %3149
        %3151 = vrot.lane.b32.xlu0 %v794, 64
        %v3152 = vpop.permute.xlu0 %3151
        %3153 = vrot.lane.b32.xlu0 %v795, 64
        %v3154 = vpop.permute.xlu0 %3153
        %3155 = vrot.lane.b32.xlu0 %v796, 64
        %v3156 = vpop.permute.xlu0 %3155
        %3157 = vrot.lane.b32.xlu0 %v797, 64
        %v3158 = vpop.permute.xlu0 %3157
        %3159 = vrot.lane.b32.xlu0 %v798, 64
        %v3160 = vpop.permute.xlu0 %3159
        %3161 = vrot.lane.b32.xlu0 %v799, 64
        %v3162 = vpop.permute.xlu0 %3161
        %3163 = vrot.lane.b32.xlu0 %v800, 64
        %v3164 = vpop.permute.xlu0 %3163
        %3173 = vmatprep.subr.bf16.mxu0 0
        %3174 = vmatpush1.bf16.msra.mxu0 %v3164
        %3175 = vmatprep.subr.bf16.mxu0 0
        %3176 = vmatpush1.bf16.msra.mxu0 %v3162
        %3177 = vmatprep.subr.bf16.mxu0 0
        %3178 = vmatpush1.bf16.msra.mxu0 %v3160
        %3179 = vmatprep.subr.bf16.mxu0 0
        %3180 = vmatpush1.bf16.msra.mxu0 %v3158
        %3181 = vmatprep.subr.bf16.mxu0 0
        %3182 = vmatpush1.bf16.msra.mxu0 %v3156
        %3183 = vmatprep.subr.bf16.mxu0 0
        %3184 = vmatpush1.bf16.msra.mxu0 %v3154
        %3185 = vmatprep.subr.bf16.mxu0 0
        %3186 = vmatpush1.bf16.msra.mxu0 %v3152
        %3187 = vmatprep.subr.bf16.mxu0 0
        %3188 = vmatpush1.bf16.msra.mxu0 %v3150
        %3189 = vmatprep.subr.bf16.mxu0 0
        %3190 = vmatpush2.bf16.msra.mxu0 0
        %3191 = vmatprep.subr.bf16.mxu0 0
        %3192 = vmatpush2.bf16.msra.mxu0 0
        %3193 = vmatprep.subr.bf16.mxu0 0
        %3194 = vmatpush2.bf16.msra.mxu0 0
        %3195 = vmatprep.subr.bf16.mxu0 0
        %3196 = vmatpush2.bf16.msra.mxu0 0
        %3197 = vmatprep.subr.bf16.mxu0 0
        %3198 = vmatpush2.bf16.msra.mxu0 0
        %3199 = vmatprep.subr.bf16.mxu0 0
        %3200 = vmatpush2.bf16.msra.mxu0 0
        %3201 = vmatprep.subr.bf16.mxu0 0
        %3202 = vmatpush2.bf16.msra.mxu0 0
        %3203 = vmatprep.subr.bf16.mxu0 0
        %3204 = vmatpush2.bf16.msra.mxu0 0
        %3205 = vmatprep.mubr.bf16.mxu0 0
        %3206 = vmatmul.mubr.bf16.gmra.mxu0 %v2572
        %v3207 = vpop.f32.mrf.mxu0
        %v3208 = vadd.f32 0.0, %v3207
        %v3209 = vpop.f32.mrf.mxu0
        %v3210 = vpop.f32.mrf.mxu0
        %v3211 = vadd.f32 0.0, %v3210
        %v3212 = vpop.f32.mrf.mxu0
        %3213 = vmatprep.mubr.bf16.mxu0 0
        %3214 = vmatmul.mubr.bf16.gmra.mxu0 %v2573
        %v3215 = vpop.f32.mrf.mxu0
        %v3216 = vadd.f32 0.0, %v3215
        %v3217 = vpop.f32.mrf.mxu0
        %v3218 = vpop.f32.mrf.mxu0
        %v3219 = vadd.f32 0.0, %v3218
        %v3220 = vpop.f32.mrf.mxu0
        %3221 = vdwg.mxu0
        %3230 = vmatprep.subr.bf16.mxu0 0
        %3231 = vmatpush1.bf16.msra.mxu0 %v624
        %3232 = vmatprep.subr.bf16.mxu0 0
        %3233 = vmatpush1.bf16.msra.mxu0 %v623
        %3234 = vmatprep.subr.bf16.mxu0 0
        %3235 = vmatpush1.bf16.msra.mxu0 %v622
        %3236 = vmatprep.subr.bf16.mxu0 0
        %3237 = vmatpush1.bf16.msra.mxu0 %v621
        %3238 = vmatprep.subr.bf16.mxu0 0
        %3239 = vmatpush1.bf16.msra.mxu0 %v620
        %3240 = vmatprep.subr.bf16.mxu0 0
        %3241 = vmatpush1.bf16.msra.mxu0 %v619
        %3242 = vmatprep.subr.bf16.mxu0 0
        %3243 = vmatpush1.bf16.msra.mxu0 %v618
        %3244 = vmatprep.subr.bf16.mxu0 0
        %3245 = vmatpush1.bf16.msra.mxu0 %v617
        %3246 = vmatprep.subr.bf16.mxu0 0
        %3247 = vmatpush2.bf16.msra.mxu0 0
        %3248 = vmatprep.subr.bf16.mxu0 0
        %3249 = vmatpush2.bf16.msra.mxu0 0
        %3250 = vmatprep.subr.bf16.mxu0 0
        %3251 = vmatpush2.bf16.msra.mxu0 0
        %3252 = vmatprep.subr.bf16.mxu0 0
        %3253 = vmatpush2.bf16.msra.mxu0 0
        %3254 = vmatprep.subr.bf16.mxu0 0
        %3255 = vmatpush2.bf16.msra.mxu0 0
        %3256 = vmatprep.subr.bf16.mxu0 0
        %3257 = vmatpush2.bf16.msra.mxu0 0
        %3258 = vmatprep.subr.bf16.mxu0 0
        %3259 = vmatpush2.bf16.msra.mxu0 0
        %3260 = vmatprep.subr.bf16.mxu0 0
        %3261 = vmatpush2.bf16.msra.mxu0 0
        %3262 = vmatprep.mubr.bf16.mxu0 0
        %3263 = vmatmul.mubr.bf16.gmra.mxu0 %v2558
        %v3264 = vpop.f32.mrf.mxu0
        %v3265 = vadd.f32 0.0, %v3264
        %v3266 = vpop.f32.mrf.mxu0
        %v3267 = vpop.f32.mrf.mxu0
        %v3268 = vadd.f32 0.0, %v3267
        %v3269 = vpop.f32.mrf.mxu0
        %3270 = vmatprep.mubr.bf16.mxu0 0
        %3271 = vmatmul.mubr.bf16.gmra.mxu0 %v2559
        %v3272 = vpop.f32.mrf.mxu0
        %v3273 = vadd.f32 0.0, %v3272
        %v3274 = vpop.f32.mrf.mxu0
        %v3275 = vpop.f32.mrf.mxu0
        %v3276 = vadd.f32 0.0, %v3275
        %v3277 = vpop.f32.mrf.mxu0
        %3278 = vmatprep.mubr.bf16.mxu0 0
        %3279 = vmatmul.mubr.bf16.gmra.mxu0 %v2560
        %v3280 = vpop.f32.mrf.mxu0
        %v3281 = vadd.f32 0.0, %v3280
        %v3282 = vpop.f32.mrf.mxu0
        %v3283 = vpop.f32.mrf.mxu0
        %v3284 = vadd.f32 0.0, %v3283
        %v3285 = vpop.f32.mrf.mxu0
        %3286 = vmatprep.mubr.bf16.mxu0 0
        %3287 = vmatmul.mubr.bf16.gmra.mxu0 %v2561
        %v3288 = vpop.f32.mrf.mxu0
        %v3289 = vadd.f32 0.0, %v3288
        %v3290 = vpop.f32.mrf.mxu0
        %v3291 = vpop.f32.mrf.mxu0
        %v3292 = vadd.f32 0.0, %v3291
        %v3293 = vpop.f32.mrf.mxu0
        %3294 = vmatprep.mubr.bf16.mxu0 0
        %3295 = vmatmul.mubr.bf16.gmra.mxu0 %v2562
        %v3296 = vpop.f32.mrf.mxu0
        %v3297 = vadd.f32 0.0, %v3296
        %v3298 = vpop.f32.mrf.mxu0
        %v3299 = vpop.f32.mrf.mxu0
        %v3300 = vadd.f32 0.0, %v3299
        %v3301 = vpop.f32.mrf.mxu0
        %3302 = vmatprep.mubr.bf16.mxu0 0
        %3303 = vmatmul.mubr.bf16.gmra.mxu0 %v2563
        %v3304 = vpop.f32.mrf.mxu0
        %v3305 = vadd.f32 0.0, %v3304
        %v3306 = vpop.f32.mrf.mxu0
        %v3307 = vpop.f32.mrf.mxu0
        %v3308 = vadd.f32 0.0, %v3307
        %v3309 = vpop.f32.mrf.mxu0
        %3310 = vmatprep.mubr.bf16.mxu0 0
        %3311 = vmatmul.mubr.bf16.gmra.mxu0 %v2564
        %v3312 = vpop.f32.mrf.mxu0
        %v3313 = vadd.f32 0.0, %v3312
        %v3314 = vpop.f32.mrf.mxu0
        %v3315 = vpop.f32.mrf.mxu0
        %v3316 = vadd.f32 0.0, %v3315
        %v3317 = vpop.f32.mrf.mxu0
        %3318 = vmatprep.mubr.bf16.mxu0 0
        %3319 = vmatmul.mubr.bf16.gmra.mxu0 %v2565
        %v3320 = vpop.f32.mrf.mxu0
        %v3321 = vadd.f32 0.0, %v3320
        %v3322 = vpop.f32.mrf.mxu0
        %v3323 = vpop.f32.mrf.mxu0
        %v3324 = vadd.f32 0.0, %v3323
        %v3325 = vpop.f32.mrf.mxu0
        %3326 = vmatprep.mubr.bf16.mxu0 0
        %3327 = vmatmul.mubr.bf16.gmra.mxu0 %v2566
        %v3328 = vpop.f32.mrf.mxu0
        %v3329 = vadd.f32 0.0, %v3328
        %v3330 = vpop.f32.mrf.mxu0
        %v3331 = vpop.f32.mrf.mxu0
        %v3332 = vadd.f32 0.0, %v3331
        %v3333 = vpop.f32.mrf.mxu0
        %3334 = vmatprep.mubr.bf16.mxu0 0
        %3335 = vmatmul.mubr.bf16.gmra.mxu0 %v2567
        %v3336 = vpop.f32.mrf.mxu0
        %v3337 = vadd.f32 0.0, %v3336
        %v3338 = vpop.f32.mrf.mxu0
        %v3339 = vpop.f32.mrf.mxu0
        %v3340 = vadd.f32 0.0, %v3339
        %v3341 = vpop.f32.mrf.mxu0
        %3342 = vmatprep.mubr.bf16.mxu0 0
        %3343 = vmatmul.mubr.bf16.gmra.mxu0 %v2568
        %v3344 = vpop.f32.mrf.mxu0
        %v3345 = vadd.f32 0.0, %v3344
        %v3346 = vpop.f32.mrf.mxu0
        %v3347 = vpop.f32.mrf.mxu0
        %v3348 = vadd.f32 0.0, %v3347
        %v3349 = vpop.f32.mrf.mxu0
        %3350 = vmatprep.mubr.bf16.mxu0 0
        %3351 = vmatmul.mubr.bf16.gmra.mxu0 %v2569
        %v3352 = vpop.f32.mrf.mxu0
        %v3353 = vadd.f32 0.0, %v3352
        %v3354 = vpop.f32.mrf.mxu0
        %v3355 = vpop.f32.mrf.mxu0
        %v3356 = vadd.f32 0.0, %v3355
        %v3357 = vpop.f32.mrf.mxu0
        %3358 = vmatprep.mubr.bf16.mxu0 0
        %3359 = vmatmul.mubr.bf16.gmra.mxu0 %v2570
        %v3360 = vpop.f32.mrf.mxu0
        %v3361 = vadd.f32 0.0, %v3360
        %v3362 = vpop.f32.mrf.mxu0
        %v3363 = vpop.f32.mrf.mxu0
        %v3364 = vadd.f32 0.0, %v3363
        %v3365 = vpop.f32.mrf.mxu0
        %3366 = vmatprep.mubr.bf16.mxu0 0
        %3367 = vmatmul.mubr.bf16.gmra.mxu0 %v2571
        %v3368 = vpop.f32.mrf.mxu0
        %v3369 = vadd.f32 0.0, %v3368
        %v3370 = vpop.f32.mrf.mxu0
        %v3371 = vpop.f32.mrf.mxu0
        %v3372 = vadd.f32 0.0, %v3371
        %v3373 = vpop.f32.mrf.mxu0
        %3374 = vmatprep.mubr.bf16.mxu0 0
        %3375 = vmatmul.mubr.bf16.gmra.mxu0 %v2572
        %v3376 = vpop.f32.mrf.mxu0
        %v3377 = vadd.f32 0.0, %v3376
        %v3378 = vpop.f32.mrf.mxu0
        %v3379 = vpop.f32.mrf.mxu0
        %v3380 = vadd.f32 0.0, %v3379
        %v3381 = vpop.f32.mrf.mxu0
        %3382 = vmatprep.mubr.bf16.mxu0 0
        %3383 = vmatmul.mubr.bf16.gmra.mxu0 %v2573
        %v3384 = vpop.f32.mrf.mxu0
        %v3385 = vadd.f32 0.0, %v3384
        %v3386 = vpop.f32.mrf.mxu0
        %v3387 = vpop.f32.mrf.mxu0
        %v3388 = vadd.f32 0.0, %v3387
        %v3389 = vpop.f32.mrf.mxu0
        %3390 = vdwg.mxu0
        %v3391 = vrcp.pop %v3265
        %v3392 = vrcp.pop %v3268
        %v3393 = vrcp.pop %v3273
        %v3394 = vrcp.pop %v3276
        %v3395 = vrcp.pop %v3281
        %v3396 = vrcp.pop %v3284
        %v3397 = vrcp.pop %v3289
        %v3398 = vrcp.pop %v3292
        %v3399 = vrcp.pop %v3297
        %v3400 = vrcp.pop %v3300
        %v3401 = vrcp.pop %v3305
        %v3402 = vrcp.pop %v3308
        %v3403 = vrcp.pop %v3313
        %v3404 = vrcp.pop %v3316
        %v3405 = vrcp.pop %v3321
        %v3406 = vrcp.pop %v3324
        %v3407 = vrcp.pop %v3329
        %v3408 = vrcp.pop %v3332
        %v3409 = vrcp.pop %v3337
        %v3410 = vrcp.pop %v3340
        %v3411 = vrcp.pop %v3345
        %v3412 = vrcp.pop %v3348
        %v3413 = vrcp.pop %v3353
        %v3414 = vrcp.pop %v3356
        %v3415 = vrcp.pop %v3361
        %v3416 = vrcp.pop %v3364
        %v3417 = vrcp.pop %v3369
        %v3418 = vrcp.pop %v3372
        %v3419 = vrcp.pop %v3377
        %v3420 = vrcp.pop %v3380
        %v3421 = vrcp.pop %v3385
        %v3422 = vrcp.pop %v3388
        %v3423 = vmul.f32 %v2641, %v3391
        %v3424 = vmul.f32 %v2644, %v3392
        %v3425 = vmul.f32 %v2649, %v3393
        %v3426 = vmul.f32 %v2652, %v3394
        %v3427 = vmul.f32 %v2722, %v3395
        %v3428 = vmul.f32 %v2725, %v3396
        %v3429 = vmul.f32 %v2730, %v3397
        %v3430 = vmul.f32 %v2733, %v3398
        %v3431 = vmul.f32 %v2803, %v3399
        %v3432 = vmul.f32 %v2806, %v3400
        %v3433 = vmul.f32 %v2811, %v3401
        %v3434 = vmul.f32 %v2814, %v3402
        %v3435 = vmul.f32 %v2884, %v3403
        %v3436 = vmul.f32 %v2887, %v3404
        %v3437 = vmul.f32 %v2892, %v3405
        %v3438 = vmul.f32 %v2895, %v3406
        %v3439 = vmul.f32 %v2965, %v3407
        %v3440 = vmul.f32 %v2968, %v3408
        %v3441 = vmul.f32 %v2973, %v3409
        %v3442 = vmul.f32 %v2976, %v3410
        %v3443 = vmul.f32 %v3046, %v3411
        %v3444 = vmul.f32 %v3049, %v3412
        %v3445 = vmul.f32 %v3054, %v3413
        %v3446 = vmul.f32 %v3057, %v3414
        %v3447 = vmul.f32 %v3127, %v3415
        %v3448 = vmul.f32 %v3130, %v3416
        %v3449 = vmul.f32 %v3135, %v3417
        %v3450 = vmul.f32 %v3138, %v3418
        %v3451 = vmul.f32 %v3208, %v3419
        %v3452 = vmul.f32 %v3211, %v3420
        %v3453 = vmul.f32 %v3216, %v3421
        %v3454 = vmul.f32 %v3219, %v3422
        %v3455 = vpack.c.bf16 %v3424, %v3423
        %v3456 = vpack.c.bf16 %v3426, %v3425
        %v3457 = vpack.c.bf16 %v3428, %v3427
        %v3458 = vpack.c.bf16 %v3430, %v3429
        %v3459 = vpack.c.bf16 %v3432, %v3431
        %v3460 = vpack.c.bf16 %v3434, %v3433
        %v3461 = vpack.c.bf16 %v3436, %v3435
        %v3462 = vpack.c.bf16 %v3438, %v3437
        %v3463 = vpack.c.bf16 %v3440, %v3439
        %v3464 = vpack.c.bf16 %v3442, %v3441
        %v3465 = vpack.c.bf16 %v3444, %v3443
        %v3466 = vpack.c.bf16 %v3446, %v3445
        %v3467 = vpack.c.bf16 %v3448, %v3447
        %v3468 = vpack.c.bf16 %v3450, %v3449
        %v3469 = vpack.c.bf16 %v3452, %v3451
        %v3470 = vpack.c.bf16 %v3454, %v3453
        %v3471 = vld [vmem:[%s4] sm:$0xff]
        %v3472 = vld [vmem:[%s4 + $0x8] sm:$0xff]
        %v3473 = vld [vmem:[%s4 + $0x10] sm:$0xff]
        %v3474 = vld [vmem:[%s4 + $0x18] sm:$0xff]
        %v3475 = vpack.c.bf16 %v3472, %v3471
        %v3476 = vpack.c.bf16 %v3474, %v3473
        %v3477 = vld [vmem:[%s5] sm:$0x1]
        %v3479 = vlaneseq
        %v3480 = vshrl.u32 %v3479, 7
        %v3481 = vsub.s32 0, %v3480
        %v3482 = vrot.slane %v3477, %v3481
        %v3485 = vsel %vm343, %v3455, 0
        %v3488 = vsel %vm343, %v3456, 0
        %v3491 = vsel %vm343, %v3457, 0
        %v3494 = vsel %vm343, %v3458, 0
        %v3497 = vsel %vm343, %v3459, 0
        %v3500 = vsel %vm343, %v3460, 0
        %v3503 = vsel %vm343, %v3461, 0
        %v3506 = vsel %vm343, %v3462, 0
        %v3509 = vsel %vm343, %v3463, 0
        %v3512 = vsel %vm343, %v3464, 0
        %v3515 = vsel %vm343, %v3465, 0
        %v3518 = vsel %vm343, %v3466, 0
        %v3521 = vsel %vm343, %v3467, 0
        %v3524 = vsel %vm343, %v3468, 0
        %v3527 = vsel %vm343, %v3469, 0
        %v3530 = vsel %vm343, %v3470, 0
        %3532 = vmatprep.subr.bf16.mxu0 0
        %3533 = vmatpush1.bf16.msra.mxu0 0
        %3534 = vmatprep.subr.bf16.mxu0 0
        %3535 = vmatpush1.bf16.msra.mxu0 0
        %3536 = vmatprep.subr.bf16.mxu0 0
        %3537 = vmatpush1.bf16.msra.mxu0 0
        %3538 = vmatprep.subr.bf16.mxu0 0
        %3539 = vmatpush1.bf16.msra.mxu0 0
        %3540 = vmatprep.subr.bf16.mxu0 0
        %3541 = vmatpush1.bf16.msra.mxu0 0
        %3542 = vmatprep.subr.bf16.mxu0 0
        %3543 = vmatpush1.bf16.msra.mxu0 0
        %3544 = vmatprep.subr.bf16.mxu0 0
        %3545 = vmatpush1.bf16.msra.mxu0 %v3476
        %3546 = vmatprep.subr.bf16.mxu0 0
        %3547 = vmatpush1.bf16.msra.mxu0 %v3475
        %3548 = vmatprep.subr.bf16.mxu0 0
        %3549 = vmatpush2.bf16.msra.mxu0 0
        %3550 = vmatprep.subr.bf16.mxu0 0
        %3551 = vmatpush2.bf16.msra.mxu0 0
        %3552 = vmatprep.subr.bf16.mxu0 0
        %3553 = vmatpush2.bf16.msra.mxu0 0
        %3554 = vmatprep.subr.bf16.mxu0 0
        %3555 = vmatpush2.bf16.msra.mxu0 0
        %3556 = vmatprep.subr.bf16.mxu0 0
        %3557 = vmatpush2.bf16.msra.mxu0 0
        %3558 = vmatprep.subr.bf16.mxu0 0
        %3559 = vmatpush2.bf16.msra.mxu0 0
        %3560 = vmatprep.subr.bf16.mxu0 0
        %3561 = vmatpush2.bf16.msra.mxu0 0
        %3562 = vmatprep.subr.bf16.mxu0 0
        %3563 = vmatpush2.bf16.msra.mxu0 0
        %3564 = vmatprep.mubr.bf16.mxu0 0
        %3565 = vmatmul.mubr.bf16.gmra.mxu0 %v3485
        %v3566 = vpop.f32.mrf.mxu0
        %v3567 = vadd.f32 %v3482, %v3566
        %v3568 = vpop.f32.mrf.mxu0
        %v3569 = vpop.f32.mrf.mxu0
        %v3570 = vadd.f32 %v3482, %v3569
        %v3571 = vpop.f32.mrf.mxu0
        %3572 = vmatprep.mubr.bf16.mxu0 0
        %3573 = vmatmul.mubr.bf16.gmra.mxu0 %v3488
        %v3574 = vpop.f32.mrf.mxu0
        %v3575 = vadd.f32 %v3482, %v3574
        %v3576 = vpop.f32.mrf.mxu0
        %v3577 = vpop.f32.mrf.mxu0
        %v3578 = vadd.f32 %v3482, %v3577
        %v3579 = vpop.f32.mrf.mxu0
        %3580 = vmatprep.mubr.bf16.mxu0 0
        %3581 = vmatmul.mubr.bf16.gmra.mxu0 %v3491
        %v3582 = vpop.f32.mrf.mxu0
        %v3583 = vadd.f32 %v3482, %v3582
        %v3584 = vpop.f32.mrf.mxu0
        %v3585 = vpop.f32.mrf.mxu0
        %v3586 = vadd.f32 %v3482, %v3585
        %v3587 = vpop.f32.mrf.mxu0
        %3588 = vmatprep.mubr.bf16.mxu0 0
        %3589 = vmatmul.mubr.bf16.gmra.mxu0 %v3494
        %v3590 = vpop.f32.mrf.mxu0
        %v3591 = vadd.f32 %v3482, %v3590
        %v3592 = vpop.f32.mrf.mxu0
        %v3593 = vpop.f32.mrf.mxu0
        %v3594 = vadd.f32 %v3482, %v3593
        %v3595 = vpop.f32.mrf.mxu0
        %3596 = vmatprep.mubr.bf16.mxu0 0
        %3597 = vmatmul.mubr.bf16.gmra.mxu0 %v3497
        %v3598 = vpop.f32.mrf.mxu0
        %v3599 = vadd.f32 %v3482, %v3598
        %v3600 = vpop.f32.mrf.mxu0
        %v3601 = vpop.f32.mrf.mxu0
        %v3602 = vadd.f32 %v3482, %v3601
        %v3603 = vpop.f32.mrf.mxu0
        %3604 = vmatprep.mubr.bf16.mxu0 0
        %3605 = vmatmul.mubr.bf16.gmra.mxu0 %v3500
        %v3606 = vpop.f32.mrf.mxu0
        %v3607 = vadd.f32 %v3482, %v3606
        %v3608 = vpop.f32.mrf.mxu0
        %v3609 = vpop.f32.mrf.mxu0
        %v3610 = vadd.f32 %v3482, %v3609
        %v3611 = vpop.f32.mrf.mxu0
        %3612 = vmatprep.mubr.bf16.mxu0 0
        %3613 = vmatmul.mubr.bf16.gmra.mxu0 %v3503
        %v3614 = vpop.f32.mrf.mxu0
        %v3615 = vadd.f32 %v3482, %v3614
        %v3616 = vpop.f32.mrf.mxu0
        %v3617 = vpop.f32.mrf.mxu0
        %v3618 = vadd.f32 %v3482, %v3617
        %v3619 = vpop.f32.mrf.mxu0
        %3620 = vmatprep.mubr.bf16.mxu0 0
        %3621 = vmatmul.mubr.bf16.gmra.mxu0 %v3506
        %v3622 = vpop.f32.mrf.mxu0
        %v3623 = vadd.f32 %v3482, %v3622
        %v3624 = vpop.f32.mrf.mxu0
        %v3625 = vpop.f32.mrf.mxu0
        %v3626 = vadd.f32 %v3482, %v3625
        %v3627 = vpop.f32.mrf.mxu0
        %3628 = vmatprep.mubr.bf16.mxu0 0
        %3629 = vmatmul.mubr.bf16.gmra.mxu0 %v3509
        %v3630 = vpop.f32.mrf.mxu0
        %v3631 = vadd.f32 %v3482, %v3630
        %v3632 = vpop.f32.mrf.mxu0
        %v3633 = vpop.f32.mrf.mxu0
        %v3634 = vadd.f32 %v3482, %v3633
        %v3635 = vpop.f32.mrf.mxu0
        %3636 = vmatprep.mubr.bf16.mxu0 0
        %3637 = vmatmul.mubr.bf16.gmra.mxu0 %v3512
        %v3638 = vpop.f32.mrf.mxu0
        %v3639 = vadd.f32 %v3482, %v3638
        %v3640 = vpop.f32.mrf.mxu0
        %v3641 = vpop.f32.mrf.mxu0
        %v3642 = vadd.f32 %v3482, %v3641
        %v3643 = vpop.f32.mrf.mxu0
        %3644 = vmatprep.mubr.bf16.mxu0 0
        %3645 = vmatmul.mubr.bf16.gmra.mxu0 %v3515
        %v3646 = vpop.f32.mrf.mxu0
        %v3647 = vadd.f32 %v3482, %v3646
        %v3648 = vpop.f32.mrf.mxu0
        %v3649 = vpop.f32.mrf.mxu0
        %v3650 = vadd.f32 %v3482, %v3649
        %v3651 = vpop.f32.mrf.mxu0
        %3652 = vmatprep.mubr.bf16.mxu0 0
        %3653 = vmatmul.mubr.bf16.gmra.mxu0 %v3518
        %v3654 = vpop.f32.mrf.mxu0
        %v3655 = vadd.f32 %v3482, %v3654
        %v3656 = vpop.f32.mrf.mxu0
        %v3657 = vpop.f32.mrf.mxu0
        %v3658 = vadd.f32 %v3482, %v3657
        %v3659 = vpop.f32.mrf.mxu0
        %3660 = vmatprep.mubr.bf16.mxu0 0
        %3661 = vmatmul.mubr.bf16.gmra.mxu0 %v3521
        %v3662 = vpop.f32.mrf.mxu0
        %v3663 = vadd.f32 %v3482, %v3662
        %v3664 = vpop.f32.mrf.mxu0
        %v3665 = vpop.f32.mrf.mxu0
        %v3666 = vadd.f32 %v3482, %v3665
        %v3667 = vpop.f32.mrf.mxu0
        %3668 = vmatprep.mubr.bf16.mxu0 0
        %3669 = vmatmul.mubr.bf16.gmra.mxu0 %v3524
        %v3670 = vpop.f32.mrf.mxu0
        %v3671 = vadd.f32 %v3482, %v3670
        %v3672 = vpop.f32.mrf.mxu0
        %v3673 = vpop.f32.mrf.mxu0
        %v3674 = vadd.f32 %v3482, %v3673
        %v3675 = vpop.f32.mrf.mxu0
        %3676 = vmatprep.mubr.bf16.mxu0 0
        %3677 = vmatmul.mubr.bf16.gmra.mxu0 %v3527
        %v3678 = vpop.f32.mrf.mxu0
        %v3679 = vadd.f32 %v3482, %v3678
        %v3680 = vpop.f32.mrf.mxu0
        %v3681 = vpop.f32.mrf.mxu0
        %v3682 = vadd.f32 %v3482, %v3681
        %v3683 = vpop.f32.mrf.mxu0
        %3684 = vmatprep.mubr.bf16.mxu0 0
        %3685 = vmatmul.mubr.bf16.gmra.mxu0 %v3530
        %v3686 = vpop.f32.mrf.mxu0
        %v3687 = vadd.f32 %v3482, %v3686
        %v3688 = vpop.f32.mrf.mxu0
        %v3689 = vpop.f32.mrf.mxu0
        %v3690 = vadd.f32 %v3482, %v3689
        %v3691 = vpop.f32.mrf.mxu0
        %3692 = vdwg.mxu0
        %3693 = vst.msk [vmem:[%s285] sm:$0xff] %vm343, %v3567
        %3694 = vst.msk [vmem:[%s285 + $0x8] sm:$0xff] %vm343, %v3570
        %3695 = vst.msk [vmem:[%s285 + $0x10] sm:$0xff] %vm343, %v3575
        %3696 = vst.msk [vmem:[%s285 + $0x18] sm:$0xff] %vm343, %v3578
        %3697 = vst.msk [vmem:[%s285 + $0x20] sm:$0xff] %vm343, %v3583
        %3698 = vst.msk [vmem:[%s285 + $0x28] sm:$0xff] %vm343, %v3586
        %3699 = vst.msk [vmem:[%s285 + $0x30] sm:$0xff] %vm343, %v3591
        %3700 = vst.msk [vmem:[%s285 + $0x38] sm:$0xff] %vm343, %v3594
        %3701 = vst.msk [vmem:[%s285 + $0x40] sm:$0xff] %vm343, %v3599
        %3702 = vst.msk [vmem:[%s285 + $0x48] sm:$0xff] %vm343, %v3602
        %3703 = vst.msk [vmem:[%s285 + $0x50] sm:$0xff] %vm343, %v3607
        %3704 = vst.msk [vmem:[%s285 + $0x58] sm:$0xff] %vm343, %v3610
        %3705 = vst.msk [vmem:[%s285 + $0x60] sm:$0xff] %vm343, %v3615
        %3706 = vst.msk [vmem:[%s285 + $0x68] sm:$0xff] %vm343, %v3618
        %3707 = vst.msk [vmem:[%s285 + $0x70] sm:$0xff] %vm343, %v3623
        %3708 = vst.msk [vmem:[%s285 + $0x78] sm:$0xff] %vm343, %v3626
        %3709 = vst.msk [vmem:[%s285 + $0x80] sm:$0xff] %vm343, %v3631
        %3710 = vst.msk [vmem:[%s285 + $0x88] sm:$0xff] %vm343, %v3634
        %3711 = vst.msk [vmem:[%s285 + $0x90] sm:$0xff] %vm343, %v3639
        %3712 = vst.msk [vmem:[%s285 + $0x98] sm:$0xff] %vm343, %v3642
        %3713 = vst.msk [vmem:[%s285 + $0xa0] sm:$0xff] %vm343, %v3647
        %3714 = vst.msk [vmem:[%s285 + $0xa8] sm:$0xff] %vm343, %v3650
        %3715 = vst.msk [vmem:[%s285 + $0xb0] sm:$0xff] %vm343, %v3655
        %3716 = vst.msk [vmem:[%s285 + $0xb8] sm:$0xff] %vm343, %v3658
        %3717 = vst.msk [vmem:[%s285 + $0xc0] sm:$0xff] %vm343, %v3663
        %3718 = vst.msk [vmem:[%s285 + $0xc8] sm:$0xff] %vm343, %v3666
        %3719 = vst.msk [vmem:[%s285 + $0xd0] sm:$0xff] %vm343, %v3671
        %3720 = vst.msk [vmem:[%s285 + $0xd8] sm:$0xff] %vm343, %v3674
        %3721 = vst.msk [vmem:[%s285 + $0xe0] sm:$0xff] %vm343, %v3679
        %3722 = vst.msk [vmem:[%s285 + $0xe8] sm:$0xff] %vm343, %v3682
        %3723 = vst.msk [vmem:[%s285 + $0xf0] sm:$0xff] %vm343, %v3687
        %3724 = vst.msk [vmem:[%s285 + $0xf8] sm:$0xff] %vm343, %v3690
        %s3725 = sand.u32 %s163, 1
        %s3726 = scalar_lea.sflag [#allocation4], %s3725
        %s3727 = sand.u32 %s163, 1
        %s3728 = smul.addr %s3727, 256
        %s3729 = scalar_lea.vmem [#allocation7], %s3728
        // Predicated region
        $region53: #{tpu_custom_call.1} parent=43 // pred_check
          %p3730 = pneg %p173
        $region54: #{tpu_custom_call.1} parent=43 // pred_check_branch
          %3732 = sbr.rel (%p3730) target = $region56
        $region55: #{tpu_custom_call.1} parent=43 // pred_region
          %s3733 = smul.u32 8, %s24
          %s3735 = ssub.s32 4096, 4096
          %3736 = vsyncadd %s3726, %s3735
          %s3737 = smul.addr %s3733, 4
          %s3738 = smul.addr %s3737, 128
          %s3739 = scalar_lea.hbm %s6, %s3738
          %s3740 = sshll.u32 %s3729, 4
          %s3741 = int_to_ptr.vmem [resolvable:$true] %s3740
          %3746 = dma.vmem_to_hbm [thread:$0]  %s3741, 4096, %s3739, %s3726, 128, 128, 8
        $region56: #{tpu_custom_call.1} parent=43 // pred_fallthru
          _
      $region44: #{tpu_custom_call.1} parent=5 // pred_fallthru
        _
      %p3747 = scmp.le.s32.totalorder 2, %s19
      // Predicated region
      $region57: #{tpu_custom_call.1} parent=5 // pred_check
        %p3748 = pneg %p3747
      $region58: #{tpu_custom_call.1} parent=5 // pred_check_branch
        %3750 = sbr.rel (%p3748) target = $region60
      $region59: #{tpu_custom_call.1} parent=5 // pred_region
        %s3751 = ssub.s32 %s19, 2
        // Predicated region
        $region61: #{tpu_custom_call.1} parent=59 // pred_check
          %p3752 = pneg %p179
        $region62: #{tpu_custom_call.1} parent=59 // pred_check_branch
          %3754 = sbr.rel (%p3752) target = $region64
        $region63: #{tpu_custom_call.1} parent=59 // pred_region
          %s3755 = sand.u32 %s164, 1
          %s3756 = scalar_lea.sflag [#allocation4], %s3755
          %s3757 = sand.u32 %s164, 1
          %s3758 = smul.addr %s3757, 256
          %s3759 = scalar_lea.vmem [#allocation7], %s3758
          %3760 = dma.done %s3756, 4096
        $region64: #{tpu_custom_call.1} parent=59 // pred_fallthru
          _
      $region60: #{tpu_custom_call.1} parent=5 // pred_fallthru
        _
    $region6: #{tpu_custom_call.1} parent=1 // loop_footer
      %s23 = sadd.s32 1, %s19
    $region7: #{tpu_custom_call.1} parent=1 // loop_footer_branch
      %18 = sbr.rel target = $region3
    $region8: #{tpu_custom_call.1} parent=1 // loop_exit
      _
    %3761 = vsyncpa [#allocation3], 1
    %s3762 = scalar_lea.sflag [#allocation3], 1
    %3763 = vsyncpa %s3762, 1
    %3764 = vsyncpa [#allocation6], 1
    %3765 = vsyncpa [#allocation4], 1
    %s3766 = scalar_lea.sflag [#allocation4], 1
    %3767 = vsyncpa %s3766, 1

// kernel: tpu_custom_call.1
$region0: #{tpu_custom_call.1}
  #allocation0 [shape = 'u32[]', space=smem, size = 0x4, offset = 0x4, fixed_abs, tag = 'smem constant byte address 0x4 - core index']
  #allocation1 [shape = 'u32[144,128]{1,0:T(1,128)}', space=vmem, size = 0x12000, scoped, tag = 'internal scratch']
  %s0 = inlined_call_operand.hbm [shape: f32[16,32,32], index: 0, kind: input, shape index: {}]
  %s1 = inlined_call_operand.vmem [shape: f32[32,96], index: 1, kind: input, shape index: {}]
  %s2 = inlined_call_operand.hbm [shape: bf16[8,32,128], index: 2, kind: input, shape index: {}]
  %s3 = inlined_call_operand.vmem [shape: bf16[128,32], index: 3, kind: input, shape index: {}]
  %s4 = inlined_call_operand.vmem [shape: f32[32,32], index: 4, kind: input, shape index: {}]
  %s5 = inlined_call_operand.vmem [shape: f32[1,32], index: 5, kind: input, shape index: {}]
  %s6 = inlined_call_operand.hbm [shape: f32[16,32,32], index: 6, kind: output, shape index: {}]
  %s7 = sld [smem:[#allocation0]]
  $region65: #{tpu_custom_call.1} parent=0
    _
  %s9 = ssub.s32 1, %s7
  %s10 = scalar_select 0, %s9, %s7
  $region1: #{tpu_custom_call.1} parent=0
    #allocation2 [shape = 'u8[262144]{0}', space=vmem, size = 0x40000, scoped, tag = 'input window, operand 0']
    #allocation3 [shape = 's32[2]{0}', space=sflag, size = 0x8, scoped, tag = 'scoped memory for tpu_custom_call.1']
    #allocation4 [shape = 's32[2]{0}', space=sflag, size = 0x8, scoped, tag = 'scoped memory for tpu_custom_call.1']
    #allocation5 [shape = 'u8[65536]{0}', space=vmem, size = 0x10000, scoped, tag = 'input window, operand 2, single buffered']
    #allocation6 [shape = 's32[1]{0}', space=sflag, size = 0x4, scoped, tag = 'scoped memory for tpu_custom_call.1']
    #allocation7 [shape = 'u8[262144]{0}', space=vmem, size = 0x40000, scoped, tag = 'output window, operand 0']
    %11 = vsyncpa [#allocation3], 0
    %s12 = scalar_lea.sflag [#allocation3], 1
    %13 = vsyncpa %s12, 0
    %14 = vsyncpa [#allocation6], 0
    %15 = vsyncpa [#allocation4], 0
    %s16 = scalar_lea.sflag [#allocation4], 1
    %17 = vsyncpa %s16, 0
    loop: start=0, step=1, limit=4
    $region2: #{tpu_custom_call.1} parent=1 // loop_pre_header
      _
    $region3: #{tpu_custom_call.1} parent=1 // loop_header
      %s19 = sphi 0, %s23
      %p20 = scmp.ge.s32.totalorder %s19, 4
      %s29 = sphi 0, %s31
      %s32 = sphi 0, %s29
      %s33 = sphi 0, %s32
      %s49 = sphi 0, %s33
      %s53 = sphi 0, %s53
      %s55 = sphi 0, %s53
      %s56 = sphi 0, %s55
      %s70 = sphi 0, %s56
      %s74 = sphi 0, %s74
      %s76 = sphi 0, %s74
      %s77 = sphi 0, %s76
      %s91 = sphi 0, %s77
      %s95 = sphi 0, %s95
      %s97 = sphi 0, %s95
      %s98 = sphi 0, %s97
      %s112 = sphi 0, %s98
      %s116 = sphi 0, %s116
      %s118 = sphi 0, %s116
      %s119 = sphi 0, %s118
      %s133 = sphi 0, %s119
      %s137 = sphi 0, %s137
      %s139 = sphi 0, %s137
      %s140 = sphi 0, %s139
      %s154 = sphi 0, %s140
      %s160 = sphi 0, %s162
      %s163 = sphi 0, %s160
      %s164 = sphi 0, %s163
      %s180 = sphi 0, %s164
    $region4: #{tpu_custom_call.1} parent=1 // loop_header_branch
      %22 = sbr.rel (%p20) target = $region8
    $region5: #{tpu_custom_call.1} parent=1 // loop_body
      %s24 = ssub.s32 %s19, 1
      %s25 = ssub.s32 %s19, 2
      %s26 = sadd.s32 %s19, 1
      %s27 = ssub.s32 %s19, %s26
      %p28 = scmp.eq.s32.totalorder %s27, 0
      %s30 = sadd.s32 %s29, 1
      %s31 = scalar_select %p28, %s29, %s30
      %p34 = pneg %p28
      %p35 = scmp.eq.s32.totalorder %s19, 1
      %p36 = por %p34, %p35
      %p37 = scmp.ne.s32.totalorder %s29, %s32
      %p38 = scmp.eq.s32.totalorder %s19, 0
      %p39 = por %p37, %p38
      %p40 = scmp.ne.s32.totalorder %s29, %s32
      %p41 = scmp.eq.s32.totalorder %s24, 1
      %p42 = por %p40, %p41
      %p43 = scmp.ne.s32.totalorder %s32, %s33
      %p44 = scmp.eq.s32.totalorder %s24, 0
      %p45 = por %p43, %p44
      %p46 = scmp.ne.s32.totalorder %s32, %s33
      %p47 = scmp.eq.s32.totalorder %s25, 1
      %p48 = por %p46, %p47
      %p50 = scmp.ne.s32.totalorder %s33, %s49
      %p51 = scmp.eq.s32.totalorder %s25, 0
      %p52 = por %p50, %p51
      %s54 = sadd.s32 %s53, 1
      %p57 = scmp.eq.s32.totalorder %s19, 1
      %p58 = scmp.ne.s32.totalorder %s53, %s55
      %p59 = scmp.eq.s32.totalorder %s19, 0
      %p60 = por %p58, %p59
      %p61 = scmp.ne.s32.totalorder %s53, %s55
      %p62 = scmp.eq.s32.totalorder %s24, 1
      %p63 = por %p61, %p62
      %p64 = scmp.ne.s32.totalorder %s55, %s56
      %p65 = scmp.eq.s32.totalorder %s24, 0
      %p66 = por %p64, %p65
      %p67 = scmp.ne.s32.totalorder %s55, %s56
      %p68 = scmp.eq.s32.totalorder %s25, 1
      %p69 = por %p67, %p68
      %p71 = scmp.ne.s32.totalorder %s56, %s70
      %p72 = scmp.eq.s32.totalorder %s25, 0
      %p73 = por %p71, %p72
      %s75 = sadd.s32 %s74, 1
      %p78 = scmp.eq.s32.totalorder %s19, 1
      %p79 = scmp.ne.s32.totalorder %s74, %s76
      %p80 = scmp.eq.s32.totalorder %s19, 0
      %p81 = por %p79, %p80
      %p82 = scmp.ne.s32.totalorder %s74, %s76
      %p83 = scmp.eq.s32.totalorder %s24, 1
      %p84 = por %p82, %p83
      %p85 = scmp.ne.s32.totalorder %s76, %s77
      %p86 = scmp.eq.s32.totalorder %s24, 0
      %p87 = por %p85, %p86
      %p88 = scmp.ne.s32.totalorder %s76, %s77
      %p89 = scmp.eq.s32.totalorder %s25, 1
      %p90 = por %p88, %p89
      %p92 = scmp.ne.s32.totalorder %s77, %s91
      %p93 = scmp.eq.s32.totalorder %s25, 0
      %p94 = por %p92, %p93
      %s96 = sadd.s32 %s95, 1
      %p99 = scmp.eq.s32.totalorder %s19, 1
      %p100 = scmp.ne.s32.totalorder %s95, %s97
      %p101 = scmp.eq.s32.totalorder %s19, 0
      %p102 = por %p100, %p101
      %p103 = scmp.ne.s32.totalorder %s95, %s97
      %p104 = scmp.eq.s32.totalorder %s24, 1
      %p105 = por %p103, %p104
      %p106 = scmp.ne.s32.totalorder %s97, %s98
      %p107 = scmp.eq.s32.totalorder %s24, 0
      %p108 = por %p106, %p107
      %p109 = scmp.ne.s32.totalorder %s97, %s98
      %p110 = scmp.eq.s32.totalorder %s25, 1
      %p111 = por %p109, %p110
      %p113 = scmp.ne.s32.totalorder %s98, %s112
      %p114 = scmp.eq.s32.totalorder %s25, 0
      %p115 = por %p113, %p114
      %s117 = sadd.s32 %s116, 1
      %p120 = scmp.eq.s32.totalorder %s19, 1
      %p121 = scmp.ne.s32.totalorder %s116, %s118
      %p122 = scmp.eq.s32.totalorder %s19, 0
      %p123 = por %p121, %p122
      %p124 = scmp.ne.s32.totalorder %s116, %s118
      %p125 = scmp.eq.s32.totalorder %s24, 1
      %p126 = por %p124, %p125
      %p127 = scmp.ne.s32.totalorder %s118, %s119
      %p128 = scmp.eq.s32.totalorder %s24, 0
      %p129 = por %p127, %p128
      %p130 = scmp.ne.s32.totalorder %s118, %s119
      %p131 = scmp.eq.s32.totalorder %s25, 1
      %p132 = por %p130, %p131
      %p134 = scmp.ne.s32.totalorder %s119, %s133
      %p135 = scmp.eq.s32.totalorder %s25, 0
      %p136 = por %p134, %p135
      %s138 = sadd.s32 %s137, 1
      %p141 = scmp.eq.s32.totalorder %s19, 1
      %p142 = scmp.ne.s32.totalorder %s137, %s139
      %p143 = scmp.eq.s32.totalorder %s19, 0
      %p144 = por %p142, %p143
      %p145 = scmp.ne.s32.totalorder %s137, %s139
      %p146 = scmp.eq.s32.totalorder %s24, 1
      %p147 = por %p145, %p146
      %p148 = scmp.ne.s32.totalorder %s139, %s140
      %p149 = scmp.eq.s32.totalorder %s24, 0
      %p150 = por %p148, %p149
      %p151 = scmp.ne.s32.totalorder %s139, %s140
      %p152 = scmp.eq.s32.totalorder %s25, 1
      %p153 = por %p151, %p152
      %p155 = scmp.ne.s32.totalorder %s140, %s154
      %p156 = scmp.eq.s32.totalorder %s25, 0
      %p157 = por %p155, %p156
      %s158 = ssub.s32 %s19, %s26
      %p159 = scmp.eq.s32.totalorder %s158, 0
      %s161 = sadd.s32 %s160, 1
      %s162 = scalar_select %p159, %s160, %s161
      %p165 = pneg %p159
      %p166 = scmp.eq.s32.totalorder %s19, 1
      %p167 = por %p165, %p166
      %p168 = scmp.ne.s32.totalorder %s160, %s163
      %p169 = scmp.eq.s32.totalorder %s19, 0
      %p170 = por %p168, %p169
      %p171 = scmp.ne.s32.totalorder %s160, %s163
      %p172 = scmp.eq.s32.totalorder %s24, 1
      %p173 = por %p171, %p172
      %p174 = scmp.ne.s32.totalorder %s163, %s164
      %p175 = scmp.eq.s32.totalorder %s24, 0
      %p176 = por %p174, %p175
      %p177 = scmp.ne.s32.totalorder %s163, %s164
      %p178 = scmp.eq.s32.totalorder %s25, 1
      %p179 = por %p177, %p178
      %p181 = scmp.ne.s32.totalorder %s164, %s180
      %p182 = scmp.eq.s32.totalorder %s25, 0
      %p183 = por %p181, %p182
      %p184 = scmp.le.s32.totalorder 1, %s19
      %p185 = scmp.lt.s32.totalorder %s19, 3
      %p186 = pnand %p184, %p185
      %p187 = pneg %p186
      // Predicated region
      $region9: #{tpu_custom_call.1} parent=5 // pred_check
        _
      $region10: #{tpu_custom_call.1} parent=5 // pred_check_branch
        %189 = sbr.rel (%p186) target = $region12
      $region11: #{tpu_custom_call.1} parent=5 // pred_region
        %s190 = ssub.s32 %s19, 1
        // Predicated region
        $region13: #{tpu_custom_call.1} parent=11 // pred_check
          %p191 = pneg %p66
        $region14: #{tpu_custom_call.1} parent=11 // pred_check_branch
          %193 = sbr.rel (%p191) target = $region16
        $region15: #{tpu_custom_call.1} parent=11 // pred_region
          _
        $region16: #{tpu_custom_call.1} parent=11 // pred_fallthru
          _
        // Predicated region
        $region17: #{tpu_custom_call.1} parent=11 // pred_check
          %p194 = pneg %p87
        $region18: #{tpu_custom_call.1} parent=11 // pred_check_branch
          %196 = sbr.rel (%p194) target = $region20
        $region19: #{tpu_custom_call.1} parent=11 // pred_region
          %s198 = ssub.s32 2048, 2048
          %199 = vsyncadd [#allocation6], %s198
          %s200 = sshll.u32 [#allocation5], 4
          %s201 = int_to_ptr.vmem [resolvable:$true] %s200
          %206 = dma.hbm_to_vmem [thread:$0]  %s2, 2048, %s201, [#allocation6], 64, 64, 4
        $region20: #{tpu_custom_call.1} parent=11 // pred_fallthru
          _
        // Predicated region
        $region21: #{tpu_custom_call.1} parent=11 // pred_check
          %p207 = pneg %p108
        $region22: #{tpu_custom_call.1} parent=11 // pred_check_branch
          %209 = sbr.rel (%p207) target = $region24
        $region23: #{tpu_custom_call.1} parent=11 // pred_region
          _
        $region24: #{tpu_custom_call.1} parent=11 // pred_fallthru
          _
        // Predicated region
        $region25: #{tpu_custom_call.1} parent=11 // pred_check
          %p210 = pneg %p129
        $region26: #{tpu_custom_call.1} parent=11 // pred_check_branch
          %212 = sbr.rel (%p210) target = $region28
        $region27: #{tpu_custom_call.1} parent=11 // pred_region
          _
        $region28: #{tpu_custom_call.1} parent=11 // pred_fallthru
          _
        // Predicated region
        $region29: #{tpu_custom_call.1} parent=11 // pred_check
          %p213 = pneg %p150
        $region30: #{tpu_custom_call.1} parent=11 // pred_check_branch
          %215 = sbr.rel (%p213) target = $region32
        $region31: #{tpu_custom_call.1} parent=11 // pred_region
          _
        $region32: #{tpu_custom_call.1} parent=11 // pred_fallthru
          _
      $region12: #{tpu_custom_call.1} parent=5 // pred_fallthru
        _
      %p216 = scmp.lt.s32.totalorder %s19, 2
      // Predicated region
      $region33: #{tpu_custom_call.1} parent=5 // pred_check
        %p217 = pneg %p216
      $region34: #{tpu_custom_call.1} parent=5 // pred_check_branch
        %219 = sbr.rel (%p217) target = $region36
      $region35: #{tpu_custom_call.1} parent=5 // pred_region
        // Predicated region
        $region37: #{tpu_custom_call.1} parent=35 // pred_check
          %p220 = pneg %p39
        $region38: #{tpu_custom_call.1} parent=35 // pred_check_branch
          %222 = sbr.rel (%p220) target = $region40
        $region39: #{tpu_custom_call.1} parent=35 // pred_region
          %s223 = sand.u32 %s29, 1
          %s224 = scalar_lea.sflag [#allocation3], %s223
          %s225 = sand.u32 %s29, 1
          %s226 = smul.addr %s225, 256
          %s227 = scalar_lea.vmem [#allocation2], %s226
          %s228 = smul.u32 8, %s19
          %s230 = ssub.s32 4096, 4096
          %231 = vsyncadd %s224, %s230
          %s232 = smul.addr %s228, 4
          %s233 = smul.addr %s232, 128
          %s234 = scalar_lea.hbm %s0, %s233
          %s235 = sshll.u32 %s227, 4
          %s236 = int_to_ptr.vmem [resolvable:$true] %s235
          %241 = dma.hbm_to_vmem [thread:$0]  %s234, 4096, %s236, %s224, 128, 128, 8
        $region40: #{tpu_custom_call.1} parent=35 // pred_fallthru
          _
      $region36: #{tpu_custom_call.1} parent=5 // pred_fallthru
        _
      %p242 = scmp.le.s32.totalorder 1, %s19
      %p243 = scmp.lt.s32.totalorder %s19, 3
      %p244 = pnand %p242, %p243
      %p245 = pneg %p244
      // Predicated region
      $region41: #{tpu_custom_call.1} parent=5 // pred_check
        _
      $region42: #{tpu_custom_call.1} parent=5 // pred_check_branch
        %247 = sbr.rel (%p244) target = $region44
      $region43: #{tpu_custom_call.1} parent=5 // pred_region
        %s248 = ssub.s32 %s19, 1
        %s249 = sand.u32 %s32, 1
        %s250 = scalar_lea.sflag [#allocation3], %s249
        %s251 = sand.u32 %s32, 1
        %s252 = smul.addr %s251, 256
        %s253 = scalar_lea.vmem [#allocation2], %s252
        // Predicated region
        $region45: #{tpu_custom_call.1} parent=43 // pred_check
          %p254 = pneg %p45
        $region46: #{tpu_custom_call.1} parent=43 // pred_check_branch
          %256 = sbr.rel (%p254) target = $region48
        $region47: #{tpu_custom_call.1} parent=43 // pred_region
          %257 = dma.done %s250, 4096
        $region48: #{tpu_custom_call.1} parent=43 // pred_fallthru
          _
        // Predicated region
        $region49: #{tpu_custom_call.1} parent=43 // pred_check
          %p258 = pneg %p87
        $region50: #{tpu_custom_call.1} parent=43 // pred_check_branch
          %260 = sbr.rel (%p258) target = $region52
        $region51: #{tpu_custom_call.1} parent=43 // pred_region
          %261 = dma.done [#allocation6], 2048
        $region52: #{tpu_custom_call.1} parent=43 // pred_fallthru
          _
        %s262 = sand.u32 %s32, 1
        %s263 = scalar_lea.sflag [#allocation3], %s262
        %s264 = sand.u32 %s32, 1
        %s265 = smul.addr %s264, 256
        %s266 = scalar_lea.vmem [#allocation2], %s265
        %p267 = pneg %p45
        %p268 = pneg %p42
        %p269 = pneg %p66
        %p270 = pneg %p63
        %p271 = pneg %p87
        %p272 = pneg %p84
        %p273 = pneg %p108
        %p274 = pneg %p105
        %p275 = pneg %p129
        %p276 = pneg %p126
        %p277 = pneg %p150
        %p278 = pneg %p147
        %p279 = pneg %p176
        %p280 = pneg %p173
        %s281 = sand.u32 %s163, 1
        %s282 = scalar_lea.sflag [#allocation4], %s281
        %s283 = sand.u32 %s163, 1
        %s284 = smul.addr %s283, 256
        %s285 = scalar_lea.vmem [#allocation7], %s284
        %s286 = smul.u32 8, %s24
        %s287 = smul.u32 8, %s24
        %v289 = vld [vmem:[%s253] sm:$0xff]
        %v290 = vld [vmem:[%s253 + $0x8] sm:$0xff]
        %v291 = vld [vmem:[%s253 + $0x10] sm:$0xff]
        %v292 = vld [vmem:[%s253 + $0x18] sm:$0xff]
        %v293 = vld [vmem:[%s253 + $0x20] sm:$0xff]
        %v294 = vld [vmem:[%s253 + $0x28] sm:$0xff]
        %v295 = vld [vmem:[%s253 + $0x30] sm:$0xff]
        %v296 = vld [vmem:[%s253 + $0x38] sm:$0xff]
        %v297 = vld [vmem:[%s253 + $0x40] sm:$0xff]
        %v298 = vld [vmem:[%s253 + $0x48] sm:$0xff]
        %v299 = vld [vmem:[%s253 + $0x50] sm:$0xff]
        %v300 = vld [vmem:[%s253 + $0x58] sm:$0xff]
        %v301 = vld [vmem:[%s253 + $0x60] sm:$0xff]
        %v302 = vld [vmem:[%s253 + $0x68] sm:$0xff]
        %v303 = vld [vmem:[%s253 + $0x70] sm:$0xff]
        %v304 = vld [vmem:[%s253 + $0x78] sm:$0xff]
        %v305 = vld [vmem:[%s253 + $0x80] sm:$0xff]
        %v306 = vld [vmem:[%s253 + $0x88] sm:$0xff]
        %v307 = vld [vmem:[%s253 + $0x90] sm:$0xff]
        %v308 = vld [vmem:[%s253 + $0x98] sm:$0xff]
        %v309 = vld [vmem:[%s253 + $0xa0] sm:$0xff]
        %v310 = vld [vmem:[%s253 + $0xa8] sm:$0xff]
        %v311 = vld [vmem:[%s253 + $0xb0] sm:$0xff]
        %v312 = vld [vmem:[%s253 + $0xb8] sm:$0xff]
        %v313 = vld [vmem:[%s253 + $0xc0] sm:$0xff]
        %v314 = vld [vmem:[%s253 + $0xc8] sm:$0xff]
        %v315 = vld [vmem:[%s253 + $0xd0] sm:$0xff]
        %v316 = vld [vmem:[%s253 + $0xd8] sm:$0xff]
        %v317 = vld [vmem:[%s253 + $0xe0] sm:$0xff]
        %v318 = vld [vmem:[%s253 + $0xe8] sm:$0xff]
        %v319 = vld [vmem:[%s253 + $0xf0] sm:$0xff]
        %v320 = vld [vmem:[%s253 + $0xf8] sm:$0xff]
        %v321 = vpack.c.bf16 %v290, %v289
        %v322 = vpack.c.bf16 %v292, %v291
        %v323 = vpack.c.bf16 %v294, %v293
        %v324 = vpack.c.bf16 %v296, %v295
        %v325 = vpack.c.bf16 %v298, %v297
        %v326 = vpack.c.bf16 %v300, %v299
        %v327 = vpack.c.bf16 %v302, %v301
        %v328 = vpack.c.bf16 %v304, %v303
        %v329 = vpack.c.bf16 %v306, %v305
        %v330 = vpack.c.bf16 %v308, %v307
        %v331 = vpack.c.bf16 %v310, %v309
        %v332 = vpack.c.bf16 %v312, %v311
        %v333 = vpack.c.bf16 %v314, %v313
        %v334 = vpack.c.bf16 %v316, %v315
        %v335 = vpack.c.bf16 %v318, %v317
        %v336 = vpack.c.bf16 %v320, %v319
        %v337 = vld [vmem:[%s1] sm:$0xff]
        %v338 = vld [vmem:[%s1 + $0x8] sm:$0xff]
        %v339 = vld [vmem:[%s1 + $0x10] sm:$0xff]
        %v340 = vld [vmem:[%s1 + $0x18] sm:$0xff]
        %v341 = vpack.c.bf16 %v338, %v337
        %v342 = vpack.c.bf16 %v340, %v339
        %vm343 = vcmask 261120
        %v345 = vsel %vm343, %v321, 0
        %v348 = vsel %vm343, %v322, 0
        %v351 = vsel %vm343, %v323, 0
        %v354 = vsel %vm343, %v324, 0
        %v357 = vsel %vm343, %v325, 0
        %v360 = vsel %vm343, %v326, 0
        %v363 = vsel %vm343, %v327, 0
        %v366 = vsel %vm343, %v328, 0
        %v369 = vsel %vm343, %v329, 0
        %v372 = vsel %vm343, %v330, 0
        %v375 = vsel %vm343, %v331, 0
        %v378 = vsel %vm343, %v332, 0
        %v381 = vsel %vm343, %v333, 0
        %v384 = vsel %vm343, %v334, 0
        %v387 = vsel %vm343, %v335, 0
        %v390 = vsel %vm343, %v336, 0
        %392 = vmatprep.subr.bf16.mxu0 0
        %393 = vmatpush1.bf16.msra.mxu0 0
        %394 = vmatprep.subr.bf16.mxu0 0
        %395 = vmatpush1.bf16.msra.mxu0 0
        %396 = vmatprep.subr.bf16.mxu0 0
        %397 = vmatpush1.bf16.msra.mxu0 0
        %398 = vmatprep.subr.bf16.mxu0 0
        %399 = vmatpush1.bf16.msra.mxu0 0
        %400 = vmatprep.subr.bf16.mxu0 0
        %401 = vmatpush1.bf16.msra.mxu0 0
        %402 = vmatprep.subr.bf16.mxu0 0
        %403 = vmatpush1.bf16.msra.mxu0 0
        %404 = vmatprep.subr.bf16.mxu0 0
        %405 = vmatpush1.bf16.msra.mxu0 %v342
        %406 = vmatprep.subr.bf16.mxu0 0
        %407 = vmatpush1.bf16.msra.mxu0 %v341
        %408 = vmatprep.subr.bf16.mxu0 0
        %409 = vmatpush2.bf16.msra.mxu0 0
        %410 = vmatprep.subr.bf16.mxu0 0
        %411 = vmatpush2.bf16.msra.mxu0 0
        %412 = vmatprep.subr.bf16.mxu0 0
        %413 = vmatpush2.bf16.msra.mxu0 0
        %414 = vmatprep.subr.bf16.mxu0 0
        %415 = vmatpush2.bf16.msra.mxu0 0
        %416 = vmatprep.subr.bf16.mxu0 0
        %417 = vmatpush2.bf16.msra.mxu0 0
        %418 = vmatprep.subr.bf16.mxu0 0
        %419 = vmatpush2.bf16.msra.mxu0 0
        %420 = vmatprep.subr.bf16.mxu0 0
        %421 = vmatpush2.bf16.msra.mxu0 0
        %422 = vmatprep.subr.bf16.mxu0 0
        %423 = vmatpush2.bf16.msra.mxu0 0
        %424 = vmatprep.mubr.bf16.mxu0 0
        %425 = vmatmul.mubr.bf16.gmra.mxu0 %v345
        %v426 = vpop.f32.mrf.mxu0
        %v427 = vadd.f32 0.0, %v426
        %v428 = vpop.f32.mrf.mxu0
        %v429 = vpop.f32.mrf.mxu0
        %v430 = vadd.f32 0.0, %v429
        %v431 = vpop.f32.mrf.mxu0
        %432 = vmatprep.mubr.bf16.mxu0 0
        %433 = vmatmul.mubr.bf16.gmra.mxu0 %v348
        %v434 = vpop.f32.mrf.mxu0
        %v435 = vadd.f32 0.0, %v434
        %v436 = vpop.f32.mrf.mxu0
        %v437 = vpop.f32.mrf.mxu0
        %v438 = vadd.f32 0.0, %v437
        %v439 = vpop.f32.mrf.mxu0
        %440 = vmatprep.mubr.bf16.mxu0 0
        %441 = vmatmul.mubr.bf16.gmra.mxu0 %v351
        %v442 = vpop.f32.mrf.mxu0
        %v443 = vadd.f32 0.0, %v442
        %v444 = vpop.f32.mrf.mxu0
        %v445 = vpop.f32.mrf.mxu0
        %v446 = vadd.f32 0.0, %v445
        %v447 = vpop.f32.mrf.mxu0
        %448 = vmatprep.mubr.bf16.mxu0 0
        %449 = vmatmul.mubr.bf16.gmra.mxu0 %v354
        %v450 = vpop.f32.mrf.mxu0
        %v451 = vadd.f32 0.0, %v450
        %v452 = vpop.f32.mrf.mxu0
        %v453 = vpop.f32.mrf.mxu0
        %v454 = vadd.f32 0.0, %v453
        %v455 = vpop.f32.mrf.mxu0
        %456 = vmatprep.mubr.bf16.mxu0 0
        %457 = vmatmul.mubr.bf16.gmra.mxu0 %v357
        %v458 = vpop.f32.mrf.mxu0
        %v459 = vadd.f32 0.0, %v458
        %v460 = vpop.f32.mrf.mxu0
        %v461 = vpop.f32.mrf.mxu0
        %v462 = vadd.f32 0.0, %v461
        %v463 = vpop.f32.mrf.mxu0
        %464 = vmatprep.mubr.bf16.mxu0 0
        %465 = vmatmul.mubr.bf16.gmra.mxu0 %v360
        %v466 = vpop.f32.mrf.mxu0
        %v467 = vadd.f32 0.0, %v466
        %v468 = vpop.f32.mrf.mxu0
        %v469 = vpop.f32.mrf.mxu0
        %v470 = vadd.f32 0.0, %v469
        %v471 = vpop.f32.mrf.mxu0
        %472 = vmatprep.mubr.bf16.mxu0 0
        %473 = vmatmul.mubr.bf16.gmra.mxu0 %v363
        %v474 = vpop.f32.mrf.mxu0
        %v475 = vadd.f32 0.0, %v474
        %v476 = vpop.f32.mrf.mxu0
        %v477 = vpop.f32.mrf.mxu0
        %v478 = vadd.f32 0.0, %v477
        %v479 = vpop.f32.mrf.mxu0
        %480 = vmatprep.mubr.bf16.mxu0 0
        %481 = vmatmul.mubr.bf16.gmra.mxu0 %v366
        %v482 = vpop.f32.mrf.mxu0
        %v483 = vadd.f32 0.0, %v482
        %v484 = vpop.f32.mrf.mxu0
        %v485 = vpop.f32.mrf.mxu0
        %v486 = vadd.f32 0.0, %v485
        %v487 = vpop.f32.mrf.mxu0
        %488 = vmatprep.mubr.bf16.mxu0 0
        %489 = vmatmul.mubr.bf16.gmra.mxu0 %v369
        %v490 = vpop.f32.mrf.mxu0
        %v491 = vadd.f32 0.0, %v490
        %v492 = vpop.f32.mrf.mxu0
        %v493 = vpop.f32.mrf.mxu0
        %v494 = vadd.f32 0.0, %v493
        %v495 = vpop.f32.mrf.mxu0
        %496 = vmatprep.mubr.bf16.mxu0 0
        %497 = vmatmul.mubr.bf16.gmra.mxu0 %v372
        %v498 = vpop.f32.mrf.mxu0
        %v499 = vadd.f32 0.0, %v498
        %v500 = vpop.f32.mrf.mxu0
        %v501 = vpop.f32.mrf.mxu0
        %v502 = vadd.f32 0.0, %v501
        %v503 = vpop.f32.mrf.mxu0
        %504 = vmatprep.mubr.bf16.mxu0 0
        %505 = vmatmul.mubr.bf16.gmra.mxu0 %v375
        %v506 = vpop.f32.mrf.mxu0
        %v507 = vadd.f32 0.0, %v506
        %v508 = vpop.f32.mrf.mxu0
        %v509 = vpop.f32.mrf.mxu0
        %v510 = vadd.f32 0.0, %v509
        %v511 = vpop.f32.mrf.mxu0
        %512 = vmatprep.mubr.bf16.mxu0 0
        %513 = vmatmul.mubr.bf16.gmra.mxu0 %v378
        %v514 = vpop.f32.mrf.mxu0
        %v515 = vadd.f32 0.0, %v514
        %v516 = vpop.f32.mrf.mxu0
        %v517 = vpop.f32.mrf.mxu0
        %v518 = vadd.f32 0.0, %v517
        %v519 = vpop.f32.mrf.mxu0
        %520 = vmatprep.mubr.bf16.mxu0 0
        %521 = vmatmul.mubr.bf16.gmra.mxu0 %v381
        %v522 = vpop.f32.mrf.mxu0
        %v523 = vadd.f32 0.0, %v522
        %v524 = vpop.f32.mrf.mxu0
        %v525 = vpop.f32.mrf.mxu0
        %v526 = vadd.f32 0.0, %v525
        %v527 = vpop.f32.mrf.mxu0
        %528 = vmatprep.mubr.bf16.mxu0 0
        %529 = vmatmul.mubr.bf16.gmra.mxu0 %v384
        %v530 = vpop.f32.mrf.mxu0
        %v531 = vadd.f32 0.0, %v530
        %v532 = vpop.f32.mrf.mxu0
        %v533 = vpop.f32.mrf.mxu0
        %v534 = vadd.f32 0.0, %v533
        %v535 = vpop.f32.mrf.mxu0
        %536 = vmatprep.mubr.bf16.mxu0 0
        %537 = vmatmul.mubr.bf16.gmra.mxu0 %v387
        %v538 = vpop.f32.mrf.mxu0
        %v539 = vadd.f32 0.0, %v538
        %v540 = vpop.f32.mrf.mxu0
        %v541 = vpop.f32.mrf.mxu0
        %v542 = vadd.f32 0.0, %v541
        %v543 = vpop.f32.mrf.mxu0
        %544 = vmatprep.mubr.bf16.mxu0 0
        %545 = vmatmul.mubr.bf16.gmra.mxu0 %v390
        %v546 = vpop.f32.mrf.mxu0
        %v547 = vadd.f32 0.0, %v546
        %v548 = vpop.f32.mrf.mxu0
        %v549 = vpop.f32.mrf.mxu0
        %v550 = vadd.f32 0.0, %v549
        %v551 = vpop.f32.mrf.mxu0
        %552 = vdwg.mxu0
        %v553 = vld [vmem:[%s3] sm:$0xf]
        %v554 = vld [vmem:[%s3 + $0x4] sm:$0xf]
        %v555 = vld [vmem:[%s3 + $0x8] sm:$0xf]
        %v556 = vld [vmem:[%s3 + $0xc] sm:$0xf]
        %v557 = vld [vmem:[%s3 + $0x10] sm:$0xf]
        %v558 = vld [vmem:[%s3 + $0x14] sm:$0xf]
        %v559 = vld [vmem:[%s3 + $0x18] sm:$0xf]
        %v560 = vld [vmem:[%s3 + $0x1c] sm:$0xf]
        %v561 = vld [vmem:[%s3 + $0x20] sm:$0xf]
        %v562 = vld [vmem:[%s3 + $0x24] sm:$0xf]
        %v563 = vld [vmem:[%s3 + $0x28] sm:$0xf]
        %v564 = vld [vmem:[%s3 + $0x2c] sm:$0xf]
        %v565 = vld [vmem:[%s3 + $0x30] sm:$0xf]
        %v566 = vld [vmem:[%s3 + $0x34] sm:$0xf]
        %v567 = vld [vmem:[%s3 + $0x38] sm:$0xf]
        %v568 = vld [vmem:[%s3 + $0x3c] sm:$0xf]
        %v569 = vpack.c.bf16 %v430, %v427
        %v570 = vpack.c.bf16 %v438, %v435
        %v571 = vpack.c.bf16 %v446, %v443
        %v572 = vpack.c.bf16 %v454, %v451
        %v573 = vpack.c.bf16 %v462, %v459
        %v574 = vpack.c.bf16 %v470, %v467
        %v575 = vpack.c.bf16 %v478, %v475
        %v576 = vpack.c.bf16 %v486, %v483
        %v577 = vpack.c.bf16 %v494, %v491
        %v578 = vpack.c.bf16 %v502, %v499
        %v579 = vpack.c.bf16 %v510, %v507
        %v580 = vpack.c.bf16 %v518, %v515
        %v581 = vpack.c.bf16 %v526, %v523
        %v582 = vpack.c.bf16 %v534, %v531
        %v583 = vpack.c.bf16 %v542, %v539
        %v584 = vpack.c.bf16 %v550, %v547
        %v601 = vunpack.c.l.b16 %v553
        %v602 = vunpack.c.l.b16 %v554
        %v603 = vunpack.c.l.b16 %v555
        %v604 = vunpack.c.l.b16 %v556
        %v605 = vunpack.c.l.b16 %v557
        %v606 = vunpack.c.l.b16 %v558
        %v607 = vunpack.c.l.b16 %v559
        %v608 = vunpack.c.l.b16 %v560
        %v609 = vunpack.c.l.b16 %v561
        %v610 = vunpack.c.l.b16 %v562
        %v611 = vunpack.c.l.b16 %v563
        %v612 = vunpack.c.l.b16 %v564
        %v613 = vunpack.c.l.b16 %v565
        %v614 = vunpack.c.l.b16 %v566
        %v615 = vunpack.c.l.b16 %v567
        %v616 = vunpack.c.l.b16 %v568
        %v617 = vpack.c.b16 %v602, %v601
        %v618 = vpack.c.b16 %v604, %v603
        %v619 = vpack.c.b16 %v606, %v605
        %v620 = vpack.c.b16 %v608, %v607
        %v621 = vpack.c.b16 %v610, %v609
        %v622 = vpack.c.b16 %v612, %v611
        %v623 = vpack.c.b16 %v614, %v613
        %v624 = vpack.c.b16 %v616, %v615
        %625 = vrot.lane.b32.xlu0 %v617, 32
        %v626 = vpop.permute.xlu0 %625
        %627 = vrot.lane.b32.xlu0 %v618, 32
        %v628 = vpop.permute.xlu0 %627
        %629 = vrot.lane.b32.xlu0 %v619, 32
        %v630 = vpop.permute.xlu0 %629
        %631 = vrot.lane.b32.xlu0 %v620, 32
        %v632 = vpop.permute.xlu0 %631
        %633 = vrot.lane.b32.xlu0 %v621, 32
        %v634 = vpop.permute.xlu0 %633
        %635 = vrot.lane.b32.xlu0 %v622, 32
        %v636 = vpop.permute.xlu0 %635
        %637 = vrot.lane.b32.xlu0 %v623, 32
        %v638 = vpop.permute.xlu0 %637
        %639 = vrot.lane.b32.xlu0 %v624, 32
        %v640 = vpop.permute.xlu0 %639
        %v649 = vmul.bf16 %v569, %v626
        %v650 = vmul.bf16 %v570, %v628
        %v651 = vmul.bf16 %v569, %v630
        %v652 = vmul.bf16 %v570, %v632
        %v653 = vmul.bf16 %v569, %v634
        %v654 = vmul.bf16 %v570, %v636
        %v655 = vmul.bf16 %v569, %v638
        %v656 = vmul.bf16 %v570, %v640
        %v657 = vmul.bf16 %v571, %v626
        %v658 = vmul.bf16 %v572, %v628
        %v659 = vmul.bf16 %v571, %v630
        %v660 = vmul.bf16 %v572, %v632
        %v661 = vmul.bf16 %v571, %v634
        %v662 = vmul.bf16 %v572, %v636
        %v663 = vmul.bf16 %v571, %v638
        %v664 = vmul.bf16 %v572, %v640
        %v665 = vmul.bf16 %v573, %v626
        %v666 = vmul.bf16 %v574, %v628
        %v667 = vmul.bf16 %v573, %v630
        %v668 = vmul.bf16 %v574, %v632
        %v669 = vmul.bf16 %v573, %v634
        %v670 = vmul.bf16 %v574, %v636
        %v671 = vmul.bf16 %v573, %v638
        %v672 = vmul.bf16 %v574, %v640
        %v673 = vmul.bf16 %v575, %v626
        %v674 = vmul.bf16 %v576, %v628
        %v675 = vmul.bf16 %v575, %v630
        %v676 = vmul.bf16 %v576, %v632
        %v677 = vmul.bf16 %v575, %v634
        %v678 = vmul.bf16 %v576, %v636
        %v679 = vmul.bf16 %v575, %v638
        %v680 = vmul.bf16 %v576, %v640
        %v681 = vmul.bf16 %v577, %v626
        %v682 = vmul.bf16 %v578, %v628
        %v683 = vmul.bf16 %v577, %v630
        %v684 = vmul.bf16 %v578, %v632
        %v685 = vmul.bf16 %v577, %v634
        %v686 = vmul.bf16 %v578, %v636
        %v687 = vmul.bf16 %v577, %v638
        %v688 = vmul.bf16 %v578, %v640
        %v689 = vmul.bf16 %v579, %v626
        %v690 = vmul.bf16 %v580, %v628
        %v691 = vmul.bf16 %v579, %v630
        %v692 = vmul.bf16 %v580, %v632
        %v693 = vmul.bf16 %v579, %v634
        %v694 = vmul.bf16 %v580, %v636
        %v695 = vmul.bf16 %v579, %v638
        %v696 = vmul.bf16 %v580, %v640
        %v697 = vmul.bf16 %v581, %v626
        %v698 = vmul.bf16 %v582, %v628
        %v699 = vmul.bf16 %v581, %v630
        %v700 = vmul.bf16 %v582, %v632
        %v701 = vmul.bf16 %v581, %v634
        %v702 = vmul.bf16 %v582, %v636
        %v703 = vmul.bf16 %v581, %v638
        %v704 = vmul.bf16 %v582, %v640
        %v705 = vmul.bf16 %v583, %v626
        %v706 = vmul.bf16 %v584, %v628
        %v707 = vmul.bf16 %v583, %v630
        %v708 = vmul.bf16 %v584, %v632
        %v709 = vmul.bf16 %v583, %v634
        %v710 = vmul.bf16 %v584, %v636
        %v711 = vmul.bf16 %v583, %v638
        %v712 = vmul.bf16 %v584, %v640
        %713 = vrot.lane.b32.xlu0 %v617, 64
        %v714 = vpop.permute.xlu0 %713
        %715 = vrot.lane.b32.xlu0 %v618, 64
        %v716 = vpop.permute.xlu0 %715
        %717 = vrot.lane.b32.xlu0 %v619, 64
        %v718 = vpop.permute.xlu0 %717
        %719 = vrot.lane.b32.xlu0 %v620, 64
        %v720 = vpop.permute.xlu0 %719
        %721 = vrot.lane.b32.xlu0 %v621, 64
        %v722 = vpop.permute.xlu0 %721
        %723 = vrot.lane.b32.xlu0 %v622, 64
        %v724 = vpop.permute.xlu0 %723
        %725 = vrot.lane.b32.xlu0 %v623, 64
        %v726 = vpop.permute.xlu0 %725
        %727 = vrot.lane.b32.xlu0 %v624, 64
        %v728 = vpop.permute.xlu0 %727
        %v737 = vmul.bf16 %v569, %v714
        %v738 = vmul.bf16 %v570, %v716
        %v739 = vmul.bf16 %v569, %v718
        %v740 = vmul.bf16 %v570, %v720
        %v741 = vmul.bf16 %v569, %v722
        %v742 = vmul.bf16 %v570, %v724
        %v743 = vmul.bf16 %v569, %v726
        %v744 = vmul.bf16 %v570, %v728
        %v745 = vmul.bf16 %v571, %v714
        %v746 = vmul.bf16 %v572, %v716
        %v747 = vmul.bf16 %v571, %v718
        %v748 = vmul.bf16 %v572, %v720
        %v749 = vmul.bf16 %v571, %v722
        %v750 = vmul.bf16 %v572, %v724
        %v751 = vmul.bf16 %v571, %v726
        %v752 = vmul.bf16 %v572, %v728
        %v753 = vmul.bf16 %v573, %v714
        %v754 = vmul.bf16 %v574, %v716
        %v755 = vmul.bf16 %v573, %v718
        %v756 = vmul.bf16 %v574, %v720
        %v757 = vmul.bf16 %v573, %v722
        %v758 = vmul.bf16 %v574, %v724
        %v759 = vmul.bf16 %v573, %v726
        %v760 = vmul.bf16 %v574, %v728
        %v761 = vmul.bf16 %v575, %v714
        %v762 = vmul.bf16 %v576, %v716
        %v763 = vmul.bf16 %v575, %v718
        %v764 = vmul.bf16 %v576, %v720
        %v765 = vmul.bf16 %v575, %v722
        %v766 = vmul.bf16 %v576, %v724
        %v767 = vmul.bf16 %v575, %v726
        %v768 = vmul.bf16 %v576, %v728
        %v769 = vmul.bf16 %v577, %v714
        %v770 = vmul.bf16 %v578, %v716
        %v771 = vmul.bf16 %v577, %v718
        %v772 = vmul.bf16 %v578, %v720
        %v773 = vmul.bf16 %v577, %v722
        %v774 = vmul.bf16 %v578, %v724
        %v775 = vmul.bf16 %v577, %v726
        %v776 = vmul.bf16 %v578, %v728
        %v777 = vmul.bf16 %v579, %v714
        %v778 = vmul.bf16 %v580, %v716
        %v779 = vmul.bf16 %v579, %v718
        %v780 = vmul.bf16 %v580, %v720
        %v781 = vmul.bf16 %v579, %v722
        %v782 = vmul.bf16 %v580, %v724
        %v783 = vmul.bf16 %v579, %v726
        %v784 = vmul.bf16 %v580, %v728
        %v785 = vmul.bf16 %v581, %v714
        %v786 = vmul.bf16 %v582, %v716
        %v787 = vmul.bf16 %v581, %v718
        %v788 = vmul.bf16 %v582, %v720
        %v789 = vmul.bf16 %v581, %v722
        %v790 = vmul.bf16 %v582, %v724
        %v791 = vmul.bf16 %v581, %v726
        %v792 = vmul.bf16 %v582, %v728
        %v793 = vmul.bf16 %v583, %v714
        %v794 = vmul.bf16 %v584, %v716
        %v795 = vmul.bf16 %v583, %v718
        %v796 = vmul.bf16 %v584, %v720
        %v797 = vmul.bf16 %v583, %v722
        %v798 = vmul.bf16 %v584, %v724
        %v799 = vmul.bf16 %v583, %v726
        %v800 = vmul.bf16 %v584, %v728
        %v801 = vld [vmem:[#allocation5] sm:$0xf]
        %v802 = vld [vmem:[#allocation5 + $0x4] sm:$0xf]
        %v803 = vld [vmem:[#allocation5 + $0x8] sm:$0xf]
        %v804 = vld [vmem:[#allocation5 + $0xc] sm:$0xf]
        %v805 = vld [vmem:[#allocation5 + $0x10] sm:$0xf]
        %v806 = vld [vmem:[#allocation5 + $0x14] sm:$0xf]
        %v807 = vld [vmem:[#allocation5 + $0x18] sm:$0xf]
        %v808 = vld [vmem:[#allocation5 + $0x1c] sm:$0xf]
        %v809 = vld [vmem:[#allocation5 + $0x20] sm:$0xf]
        %v810 = vld [vmem:[#allocation5 + $0x24] sm:$0xf]
        %v811 = vld [vmem:[#allocation5 + $0x28] sm:$0xf]
        %v812 = vld [vmem:[#allocation5 + $0x2c] sm:$0xf]
        %v813 = vld [vmem:[#allocation5 + $0x30] sm:$0xf]
        %v814 = vld [vmem:[#allocation5 + $0x34] sm:$0xf]
        %v815 = vld [vmem:[#allocation5 + $0x38] sm:$0xf]
        %v816 = vld [vmem:[#allocation5 + $0x3c] sm:$0xf]
        %v817 = vld [vmem:[#allocation5 + $0x40] sm:$0xf]
        %v818 = vld [vmem:[#allocation5 + $0x44] sm:$0xf]
        %v819 = vld [vmem:[#allocation5 + $0x48] sm:$0xf]
        %v820 = vld [vmem:[#allocation5 + $0x4c] sm:$0xf]
        %v821 = vld [vmem:[#allocation5 + $0x50] sm:$0xf]
        %v822 = vld [vmem:[#allocation5 + $0x54] sm:$0xf]
        %v823 = vld [vmem:[#allocation5 + $0x58] sm:$0xf]
        %v824 = vld [vmem:[#allocation5 + $0x5c] sm:$0xf]
        %v825 = vld [vmem:[#allocation5 + $0x60] sm:$0xf]
        %v826 = vld [vmem:[#allocation5 + $0x64] sm:$0xf]
        %v827 = vld [vmem:[#allocation5 + $0x68] sm:$0xf]
        %v828 = vld [vmem:[#allocation5 + $0x6c] sm:$0xf]
        %v829 = vld [vmem:[#allocation5 + $0x70] sm:$0xf]
        %v830 = vld [vmem:[#allocation5 + $0x74] sm:$0xf]
        %v831 = vld [vmem:[#allocation5 + $0x78] sm:$0xf]
        %v832 = vld [vmem:[#allocation5 + $0x7c] sm:$0xf]
        %v833 = vunpack.c.l.bf16 %v801
        %v834 = vunpack.c.l.bf16 %v802
        %v835 = vunpack.c.l.bf16 %v803
        %v836 = vunpack.c.l.bf16 %v804
        %v837 = vunpack.c.l.bf16 %v805
        %v838 = vunpack.c.l.bf16 %v806
        %v839 = vunpack.c.l.bf16 %v807
        %v840 = vunpack.c.l.bf16 %v808
        %v841 = vunpack.c.l.bf16 %v809
        %v842 = vunpack.c.l.bf16 %v810
        %v843 = vunpack.c.l.bf16 %v811
        %v844 = vunpack.c.l.bf16 %v812
        %v845 = vunpack.c.l.bf16 %v813
        %v846 = vunpack.c.l.bf16 %v814
        %v847 = vunpack.c.l.bf16 %v815
        %v848 = vunpack.c.l.bf16 %v816
        %v849 = vunpack.c.l.bf16 %v817
        %v850 = vunpack.c.l.bf16 %v818
        %v851 = vunpack.c.l.bf16 %v819
        %v852 = vunpack.c.l.bf16 %v820
        %v853 = vunpack.c.l.bf16 %v821
        %v854 = vunpack.c.l.bf16 %v822
        %v855 = vunpack.c.l.bf16 %v823
        %v856 = vunpack.c.l.bf16 %v824
        %v857 = vunpack.c.l.bf16 %v825
        %v858 = vunpack.c.l.bf16 %v826
        %v859 = vunpack.c.l.bf16 %v827
        %v860 = vunpack.c.l.bf16 %v828
        %v861 = vunpack.c.l.bf16 %v829
        %v862 = vunpack.c.l.bf16 %v830
        %v863 = vunpack.c.l.bf16 %v831
        %v864 = vunpack.c.l.bf16 %v832
        %873 = vrot.lane.b32.xlu0 %v649, 96
        %v874 = vpop.permute.xlu0 %873
        %875 = vrot.lane.b32.xlu0 %v650, 96
        %v876 = vpop.permute.xlu0 %875
        %877 = vrot.lane.b32.xlu0 %v651, 96
        %v878 = vpop.permute.xlu0 %877
        %879 = vrot.lane.b32.xlu0 %v652, 96
        %v880 = vpop.permute.xlu0 %879
        %881 = vrot.lane.b32.xlu0 %v653, 96
        %v882 = vpop.permute.xlu0 %881
        %883 = vrot.lane.b32.xlu0 %v654, 96
        %v884 = vpop.permute.xlu0 %883
        %885 = vrot.lane.b32.xlu0 %v655, 96
        %v886 = vpop.permute.xlu0 %885
        %887 = vrot.lane.b32.xlu0 %v656, 96
        %v888 = vpop.permute.xlu0 %887
        %v890 = vsel %vm343, %v569, 0
        %v893 = vsel %vm343, %v570, 0
        %v896 = vsel %vm343, %v874, 0
        %v899 = vsel %vm343, %v876, 0
        %v902 = vsel %vm343, %v878, 0
        %v905 = vsel %vm343, %v880, 0
        %v908 = vsel %vm343, %v882, 0
        %v911 = vsel %vm343, %v884, 0
        %v914 = vsel %vm343, %v886, 0
        %v917 = vsel %vm343, %v888, 0
        %919 = vmatprep.subr.bf16.mxu0 0
        %920 = vmatpush1.bf16.xpose.msra.mxu0 %v917
        %921 = vmatprep.subr.bf16.mxu0 0
        %922 = vmatpush1.bf16.xpose.msra.mxu0 %v914
        %923 = vmatprep.subr.bf16.mxu0 0
        %924 = vmatpush1.bf16.xpose.msra.mxu0 %v911
        %925 = vmatprep.subr.bf16.mxu0 0
        %926 = vmatpush1.bf16.xpose.msra.mxu0 %v908
        %927 = vmatprep.subr.bf16.mxu0 0
        %928 = vmatpush1.bf16.xpose.msra.mxu0 %v905
        %929 = vmatprep.subr.bf16.mxu0 0
        %930 = vmatpush1.bf16.xpose.msra.mxu0 %v902
        %931 = vmatprep.subr.bf16.mxu0 0
        %932 = vmatpush1.bf16.xpose.msra.mxu0 %v899
        %933 = vmatprep.subr.bf16.mxu0 0
        %934 = vmatpush1.bf16.xpose.msra.mxu0 %v896
        %935 = vmatprep.subr.bf16.mxu0 0
        %936 = vmatpush2.bf16.xpose.msra.mxu0 0
        %937 = vmatprep.subr.bf16.mxu0 0
        %938 = vmatpush2.bf16.xpose.msra.mxu0 0
        %939 = vmatprep.subr.bf16.mxu0 0
        %940 = vmatpush2.bf16.xpose.msra.mxu0 0
        %941 = vmatprep.subr.bf16.mxu0 0
        %942 = vmatpush2.bf16.xpose.msra.mxu0 0
        %943 = vmatprep.subr.bf16.mxu0 0
        %944 = vmatpush2.bf16.xpose.msra.mxu0 0
        %945 = vmatprep.subr.bf16.mxu0 0
        %946 = vmatpush2.bf16.xpose.msra.mxu0 0
        %947 = vmatprep.subr.bf16.mxu0 0
        %948 = vmatpush2.bf16.xpose.msra.mxu0 0
        %949 = vmatprep.subr.bf16.mxu0 0
        %950 = vmatpush2.bf16.xpose.msra.mxu0 0
        %951 = vmatprep.mubr.bf16.mxu0 0
        %952 = vmatmul.mubr.bf16.gmra.mxu0 %v890
        %v953 = vpop.f32.mrf.mxu0
        %v954 = vadd.f32 %v833, %v953
        %v955 = vpop.f32.mrf.mxu0
        %v956 = vpop.f32.mrf.mxu0
        %v957 = vadd.f32 %v834, %v956
        %v958 = vpop.f32.mrf.mxu0
        %959 = vmatprep.mubr.bf16.mxu0 0
        %960 = vmatmul.mubr.bf16.gmra.mxu0 %v893
        %v961 = vpop.f32.mrf.mxu0
        %v962 = vadd.f32 %v835, %v961
        %v963 = vpop.f32.mrf.mxu0
        %v964 = vpop.f32.mrf.mxu0
        %v965 = vadd.f32 %v836, %v964
        %v966 = vpop.f32.mrf.mxu0
        %967 = vdwg.mxu0
        %976 = vrot.lane.b32.xlu0 %v657, 96
        %v977 = vpop.permute.xlu0 %976
        %978 = vrot.lane.b32.xlu0 %v658, 96
        %v979 = vpop.permute.xlu0 %978
        %980 = vrot.lane.b32.xlu0 %v659, 96
        %v981 = vpop.permute.xlu0 %980
        %982 = vrot.lane.b32.xlu0 %v660, 96
        %v983 = vpop.permute.xlu0 %982
        %984 = vrot.lane.b32.xlu0 %v661, 96
        %v985 = vpop.permute.xlu0 %984
        %986 = vrot.lane.b32.xlu0 %v662, 96
        %v987 = vpop.permute.xlu0 %986
        %988 = vrot.lane.b32.xlu0 %v663, 96
        %v989 = vpop.permute.xlu0 %988
        %990 = vrot.lane.b32.xlu0 %v664, 96
        %v991 = vpop.permute.xlu0 %990
        %v993 = vsel %vm343, %v571, 0
        %v996 = vsel %vm343, %v572, 0
        %v999 = vsel %vm343, %v977, 0
        %v1002 = vsel %vm343, %v979, 0
        %v1005 = vsel %vm343, %v981, 0
        %v1008 = vsel %vm343, %v983, 0
        %v1011 = vsel %vm343, %v985, 0
        %v1014 = vsel %vm343, %v987, 0
        %v1017 = vsel %vm343, %v989, 0
        %v1020 = vsel %vm343, %v991, 0
        %1022 = vmatprep.subr.bf16.mxu0 0
        %1023 = vmatpush1.bf16.xpose.msra.mxu0 %v1020
        %1024 = vmatprep.subr.bf16.mxu0 0
        %1025 = vmatpush1.bf16.xpose.msra.mxu0 %v1017
        %1026 = vmatprep.subr.bf16.mxu0 0
        %1027 = vmatpush1.bf16.xpose.msra.mxu0 %v1014
        %1028 = vmatprep.subr.bf16.mxu0 0
        %1029 = vmatpush1.bf16.xpose.msra.mxu0 %v1011
        %1030 = vmatprep.subr.bf16.mxu0 0
        %1031 = vmatpush1.bf16.xpose.msra.mxu0 %v1008
        %1032 = vmatprep.subr.bf16.mxu0 0
        %1033 = vmatpush1.bf16.xpose.msra.mxu0 %v1005
        %1034 = vmatprep.subr.bf16.mxu0 0
        %1035 = vmatpush1.bf16.xpose.msra.mxu0 %v1002
        %1036 = vmatprep.subr.bf16.mxu0 0
        %1037 = vmatpush1.bf16.xpose.msra.mxu0 %v999
        %1038 = vmatprep.subr.bf16.mxu0 0
        %1039 = vmatpush2.bf16.xpose.msra.mxu0 0
        %1040 = vmatprep.subr.bf16.mxu0 0
        %1041 = vmatpush2.bf16.xpose.msra.mxu0 0
        %1042 = vmatprep.subr.bf16.mxu0 0
        %1043 = vmatpush2.bf16.xpose.msra.mxu0 0
        %1044 = vmatprep.subr.bf16.mxu0 0
        %1045 = vmatpush2.bf16.xpose.msra.mxu0 0
        %1046 = vmatprep.subr.bf16.mxu0 0
        %1047 = vmatpush2.bf16.xpose.msra.mxu0 0
        %1048 = vmatprep.subr.bf16.mxu0 0
        %1049 = vmatpush2.bf16.xpose.msra.mxu0 0
        %1050 = vmatprep.subr.bf16.mxu0 0
        %1051 = vmatpush2.bf16.xpose.msra.mxu0 0
        %1052 = vmatprep.subr.bf16.mxu0 0
        %1053 = vmatpush2.bf16.xpose.msra.mxu0 0
        %1054 = vmatprep.mubr.bf16.mxu0 0
        %1055 = vmatmul.mubr.bf16.gmra.mxu0 %v993
        %v1056 = vpop.f32.mrf.mxu0
        %v1057 = vadd.f32 %v837, %v1056
        %v1058 = vpop.f32.mrf.mxu0
        %v1059 = vpop.f32.mrf.mxu0
        %v1060 = vadd.f32 %v838, %v1059
        %v1061 = vpop.f32.mrf.mxu0
        %1062 = vmatprep.mubr.bf16.mxu0 0
        %1063 = vmatmul.mubr.bf16.gmra.mxu0 %v996
        %v1064 = vpop.f32.mrf.mxu0
        %v1065 = vadd.f32 %v839, %v1064
        %v1066 = vpop.f32.mrf.mxu0
        %v1067 = vpop.f32.mrf.mxu0
        %v1068 = vadd.f32 %v840, %v1067
        %v1069 = vpop.f32.mrf.mxu0
        %1070 = vdwg.mxu0
        %1079 = vrot.lane.b32.xlu0 %v665, 96
        %v1080 = vpop.permute.xlu0 %1079
        %1081 = vrot.lane.b32.xlu0 %v666, 96
        %v1082 = vpop.permute.xlu0 %1081
        %1083 = vrot.lane.b32.xlu0 %v667, 96
        %v1084 = vpop.permute.xlu0 %1083
        %1085 = vrot.lane.b32.xlu0 %v668, 96
        %v1086 = vpop.permute.xlu0 %1085
        %1087 = vrot.lane.b32.xlu0 %v669, 96
        %v1088 = vpop.permute.xlu0 %1087
        %1089 = vrot.lane.b32.xlu0 %v670, 96
        %v1090 = vpop.permute.xlu0 %1089
        %1091 = vrot.lane.b32.xlu0 %v671, 96
        %v1092 = vpop.permute.xlu0 %1091
        %1093 = vrot.lane.b32.xlu0 %v672, 96
        %v1094 = vpop.permute.xlu0 %1093
        %v1096 = vsel %vm343, %v573, 0
        %v1099 = vsel %vm343, %v574, 0
        %v1102 = vsel %vm343, %v1080, 0
        %v1105 = vsel %vm343, %v1082, 0
        %v1108 = vsel %vm343, %v1084, 0
        %v1111 = vsel %vm343, %v1086, 0
        %v1114 = vsel %vm343, %v1088, 0
        %v1117 = vsel %vm343, %v1090, 0
        %v1120 = vsel %vm343, %v1092, 0
        %v1123 = vsel %vm343, %v1094, 0
        %1125 = vmatprep.subr.bf16.mxu0 0
        %1126 = vmatpush1.bf16.xpose.msra.mxu0 %v1123
        %1127 = vmatprep.subr.bf16.mxu0 0
        %1128 = vmatpush1.bf16.xpose.msra.mxu0 %v1120
        %1129 = vmatprep.subr.bf16.mxu0 0
        %1130 = vmatpush1.bf16.xpose.msra.mxu0 %v1117
        %1131 = vmatprep.subr.bf16.mxu0 0
        %1132 = vmatpush1.bf16.xpose.msra.mxu0 %v1114
        %1133 = vmatprep.subr.bf16.mxu0 0
        %1134 = vmatpush1.bf16.xpose.msra.mxu0 %v1111
        %1135 = vmatprep.subr.bf16.mxu0 0
        %1136 = vmatpush1.bf16.xpose.msra.mxu0 %v1108
        %1137 = vmatprep.subr.bf16.mxu0 0
        %1138 = vmatpush1.bf16.xpose.msra.mxu0 %v1105
        %1139 = vmatprep.subr.bf16.mxu0 0
        %1140 = vmatpush1.bf16.xpose.msra.mxu0 %v1102
        %1141 = vmatprep.subr.bf16.mxu0 0
        %1142 = vmatpush2.bf16.xpose.msra.mxu0 0
        %1143 = vmatprep.subr.bf16.mxu0 0
        %1144 = vmatpush2.bf16.xpose.msra.mxu0 0
        %1145 = vmatprep.subr.bf16.mxu0 0
        %1146 = vmatpush2.bf16.xpose.msra.mxu0 0
        %1147 = vmatprep.subr.bf16.mxu0 0
        %1148 = vmatpush2.bf16.xpose.msra.mxu0 0
        %1149 = vmatprep.subr.bf16.mxu0 0
        %1150 = vmatpush2.bf16.xpose.msra.mxu0 0
        %1151 = vmatprep.subr.bf16.mxu0 0
        %1152 = vmatpush2.bf16.xpose.msra.mxu0 0
        %1153 = vmatprep.subr.bf16.mxu0 0
        %1154 = vmatpush2.bf16.xpose.msra.mxu0 0
        %1155 = vmatprep.subr.bf16.mxu0 0
        %1156 = vmatpush2.bf16.xpose.msra.mxu0 0
        %1157 = vmatprep.mubr.bf16.mxu0 0
        %1158 = vmatmul.mubr.bf16.gmra.mxu0 %v1096
        %v1159 = vpop.f32.mrf.mxu0
        %v1160 = vadd.f32 %v841, %v1159
        %v1161 = vpop.f32.mrf.mxu0
        %v1162 = vpop.f32.mrf.mxu0
        %v1163 = vadd.f32 %v842, %v1162
        %v1164 = vpop.f32.mrf.mxu0
        %1165 = vmatprep.mubr.bf16.mxu0 0
        %1166 = vmatmul.mubr.bf16.gmra.mxu0 %v1099
        %v1167 = vpop.f32.mrf.mxu0
        %v1168 = vadd.f32 %v843, %v1167
        %v1169 = vpop.f32.mrf.mxu0
        %v1170 = vpop.f32.mrf.mxu0
        %v1171 = vadd.f32 %v844, %v1170
        %v1172 = vpop.f32.mrf.mxu0
        %1173 = vdwg.mxu0
        %1182 = vrot.lane.b32.xlu0 %v673, 96
        %v1183 = vpop.permute.xlu0 %1182
        %1184 = vrot.lane.b32.xlu0 %v674, 96
        %v1185 = vpop.permute.xlu0 %1184
        %1186 = vrot.lane.b32.xlu0 %v675, 96
        %v1187 = vpop.permute.xlu0 %1186
        %1188 = vrot.lane.b32.xlu0 %v676, 96
        %v1189 = vpop.permute.xlu0 %1188
        %1190 = vrot.lane.b32.xlu0 %v677, 96
        %v1191 = vpop.permute.xlu0 %1190
        %1192 = vrot.lane.b32.xlu0 %v678, 96
        %v1193 = vpop.permute.xlu0 %1192
        %1194 = vrot.lane.b32.xlu0 %v679, 96
        %v1195 = vpop.permute.xlu0 %1194
        %1196 = vrot.lane.b32.xlu0 %v680, 96
        %v1197 = vpop.permute.xlu0 %1196
        %v1199 = vsel %vm343, %v575, 0
        %v1202 = vsel %vm343, %v576, 0
        %v1205 = vsel %vm343, %v1183, 0
        %v1208 = vsel %vm343, %v1185, 0
        %v1211 = vsel %vm343, %v1187, 0
        %v1214 = vsel %vm343, %v1189, 0
        %v1217 = vsel %vm343, %v1191, 0
        %v1220 = vsel %vm343, %v1193, 0
        %v1223 = vsel %vm343, %v1195, 0
        %v1226 = vsel %vm343, %v1197, 0
        %1228 = vmatprep.subr.bf16.mxu0 0
        %1229 = vmatpush1.bf16.xpose.msra.mxu0 %v1226
        %1230 = vmatprep.subr.bf16.mxu0 0
        %1231 = vmatpush1.bf16.xpose.msra.mxu0 %v1223
        %1232 = vmatprep.subr.bf16.mxu0 0
        %1233 = vmatpush1.bf16.xpose.msra.mxu0 %v1220
        %1234 = vmatprep.subr.bf16.mxu0 0
        %1235 = vmatpush1.bf16.xpose.msra.mxu0 %v1217
        %1236 = vmatprep.subr.bf16.mxu0 0
        %1237 = vmatpush1.bf16.xpose.msra.mxu0 %v1214
        %1238 = vmatprep.subr.bf16.mxu0 0
        %1239 = vmatpush1.bf16.xpose.msra.mxu0 %v1211
        %1240 = vmatprep.subr.bf16.mxu0 0
        %1241 = vmatpush1.bf16.xpose.msra.mxu0 %v1208
        %1242 = vmatprep.subr.bf16.mxu0 0
        %1243 = vmatpush1.bf16.xpose.msra.mxu0 %v1205
        %1244 = vmatprep.subr.bf16.mxu0 0
        %1245 = vmatpush2.bf16.xpose.msra.mxu0 0
        %1246 = vmatprep.subr.bf16.mxu0 0
        %1247 = vmatpush2.bf16.xpose.msra.mxu0 0
        %1248 = vmatprep.subr.bf16.mxu0 0
        %1249 = vmatpush2.bf16.xpose.msra.mxu0 0
        %1250 = vmatprep.subr.bf16.mxu0 0
        %1251 = vmatpush2.bf16.xpose.msra.mxu0 0
        %1252 = vmatprep.subr.bf16.mxu0 0
        %1253 = vmatpush2.bf16.xpose.msra.mxu0 0
        %1254 = vmatprep.subr.bf16.mxu0 0
        %1255 = vmatpush2.bf16.xpose.msra.mxu0 0
        %1256 = vmatprep.subr.bf16.mxu0 0
        %1257 = vmatpush2.bf16.xpose.msra.mxu0 0
        %1258 = vmatprep.subr.bf16.mxu0 0
        %1259 = vmatpush2.bf16.xpose.msra.mxu0 0
        %1260 = vmatprep.mubr.bf16.mxu0 0
        %1261 = vmatmul.mubr.bf16.gmra.mxu0 %v1199
        %v1262 = vpop.f32.mrf.mxu0
        %v1263 = vadd.f32 %v845, %v1262
        %v1264 = vpop.f32.mrf.mxu0
        %v1265 = vpop.f32.mrf.mxu0
        %v1266 = vadd.f32 %v846, %v1265
        %v1267 = vpop.f32.mrf.mxu0
        %1268 = vmatprep.mubr.bf16.mxu0 0
        %1269 = vmatmul.mubr.bf16.gmra.mxu0 %v1202
        %v1270 = vpop.f32.mrf.mxu0
        %v1271 = vadd.f32 %v847, %v1270
        %v1272 = vpop.f32.mrf.mxu0
        %v1273 = vpop.f32.mrf.mxu0
        %v1274 = vadd.f32 %v848, %v1273
        %v1275 = vpop.f32.mrf.mxu0
        %1276 = vdwg.mxu0
        %1285 = vrot.lane.b32.xlu0 %v681, 96
        %v1286 = vpop.permute.xlu0 %1285
        %1287 = vrot.lane.b32.xlu0 %v682, 96
        %v1288 = vpop.permute.xlu0 %1287
        %1289 = vrot.lane.b32.xlu0 %v683, 96
        %v1290 = vpop.permute.xlu0 %1289
        %1291 = vrot.lane.b32.xlu0 %v684, 96
        %v1292 = vpop.permute.xlu0 %1291
        %1293 = vrot.lane.b32.xlu0 %v685, 96
        %v1294 = vpop.permute.xlu0 %1293
        %1295 = vrot.lane.b32.xlu0 %v686, 96
        %v1296 = vpop.permute.xlu0 %1295
        %1297 = vrot.lane.b32.xlu0 %v687, 96
        %v1298 = vpop.permute.xlu0 %1297
        %1299 = vrot.lane.b32.xlu0 %v688, 96
        %v1300 = vpop.permute.xlu0 %1299
        %v1302 = vsel %vm343, %v577, 0
        %v1305 = vsel %vm343, %v578, 0
        %v1308 = vsel %vm343, %v1286, 0
        %v1311 = vsel %vm343, %v1288, 0
        %v1314 = vsel %vm343, %v1290, 0
        %v1317 = vsel %vm343, %v1292, 0
        %v1320 = vsel %vm343, %v1294, 0
        %v1323 = vsel %vm343, %v1296, 0
        %v1326 = vsel %vm343, %v1298, 0
        %v1329 = vsel %vm343, %v1300, 0
        %1331 = vmatprep.subr.bf16.mxu0 0
        %1332 = vmatpush1.bf16.xpose.msra.mxu0 %v1329
        %1333 = vmatprep.subr.bf16.mxu0 0
        %1334 = vmatpush1.bf16.xpose.msra.mxu0 %v1326
        %1335 = vmatprep.subr.bf16.mxu0 0
        %1336 = vmatpush1.bf16.xpose.msra.mxu0 %v1323
        %1337 = vmatprep.subr.bf16.mxu0 0
        %1338 = vmatpush1.bf16.xpose.msra.mxu0 %v1320
        %1339 = vmatprep.subr.bf16.mxu0 0
        %1340 = vmatpush1.bf16.xpose.msra.mxu0 %v1317
        %1341 = vmatprep.subr.bf16.mxu0 0
        %1342 = vmatpush1.bf16.xpose.msra.mxu0 %v1314
        %1343 = vmatprep.subr.bf16.mxu0 0
        %1344 = vmatpush1.bf16.xpose.msra.mxu0 %v1311
        %1345 = vmatprep.subr.bf16.mxu0 0
        %1346 = vmatpush1.bf16.xpose.msra.mxu0 %v1308
        %1347 = vmatprep.subr.bf16.mxu0 0
        %1348 = vmatpush2.bf16.xpose.msra.mxu0 0
        %1349 = vmatprep.subr.bf16.mxu0 0
        %1350 = vmatpush2.bf16.xpose.msra.mxu0 0
        %1351 = vmatprep.subr.bf16.mxu0 0
        %1352 = vmatpush2.bf16.xpose.msra.mxu0 0
        %1353 = vmatprep.subr.bf16.mxu0 0
        %1354 = vmatpush2.bf16.xpose.msra.mxu0 0
        %1355 = vmatprep.subr.bf16.mxu0 0
        %1356 = vmatpush2.bf16.xpose.msra.mxu0 0
        %1357 = vmatprep.subr.bf16.mxu0 0
        %1358 = vmatpush2.bf16.xpose.msra.mxu0 0
        %1359 = vmatprep.subr.bf16.mxu0 0
        %1360 = vmatpush2.bf16.xpose.msra.mxu0 0
        %1361 = vmatprep.subr.bf16.mxu0 0
        %1362 = vmatpush2.bf16.xpose.msra.mxu0 0
        %1363 = vmatprep.mubr.bf16.mxu0 0
        %1364 = vmatmul.mubr.bf16.gmra.mxu0 %v1302
        %v1365 = vpop.f32.mrf.mxu0
        %v1366 = vadd.f32 %v849, %v1365
        %v1367 = vpop.f32.mrf.mxu0
        %v1368 = vpop.f32.mrf.mxu0
        %v1369 = vadd.f32 %v850, %v1368
        %v1370 = vpop.f32.mrf.mxu0
        %1371 = vmatprep.mubr.bf16.mxu0 0
        %1372 = vmatmul.mubr.bf16.gmra.mxu0 %v1305
        %v1373 = vpop.f32.mrf.mxu0
        %v1374 = vadd.f32 %v851, %v1373
        %v1375 = vpop.f32.mrf.mxu0
        %v1376 = vpop.f32.mrf.mxu0
        %v1377 = vadd.f32 %v852, %v1376
        %v1378 = vpop.f32.mrf.mxu0
        %1379 = vdwg.mxu0
        %1388 = vrot.lane.b32.xlu0 %v689, 96
        %v1389 = vpop.permute.xlu0 %1388
        %1390 = vrot.lane.b32.xlu0 %v690, 96
        %v1391 = vpop.permute.xlu0 %1390
        %1392 = vrot.lane.b32.xlu0 %v691, 96
        %v1393 = vpop.permute.xlu0 %1392
        %1394 = vrot.lane.b32.xlu0 %v692, 96
        %v1395 = vpop.permute.xlu0 %1394
        %1396 = vrot.lane.b32.xlu0 %v693, 96
        %v1397 = vpop.permute.xlu0 %1396
        %1398 = vrot.lane.b32.xlu0 %v694, 96
        %v1399 = vpop.permute.xlu0 %1398
        %1400 = vrot.lane.b32.xlu0 %v695, 96
        %v1401 = vpop.permute.xlu0 %1400
        %1402 = vrot.lane.b32.xlu0 %v696, 96
        %v1403 = vpop.permute.xlu0 %1402
        %v1405 = vsel %vm343, %v579, 0
        %v1408 = vsel %vm343, %v580, 0
        %v1411 = vsel %vm343, %v1389, 0
        %v1414 = vsel %vm343, %v1391, 0
        %v1417 = vsel %vm343, %v1393, 0
        %v1420 = vsel %vm343, %v1395, 0
        %v1423 = vsel %vm343, %v1397, 0
        %v1426 = vsel %vm343, %v1399, 0
        %v1429 = vsel %vm343, %v1401, 0
        %v1432 = vsel %vm343, %v1403, 0
        %1434 = vmatprep.subr.bf16.mxu0 0
        %1435 = vmatpush1.bf16.xpose.msra.mxu0 %v1432
        %1436 = vmatprep.subr.bf16.mxu0 0
        %1437 = vmatpush1.bf16.xpose.msra.mxu0 %v1429
        %1438 = vmatprep.subr.bf16.mxu0 0
        %1439 = vmatpush1.bf16.xpose.msra.mxu0 %v1426
        %1440 = vmatprep.subr.bf16.mxu0 0
        %1441 = vmatpush1.bf16.xpose.msra.mxu0 %v1423
        %1442 = vmatprep.subr.bf16.mxu0 0
        %1443 = vmatpush1.bf16.xpose.msra.mxu0 %v1420
        %1444 = vmatprep.subr.bf16.mxu0 0
        %1445 = vmatpush1.bf16.xpose.msra.mxu0 %v1417
        %1446 = vmatprep.subr.bf16.mxu0 0
        %1447 = vmatpush1.bf16.xpose.msra.mxu0 %v1414
        %1448 = vmatprep.subr.bf16.mxu0 0
        %1449 = vmatpush1.bf16.xpose.msra.mxu0 %v1411
        %1450 = vmatprep.subr.bf16.mxu0 0
        %1451 = vmatpush2.bf16.xpose.msra.mxu0 0
        %1452 = vmatprep.subr.bf16.mxu0 0
        %1453 = vmatpush2.bf16.xpose.msra.mxu0 0
        %1454 = vmatprep.subr.bf16.mxu0 0
        %1455 = vmatpush2.bf16.xpose.msra.mxu0 0
        %1456 = vmatprep.subr.bf16.mxu0 0
        %1457 = vmatpush2.bf16.xpose.msra.mxu0 0
        %1458 = vmatprep.subr.bf16.mxu0 0
        %1459 = vmatpush2.bf16.xpose.msra.mxu0 0
        %1460 = vmatprep.subr.bf16.mxu0 0
        %1461 = vmatpush2.bf16.xpose.msra.mxu0 0
        %1462 = vmatprep.subr.bf16.mxu0 0
        %1463 = vmatpush2.bf16.xpose.msra.mxu0 0
        %1464 = vmatprep.subr.bf16.mxu0 0
        %1465 = vmatpush2.bf16.xpose.msra.mxu0 0
        %1466 = vmatprep.mubr.bf16.mxu0 0
        %1467 = vmatmul.mubr.bf16.gmra.mxu0 %v1405
        %v1468 = vpop.f32.mrf.mxu0
        %v1469 = vadd.f32 %v853, %v1468
        %v1470 = vpop.f32.mrf.mxu0
        %v1471 = vpop.f32.mrf.mxu0
        %v1472 = vadd.f32 %v854, %v1471
        %v1473 = vpop.f32.mrf.mxu0
        %1474 = vmatprep.mubr.bf16.mxu0 0
        %1475 = vmatmul.mubr.bf16.gmra.mxu0 %v1408
        %v1476 = vpop.f32.mrf.mxu0
        %v1477 = vadd.f32 %v855, %v1476
        %v1478 = vpop.f32.mrf.mxu0
        %v1479 = vpop.f32.mrf.mxu0
        %v1480 = vadd.f32 %v856, %v1479
        %v1481 = vpop.f32.mrf.mxu0
        %1482 = vdwg.mxu0
        %1491 = vrot.lane.b32.xlu0 %v697, 96
        %v1492 = vpop.permute.xlu0 %1491
        %1493 = vrot.lane.b32.xlu0 %v698, 96
        %v1494 = vpop.permute.xlu0 %1493
        %1495 = vrot.lane.b32.xlu0 %v699, 96
        %v1496 = vpop.permute.xlu0 %1495
        %1497 = vrot.lane.b32.xlu0 %v700, 96
        %v1498 = vpop.permute.xlu0 %1497
        %1499 = vrot.lane.b32.xlu0 %v701, 96
        %v1500 = vpop.permute.xlu0 %1499
        %1501 = vrot.lane.b32.xlu0 %v702, 96
        %v1502 = vpop.permute.xlu0 %1501
        %1503 = vrot.lane.b32.xlu0 %v703, 96
        %v1504 = vpop.permute.xlu0 %1503
        %1505 = vrot.lane.b32.xlu0 %v704, 96
        %v1506 = vpop.permute.xlu0 %1505
        %v1508 = vsel %vm343, %v581, 0
        %v1511 = vsel %vm343, %v582, 0
        %v1514 = vsel %vm343, %v1492, 0
        %v1517 = vsel %vm343, %v1494, 0
        %v1520 = vsel %vm343, %v1496, 0
        %v1523 = vsel %vm343, %v1498, 0
        %v1526 = vsel %vm343, %v1500, 0
        %v1529 = vsel %vm343, %v1502, 0
        %v1532 = vsel %vm343, %v1504, 0
        %v1535 = vsel %vm343, %v1506, 0
        %1537 = vmatprep.subr.bf16.mxu0 0
        %1538 = vmatpush1.bf16.xpose.msra.mxu0 %v1535
        %1539 = vmatprep.subr.bf16.mxu0 0
        %1540 = vmatpush1.bf16.xpose.msra.mxu0 %v1532
        %1541 = vmatprep.subr.bf16.mxu0 0
        %1542 = vmatpush1.bf16.xpose.msra.mxu0 %v1529
        %1543 = vmatprep.subr.bf16.mxu0 0
        %1544 = vmatpush1.bf16.xpose.msra.mxu0 %v1526
        %1545 = vmatprep.subr.bf16.mxu0 0
        %1546 = vmatpush1.bf16.xpose.msra.mxu0 %v1523
        %1547 = vmatprep.subr.bf16.mxu0 0
        %1548 = vmatpush1.bf16.xpose.msra.mxu0 %v1520
        %1549 = vmatprep.subr.bf16.mxu0 0
        %1550 = vmatpush1.bf16.xpose.msra.mxu0 %v1517
        %1551 = vmatprep.subr.bf16.mxu0 0
        %1552 = vmatpush1.bf16.xpose.msra.mxu0 %v1514
        %1553 = vmatprep.subr.bf16.mxu0 0
        %1554 = vmatpush2.bf16.xpose.msra.mxu0 0
        %1555 = vmatprep.subr.bf16.mxu0 0
        %1556 = vmatpush2.bf16.xpose.msra.mxu0 0
        %1557 = vmatprep.subr.bf16.mxu0 0
        %1558 = vmatpush2.bf16.xpose.msra.mxu0 0
        %1559 = vmatprep.subr.bf16.mxu0 0
        %1560 = vmatpush2.bf16.xpose.msra.mxu0 0
        %1561 = vmatprep.subr.bf16.mxu0 0
        %1562 = vmatpush2.bf16.xpose.msra.mxu0 0
        %1563 = vmatprep.subr.bf16.mxu0 0
        %1564 = vmatpush2.bf16.xpose.msra.mxu0 0
        %1565 = vmatprep.subr.bf16.mxu0 0
        %1566 = vmatpush2.bf16.xpose.msra.mxu0 0
        %1567 = vmatprep.subr.bf16.mxu0 0
        %1568 = vmatpush2.bf16.xpose.msra.mxu0 0
        %1569 = vmatprep.mubr.bf16.mxu0 0
        %1570 = vmatmul.mubr.bf16.gmra.mxu0 %v1508
        %v1571 = vpop.f32.mrf.mxu0
        %v1572 = vadd.f32 %v857, %v1571
        %v1573 = vpop.f32.mrf.mxu0
        %v1574 = vpop.f32.mrf.mxu0
        %v1575 = vadd.f32 %v858, %v1574
        %v1576 = vpop.f32.mrf.mxu0
        %1577 = vmatprep.mubr.bf16.mxu0 0
        %1578 = vmatmul.mubr.bf16.gmra.mxu0 %v1511
        %v1579 = vpop.f32.mrf.mxu0
        %v1580 = vadd.f32 %v859, %v1579
        %v1581 = vpop.f32.mrf.mxu0
        %v1582 = vpop.f32.mrf.mxu0
        %v1583 = vadd.f32 %v860, %v1582
        %v1584 = vpop.f32.mrf.mxu0
        %1585 = vdwg.mxu0
        %1594 = vrot.lane.b32.xlu0 %v705, 96
        %v1595 = vpop.permute.xlu0 %1594
        %1596 = vrot.lane.b32.xlu0 %v706, 96
        %v1597 = vpop.permute.xlu0 %1596
        %1598 = vrot.lane.b32.xlu0 %v707, 96
        %v1599 = vpop.permute.xlu0 %1598
        %1600 = vrot.lane.b32.xlu0 %v708, 96
        %v1601 = vpop.permute.xlu0 %1600
        %1602 = vrot.lane.b32.xlu0 %v709, 96
        %v1603 = vpop.permute.xlu0 %1602
        %1604 = vrot.lane.b32.xlu0 %v710, 96
        %v1605 = vpop.permute.xlu0 %1604
        %1606 = vrot.lane.b32.xlu0 %v711, 96
        %v1607 = vpop.permute.xlu0 %1606
        %1608 = vrot.lane.b32.xlu0 %v712, 96
        %v1609 = vpop.permute.xlu0 %1608
        %v1611 = vsel %vm343, %v583, 0
        %v1614 = vsel %vm343, %v584, 0
        %v1617 = vsel %vm343, %v1595, 0
        %v1620 = vsel %vm343, %v1597, 0
        %v1623 = vsel %vm343, %v1599, 0
        %v1626 = vsel %vm343, %v1601, 0
        %v1629 = vsel %vm343, %v1603, 0
        %v1632 = vsel %vm343, %v1605, 0
        %v1635 = vsel %vm343, %v1607, 0
        %v1638 = vsel %vm343, %v1609, 0
        %1640 = vmatprep.subr.bf16.mxu0 0
        %1641 = vmatpush1.bf16.xpose.msra.mxu0 %v1638
        %1642 = vmatprep.subr.bf16.mxu0 0
        %1643 = vmatpush1.bf16.xpose.msra.mxu0 %v1635
        %1644 = vmatprep.subr.bf16.mxu0 0
        %1645 = vmatpush1.bf16.xpose.msra.mxu0 %v1632
        %1646 = vmatprep.subr.bf16.mxu0 0
        %1647 = vmatpush1.bf16.xpose.msra.mxu0 %v1629
        %1648 = vmatprep.subr.bf16.mxu0 0
        %1649 = vmatpush1.bf16.xpose.msra.mxu0 %v1626
        %1650 = vmatprep.subr.bf16.mxu0 0
        %1651 = vmatpush1.bf16.xpose.msra.mxu0 %v1623
        %1652 = vmatprep.subr.bf16.mxu0 0
        %1653 = vmatpush1.bf16.xpose.msra.mxu0 %v1620
        %1654 = vmatprep.subr.bf16.mxu0 0
        %1655 = vmatpush1.bf16.xpose.msra.mxu0 %v1617
        %1656 = vmatprep.subr.bf16.mxu0 0
        %1657 = vmatpush2.bf16.xpose.msra.mxu0 0
        %1658 = vmatprep.subr.bf16.mxu0 0
        %1659 = vmatpush2.bf16.xpose.msra.mxu0 0
        %1660 = vmatprep.subr.bf16.mxu0 0
        %1661 = vmatpush2.bf16.xpose.msra.mxu0 0
        %1662 = vmatprep.subr.bf16.mxu0 0
        %1663 = vmatpush2.bf16.xpose.msra.mxu0 0
        %1664 = vmatprep.subr.bf16.mxu0 0
        %1665 = vmatpush2.bf16.xpose.msra.mxu0 0
        %1666 = vmatprep.subr.bf16.mxu0 0
        %1667 = vmatpush2.bf16.xpose.msra.mxu0 0
        %1668 = vmatprep.subr.bf16.mxu0 0
        %1669 = vmatpush2.bf16.xpose.msra.mxu0 0
        %1670 = vmatprep.subr.bf16.mxu0 0
        %1671 = vmatpush2.bf16.xpose.msra.mxu0 0
        %1672 = vmatprep.mubr.bf16.mxu0 0
        %1673 = vmatmul.mubr.bf16.gmra.mxu0 %v1611
        %v1674 = vpop.f32.mrf.mxu0
        %v1675 = vadd.f32 %v861, %v1674
        %v1676 = vpop.f32.mrf.mxu0
        %v1677 = vpop.f32.mrf.mxu0
        %v1678 = vadd.f32 %v862, %v1677
        %v1679 = vpop.f32.mrf.mxu0
        %1680 = vmatprep.mubr.bf16.mxu0 0
        %1681 = vmatmul.mubr.bf16.gmra.mxu0 %v1614
        %v1682 = vpop.f32.mrf.mxu0
        %v1683 = vadd.f32 %v863, %v1682
        %v1684 = vpop.f32.mrf.mxu0
        %v1685 = vpop.f32.mrf.mxu0
        %v1686 = vadd.f32 %v864, %v1685
        %v1687 = vpop.f32.mrf.mxu0
        %1688 = vdwg.mxu0
        %v1689 = vsel %vm343, %v954, -inf
        %1690 = vmax.xlane.f32.xlu0 %v1689
        %v1691 = vpop.xlane.xlu0 %1690
        %v1692 = vsel %vm343, %v957, -inf
        %1693 = vmax.xlane.f32.xlu0 %v1692
        %v1694 = vpop.xlane.xlu0 %1693
        %v1695 = vsel %vm343, %v962, -inf
        %1696 = vmax.xlane.f32.xlu0 %v1695
        %v1697 = vpop.xlane.xlu0 %1696
        %v1698 = vsel %vm343, %v965, -inf
        %1699 = vmax.xlane.f32.xlu0 %v1698
        %v1700 = vpop.xlane.xlu0 %1699
        %v1701 = vsel %vm343, %v1057, -inf
        %1702 = vmax.xlane.f32.xlu0 %v1701
        %v1703 = vpop.xlane.xlu0 %1702
        %v1704 = vsel %vm343, %v1060, -inf
        %1705 = vmax.xlane.f32.xlu0 %v1704
        %v1706 = vpop.xlane.xlu0 %1705
        %v1707 = vsel %vm343, %v1065, -inf
        %1708 = vmax.xlane.f32.xlu0 %v1707
        %v1709 = vpop.xlane.xlu0 %1708
        %v1710 = vsel %vm343, %v1068, -inf
        %1711 = vmax.xlane.f32.xlu0 %v1710
        %v1712 = vpop.xlane.xlu0 %1711
        %v1713 = vsel %vm343, %v1160, -inf
        %1714 = vmax.xlane.f32.xlu0 %v1713
        %v1715 = vpop.xlane.xlu0 %1714
        %v1716 = vsel %vm343, %v1163, -inf
        %1717 = vmax.xlane.f32.xlu0 %v1716
        %v1718 = vpop.xlane.xlu0 %1717
        %v1719 = vsel %vm343, %v1168, -inf
        %1720 = vmax.xlane.f32.xlu0 %v1719
        %v1721 = vpop.xlane.xlu0 %1720
        %v1722 = vsel %vm343, %v1171, -inf
        %1723 = vmax.xlane.f32.xlu0 %v1722
        %v1724 = vpop.xlane.xlu0 %1723
        %v1725 = vsel %vm343, %v1263, -inf
        %1726 = vmax.xlane.f32.xlu0 %v1725
        %v1727 = vpop.xlane.xlu0 %1726
        %v1728 = vsel %vm343, %v1266, -inf
        %1729 = vmax.xlane.f32.xlu0 %v1728
        %v1730 = vpop.xlane.xlu0 %1729
        %v1731 = vsel %vm343, %v1271, -inf
        %1732 = vmax.xlane.f32.xlu0 %v1731
        %v1733 = vpop.xlane.xlu0 %1732
        %v1734 = vsel %vm343, %v1274, -inf
        %1735 = vmax.xlane.f32.xlu0 %v1734
        %v1736 = vpop.xlane.xlu0 %1735
        %v1737 = vsel %vm343, %v1366, -inf
        %1738 = vmax.xlane.f32.xlu0 %v1737
        %v1739 = vpop.xlane.xlu0 %1738
        %v1740 = vsel %vm343, %v1369, -inf
        %1741 = vmax.xlane.f32.xlu0 %v1740
        %v1742 = vpop.xlane.xlu0 %1741
        %v1743 = vsel %vm343, %v1374, -inf
        %1744 = vmax.xlane.f32.xlu0 %v1743
        %v1745 = vpop.xlane.xlu0 %1744
        %v1746 = vsel %vm343, %v1377, -inf
        %1747 = vmax.xlane.f32.xlu0 %v1746
        %v1748 = vpop.xlane.xlu0 %1747
        %v1749 = vsel %vm343, %v1469, -inf
        %1750 = vmax.xlane.f32.xlu0 %v1749
        %v1751 = vpop.xlane.xlu0 %1750
        %v1752 = vsel %vm343, %v1472, -inf
        %1753 = vmax.xlane.f32.xlu0 %v1752
        %v1754 = vpop.xlane.xlu0 %1753
        %v1755 = vsel %vm343, %v1477, -inf
        %1756 = vmax.xlane.f32.xlu0 %v1755
        %v1757 = vpop.xlane.xlu0 %1756
        %v1758 = vsel %vm343, %v1480, -inf
        %1759 = vmax.xlane.f32.xlu0 %v1758
        %v1760 = vpop.xlane.xlu0 %1759
        %v1761 = vsel %vm343, %v1572, -inf
        %1762 = vmax.xlane.f32.xlu0 %v1761
        %v1763 = vpop.xlane.xlu0 %1762
        %v1764 = vsel %vm343, %v1575, -inf
        %1765 = vmax.xlane.f32.xlu0 %v1764
        %v1766 = vpop.xlane.xlu0 %1765
        %v1767 = vsel %vm343, %v1580, -inf
        %1768 = vmax.xlane.f32.xlu0 %v1767
        %v1769 = vpop.xlane.xlu0 %1768
        %v1770 = vsel %vm343, %v1583, -inf
        %1771 = vmax.xlane.f32.xlu0 %v1770
        %v1772 = vpop.xlane.xlu0 %1771
        %v1773 = vsel %vm343, %v1675, -inf
        %1774 = vmax.xlane.f32.xlu0 %v1773
        %v1775 = vpop.xlane.xlu0 %1774
        %v1776 = vsel %vm343, %v1678, -inf
        %1777 = vmax.xlane.f32.xlu0 %v1776
        %v1778 = vpop.xlane.xlu0 %1777
        %v1779 = vsel %vm343, %v1683, -inf
        %1780 = vmax.xlane.f32.xlu0 %v1779
        %v1781 = vpop.xlane.xlu0 %1780
        %v1782 = vsel %vm343, %v1686, -inf
        %1783 = vmax.xlane.f32.xlu0 %v1782
        %v1784 = vpop.xlane.xlu0 %1783
        %v1785 = vsub.f32 %v954, %v1691
        %v1786 = vsub.f32 %v957, %v1694
        %v1787 = vsub.f32 %v962, %v1697
        %v1788 = vsub.f32 %v965, %v1700
        %v1789 = vsub.f32 %v1057, %v1703
        %v1790 = vsub.f32 %v1060, %v1706
        %v1791 = vsub.f32 %v1065, %v1709
        %v1792 = vsub.f32 %v1068, %v1712
        %v1793 = vsub.f32 %v1160, %v1715
        %v1794 = vsub.f32 %v1163, %v1718
        %v1795 = vsub.f32 %v1168, %v1721
        %v1796 = vsub.f32 %v1171, %v1724
        %v1797 = vsub.f32 %v1263, %v1727
        %v1798 = vsub.f32 %v1266, %v1730
        %v1799 = vsub.f32 %v1271, %v1733
        %v1800 = vsub.f32 %v1274, %v1736
        %v1801 = vsub.f32 %v1366, %v1739
        %v1802 = vsub.f32 %v1369, %v1742
        %v1803 = vsub.f32 %v1374, %v1745
        %v1804 = vsub.f32 %v1377, %v1748
        %v1805 = vsub.f32 %v1469, %v1751
        %v1806 = vsub.f32 %v1472, %v1754
        %v1807 = vsub.f32 %v1477, %v1757
        %v1808 = vsub.f32 %v1480, %v1760
        %v1809 = vsub.f32 %v1572, %v1763
        %v1810 = vsub.f32 %v1575, %v1766
        %v1811 = vsub.f32 %v1580, %v1769
        %v1812 = vsub.f32 %v1583, %v1772
        %v1813 = vsub.f32 %v1675, %v1775
        %v1814 = vsub.f32 %v1678, %v1778
        %v1815 = vsub.f32 %v1683, %v1781
        %v1816 = vsub.f32 %v1686, %v1784
        %v1817 = vmul.f32 %v1785, 1.442695
        %v1818 = vpow.pop %v1817
        %v1819 = vmul.f32 %v1786, 1.442695
        %v1820 = vpow.pop %v1819
        %v1821 = vmul.f32 %v1787, 1.442695
        %v1822 = vpow.pop %v1821
        %v1823 = vmul.f32 %v1788, 1.442695
        %v1824 = vpow.pop %v1823
        %v1825 = vmul.f32 %v1789, 1.442695
        %v1826 = vpow.pop %v1825
        %v1827 = vmul.f32 %v1790, 1.442695
        %v1828 = vpow.pop %v1827
        %v1829 = vmul.f32 %v1791, 1.442695
        %v1830 = vpow.pop %v1829
        %v1831 = vmul.f32 %v1792, 1.442695
        %v1832 = vpow.pop %v1831
        %v1833 = vmul.f32 %v1793, 1.442695
        %v1834 = vpow.pop %v1833
        %v1835 = vmul.f32 %v1794, 1.442695
        %v1836 = vpow.pop %v1835
        %v1837 = vmul.f32 %v1795, 1.442695
        %v1838 = vpow.pop %v1837
        %v1839 = vmul.f32 %v1796, 1.442695
        %v1840 = vpow.pop %v1839
        %v1841 = vmul.f32 %v1797, 1.442695
        %v1842 = vpow.pop %v1841
        %v1843 = vmul.f32 %v1798, 1.442695
        %v1844 = vpow.pop %v1843
        %v1845 = vmul.f32 %v1799, 1.442695
        %v1846 = vpow.pop %v1845
        %v1847 = vmul.f32 %v1800, 1.442695
        %v1848 = vpow.pop %v1847
        %v1849 = vmul.f32 %v1801, 1.442695
        %v1850 = vpow.pop %v1849
        %v1851 = vmul.f32 %v1802, 1.442695
        %v1852 = vpow.pop %v1851
        %v1853 = vmul.f32 %v1803, 1.442695
        %v1854 = vpow.pop %v1853
        %v1855 = vmul.f32 %v1804, 1.442695
        %v1856 = vpow.pop %v1855
        %v1857 = vmul.f32 %v1805, 1.442695
        %v1858 = vpow.pop %v1857
        %v1859 = vmul.f32 %v1806, 1.442695
        %v1860 = vpow.pop %v1859
        %v1861 = vmul.f32 %v1807, 1.442695
        %v1862 = vpow.pop %v1861
        %v1863 = vmul.f32 %v1808, 1.442695
        %v1864 = vpow.pop %v1863
        %v1865 = vmul.f32 %v1809, 1.442695
        %v1866 = vpow.pop %v1865
        %v1867 = vmul.f32 %v1810, 1.442695
        %v1868 = vpow.pop %v1867
        %v1869 = vmul.f32 %v1811, 1.442695
        %v1870 = vpow.pop %v1869
        %v1871 = vmul.f32 %v1812, 1.442695
        %v1872 = vpow.pop %v1871
        %v1873 = vmul.f32 %v1813, 1.442695
        %v1874 = vpow.pop %v1873
        %v1875 = vmul.f32 %v1814, 1.442695
        %v1876 = vpow.pop %v1875
        %v1877 = vmul.f32 %v1815, 1.442695
        %v1878 = vpow.pop %v1877
        %v1879 = vmul.f32 %v1816, 1.442695
        %v1880 = vpow.pop %v1879
        %vm1881 = vcmask 523520
        %v1882 = vsel %vm1881, %v954, -inf
        %1883 = vmax.xlane.f32.xlu0 %v1882
        %v1884 = vpop.xlane.xlu0 %1883
        %v1885 = vsel %vm1881, %v957, -inf
        %1886 = vmax.xlane.f32.xlu0 %v1885
        %v1887 = vpop.xlane.xlu0 %1886
        %v1888 = vsel %vm1881, %v962, -inf
        %1889 = vmax.xlane.f32.xlu0 %v1888
        %v1890 = vpop.xlane.xlu0 %1889
        %v1891 = vsel %vm1881, %v965, -inf
        %1892 = vmax.xlane.f32.xlu0 %v1891
        %v1893 = vpop.xlane.xlu0 %1892
        %v1894 = vsel %vm1881, %v1057, -inf
        %1895 = vmax.xlane.f32.xlu0 %v1894
        %v1896 = vpop.xlane.xlu0 %1895
        %v1897 = vsel %vm1881, %v1060, -inf
        %1898 = vmax.xlane.f32.xlu0 %v1897
        %v1899 = vpop.xlane.xlu0 %1898
        %v1900 = vsel %vm1881, %v1065, -inf
        %1901 = vmax.xlane.f32.xlu0 %v1900
        %v1902 = vpop.xlane.xlu0 %1901
        %v1903 = vsel %vm1881, %v1068, -inf
        %1904 = vmax.xlane.f32.xlu0 %v1903
        %v1905 = vpop.xlane.xlu0 %1904
        %v1906 = vsel %vm1881, %v1160, -inf
        %1907 = vmax.xlane.f32.xlu0 %v1906
        %v1908 = vpop.xlane.xlu0 %1907
        %v1909 = vsel %vm1881, %v1163, -inf
        %1910 = vmax.xlane.f32.xlu0 %v1909
        %v1911 = vpop.xlane.xlu0 %1910
        %v1912 = vsel %vm1881, %v1168, -inf
        %1913 = vmax.xlane.f32.xlu0 %v1912
        %v1914 = vpop.xlane.xlu0 %1913
        %v1915 = vsel %vm1881, %v1171, -inf
        %1916 = vmax.xlane.f32.xlu0 %v1915
        %v1917 = vpop.xlane.xlu0 %1916
        %v1918 = vsel %vm1881, %v1263, -inf
        %1919 = vmax.xlane.f32.xlu0 %v1918
        %v1920 = vpop.xlane.xlu0 %1919
        %v1921 = vsel %vm1881, %v1266, -inf
        %1922 = vmax.xlane.f32.xlu0 %v1921
        %v1923 = vpop.xlane.xlu0 %1922
        %v1924 = vsel %vm1881, %v1271, -inf
        %1925 = vmax.xlane.f32.xlu0 %v1924
        %v1926 = vpop.xlane.xlu0 %1925
        %v1927 = vsel %vm1881, %v1274, -inf
        %1928 = vmax.xlane.f32.xlu0 %v1927
        %v1929 = vpop.xlane.xlu0 %1928
        %v1930 = vsel %vm1881, %v1366, -inf
        %1931 = vmax.xlane.f32.xlu0 %v1930
        %v1932 = vpop.xlane.xlu0 %1931
        %v1933 = vsel %vm1881, %v1369, -inf
        %1934 = vmax.xlane.f32.xlu0 %v1933
        %v1935 = vpop.xlane.xlu0 %1934
        %v1936 = vsel %vm1881, %v1374, -inf
        %1937 = vmax.xlane.f32.xlu0 %v1936
        %v1938 = vpop.xlane.xlu0 %1937
        %v1939 = vsel %vm1881, %v1377, -inf
        %1940 = vmax.xlane.f32.xlu0 %v1939
        %v1941 = vpop.xlane.xlu0 %1940
        %v1942 = vsel %vm1881, %v1469, -inf
        %1943 = vmax.xlane.f32.xlu0 %v1942
        %v1944 = vpop.xlane.xlu0 %1943
        %v1945 = vsel %vm1881, %v1472, -inf
        %1946 = vmax.xlane.f32.xlu0 %v1945
        %v1947 = vpop.xlane.xlu0 %1946
        %v1948 = vsel %vm1881, %v1477, -inf
        %1949 = vmax.xlane.f32.xlu0 %v1948
        %v1950 = vpop.xlane.xlu0 %1949
        %v1951 = vsel %vm1881, %v1480, -inf
        %1952 = vmax.xlane.f32.xlu0 %v1951
        %v1953 = vpop.xlane.xlu0 %1952
        %v1954 = vsel %vm1881, %v1572, -inf
        %1955 = vmax.xlane.f32.xlu0 %v1954
        %v1956 = vpop.xlane.xlu0 %1955
        %v1957 = vsel %vm1881, %v1575, -inf
        %1958 = vmax.xlane.f32.xlu0 %v1957
        %v1959 = vpop.xlane.xlu0 %1958
        %v1960 = vsel %vm1881, %v1580, -inf
        %1961 = vmax.xlane.f32.xlu0 %v1960
        %v1962 = vpop.xlane.xlu0 %1961
        %v1963 = vsel %vm1881, %v1583, -inf
        %1964 = vmax.xlane.f32.xlu0 %v1963
        %v1965 = vpop.xlane.xlu0 %1964
        %v1966 = vsel %vm1881, %v1675, -inf
        %1967 = vmax.xlane.f32.xlu0 %v1966
        %v1968 = vpop.xlane.xlu0 %1967
        %v1969 = vsel %vm1881, %v1678, -inf
        %1970 = vmax.xlane.f32.xlu0 %v1969
        %v1971 = vpop.xlane.xlu0 %1970
        %v1972 = vsel %vm1881, %v1683, -inf
        %1973 = vmax.xlane.f32.xlu0 %v1972
        %v1974 = vpop.xlane.xlu0 %1973
        %v1975 = vsel %vm1881, %v1686, -inf
        %1976 = vmax.xlane.f32.xlu0 %v1975
        %v1977 = vpop.xlane.xlu0 %1976
        %v1978 = vsub.f32 %v954, %v1884
        %v1979 = vsub.f32 %v957, %v1887
        %v1980 = vsub.f32 %v962, %v1890
        %v1981 = vsub.f32 %v965, %v1893
        %v1982 = vsub.f32 %v1057, %v1896
        %v1983 = vsub.f32 %v1060, %v1899
        %v1984 = vsub.f32 %v1065, %v1902
        %v1985 = vsub.f32 %v1068, %v1905
        %v1986 = vsub.f32 %v1160, %v1908
        %v1987 = vsub.f32 %v1163, %v1911
        %v1988 = vsub.f32 %v1168, %v1914
        %v1989 = vsub.f32 %v1171, %v1917
        %v1990 = vsub.f32 %v1263, %v1920
        %v1991 = vsub.f32 %v1266, %v1923
        %v1992 = vsub.f32 %v1271, %v1926
        %v1993 = vsub.f32 %v1274, %v1929
        %v1994 = vsub.f32 %v1366, %v1932
        %v1995 = vsub.f32 %v1369, %v1935
        %v1996 = vsub.f32 %v1374, %v1938
        %v1997 = vsub.f32 %v1377, %v1941
        %v1998 = vsub.f32 %v1469, %v1944
        %v1999 = vsub.f32 %v1472, %v1947
        %v2000 = vsub.f32 %v1477, %v1950
        %v2001 = vsub.f32 %v1480, %v1953
        %v2002 = vsub.f32 %v1572, %v1956
        %v2003 = vsub.f32 %v1575, %v1959
        %v2004 = vsub.f32 %v1580, %v1962
        %v2005 = vsub.f32 %v1583, %v1965
        %v2006 = vsub.f32 %v1675, %v1968
        %v2007 = vsub.f32 %v1678, %v1971
        %v2008 = vsub.f32 %v1683, %v1974
        %v2009 = vsub.f32 %v1686, %v1977
        %v2010 = vmul.f32 %v1978, 1.442695
        %v2011 = vpow.pop %v2010
        %v2012 = vmul.f32 %v1979, 1.442695
        %v2013 = vpow.pop %v2012
        %v2014 = vmul.f32 %v1980, 1.442695
        %v2015 = vpow.pop %v2014
        %v2016 = vmul.f32 %v1981, 1.442695
        %v2017 = vpow.pop %v2016
        %v2018 = vmul.f32 %v1982, 1.442695
        %v2019 = vpow.pop %v2018
        %v2020 = vmul.f32 %v1983, 1.442695
        %v2021 = vpow.pop %v2020
        %v2022 = vmul.f32 %v1984, 1.442695
        %v2023 = vpow.pop %v2022
        %v2024 = vmul.f32 %v1985, 1.442695
        %v2025 = vpow.pop %v2024
        %v2026 = vmul.f32 %v1986, 1.442695
        %v2027 = vpow.pop %v2026
        %v2028 = vmul.f32 %v1987, 1.442695
        %v2029 = vpow.pop %v2028
        %v2030 = vmul.f32 %v1988, 1.442695
        %v2031 = vpow.pop %v2030
        %v2032 = vmul.f32 %v1989, 1.442695
        %v2033 = vpow.pop %v2032
        %v2034 = vmul.f32 %v1990, 1.442695
        %v2035 = vpow.pop %v2034
        %v2036 = vmul.f32 %v1991, 1.442695
        %v2037 = vpow.pop %v2036
        %v2038 = vmul.f32 %v1992, 1.442695
        %v2039 = vpow.pop %v2038
        %v2040 = vmul.f32 %v1993, 1.442695
        %v2041 = vpow.pop %v2040
        %v2042 = vmul.f32 %v1994, 1.442695
        %v2043 = vpow.pop %v2042
        %v2044 = vmul.f32 %v1995, 1.442695
        %v2045 = vpow.pop %v2044
        %v2046 = vmul.f32 %v1996, 1.442695
        %v2047 = vpow.pop %v2046
        %v2048 = vmul.f32 %v1997, 1.442695
        %v2049 = vpow.pop %v2048
        %v2050 = vmul.f32 %v1998, 1.442695
        %v2051 = vpow.pop %v2050
        %v2052 = vmul.f32 %v1999, 1.442695
        %v2053 = vpow.pop %v2052
        %v2054 = vmul.f32 %v2000, 1.442695
        %v2055 = vpow.pop %v2054
        %v2056 = vmul.f32 %v2001, 1.442695
        %v2057 = vpow.pop %v2056
        %v2058 = vmul.f32 %v2002, 1.442695
        %v2059 = vpow.pop %v2058
        %v2060 = vmul.f32 %v2003, 1.442695
        %v2061 = vpow.pop %v2060
        %v2062 = vmul.f32 %v2004, 1.442695
        %v2063 = vpow.pop %v2062
        %v2064 = vmul.f32 %v2005, 1.442695
        %v2065 = vpow.pop %v2064
        %v2066 = vmul.f32 %v2006, 1.442695
        %v2067 = vpow.pop %v2066
        %v2068 = vmul.f32 %v2007, 1.442695
        %v2069 = vpow.pop %v2068
        %v2070 = vmul.f32 %v2008, 1.442695
        %v2071 = vpow.pop %v2070
        %v2072 = vmul.f32 %v2009, 1.442695
        %v2073 = vpow.pop %v2072
        %vm2074 = vcmask 785920
        %v2075 = vsel %vm2074, %v954, -inf
        %2076 = vmax.xlane.f32.xlu0 %v2075
        %v2077 = vpop.xlane.xlu0 %2076
        %v2078 = vsel %vm2074, %v957, -inf
        %2079 = vmax.xlane.f32.xlu0 %v2078
        %v2080 = vpop.xlane.xlu0 %2079
        %v2081 = vsel %vm2074, %v962, -inf
        %2082 = vmax.xlane.f32.xlu0 %v2081
        %v2083 = vpop.xlane.xlu0 %2082
        %v2084 = vsel %vm2074, %v965, -inf
        %2085 = vmax.xlane.f32.xlu0 %v2084
        %v2086 = vpop.xlane.xlu0 %2085
        %v2087 = vsel %vm2074, %v1057, -inf
        %2088 = vmax.xlane.f32.xlu0 %v2087
        %v2089 = vpop.xlane.xlu0 %2088
        %v2090 = vsel %vm2074, %v1060, -inf
        %2091 = vmax.xlane.f32.xlu0 %v2090
        %v2092 = vpop.xlane.xlu0 %2091
        %v2093 = vsel %vm2074, %v1065, -inf
        %2094 = vmax.xlane.f32.xlu0 %v2093
        %v2095 = vpop.xlane.xlu0 %2094
        %v2096 = vsel %vm2074, %v1068, -inf
        %2097 = vmax.xlane.f32.xlu0 %v2096
        %v2098 = vpop.xlane.xlu0 %2097
        %v2099 = vsel %vm2074, %v1160, -inf
        %2100 = vmax.xlane.f32.xlu0 %v2099
        %v2101 = vpop.xlane.xlu0 %2100
        %v2102 = vsel %vm2074, %v1163, -inf
        %2103 = vmax.xlane.f32.xlu0 %v2102
        %v2104 = vpop.xlane.xlu0 %2103
        %v2105 = vsel %vm2074, %v1168, -inf
        %2106 = vmax.xlane.f32.xlu0 %v2105
        %v2107 = vpop.xlane.xlu0 %2106
        %v2108 = vsel %vm2074, %v1171, -inf
        %2109 = vmax.xlane.f32.xlu0 %v2108
        %v2110 = vpop.xlane.xlu0 %2109
        %v2111 = vsel %vm2074, %v1263, -inf
        %2112 = vmax.xlane.f32.xlu0 %v2111
        %v2113 = vpop.xlane.xlu0 %2112
        %v2114 = vsel %vm2074, %v1266, -inf
        %2115 = vmax.xlane.f32.xlu0 %v2114
        %v2116 = vpop.xlane.xlu0 %2115
        %v2117 = vsel %vm2074, %v1271, -inf
        %2118 = vmax.xlane.f32.xlu0 %v2117
        %v2119 = vpop.xlane.xlu0 %2118
        %v2120 = vsel %vm2074, %v1274, -inf
        %2121 = vmax.xlane.f32.xlu0 %v2120
        %v2122 = vpop.xlane.xlu0 %2121
        %v2123 = vsel %vm2074, %v1366, -inf
        %2124 = vmax.xlane.f32.xlu0 %v2123
        %v2125 = vpop.xlane.xlu0 %2124
        %v2126 = vsel %vm2074, %v1369, -inf
        %2127 = vmax.xlane.f32.xlu0 %v2126
        %v2128 = vpop.xlane.xlu0 %2127
        %v2129 = vsel %vm2074, %v1374, -inf
        %2130 = vmax.xlane.f32.xlu0 %v2129
        %v2131 = vpop.xlane.xlu0 %2130
        %v2132 = vsel %vm2074, %v1377, -inf
        %2133 = vmax.xlane.f32.xlu0 %v2132
        %v2134 = vpop.xlane.xlu0 %2133
        %v2135 = vsel %vm2074, %v1469, -inf
        %2136 = vmax.xlane.f32.xlu0 %v2135
        %v2137 = vpop.xlane.xlu0 %2136
        %v2138 = vsel %vm2074, %v1472, -inf
        %2139 = vmax.xlane.f32.xlu0 %v2138
        %v2140 = vpop.xlane.xlu0 %2139
        %v2141 = vsel %vm2074, %v1477, -inf
        %2142 = vmax.xlane.f32.xlu0 %v2141
        %v2143 = vpop.xlane.xlu0 %2142
        %v2144 = vsel %vm2074, %v1480, -inf
        %2145 = vmax.xlane.f32.xlu0 %v2144
        %v2146 = vpop.xlane.xlu0 %2145
        %v2147 = vsel %vm2074, %v1572, -inf
        %2148 = vmax.xlane.f32.xlu0 %v2147
        %v2149 = vpop.xlane.xlu0 %2148
        %v2150 = vsel %vm2074, %v1575, -inf
        %2151 = vmax.xlane.f32.xlu0 %v2150
        %v2152 = vpop.xlane.xlu0 %2151
        %v2153 = vsel %vm2074, %v1580, -inf
        %2154 = vmax.xlane.f32.xlu0 %v2153
        %v2155 = vpop.xlane.xlu0 %2154
        %v2156 = vsel %vm2074, %v1583, -inf
        %2157 = vmax.xlane.f32.xlu0 %v2156
        %v2158 = vpop.xlane.xlu0 %2157
        %v2159 = vsel %vm2074, %v1675, -inf
        %2160 = vmax.xlane.f32.xlu0 %v2159
        %v2161 = vpop.xlane.xlu0 %2160
        %v2162 = vsel %vm2074, %v1678, -inf
        %2163 = vmax.xlane.f32.xlu0 %v2162
        %v2164 = vpop.xlane.xlu0 %2163
        %v2165 = vsel %vm2074, %v1683, -inf
        %2166 = vmax.xlane.f32.xlu0 %v2165
        %v2167 = vpop.xlane.xlu0 %2166
        %v2168 = vsel %vm2074, %v1686, -inf
        %2169 = vmax.xlane.f32.xlu0 %v2168
        %v2170 = vpop.xlane.xlu0 %2169
        %v2171 = vsub.f32 %v954, %v2077
        %v2172 = vsub.f32 %v957, %v2080
        %v2173 = vsub.f32 %v962, %v2083
        %v2174 = vsub.f32 %v965, %v2086
        %v2175 = vsub.f32 %v1057, %v2089
        %v2176 = vsub.f32 %v1060, %v2092
        %v2177 = vsub.f32 %v1065, %v2095
        %v2178 = vsub.f32 %v1068, %v2098
        %v2179 = vsub.f32 %v1160, %v2101
        %v2180 = vsub.f32 %v1163, %v2104
        %v2181 = vsub.f32 %v1168, %v2107
        %v2182 = vsub.f32 %v1171, %v2110
        %v2183 = vsub.f32 %v1263, %v2113
        %v2184 = vsub.f32 %v1266, %v2116
        %v2185 = vsub.f32 %v1271, %v2119
        %v2186 = vsub.f32 %v1274, %v2122
        %v2187 = vsub.f32 %v1366, %v2125
        %v2188 = vsub.f32 %v1369, %v2128
        %v2189 = vsub.f32 %v1374, %v2131
        %v2190 = vsub.f32 %v1377, %v2134
        %v2191 = vsub.f32 %v1469, %v2137
        %v2192 = vsub.f32 %v1472, %v2140
        %v2193 = vsub.f32 %v1477, %v2143
        %v2194 = vsub.f32 %v1480, %v2146
        %v2195 = vsub.f32 %v1572, %v2149
        %v2196 = vsub.f32 %v1575, %v2152
        %v2197 = vsub.f32 %v1580, %v2155
        %v2198 = vsub.f32 %v1583, %v2158
        %v2199 = vsub.f32 %v1675, %v2161
        %v2200 = vsub.f32 %v1678, %v2164
        %v2201 = vsub.f32 %v1683, %v2167
        %v2202 = vsub.f32 %v1686, %v2170
        %v2203 = vmul.f32 %v2171, 1.442695
        %v2204 = vpow.pop %v2203
        %v2205 = vmul.f32 %v2172, 1.442695
        %v2206 = vpow.pop %v2205
        %v2207 = vmul.f32 %v2173, 1.442695
        %v2208 = vpow.pop %v2207
        %v2209 = vmul.f32 %v2174, 1.442695
        %v2210 = vpow.pop %v2209
        %v2211 = vmul.f32 %v2175, 1.442695
        %v2212 = vpow.pop %v2211
        %v2213 = vmul.f32 %v2176, 1.442695
        %v2214 = vpow.pop %v2213
        %v2215 = vmul.f32 %v2177, 1.442695
        %v2216 = vpow.pop %v2215
        %v2217 = vmul.f32 %v2178, 1.442695
        %v2218 = vpow.pop %v2217
        %v2219 = vmul.f32 %v2179, 1.442695
        %v2220 = vpow.pop %v2219
        %v2221 = vmul.f32 %v2180, 1.442695
        %v2222 = vpow.pop %v2221
        %v2223 = vmul.f32 %v2181, 1.442695
        %v2224 = vpow.pop %v2223
        %v2225 = vmul.f32 %v2182, 1.442695
        %v2226 = vpow.pop %v2225
        %v2227 = vmul.f32 %v2183, 1.442695
        %v2228 = vpow.pop %v2227
        %v2229 = vmul.f32 %v2184, 1.442695
        %v2230 = vpow.pop %v2229
        %v2231 = vmul.f32 %v2185, 1.442695
        %v2232 = vpow.pop %v2231
        %v2233 = vmul.f32 %v2186, 1.442695
        %v2234 = vpow.pop %v2233
        %v2235 = vmul.f32 %v2187, 1.442695
        %v2236 = vpow.pop %v2235
        %v2237 = vmul.f32 %v2188, 1.442695
        %v2238 = vpow.pop %v2237
        %v2239 = vmul.f32 %v2189, 1.442695
        %v2240 = vpow.pop %v2239
        %v2241 = vmul.f32 %v2190, 1.442695
        %v2242 = vpow.pop %v2241
        %v2243 = vmul.f32 %v2191, 1.442695
        %v2244 = vpow.pop %v2243
        %v2245 = vmul.f32 %v2192, 1.442695
        %v2246 = vpow.pop %v2245
        %v2247 = vmul.f32 %v2193, 1.442695
        %v2248 = vpow.pop %v2247
        %v2249 = vmul.f32 %v2194, 1.442695
        %v2250 = vpow.pop %v2249
        %v2251 = vmul.f32 %v2195, 1.442695
        %v2252 = vpow.pop %v2251
        %v2253 = vmul.f32 %v2196, 1.442695
        %v2254 = vpow.pop %v2253
        %v2255 = vmul.f32 %v2197, 1.442695
        %v2256 = vpow.pop %v2255
        %v2257 = vmul.f32 %v2198, 1.442695
        %v2258 = vpow.pop %v2257
        %v2259 = vmul.f32 %v2199, 1.442695
        %v2260 = vpow.pop %v2259
        %v2261 = vmul.f32 %v2200, 1.442695
        %v2262 = vpow.pop %v2261
        %v2263 = vmul.f32 %v2201, 1.442695
        %v2264 = vpow.pop %v2263
        %v2265 = vmul.f32 %v2202, 1.442695
        %v2266 = vpow.pop %v2265
        %vm2267 = vcmask 1048320
        %v2268 = vsel %vm2267, %v954, -inf
        %2269 = vmax.xlane.f32.xlu0 %v2268
        %v2270 = vpop.xlane.xlu0 %2269
        %v2271 = vsel %vm2267, %v957, -inf
        %2272 = vmax.xlane.f32.xlu0 %v2271
        %v2273 = vpop.xlane.xlu0 %2272
        %v2274 = vsel %vm2267, %v962, -inf
        %2275 = vmax.xlane.f32.xlu0 %v2274
        %v2276 = vpop.xlane.xlu0 %2275
        %v2277 = vsel %vm2267, %v965, -inf
        %2278 = vmax.xlane.f32.xlu0 %v2277
        %v2279 = vpop.xlane.xlu0 %2278
        %v2280 = vsel %vm2267, %v1057, -inf
        %2281 = vmax.xlane.f32.xlu0 %v2280
        %v2282 = vpop.xlane.xlu0 %2281
        %v2283 = vsel %vm2267, %v1060, -inf
        %2284 = vmax.xlane.f32.xlu0 %v2283
        %v2285 = vpop.xlane.xlu0 %2284
        %v2286 = vsel %vm2267, %v1065, -inf
        %2287 = vmax.xlane.f32.xlu0 %v2286
        %v2288 = vpop.xlane.xlu0 %2287
        %v2289 = vsel %vm2267, %v1068, -inf
        %2290 = vmax.xlane.f32.xlu0 %v2289
        %v2291 = vpop.xlane.xlu0 %2290
        %v2292 = vsel %vm2267, %v1160, -inf
        %2293 = vmax.xlane.f32.xlu0 %v2292
        %v2294 = vpop.xlane.xlu0 %2293
        %v2295 = vsel %vm2267, %v1163, -inf
        %2296 = vmax.xlane.f32.xlu0 %v2295
        %v2297 = vpop.xlane.xlu0 %2296
        %v2298 = vsel %vm2267, %v1168, -inf
        %2299 = vmax.xlane.f32.xlu0 %v2298
        %v2300 = vpop.xlane.xlu0 %2299
        %v2301 = vsel %vm2267, %v1171, -inf
        %2302 = vmax.xlane.f32.xlu0 %v2301
        %v2303 = vpop.xlane.xlu0 %2302
        %v2304 = vsel %vm2267, %v1263, -inf
        %2305 = vmax.xlane.f32.xlu0 %v2304
        %v2306 = vpop.xlane.xlu0 %2305
        %v2307 = vsel %vm2267, %v1266, -inf
        %2308 = vmax.xlane.f32.xlu0 %v2307
        %v2309 = vpop.xlane.xlu0 %2308
        %v2310 = vsel %vm2267, %v1271, -inf
        %2311 = vmax.xlane.f32.xlu0 %v2310
        %v2312 = vpop.xlane.xlu0 %2311
        %v2313 = vsel %vm2267, %v1274, -inf
        %2314 = vmax.xlane.f32.xlu0 %v2313
        %v2315 = vpop.xlane.xlu0 %2314
        %v2316 = vsel %vm2267, %v1366, -inf
        %2317 = vmax.xlane.f32.xlu0 %v2316
        %v2318 = vpop.xlane.xlu0 %2317
        %v2319 = vsel %vm2267, %v1369, -inf
        %2320 = vmax.xlane.f32.xlu0 %v2319
        %v2321 = vpop.xlane.xlu0 %2320
        %v2322 = vsel %vm2267, %v1374, -inf
        %2323 = vmax.xlane.f32.xlu0 %v2322
        %v2324 = vpop.xlane.xlu0 %2323
        %v2325 = vsel %vm2267, %v1377, -inf
        %2326 = vmax.xlane.f32.xlu0 %v2325
        %v2327 = vpop.xlane.xlu0 %2326
        %v2328 = vsel %vm2267, %v1469, -inf
        %2329 = vmax.xlane.f32.xlu0 %v2328
        %v2330 = vpop.xlane.xlu0 %2329
        %v2331 = vsel %vm2267, %v1472, -inf
        %2332 = vmax.xlane.f32.xlu0 %v2331
        %v2333 = vpop.xlane.xlu0 %2332
        %v2334 = vsel %vm2267, %v1477, -inf
        %2335 = vmax.xlane.f32.xlu0 %v2334
        %v2336 = vpop.xlane.xlu0 %2335
        %v2337 = vsel %vm2267, %v1480, -inf
        %2338 = vmax.xlane.f32.xlu0 %v2337
        %v2339 = vpop.xlane.xlu0 %2338
        %v2340 = vsel %vm2267, %v1572, -inf
        %2341 = vmax.xlane.f32.xlu0 %v2340
        %v2342 = vpop.xlane.xlu0 %2341
        %v2343 = vsel %vm2267, %v1575, -inf
        %2344 = vmax.xlane.f32.xlu0 %v2343
        %v2345 = vpop.xlane.xlu0 %2344
        %v2346 = vsel %vm2267, %v1580, -inf
        %2347 = vmax.xlane.f32.xlu0 %v2346
        %v2348 = vpop.xlane.xlu0 %2347
        %v2349 = vsel %vm2267, %v1583, -inf
        %2350 = vmax.xlane.f32.xlu0 %v2349
        %v2351 = vpop.xlane.xlu0 %2350
        %v2352 = vsel %vm2267, %v1675, -inf
        %2353 = vmax.xlane.f32.xlu0 %v2352
        %v2354 = vpop.xlane.xlu0 %2353
        %v2355 = vsel %vm2267, %v1678, -inf
        %2356 = vmax.xlane.f32.xlu0 %v2355
        %v2357 = vpop.xlane.xlu0 %2356
        %v2358 = vsel %vm2267, %v1683, -inf
        %2359 = vmax.xlane.f32.xlu0 %v2358
        %v2360 = vpop.xlane.xlu0 %2359
        %v2361 = vsel %vm2267, %v1686, -inf
        %2362 = vmax.xlane.f32.xlu0 %v2361
        %v2363 = vpop.xlane.xlu0 %2362
        %v2364 = vsub.f32 %v954, %v2270
        %v2365 = vsub.f32 %v957, %v2273
        %v2366 = vsub.f32 %v962, %v2276
        %v2367 = vsub.f32 %v965, %v2279
        %v2368 = vsub.f32 %v1057, %v2282
        %v2369 = vsub.f32 %v1060, %v2285
        %v2370 = vsub.f32 %v1065, %v2288
        %v2371 = vsub.f32 %v1068, %v2291
        %v2372 = vsub.f32 %v1160, %v2294
        %v2373 = vsub.f32 %v1163, %v2297
        %v2374 = vsub.f32 %v1168, %v2300
        %v2375 = vsub.f32 %v1171, %v2303
        %v2376 = vsub.f32 %v1263, %v2306
        %v2377 = vsub.f32 %v1266, %v2309
        %v2378 = vsub.f32 %v1271, %v2312
        %v2379 = vsub.f32 %v1274, %v2315
        %v2380 = vsub.f32 %v1366, %v2318
        %v2381 = vsub.f32 %v1369, %v2321
        %v2382 = vsub.f32 %v1374, %v2324
        %v2383 = vsub.f32 %v1377, %v2327
        %v2384 = vsub.f32 %v1469, %v2330
        %v2385 = vsub.f32 %v1472, %v2333
        %v2386 = vsub.f32 %v1477, %v2336
        %v2387 = vsub.f32 %v1480, %v2339
        %v2388 = vsub.f32 %v1572, %v2342
        %v2389 = vsub.f32 %v1575, %v2345
        %v2390 = vsub.f32 %v1580, %v2348
        %v2391 = vsub.f32 %v1583, %v2351
        %v2392 = vsub.f32 %v1675, %v2354
        %v2393 = vsub.f32 %v1678, %v2357
        %v2394 = vsub.f32 %v1683, %v2360
        %v2395 = vsub.f32 %v1686, %v2363
        %v2396 = vmul.f32 %v2364, 1.442695
        %v2397 = vpow.pop %v2396
        %v2398 = vmul.f32 %v2365, 1.442695
        %v2399 = vpow.pop %v2398
        %v2400 = vmul.f32 %v2366, 1.442695
        %v2401 = vpow.pop %v2400
        %v2402 = vmul.f32 %v2367, 1.442695
        %v2403 = vpow.pop %v2402
        %v2404 = vmul.f32 %v2368, 1.442695
        %v2405 = vpow.pop %v2404
        %v2406 = vmul.f32 %v2369, 1.442695
        %v2407 = vpow.pop %v2406
        %v2408 = vmul.f32 %v2370, 1.442695
        %v2409 = vpow.pop %v2408
        %v2410 = vmul.f32 %v2371, 1.442695
        %v2411 = vpow.pop %v2410
        %v2412 = vmul.f32 %v2372, 1.442695
        %v2413 = vpow.pop %v2412
        %v2414 = vmul.f32 %v2373, 1.442695
        %v2415 = vpow.pop %v2414
        %v2416 = vmul.f32 %v2374, 1.442695
        %v2417 = vpow.pop %v2416
        %v2418 = vmul.f32 %v2375, 1.442695
        %v2419 = vpow.pop %v2418
        %v2420 = vmul.f32 %v2376, 1.442695
        %v2421 = vpow.pop %v2420
        %v2422 = vmul.f32 %v2377, 1.442695
        %v2423 = vpow.pop %v2422
        %v2424 = vmul.f32 %v2378, 1.442695
        %v2425 = vpow.pop %v2424
        %v2426 = vmul.f32 %v2379, 1.442695
        %v2427 = vpow.pop %v2426
        %v2428 = vmul.f32 %v2380, 1.442695
        %v2429 = vpow.pop %v2428
        %v2430 = vmul.f32 %v2381, 1.442695
        %v2431 = vpow.pop %v2430
        %v2432 = vmul.f32 %v2382, 1.442695
        %v2433 = vpow.pop %v2432
        %v2434 = vmul.f32 %v2383, 1.442695
        %v2435 = vpow.pop %v2434
        %v2436 = vmul.f32 %v2384, 1.442695
        %v2437 = vpow.pop %v2436
        %v2438 = vmul.f32 %v2385, 1.442695
        %v2439 = vpow.pop %v2438
        %v2440 = vmul.f32 %v2386, 1.442695
        %v2441 = vpow.pop %v2440
        %v2442 = vmul.f32 %v2387, 1.442695
        %v2443 = vpow.pop %v2442
        %v2444 = vmul.f32 %v2388, 1.442695
        %v2445 = vpow.pop %v2444
        %v2446 = vmul.f32 %v2389, 1.442695
        %v2447 = vpow.pop %v2446
        %v2448 = vmul.f32 %v2390, 1.442695
        %v2449 = vpow.pop %v2448
        %v2450 = vmul.f32 %v2391, 1.442695
        %v2451 = vpow.pop %v2450
        %v2452 = vmul.f32 %v2392, 1.442695
        %v2453 = vpow.pop %v2452
        %v2454 = vmul.f32 %v2393, 1.442695
        %v2455 = vpow.pop %v2454
        %v2456 = vmul.f32 %v2394, 1.442695
        %v2457 = vpow.pop %v2456
        %v2458 = vmul.f32 %v2395, 1.442695
        %v2459 = vpow.pop %v2458
        %v2460 = vsel %vm343, %v1818, %v2011
        %v2461 = vsel %vm343, %v1820, %v2013
        %v2462 = vsel %vm343, %v1822, %v2015
        %v2463 = vsel %vm343, %v1824, %v2017
        %v2464 = vsel %vm343, %v1826, %v2019
        %v2465 = vsel %vm343, %v1828, %v2021
        %v2466 = vsel %vm343, %v1830, %v2023
        %v2467 = vsel %vm343, %v1832, %v2025
        %v2468 = vsel %vm343, %v1834, %v2027
        %v2469 = vsel %vm343, %v1836, %v2029
        %v2470 = vsel %vm343, %v1838, %v2031
        %v2471 = vsel %vm343, %v1840, %v2033
        %v2472 = vsel %vm343, %v1842, %v2035
        %v2473 = vsel %vm343, %v1844, %v2037
        %v2474 = vsel %vm343, %v1846, %v2039
        %v2475 = vsel %vm343, %v1848, %v2041
        %v2476 = vsel %vm343, %v1850, %v2043
        %v2477 = vsel %vm343, %v1852, %v2045
        %v2478 = vsel %vm343, %v1854, %v2047
        %v2479 = vsel %vm343, %v1856, %v2049
        %v2480 = vsel %vm343, %v1858, %v2051
        %v2481 = vsel %vm343, %v1860, %v2053
        %v2482 = vsel %vm343, %v1862, %v2055
        %v2483 = vsel %vm343, %v1864, %v2057
        %v2484 = vsel %vm343, %v1866, %v2059
        %v2485 = vsel %vm343, %v1868, %v2061
        %v2486 = vsel %vm343, %v1870, %v2063
        %v2487 = vsel %vm343, %v1872, %v2065
        %v2488 = vsel %vm343, %v1874, %v2067
        %v2489 = vsel %vm343, %v1876, %v2069
        %v2490 = vsel %vm343, %v1878, %v2071
        %v2491 = vsel %vm343, %v1880, %v2073
        %vm2492 = vcmask 523264
        %v2493 = vsel %vm2492, %v2460, %v2204
        %v2494 = vsel %vm2492, %v2461, %v2206
        %v2495 = vsel %vm2492, %v2462, %v2208
        %v2496 = vsel %vm2492, %v2463, %v2210
        %v2497 = vsel %vm2492, %v2464, %v2212
        %v2498 = vsel %vm2492, %v2465, %v2214
        %v2499 = vsel %vm2492, %v2466, %v2216
        %v2500 = vsel %vm2492, %v2467, %v2218
        %v2501 = vsel %vm2492, %v2468, %v2220
        %v2502 = vsel %vm2492, %v2469, %v2222
        %v2503 = vsel %vm2492, %v2470, %v2224
        %v2504 = vsel %vm2492, %v2471, %v2226
        %v2505 = vsel %vm2492, %v2472, %v2228
        %v2506 = vsel %vm2492, %v2473, %v2230
        %v2507 = vsel %vm2492, %v2474, %v2232
        %v2508 = vsel %vm2492, %v2475, %v2234
        %v2509 = vsel %vm2492, %v2476, %v2236
        %v2510 = vsel %vm2492, %v2477, %v2238
        %v2511 = vsel %vm2492, %v2478, %v2240
        %v2512 = vsel %vm2492, %v2479, %v2242
        %v2513 = vsel %vm2492, %v2480, %v2244
        %v2514 = vsel %vm2492, %v2481, %v2246
        %v2515 = vsel %vm2492, %v2482, %v2248
        %v2516 = vsel %vm2492, %v2483, %v2250
        %v2517 = vsel %vm2492, %v2484, %v2252
        %v2518 = vsel %vm2492, %v2485, %v2254
        %v2519 = vsel %vm2492, %v2486, %v2256
        %v2520 = vsel %vm2492, %v2487, %v2258
        %v2521 = vsel %vm2492, %v2488, %v2260
        %v2522 = vsel %vm2492, %v2489, %v2262
        %v2523 = vsel %vm2492, %v2490, %v2264
        %v2524 = vsel %vm2492, %v2491, %v2266
        %vm2525 = vcmask 785408
        %v2526 = vsel %vm2525, %v2493, %v2397
        %v2527 = vsel %vm2525, %v2494, %v2399
        %v2528 = vsel %vm2525, %v2495, %v2401
        %v2529 = vsel %vm2525, %v2496, %v2403
        %v2530 = vsel %vm2525, %v2497, %v2405
        %v2531 = vsel %vm2525, %v2498, %v2407
        %v2532 = vsel %vm2525, %v2499, %v2409
        %v2533 = vsel %vm2525, %v2500, %v2411
        %v2534 = vsel %vm2525, %v2501, %v2413
        %v2535 = vsel %vm2525, %v2502, %v2415
        %v2536 = vsel %vm2525, %v2503, %v2417
        %v2537 = vsel %vm2525, %v2504, %v2419
        %v2538 = vsel %vm2525, %v2505, %v2421
        %v2539 = vsel %vm2525, %v2506, %v2423
        %v2540 = vsel %vm2525, %v2507, %v2425
        %v2541 = vsel %vm2525, %v2508, %v2427
        %v2542 = vsel %vm2525, %v2509, %v2429
        %v2543 = vsel %vm2525, %v2510, %v2431
        %v2544 = vsel %vm2525, %v2511, %v2433
        %v2545 = vsel %vm2525, %v2512, %v2435
        %v2546 = vsel %vm2525, %v2513, %v2437
        %v2547 = vsel %vm2525, %v2514, %v2439
        %v2548 = vsel %vm2525, %v2515, %v2441
        %v2549 = vsel %vm2525, %v2516, %v2443
        %v2550 = vsel %vm2525, %v2517, %v2445
        %v2551 = vsel %vm2525, %v2518, %v2447
        %v2552 = vsel %vm2525, %v2519, %v2449
        %v2553 = vsel %vm2525, %v2520, %v2451
        %v2554 = vsel %vm2525, %v2521, %v2453
        %v2555 = vsel %vm2525, %v2522, %v2455
        %v2556 = vsel %vm2525, %v2523, %v2457
        %v2557 = vsel %vm2525, %v2524, %v2459
        %v2558 = vpack.c.bf16 %v2527, %v2526
        %v2559 = vpack.c.bf16 %v2529, %v2528
        %v2560 = vpack.c.bf16 %v2531, %v2530
        %v2561 = vpack.c.bf16 %v2533, %v2532
        %v2562 = vpack.c.bf16 %v2535, %v2534
        %v2563 = vpack.c.bf16 %v2537, %v2536
        %v2564 = vpack.c.bf16 %v2539, %v2538
        %v2565 = vpack.c.bf16 %v2541, %v2540
        %v2566 = vpack.c.bf16 %v2543, %v2542
        %v2567 = vpack.c.bf16 %v2545, %v2544
        %v2568 = vpack.c.bf16 %v2547, %v2546
        %v2569 = vpack.c.bf16 %v2549, %v2548
        %v2570 = vpack.c.bf16 %v2551, %v2550
        %v2571 = vpack.c.bf16 %v2553, %v2552
        %v2572 = vpack.c.bf16 %v2555, %v2554
        %v2573 = vpack.c.bf16 %v2557, %v2556
        %2582 = vrot.lane.b32.xlu0 %v737, 64
        %v2583 = vpop.permute.xlu0 %2582
        %2584 = vrot.lane.b32.xlu0 %v738, 64
        %v2585 = vpop.permute.xlu0 %2584
        %2586 = vrot.lane.b32.xlu0 %v739, 64
        %v2587 = vpop.permute.xlu0 %2586
        %2588 = vrot.lane.b32.xlu0 %v740, 64
        %v2589 = vpop.permute.xlu0 %2588
        %2590 = vrot.lane.b32.xlu0 %v741, 64
        %v2591 = vpop.permute.xlu0 %2590
        %2592 = vrot.lane.b32.xlu0 %v742, 64
        %v2593 = vpop.permute.xlu0 %2592
        %2594 = vrot.lane.b32.xlu0 %v743, 64
        %v2595 = vpop.permute.xlu0 %2594
        %2596 = vrot.lane.b32.xlu0 %v744, 64
        %v2597 = vpop.permute.xlu0 %2596
        %2606 = vmatprep.subr.bf16.mxu0 0
        %2607 = vmatpush1.bf16.msra.mxu0 %v2597
        %2608 = vmatprep.subr.bf16.mxu0 0
        %2609 = vmatpush1.bf16.msra.mxu0 %v2595
        %2610 = vmatprep.subr.bf16.mxu0 0
        %2611 = vmatpush1.bf16.msra.mxu0 %v2593
        %2612 = vmatprep.subr.bf16.mxu0 0
        %2613 = vmatpush1.bf16.msra.mxu0 %v2591
        %2614 = vmatprep.subr.bf16.mxu0 0
        %2615 = vmatpush1.bf16.msra.mxu0 %v2589
        %2616 = vmatprep.subr.bf16.mxu0 0
        %2617 = vmatpush1.bf16.msra.mxu0 %v2587
        %2618 = vmatprep.subr.bf16.mxu0 0
        %2619 = vmatpush1.bf16.msra.mxu0 %v2585
        %2620 = vmatprep.subr.bf16.mxu0 0
        %2621 = vmatpush1.bf16.msra.mxu0 %v2583
        %2622 = vmatprep.subr.bf16.mxu0 0
        %2623 = vmatpush2.bf16.msra.mxu0 0
        %2624 = vmatprep.subr.bf16.mxu0 0
        %2625 = vmatpush2.bf16.msra.mxu0 0
        %2626 = vmatprep.subr.bf16.mxu0 0
        %2627 = vmatpush2.bf16.msra.mxu0 0
        %2628 = vmatprep.subr.bf16.mxu0 0
        %2629 = vmatpush2.bf16.msra.mxu0 0
        %2630 = vmatprep.subr.bf16.mxu0 0
        %2631 = vmatpush2.bf16.msra.mxu0 0
        %2632 = vmatprep.subr.bf16.mxu0 0
        %2633 = vmatpush2.bf16.msra.mxu0 0
        %2634 = vmatprep.subr.bf16.mxu0 0
        %2635 = vmatpush2.bf16.msra.mxu0 0
        %2636 = vmatprep.subr.bf16.mxu0 0
        %2637 = vmatpush2.bf16.msra.mxu0 0
        %2638 = vmatprep.mubr.bf16.mxu0 0
        %2639 = vmatmul.mubr.bf16.gmra.mxu0 %v2558
        %v2640 = vpop.f32.mrf.mxu0
        %v2641 = vadd.f32 0.0, %v2640
        %v2642 = vpop.f32.mrf.mxu0
        %v2643 = vpop.f32.mrf.mxu0
        %v2644 = vadd.f32 0.0, %v2643
        %v2645 = vpop.f32.mrf.mxu0
        %2646 = vmatprep.mubr.bf16.mxu0 0
        %2647 = vmatmul.mubr.bf16.gmra.mxu0 %v2559
        %v2648 = vpop.f32.mrf.mxu0
        %v2649 = vadd.f32 0.0, %v2648
        %v2650 = vpop.f32.mrf.mxu0
        %v2651 = vpop.f32.mrf.mxu0
        %v2652 = vadd.f32 0.0, %v2651
        %v2653 = vpop.f32.mrf.mxu0
        %2654 = vdwg.mxu0
        %2663 = vrot.lane.b32.xlu0 %v745, 64
        %v2664 = vpop.permute.xlu0 %2663
        %2665 = vrot.lane.b32.xlu0 %v746, 64
        %v2666 = vpop.permute.xlu0 %2665
        %2667 = vrot.lane.b32.xlu0 %v747, 64
        %v2668 = vpop.permute.xlu0 %2667
        %2669 = vrot.lane.b32.xlu0 %v748, 64
        %v2670 = vpop.permute.xlu0 %2669
        %2671 = vrot.lane.b32.xlu0 %v749, 64
        %v2672 = vpop.permute.xlu0 %2671
        %2673 = vrot.lane.b32.xlu0 %v750, 64
        %v2674 = vpop.permute.xlu0 %2673
        %2675 = vrot.lane.b32.xlu0 %v751, 64
        %v2676 = vpop.permute.xlu0 %2675
        %2677 = vrot.lane.b32.xlu0 %v752, 64
        %v2678 = vpop.permute.xlu0 %2677
        %2687 = vmatprep.subr.bf16.mxu0 0
        %2688 = vmatpush1.bf16.msra.mxu0 %v2678
        %2689 = vmatprep.subr.bf16.mxu0 0
        %2690 = vmatpush1.bf16.msra.mxu0 %v2676
        %2691 = vmatprep.subr.bf16.mxu0 0
        %2692 = vmatpush1.bf16.msra.mxu0 %v2674
        %2693 = vmatprep.subr.bf16.mxu0 0
        %2694 = vmatpush1.bf16.msra.mxu0 %v2672
        %2695 = vmatprep.subr.bf16.mxu0 0
        %2696 = vmatpush1.bf16.msra.mxu0 %v2670
        %2697 = vmatprep.subr.bf16.mxu0 0
        %2698 = vmatpush1.bf16.msra.mxu0 %v2668
        %2699 = vmatprep.subr.bf16.mxu0 0
        %2700 = vmatpush1.bf16.msra.mxu0 %v2666
        %2701 = vmatprep.subr.bf16.mxu0 0
        %2702 = vmatpush1.bf16.msra.mxu0 %v2664
        %2703 = vmatprep.subr.bf16.mxu0 0
        %2704 = vmatpush2.bf16.msra.mxu0 0
        %2705 = vmatprep.subr.bf16.mxu0 0
        %2706 = vmatpush2.bf16.msra.mxu0 0
        %2707 = vmatprep.subr.bf16.mxu0 0
        %2708 = vmatpush2.bf16.msra.mxu0 0
        %2709 = vmatprep.subr.bf16.mxu0 0
        %2710 = vmatpush2.bf16.msra.mxu0 0
        %2711 = vmatprep.subr.bf16.mxu0 0
        %2712 = vmatpush2.bf16.msra.mxu0 0
        %2713 = vmatprep.subr.bf16.mxu0 0
        %2714 = vmatpush2.bf16.msra.mxu0 0
        %2715 = vmatprep.subr.bf16.mxu0 0
        %2716 = vmatpush2.bf16.msra.mxu0 0
        %2717 = vmatprep.subr.bf16.mxu0 0
        %2718 = vmatpush2.bf16.msra.mxu0 0
        %2719 = vmatprep.mubr.bf16.mxu0 0
        %2720 = vmatmul.mubr.bf16.gmra.mxu0 %v2560
        %v2721 = vpop.f32.mrf.mxu0
        %v2722 = vadd.f32 0.0, %v2721
        %v2723 = vpop.f32.mrf.mxu0
        %v2724 = vpop.f32.mrf.mxu0
        %v2725 = vadd.f32 0.0, %v2724
        %v2726 = vpop.f32.mrf.mxu0
        %2727 = vmatprep.mubr.bf16.mxu0 0
        %2728 = vmatmul.mubr.bf16.gmra.mxu0 %v2561
        %v2729 = vpop.f32.mrf.mxu0
        %v2730 = vadd.f32 0.0, %v2729
        %v2731 = vpop.f32.mrf.mxu0
        %v2732 = vpop.f32.mrf.mxu0
        %v2733 = vadd.f32 0.0, %v2732
        %v2734 = vpop.f32.mrf.mxu0
        %2735 = vdwg.mxu0
        %2744 = vrot.lane.b32.xlu0 %v753, 64
        %v2745 = vpop.permute.xlu0 %2744
        %2746 = vrot.lane.b32.xlu0 %v754, 64
        %v2747 = vpop.permute.xlu0 %2746
        %2748 = vrot.lane.b32.xlu0 %v755, 64
        %v2749 = vpop.permute.xlu0 %2748
        %2750 = vrot.lane.b32.xlu0 %v756, 64
        %v2751 = vpop.permute.xlu0 %2750
        %2752 = vrot.lane.b32.xlu0 %v757, 64
        %v2753 = vpop.permute.xlu0 %2752
        %2754 = vrot.lane.b32.xlu0 %v758, 64
        %v2755 = vpop.permute.xlu0 %2754
        %2756 = vrot.lane.b32.xlu0 %v759, 64
        %v2757 = vpop.permute.xlu0 %2756
        %2758 = vrot.lane.b32.xlu0 %v760, 64
        %v2759 = vpop.permute.xlu0 %2758
        %2768 = vmatprep.subr.bf16.mxu0 0
        %2769 = vmatpush1.bf16.msra.mxu0 %v2759
        %2770 = vmatprep.subr.bf16.mxu0 0
        %2771 = vmatpush1.bf16.msra.mxu0 %v2757
        %2772 = vmatprep.subr.bf16.mxu0 0
        %2773 = vmatpush1.bf16.msra.mxu0 %v2755
        %2774 = vmatprep.subr.bf16.mxu0 0
        %2775 = vmatpush1.bf16.msra.mxu0 %v2753
        %2776 = vmatprep.subr.bf16.mxu0 0
        %2777 = vmatpush1.bf16.msra.mxu0 %v2751
        %2778 = vmatprep.subr.bf16.mxu0 0
        %2779 = vmatpush1.bf16.msra.mxu0 %v2749
        %2780 = vmatprep.subr.bf16.mxu0 0
        %2781 = vmatpush1.bf16.msra.mxu0 %v2747
        %2782 = vmatprep.subr.bf16.mxu0 0
        %2783 = vmatpush1.bf16.msra.mxu0 %v2745
        %2784 = vmatprep.subr.bf16.mxu0 0
        %2785 = vmatpush2.bf16.msra.mxu0 0
        %2786 = vmatprep.subr.bf16.mxu0 0
        %2787 = vmatpush2.bf16.msra.mxu0 0
        %2788 = vmatprep.subr.bf16.mxu0 0
        %2789 = vmatpush2.bf16.msra.mxu0 0
        %2790 = vmatprep.subr.bf16.mxu0 0
        %2791 = vmatpush2.bf16.msra.mxu0 0
        %2792 = vmatprep.subr.bf16.mxu0 0
        %2793 = vmatpush2.bf16.msra.mxu0 0
        %2794 = vmatprep.subr.bf16.mxu0 0
        %2795 = vmatpush2.bf16.msra.mxu0 0
        %2796 = vmatprep.subr.bf16.mxu0 0
        %2797 = vmatpush2.bf16.msra.mxu0 0
        %2798 = vmatprep.subr.bf16.mxu0 0
        %2799 = vmatpush2.bf16.msra.mxu0 0
        %2800 = vmatprep.mubr.bf16.mxu0 0
        %2801 = vmatmul.mubr.bf16.gmra.mxu0 %v2562
        %v2802 = vpop.f32.mrf.mxu0
        %v2803 = vadd.f32 0.0, %v2802
        %v2804 = vpop.f32.mrf.mxu0
        %v2805 = vpop.f32.mrf.mxu0
        %v2806 = vadd.f32 0.0, %v2805
        %v2807 = vpop.f32.mrf.mxu0
        %2808 = vmatprep.mubr.bf16.mxu0 0
        %2809 = vmatmul.mubr.bf16.gmra.mxu0 %v2563
        %v2810 = vpop.f32.mrf.mxu0
        %v2811 = vadd.f32 0.0, %v2810
        %v2812 = vpop.f32.mrf.mxu0
        %v2813 = vpop.f32.mrf.mxu0
        %v2814 = vadd.f32 0.0, %v2813
        %v2815 = vpop.f32.mrf.mxu0
        %2816 = vdwg.mxu0
        %2825 = vrot.lane.b32.xlu0 %v761, 64
        %v2826 = vpop.permute.xlu0 %2825
        %2827 = vrot.lane.b32.xlu0 %v762, 64
        %v2828 = vpop.permute.xlu0 %2827
        %2829 = vrot.lane.b32.xlu0 %v763, 64
        %v2830 = vpop.permute.xlu0 %2829
        %2831 = vrot.lane.b32.xlu0 %v764, 64
        %v2832 = vpop.permute.xlu0 %2831
        %2833 = vrot.lane.b32.xlu0 %v765, 64
        %v2834 = vpop.permute.xlu0 %2833
        %2835 = vrot.lane.b32.xlu0 %v766, 64
        %v2836 = vpop.permute.xlu0 %2835
        %2837 = vrot.lane.b32.xlu0 %v767, 64
        %v2838 = vpop.permute.xlu0 %2837
        %2839 = vrot.lane.b32.xlu0 %v768, 64
        %v2840 = vpop.permute.xlu0 %2839
        %2849 = vmatprep.subr.bf16.mxu0 0
        %2850 = vmatpush1.bf16.msra.mxu0 %v2840
        %2851 = vmatprep.subr.bf16.mxu0 0
        %2852 = vmatpush1.bf16.msra.mxu0 %v2838
        %2853 = vmatprep.subr.bf16.mxu0 0
        %2854 = vmatpush1.bf16.msra.mxu0 %v2836
        %2855 = vmatprep.subr.bf16.mxu0 0
        %2856 = vmatpush1.bf16.msra.mxu0 %v2834
        %2857 = vmatprep.subr.bf16.mxu0 0
        %2858 = vmatpush1.bf16.msra.mxu0 %v2832
        %2859 = vmatprep.subr.bf16.mxu0 0
        %2860 = vmatpush1.bf16.msra.mxu0 %v2830
        %2861 = vmatprep.subr.bf16.mxu0 0
        %2862 = vmatpush1.bf16.msra.mxu0 %v2828
        %2863 = vmatprep.subr.bf16.mxu0 0
        %2864 = vmatpush1.bf16.msra.mxu0 %v2826
        %2865 = vmatprep.subr.bf16.mxu0 0
        %2866 = vmatpush2.bf16.msra.mxu0 0
        %2867 = vmatprep.subr.bf16.mxu0 0
        %2868 = vmatpush2.bf16.msra.mxu0 0
        %2869 = vmatprep.subr.bf16.mxu0 0
        %2870 = vmatpush2.bf16.msra.mxu0 0
        %2871 = vmatprep.subr.bf16.mxu0 0
        %2872 = vmatpush2.bf16.msra.mxu0 0
        %2873 = vmatprep.subr.bf16.mxu0 0
        %2874 = vmatpush2.bf16.msra.mxu0 0
        %2875 = vmatprep.subr.bf16.mxu0 0
        %2876 = vmatpush2.bf16.msra.mxu0 0
        %2877 = vmatprep.subr.bf16.mxu0 0
        %2878 = vmatpush2.bf16.msra.mxu0 0
        %2879 = vmatprep.subr.bf16.mxu0 0
        %2880 = vmatpush2.bf16.msra.mxu0 0
        %2881 = vmatprep.mubr.bf16.mxu0 0
        %2882 = vmatmul.mubr.bf16.gmra.mxu0 %v2564
        %v2883 = vpop.f32.mrf.mxu0
        %v2884 = vadd.f32 0.0, %v2883
        %v2885 = vpop.f32.mrf.mxu0
        %v2886 = vpop.f32.mrf.mxu0
        %v2887 = vadd.f32 0.0, %v2886
        %v2888 = vpop.f32.mrf.mxu0
        %2889 = vmatprep.mubr.bf16.mxu0 0
        %2890 = vmatmul.mubr.bf16.gmra.mxu0 %v2565
        %v2891 = vpop.f32.mrf.mxu0
        %v2892 = vadd.f32 0.0, %v2891
        %v2893 = vpop.f32.mrf.mxu0
        %v2894 = vpop.f32.mrf.mxu0
        %v2895 = vadd.f32 0.0, %v2894
        %v2896 = vpop.f32.mrf.mxu0
        %2897 = vdwg.mxu0
        %2906 = vrot.lane.b32.xlu0 %v769, 64
        %v2907 = vpop.permute.xlu0 %2906
        %2908 = vrot.lane.b32.xlu0 %v770, 64
        %v2909 = vpop.permute.xlu0 %2908
        %2910 = vrot.lane.b32.xlu0 %v771, 64
        %v2911 = vpop.permute.xlu0 %2910
        %2912 = vrot.lane.b32.xlu0 %v772, 64
        %v2913 = vpop.permute.xlu0 %2912
        %2914 = vrot.lane.b32.xlu0 %v773, 64
        %v2915 = vpop.permute.xlu0 %2914
        %2916 = vrot.lane.b32.xlu0 %v774, 64
        %v2917 = vpop.permute.xlu0 %2916
        %2918 = vrot.lane.b32.xlu0 %v775, 64
        %v2919 = vpop.permute.xlu0 %2918
        %2920 = vrot.lane.b32.xlu0 %v776, 64
        %v2921 = vpop.permute.xlu0 %2920
        %2930 = vmatprep.subr.bf16.mxu0 0
        %2931 = vmatpush1.bf16.msra.mxu0 %v2921
        %2932 = vmatprep.subr.bf16.mxu0 0
        %2933 = vmatpush1.bf16.msra.mxu0 %v2919
        %2934 = vmatprep.subr.bf16.mxu0 0
        %2935 = vmatpush1.bf16.msra.mxu0 %v2917
        %2936 = vmatprep.subr.bf16.mxu0 0
        %2937 = vmatpush1.bf16.msra.mxu0 %v2915
        %2938 = vmatprep.subr.bf16.mxu0 0
        %2939 = vmatpush1.bf16.msra.mxu0 %v2913
        %2940 = vmatprep.subr.bf16.mxu0 0
        %2941 = vmatpush1.bf16.msra.mxu0 %v2911
        %2942 = vmatprep.subr.bf16.mxu0 0
        %2943 = vmatpush1.bf16.msra.mxu0 %v2909
        %2944 = vmatprep.subr.bf16.mxu0 0
        %2945 = vmatpush1.bf16.msra.mxu0 %v2907
        %2946 = vmatprep.subr.bf16.mxu0 0
        %2947 = vmatpush2.bf16.msra.mxu0 0
        %2948 = vmatprep.subr.bf16.mxu0 0
        %2949 = vmatpush2.bf16.msra.mxu0 0
        %2950 = vmatprep.subr.bf16.mxu0 0
        %2951 = vmatpush2.bf16.msra.mxu0 0
        %2952 = vmatprep.subr.bf16.mxu0 0
        %2953 = vmatpush2.bf16.msra.mxu0 0
        %2954 = vmatprep.subr.bf16.mxu0 0
        %2955 = vmatpush2.bf16.msra.mxu0 0
        %2956 = vmatprep.subr.bf16.mxu0 0
        %2957 = vmatpush2.bf16.msra.mxu0 0
        %2958 = vmatprep.subr.bf16.mxu0 0
        %2959 = vmatpush2.bf16.msra.mxu0 0
        %2960 = vmatprep.subr.bf16.mxu0 0
        %2961 = vmatpush2.bf16.msra.mxu0 0
        %2962 = vmatprep.mubr.bf16.mxu0 0
        %2963 = vmatmul.mubr.bf16.gmra.mxu0 %v2566
        %v2964 = vpop.f32.mrf.mxu0
        %v2965 = vadd.f32 0.0, %v2964
        %v2966 = vpop.f32.mrf.mxu0
        %v2967 = vpop.f32.mrf.mxu0
        %v2968 = vadd.f32 0.0, %v2967
        %v2969 = vpop.f32.mrf.mxu0
        %2970 = vmatprep.mubr.bf16.mxu0 0
        %2971 = vmatmul.mubr.bf16.gmra.mxu0 %v2567
        %v2972 = vpop.f32.mrf.mxu0
        %v2973 = vadd.f32 0.0, %v2972
        %v2974 = vpop.f32.mrf.mxu0
        %v2975 = vpop.f32.mrf.mxu0
        %v2976 = vadd.f32 0.0, %v2975
        %v2977 = vpop.f32.mrf.mxu0
        %2978 = vdwg.mxu0
        %2987 = vrot.lane.b32.xlu0 %v777, 64
        %v2988 = vpop.permute.xlu0 %2987
        %2989 = vrot.lane.b32.xlu0 %v778, 64
        %v2990 = vpop.permute.xlu0 %2989
        %2991 = vrot.lane.b32.xlu0 %v779, 64
        %v2992 = vpop.permute.xlu0 %2991
        %2993 = vrot.lane.b32.xlu0 %v780, 64
        %v2994 = vpop.permute.xlu0 %2993
        %2995 = vrot.lane.b32.xlu0 %v781, 64
        %v2996 = vpop.permute.xlu0 %2995
        %2997 = vrot.lane.b32.xlu0 %v782, 64
        %v2998 = vpop.permute.xlu0 %2997
        %2999 = vrot.lane.b32.xlu0 %v783, 64
        %v3000 = vpop.permute.xlu0 %2999
        %3001 = vrot.lane.b32.xlu0 %v784, 64
        %v3002 = vpop.permute.xlu0 %3001
        %3011 = vmatprep.subr.bf16.mxu0 0
        %3012 = vmatpush1.bf16.msra.mxu0 %v3002
        %3013 = vmatprep.subr.bf16.mxu0 0
        %3014 = vmatpush1.bf16.msra.mxu0 %v3000
        %3015 = vmatprep.subr.bf16.mxu0 0
        %3016 = vmatpush1.bf16.msra.mxu0 %v2998
        %3017 = vmatprep.subr.bf16.mxu0 0
        %3018 = vmatpush1.bf16.msra.mxu0 %v2996
        %3019 = vmatprep.subr.bf16.mxu0 0
        %3020 = vmatpush1.bf16.msra.mxu0 %v2994
        %3021 = vmatprep.subr.bf16.mxu0 0
        %3022 = vmatpush1.bf16.msra.mxu0 %v2992
        %3023 = vmatprep.subr.bf16.mxu0 0
        %3024 = vmatpush1.bf16.msra.mxu0 %v2990
        %3025 = vmatprep.subr.bf16.mxu0 0
        %3026 = vmatpush1.bf16.msra.mxu0 %v2988
        %3027 = vmatprep.subr.bf16.mxu0 0
        %3028 = vmatpush2.bf16.msra.mxu0 0
        %3029 = vmatprep.subr.bf16.mxu0 0
        %3030 = vmatpush2.bf16.msra.mxu0 0
        %3031 = vmatprep.subr.bf16.mxu0 0
        %3032 = vmatpush2.bf16.msra.mxu0 0
        %3033 = vmatprep.subr.bf16.mxu0 0
        %3034 = vmatpush2.bf16.msra.mxu0 0
        %3035 = vmatprep.subr.bf16.mxu0 0
        %3036 = vmatpush2.bf16.msra.mxu0 0
        %3037 = vmatprep.subr.bf16.mxu0 0
        %3038 = vmatpush2.bf16.msra.mxu0 0
        %3039 = vmatprep.subr.bf16.mxu0 0
        %3040 = vmatpush2.bf16.msra.mxu0 0
        %3041 = vmatprep.subr.bf16.mxu0 0
        %3042 = vmatpush2.bf16.msra.mxu0 0
        %3043 = vmatprep.mubr.bf16.mxu0 0
        %3044 = vmatmul.mubr.bf16.gmra.mxu0 %v2568
        %v3045 = vpop.f32.mrf.mxu0
        %v3046 = vadd.f32 0.0, %v3045
        %v3047 = vpop.f32.mrf.mxu0
        %v3048 = vpop.f32.mrf.mxu0
        %v3049 = vadd.f32 0.0, %v3048
        %v3050 = vpop.f32.mrf.mxu0
        %3051 = vmatprep.mubr.bf16.mxu0 0
        %3052 = vmatmul.mubr.bf16.gmra.mxu0 %v2569
        %v3053 = vpop.f32.mrf.mxu0
        %v3054 = vadd.f32 0.0, %v3053
        %v3055 = vpop.f32.mrf.mxu0
        %v3056 = vpop.f32.mrf.mxu0
        %v3057 = vadd.f32 0.0, %v3056
        %v3058 = vpop.f32.mrf.mxu0
        %3059 = vdwg.mxu0
        %3068 = vrot.lane.b32.xlu0 %v785, 64
        %v3069 = vpop.permute.xlu0 %3068
        %3070 = vrot.lane.b32.xlu0 %v786, 64
        %v3071 = vpop.permute.xlu0 %3070
        %3072 = vrot.lane.b32.xlu0 %v787, 64
        %v3073 = vpop.permute.xlu0 %3072
        %3074 = vrot.lane.b32.xlu0 %v788, 64
        %v3075 = vpop.permute.xlu0 %3074
        %3076 = vrot.lane.b32.xlu0 %v789, 64
        %v3077 = vpop.permute.xlu0 %3076
        %3078 = vrot.lane.b32.xlu0 %v790, 64
        %v3079 = vpop.permute.xlu0 %3078
        %3080 = vrot.lane.b32.xlu0 %v791, 64
        %v3081 = vpop.permute.xlu0 %3080
        %3082 = vrot.lane.b32.xlu0 %v792, 64
        %v3083 = vpop.permute.xlu0 %3082
        %3092 = vmatprep.subr.bf16.mxu0 0
        %3093 = vmatpush1.bf16.msra.mxu0 %v3083
        %3094 = vmatprep.subr.bf16.mxu0 0
        %3095 = vmatpush1.bf16.msra.mxu0 %v3081
        %3096 = vmatprep.subr.bf16.mxu0 0
        %3097 = vmatpush1.bf16.msra.mxu0 %v3079
        %3098 = vmatprep.subr.bf16.mxu0 0
        %3099 = vmatpush1.bf16.msra.mxu0 %v3077
        %3100 = vmatprep.subr.bf16.mxu0 0
        %3101 = vmatpush1.bf16.msra.mxu0 %v3075
        %3102 = vmatprep.subr.bf16.mxu0 0
        %3103 = vmatpush1.bf16.msra.mxu0 %v3073
        %3104 = vmatprep.subr.bf16.mxu0 0
        %3105 = vmatpush1.bf16.msra.mxu0 %v3071
        %3106 = vmatprep.subr.bf16.mxu0 0
        %3107 = vmatpush1.bf16.msra.mxu0 %v3069
        %3108 = vmatprep.subr.bf16.mxu0 0
        %3109 = vmatpush2.bf16.msra.mxu0 0
        %3110 = vmatprep.subr.bf16.mxu0 0
        %3111 = vmatpush2.bf16.msra.mxu0 0
        %3112 = vmatprep.subr.bf16.mxu0 0
        %3113 = vmatpush2.bf16.msra.mxu0 0
        %3114 = vmatprep.subr.bf16.mxu0 0
        %3115 = vmatpush2.bf16.msra.mxu0 0
        %3116 = vmatprep.subr.bf16.mxu0 0
        %3117 = vmatpush2.bf16.msra.mxu0 0
        %3118 = vmatprep.subr.bf16.mxu0 0
        %3119 = vmatpush2.bf16.msra.mxu0 0
        %3120 = vmatprep.subr.bf16.mxu0 0
        %3121 = vmatpush2.bf16.msra.mxu0 0
        %3122 = vmatprep.subr.bf16.mxu0 0
        %3123 = vmatpush2.bf16.msra.mxu0 0
        %3124 = vmatprep.mubr.bf16.mxu0 0
        %3125 = vmatmul.mubr.bf16.gmra.mxu0 %v2570
        %v3126 = vpop.f32.mrf.mxu0
        %v3127 = vadd.f32 0.0, %v3126
        %v3128 = vpop.f32.mrf.mxu0
        %v3129 = vpop.f32.mrf.mxu0
        %v3130 = vadd.f32 0.0, %v3129
        %v3131 = vpop.f32.mrf.mxu0
        %3132 = vmatprep.mubr.bf16.mxu0 0
        %3133 = vmatmul.mubr.bf16.gmra.mxu0 %v2571
        %v3134 = vpop.f32.mrf.mxu0
        %v3135 = vadd.f32 0.0, %v3134
        %v3136 = vpop.f32.mrf.mxu0
        %v3137 = vpop.f32.mrf.mxu0
        %v3138 = vadd.f32 0.0, %v3137
        %v3139 = vpop.f32.mrf.mxu0
        %3140 = vdwg.mxu0
        %3149 = vrot.lane.b32.xlu0 %v793, 64
        %v3150 = vpop.permute.xlu0 %3149
        %3151 = vrot.lane.b32.xlu0 %v794, 64
        %v3152 = vpop.permute.xlu0 %3151
        %3153 = vrot.lane.b32.xlu0 %v795, 64
        %v3154 = vpop.permute.xlu0 %3153
        %3155 = vrot.lane.b32.xlu0 %v796, 64
        %v3156 = vpop.permute.xlu0 %3155
        %3157 = vrot.lane.b32.xlu0 %v797, 64
        %v3158 = vpop.permute.xlu0 %3157
        %3159 = vrot.lane.b32.xlu0 %v798, 64
        %v3160 = vpop.permute.xlu0 %3159
        %3161 = vrot.lane.b32.xlu0 %v799, 64
        %v3162 = vpop.permute.xlu0 %3161
        %3163 = vrot.lane.b32.xlu0 %v800, 64
        %v3164 = vpop.permute.xlu0 %3163
        %3173 = vmatprep.subr.bf16.mxu0 0
        %3174 = vmatpush1.bf16.msra.mxu0 %v3164
        %3175 = vmatprep.subr.bf16.mxu0 0
        %3176 = vmatpush1.bf16.msra.mxu0 %v3162
        %3177 = vmatprep.subr.bf16.mxu0 0
        %3178 = vmatpush1.bf16.msra.mxu0 %v3160
        %3179 = vmatprep.subr.bf16.mxu0 0
        %3180 = vmatpush1.bf16.msra.mxu0 %v3158
        %3181 = vmatprep.subr.bf16.mxu0 0
        %3182 = vmatpush1.bf16.msra.mxu0 %v3156
        %3183 = vmatprep.subr.bf16.mxu0 0
        %3184 = vmatpush1.bf16.msra.mxu0 %v3154
        %3185 = vmatprep.subr.bf16.mxu0 0
        %3186 = vmatpush1.bf16.msra.mxu0 %v3152
        %3187 = vmatprep.subr.bf16.mxu0 0
        %3188 = vmatpush1.bf16.msra.mxu0 %v3150
        %3189 = vmatprep.subr.bf16.mxu0 0
        %3190 = vmatpush2.bf16.msra.mxu0 0
        %3191 = vmatprep.subr.bf16.mxu0 0
        %3192 = vmatpush2.bf16.msra.mxu0 0
        %3193 = vmatprep.subr.bf16.mxu0 0
        %3194 = vmatpush2.bf16.msra.mxu0 0
        %3195 = vmatprep.subr.bf16.mxu0 0
        %3196 = vmatpush2.bf16.msra.mxu0 0
        %3197 = vmatprep.subr.bf16.mxu0 0
        %3198 = vmatpush2.bf16.msra.mxu0 0
        %3199 = vmatprep.subr.bf16.mxu0 0
        %3200 = vmatpush2.bf16.msra.mxu0 0
        %3201 = vmatprep.subr.bf16.mxu0 0
        %3202 = vmatpush2.bf16.msra.mxu0 0
        %3203 = vmatprep.subr.bf16.mxu0 0
        %3204 = vmatpush2.bf16.msra.mxu0 0
        %3205 = vmatprep.mubr.bf16.mxu0 0
        %3206 = vmatmul.mubr.bf16.gmra.mxu0 %v2572
        %v3207 = vpop.f32.mrf.mxu0
        %v3208 = vadd.f32 0.0, %v3207
        %v3209 = vpop.f32.mrf.mxu0
        %v3210 = vpop.f32.mrf.mxu0
        %v3211 = vadd.f32 0.0, %v3210
        %v3212 = vpop.f32.mrf.mxu0
        %3213 = vmatprep.mubr.bf16.mxu0 0
        %3214 = vmatmul.mubr.bf16.gmra.mxu0 %v2573
        %v3215 = vpop.f32.mrf.mxu0
        %v3216 = vadd.f32 0.0, %v3215
        %v3217 = vpop.f32.mrf.mxu0
        %v3218 = vpop.f32.mrf.mxu0
        %v3219 = vadd.f32 0.0, %v3218
        %v3220 = vpop.f32.mrf.mxu0
        %3221 = vdwg.mxu0
        %3230 = vmatprep.subr.bf16.mxu0 0
        %3231 = vmatpush1.bf16.msra.mxu0 %v624
        %3232 = vmatprep.subr.bf16.mxu0 0
        %3233 = vmatpush1.bf16.msra.mxu0 %v623
        %3234 = vmatprep.subr.bf16.mxu0 0
        %3235 = vmatpush1.bf16.msra.mxu0 %v622
        %3236 = vmatprep.subr.bf16.mxu0 0
        %3237 = vmatpush1.bf16.msra.mxu0 %v621
        %3238 = vmatprep.subr.bf16.mxu0 0
        %3239 = vmatpush1.bf16.msra.mxu0 %v620
        %3240 = vmatprep.subr.bf16.mxu0 0
        %3241 = vmatpush1.bf16.msra.mxu0 %v619
        %3242 = vmatprep.subr.bf16.mxu0 0
        %3243 = vmatpush1.bf16.msra.mxu0 %v618
        %3244 = vmatprep.subr.bf16.mxu0 0
        %3245 = vmatpush1.bf16.msra.mxu0 %v617
        %3246 = vmatprep.subr.bf16.mxu0 0
        %3247 = vmatpush2.bf16.msra.mxu0 0
        %3248 = vmatprep.subr.bf16.mxu0 0
        %3249 = vmatpush2.bf16.msra.mxu0 0
        %3250 = vmatprep.subr.bf16.mxu0 0
        %3251 = vmatpush2.bf16.msra.mxu0 0
        %3252 = vmatprep.subr.bf16.mxu0 0
        %3253 = vmatpush2.bf16.msra.mxu0 0
        %3254 = vmatprep.subr.bf16.mxu0 0
        %3255 = vmatpush2.bf16.msra.mxu0 0
        %3256 = vmatprep.subr.bf16.mxu0 0
        %3257 = vmatpush2.bf16.msra.mxu0 0
        %3258 = vmatprep.subr.bf16.mxu0 0
        %3259 = vmatpush2.bf16.msra.mxu0 0
        %3260 = vmatprep.subr.bf16.mxu0 0
        %3261 = vmatpush2.bf16.msra.mxu0 0
        %3262 = vmatprep.mubr.bf16.mxu0 0
        %3263 = vmatmul.mubr.bf16.gmra.mxu0 %v2558
        %v3264 = vpop.f32.mrf.mxu0
        %v3265 = vadd.f32 0.0, %v3264
        %v3266 = vpop.f32.mrf.mxu0
        %v3267 = vpop.f32.mrf.mxu0
        %v3268 = vadd.f32 0.0, %v3267
        %v3269 = vpop.f32.mrf.mxu0
        %3270 = vmatprep.mubr.bf16.mxu0 0
        %3271 = vmatmul.mubr.bf16.gmra.mxu0 %v2559
        %v3272 = vpop.f32.mrf.mxu0
        %v3273 = vadd.f32 0.0, %v3272
        %v3274 = vpop.f32.mrf.mxu0
        %v3275 = vpop.f32.mrf.mxu0
        %v3276 = vadd.f32 0.0, %v3275
        %v3277 = vpop.f32.mrf.mxu0
        %3278 = vmatprep.mubr.bf16.mxu0 0
        %3279 = vmatmul.mubr.bf16.gmra.mxu0 %v2560
        %v3280 = vpop.f32.mrf.mxu0
        %v3281 = vadd.f32 0.0, %v3280
        %v3282 = vpop.f32.mrf.mxu0
        %v3283 = vpop.f32.mrf.mxu0
        %v3284 = vadd.f32 0.0, %v3283
        %v3285 = vpop.f32.mrf.mxu0
        %3286 = vmatprep.mubr.bf16.mxu0 0
        %3287 = vmatmul.mubr.bf16.gmra.mxu0 %v2561
        %v3288 = vpop.f32.mrf.mxu0
        %v3289 = vadd.f32 0.0, %v3288
        %v3290 = vpop.f32.mrf.mxu0
        %v3291 = vpop.f32.mrf.mxu0
        %v3292 = vadd.f32 0.0, %v3291
        %v3293 = vpop.f32.mrf.mxu0
        %3294 = vmatprep.mubr.bf16.mxu0 0
        %3295 = vmatmul.mubr.bf16.gmra.mxu0 %v2562
        %v3296 = vpop.f32.mrf.mxu0
        %v3297 = vadd.f32 0.0, %v3296
        %v3298 = vpop.f32.mrf.mxu0
        %v3299 = vpop.f32.mrf.mxu0
        %v3300 = vadd.f32 0.0, %v3299
        %v3301 = vpop.f32.mrf.mxu0
        %3302 = vmatprep.mubr.bf16.mxu0 0
        %3303 = vmatmul.mubr.bf16.gmra.mxu0 %v2563
        %v3304 = vpop.f32.mrf.mxu0
        %v3305 = vadd.f32 0.0, %v3304
        %v3306 = vpop.f32.mrf.mxu0
        %v3307 = vpop.f32.mrf.mxu0
        %v3308 = vadd.f32 0.0, %v3307
        %v3309 = vpop.f32.mrf.mxu0
        %3310 = vmatprep.mubr.bf16.mxu0 0
        %3311 = vmatmul.mubr.bf16.gmra.mxu0 %v2564
        %v3312 = vpop.f32.mrf.mxu0
        %v3313 = vadd.f32 0.0, %v3312
        %v3314 = vpop.f32.mrf.mxu0
        %v3315 = vpop.f32.mrf.mxu0
        %v3316 = vadd.f32 0.0, %v3315
        %v3317 = vpop.f32.mrf.mxu0
        %3318 = vmatprep.mubr.bf16.mxu0 0
        %3319 = vmatmul.mubr.bf16.gmra.mxu0 %v2565
        %v3320 = vpop.f32.mrf.mxu0
        %v3321 = vadd.f32 0.0, %v3320
        %v3322 = vpop.f32.mrf.mxu0
        %v3323 = vpop.f32.mrf.mxu0
        %v3324 = vadd.f32 0.0, %v3323
        %v3325 = vpop.f32.mrf.mxu0
        %3326 = vmatprep.mubr.bf16.mxu0 0
        %3327 = vmatmul.mubr.bf16.gmra.mxu0 %v2566
        %v3328 = vpop.f32.mrf.mxu0
        %v3329 = vadd.f32 0.0, %v3328
        %v3330 = vpop.f32.mrf.mxu0
        %v3331 = vpop.f32.mrf.mxu0
        %v3332 = vadd.f32 0.0, %v3331
        %v3333 = vpop.f32.mrf.mxu0
        %3334 = vmatprep.mubr.bf16.mxu0 0
        %3335 = vmatmul.mubr.bf16.gmra.mxu0 %v2567
        %v3336 = vpop.f32.mrf.mxu0
        %v3337 = vadd.f32 0.0, %v3336
        %v3338 = vpop.f32.mrf.mxu0
        %v3339 = vpop.f32.mrf.mxu0
        %v3340 = vadd.f32 0.0, %v3339
        %v3341 = vpop.f32.mrf.mxu0
        %3342 = vmatprep.mubr.bf16.mxu0 0
        %3343 = vmatmul.mubr.bf16.gmra.mxu0 %v2568
        %v3344 = vpop.f32.mrf.mxu0
        %v3345 = vadd.f32 0.0, %v3344
        %v3346 = vpop.f32.mrf.mxu0
        %v3347 = vpop.f32.mrf.mxu0
        %v3348 = vadd.f32 0.0, %v3347
        %v3349 = vpop.f32.mrf.mxu0
        %3350 = vmatprep.mubr.bf16.mxu0 0
        %3351 = vmatmul.mubr.bf16.gmra.mxu0 %v2569
        %v3352 = vpop.f32.mrf.mxu0
        %v3353 = vadd.f32 0.0, %v3352
        %v3354 = vpop.f32.mrf.mxu0
        %v3355 = vpop.f32.mrf.mxu0
        %v3356 = vadd.f32 0.0, %v3355
        %v3357 = vpop.f32.mrf.mxu0
        %3358 = vmatprep.mubr.bf16.mxu0 0
        %3359 = vmatmul.mubr.bf16.gmra.mxu0 %v2570
        %v3360 = vpop.f32.mrf.mxu0
        %v3361 = vadd.f32 0.0, %v3360
        %v3362 = vpop.f32.mrf.mxu0
        %v3363 = vpop.f32.mrf.mxu0
        %v3364 = vadd.f32 0.0, %v3363
        %v3365 = vpop.f32.mrf.mxu0
        %3366 = vmatprep.mubr.bf16.mxu0 0
        %3367 = vmatmul.mubr.bf16.gmra.mxu0 %v2571
        %v3368 = vpop.f32.mrf.mxu0
        %v3369 = vadd.f32 0.0, %v3368
        %v3370 = vpop.f32.mrf.mxu0
        %v3371 = vpop.f32.mrf.mxu0
        %v3372 = vadd.f32 0.0, %v3371
        %v3373 = vpop.f32.mrf.mxu0
        %3374 = vmatprep.mubr.bf16.mxu0 0
        %3375 = vmatmul.mubr.bf16.gmra.mxu0 %v2572
        %v3376 = vpop.f32.mrf.mxu0
        %v3377 = vadd.f32 0.0, %v3376
        %v3378 = vpop.f32.mrf.mxu0
        %v3379 = vpop.f32.mrf.mxu0
        %v3380 = vadd.f32 0.0, %v3379
        %v3381 = vpop.f32.mrf.mxu0
        %3382 = vmatprep.mubr.bf16.mxu0 0
        %3383 = vmatmul.mubr.bf16.gmra.mxu0 %v2573
        %v3384 = vpop.f32.mrf.mxu0
        %v3385 = vadd.f32 0.0, %v3384
        %v3386 = vpop.f32.mrf.mxu0
        %v3387 = vpop.f32.mrf.mxu0
        %v3388 = vadd.f32 0.0, %v3387
        %v3389 = vpop.f32.mrf.mxu0
        %3390 = vdwg.mxu0
        %v3391 = vrcp.pop %v3265
        %v3392 = vrcp.pop %v3268
        %v3393 = vrcp.pop %v3273
        %v3394 = vrcp.pop %v3276
        %v3395 = vrcp.pop %v3281
        %v3396 = vrcp.pop %v3284
        %v3397 = vrcp.pop %v3289
        %v3398 = vrcp.pop %v3292
        %v3399 = vrcp.pop %v3297
        %v3400 = vrcp.pop %v3300
        %v3401 = vrcp.pop %v3305
        %v3402 = vrcp.pop %v3308
        %v3403 = vrcp.pop %v3313
        %v3404 = vrcp.pop %v3316
        %v3405 = vrcp.pop %v3321
        %v3406 = vrcp.pop %v3324
        %v3407 = vrcp.pop %v3329
        %v3408 = vrcp.pop %v3332
        %v3409 = vrcp.pop %v3337
        %v3410 = vrcp.pop %v3340
        %v3411 = vrcp.pop %v3345
        %v3412 = vrcp.pop %v3348
        %v3413 = vrcp.pop %v3353
        %v3414 = vrcp.pop %v3356
        %v3415 = vrcp.pop %v3361
        %v3416 = vrcp.pop %v3364
        %v3417 = vrcp.pop %v3369
        %v3418 = vrcp.pop %v3372
        %v3419 = vrcp.pop %v3377
        %v3420 = vrcp.pop %v3380
        %v3421 = vrcp.pop %v3385
        %v3422 = vrcp.pop %v3388
        %v3423 = vmul.f32 %v2641, %v3391
        %v3424 = vmul.f32 %v2644, %v3392
        %v3425 = vmul.f32 %v2649, %v3393
        %v3426 = vmul.f32 %v2652, %v3394
        %v3427 = vmul.f32 %v2722, %v3395
        %v3428 = vmul.f32 %v2725, %v3396
        %v3429 = vmul.f32 %v2730, %v3397
        %v3430 = vmul.f32 %v2733, %v3398
        %v3431 = vmul.f32 %v2803, %v3399
        %v3432 = vmul.f32 %v2806, %v3400
        %v3433 = vmul.f32 %v2811, %v3401
        %v3434 = vmul.f32 %v2814, %v3402
        %v3435 = vmul.f32 %v2884, %v3403
        %v3436 = vmul.f32 %v2887, %v3404
        %v3437 = vmul.f32 %v2892, %v3405
        %v3438 = vmul.f32 %v2895, %v3406
        %v3439 = vmul.f32 %v2965, %v3407
        %v3440 = vmul.f32 %v2968, %v3408
        %v3441 = vmul.f32 %v2973, %v3409
        %v3442 = vmul.f32 %v2976, %v3410
        %v3443 = vmul.f32 %v3046, %v3411
        %v3444 = vmul.f32 %v3049, %v3412
        %v3445 = vmul.f32 %v3054, %v3413
        %v3446 = vmul.f32 %v3057, %v3414
        %v3447 = vmul.f32 %v3127, %v3415
        %v3448 = vmul.f32 %v3130, %v3416
        %v3449 = vmul.f32 %v3135, %v3417
        %v3450 = vmul.f32 %v3138, %v3418
        %v3451 = vmul.f32 %v3208, %v3419
        %v3452 = vmul.f32 %v3211, %v3420
        %v3453 = vmul.f32 %v3216, %v3421
        %v3454 = vmul.f32 %v3219, %v3422
        %v3455 = vpack.c.bf16 %v3424, %v3423
        %v3456 = vpack.c.bf16 %v3426, %v3425
        %v3457 = vpack.c.bf16 %v3428, %v3427
        %v3458 = vpack.c.bf16 %v3430, %v3429
        %v3459 = vpack.c.bf16 %v3432, %v3431
        %v3460 = vpack.c.bf16 %v3434, %v3433
        %v3461 = vpack.c.bf16 %v3436, %v3435
        %v3462 = vpack.c.bf16 %v3438, %v3437
        %v3463 = vpack.c.bf16 %v3440, %v3439
        %v3464 = vpack.c.bf16 %v3442, %v3441
        %v3465 = vpack.c.bf16 %v3444, %v3443
        %v3466 = vpack.c.bf16 %v3446, %v3445
        %v3467 = vpack.c.bf16 %v3448, %v3447
        %v3468 = vpack.c.bf16 %v3450, %v3449
        %v3469 = vpack.c.bf16 %v3452, %v3451
        %v3470 = vpack.c.bf16 %v3454, %v3453
        %v3471 = vld [vmem:[%s4] sm:$0xff]
        %v3472 = vld [vmem:[%s4 + $0x8] sm:$0xff]
        %v3473 = vld [vmem:[%s4 + $0x10] sm:$0xff]
        %v3474 = vld [vmem:[%s4 + $0x18] sm:$0xff]
        %v3475 = vpack.c.bf16 %v3472, %v3471
        %v3476 = vpack.c.bf16 %v3474, %v3473
        %v3477 = vld [vmem:[%s5] sm:$0x1]
        %v3479 = vlaneseq
        %v3480 = vshrl.u32 %v3479, 7
        %v3481 = vsub.s32 0, %v3480
        %v3482 = vrot.slane %v3477, %v3481
        %v3485 = vsel %vm343, %v3455, 0
        %v3488 = vsel %vm343, %v3456, 0
        %v3491 = vsel %vm343, %v3457, 0
        %v3494 = vsel %vm343, %v3458, 0
        %v3497 = vsel %vm343, %v3459, 0
        %v3500 = vsel %vm343, %v3460, 0
        %v3503 = vsel %vm343, %v3461, 0
        %v3506 = vsel %vm343, %v3462, 0
        %v3509 = vsel %vm343, %v3463, 0
        %v3512 = vsel %vm343, %v3464, 0
        %v3515 = vsel %vm343, %v3465, 0
        %v3518 = vsel %vm343, %v3466, 0
        %v3521 = vsel %vm343, %v3467, 0
        %v3524 = vsel %vm343, %v3468, 0
        %v3527 = vsel %vm343, %v3469, 0
        %v3530 = vsel %vm343, %v3470, 0
        %3532 = vmatprep.subr.bf16.mxu0 0
        %3533 = vmatpush1.bf16.msra.mxu0 0
        %3534 = vmatprep.subr.bf16.mxu0 0
        %3535 = vmatpush1.bf16.msra.mxu0 0
        %3536 = vmatprep.subr.bf16.mxu0 0
        %3537 = vmatpush1.bf16.msra.mxu0 0
        %3538 = vmatprep.subr.bf16.mxu0 0
        %3539 = vmatpush1.bf16.msra.mxu0 0
        %3540 = vmatprep.subr.bf16.mxu0 0
        %3541 = vmatpush1.bf16.msra.mxu0 0
        %3542 = vmatprep.subr.bf16.mxu0 0
        %3543 = vmatpush1.bf16.msra.mxu0 0
        %3544 = vmatprep.subr.bf16.mxu0 0
        %3545 = vmatpush1.bf16.msra.mxu0 %v3476
        %3546 = vmatprep.subr.bf16.mxu0 0
        %3547 = vmatpush1.bf16.msra.mxu0 %v3475
        %3548 = vmatprep.subr.bf16.mxu0 0
        %3549 = vmatpush2.bf16.msra.mxu0 0
        %3550 = vmatprep.subr.bf16.mxu0 0
        %3551 = vmatpush2.bf16.msra.mxu0 0
        %3552 = vmatprep.subr.bf16.mxu0 0
        %3553 = vmatpush2.bf16.msra.mxu0 0
        %3554 = vmatprep.subr.bf16.mxu0 0
        %3555 = vmatpush2.bf16.msra.mxu0 0
        %3556 = vmatprep.subr.bf16.mxu0 0
        %3557 = vmatpush2.bf16.msra.mxu0 0
        %3558 = vmatprep.subr.bf16.mxu0 0
        %3559 = vmatpush2.bf16.msra.mxu0 0
        %3560 = vmatprep.subr.bf16.mxu0 0
        %3561 = vmatpush2.bf16.msra.mxu0 0
        %3562 = vmatprep.subr.bf16.mxu0 0
        %3563 = vmatpush2.bf16.msra.mxu0 0
        %3564 = vmatprep.mubr.bf16.mxu0 0
        %3565 = vmatmul.mubr.bf16.gmra.mxu0 %v3485
        %v3566 = vpop.f32.mrf.mxu0
        %v3567 = vadd.f32 %v3482, %v3566
        %v3568 = vpop.f32.mrf.mxu0
        %v3569 = vpop.f32.mrf.mxu0
        %v3570 = vadd.f32 %v3482, %v3569
        %v3571 = vpop.f32.mrf.mxu0
        %3572 = vmatprep.mubr.bf16.mxu0 0
        %3573 = vmatmul.mubr.bf16.gmra.mxu0 %v3488
        %v3574 = vpop.f32.mrf.mxu0
        %v3575 = vadd.f32 %v3482, %v3574
        %v3576 = vpop.f32.mrf.mxu0
        %v3577 = vpop.f32.mrf.mxu0
        %v3578 = vadd.f32 %v3482, %v3577
        %v3579 = vpop.f32.mrf.mxu0
        %3580 = vmatprep.mubr.bf16.mxu0 0
        %3581 = vmatmul.mubr.bf16.gmra.mxu0 %v3491
        %v3582 = vpop.f32.mrf.mxu0
        %v3583 = vadd.f32 %v3482, %v3582
        %v3584 = vpop.f32.mrf.mxu0
        %v3585 = vpop.f32.mrf.mxu0
        %v3586 = vadd.f32 %v3482, %v3585
        %v3587 = vpop.f32.mrf.mxu0
        %3588 = vmatprep.mubr.bf16.mxu0 0
        %3589 = vmatmul.mubr.bf16.gmra.mxu0 %v3494
        %v3590 = vpop.f32.mrf.mxu0
        %v3591 = vadd.f32 %v3482, %v3590
        %v3592 = vpop.f32.mrf.mxu0
        %v3593 = vpop.f32.mrf.mxu0
        %v3594 = vadd.f32 %v3482, %v3593
        %v3595 = vpop.f32.mrf.mxu0
        %3596 = vmatprep.mubr.bf16.mxu0 0
        %3597 = vmatmul.mubr.bf16.gmra.mxu0 %v3497
        %v3598 = vpop.f32.mrf.mxu0
        %v3599 = vadd.f32 %v3482, %v3598
        %v3600 = vpop.f32.mrf.mxu0
        %v3601 = vpop.f32.mrf.mxu0
        %v3602 = vadd.f32 %v3482, %v3601
        %v3603 = vpop.f32.mrf.mxu0
        %3604 = vmatprep.mubr.bf16.mxu0 0
        %3605 = vmatmul.mubr.bf16.gmra.mxu0 %v3500
        %v3606 = vpop.f32.mrf.mxu0
        %v3607 = vadd.f32 %v3482, %v3606
        %v3608 = vpop.f32.mrf.mxu0
        %v3609 = vpop.f32.mrf.mxu0
        %v3610 = vadd.f32 %v3482, %v3609
        %v3611 = vpop.f32.mrf.mxu0
        %3612 = vmatprep.mubr.bf16.mxu0 0
        %3613 = vmatmul.mubr.bf16.gmra.mxu0 %v3503
        %v3614 = vpop.f32.mrf.mxu0
        %v3615 = vadd.f32 %v3482, %v3614
        %v3616 = vpop.f32.mrf.mxu0
        %v3617 = vpop.f32.mrf.mxu0
        %v3618 = vadd.f32 %v3482, %v3617
        %v3619 = vpop.f32.mrf.mxu0
        %3620 = vmatprep.mubr.bf16.mxu0 0
        %3621 = vmatmul.mubr.bf16.gmra.mxu0 %v3506
        %v3622 = vpop.f32.mrf.mxu0
        %v3623 = vadd.f32 %v3482, %v3622
        %v3624 = vpop.f32.mrf.mxu0
        %v3625 = vpop.f32.mrf.mxu0
        %v3626 = vadd.f32 %v3482, %v3625
        %v3627 = vpop.f32.mrf.mxu0
        %3628 = vmatprep.mubr.bf16.mxu0 0
        %3629 = vmatmul.mubr.bf16.gmra.mxu0 %v3509
        %v3630 = vpop.f32.mrf.mxu0
        %v3631 = vadd.f32 %v3482, %v3630
        %v3632 = vpop.f32.mrf.mxu0
        %v3633 = vpop.f32.mrf.mxu0
        %v3634 = vadd.f32 %v3482, %v3633
        %v3635 = vpop.f32.mrf.mxu0
        %3636 = vmatprep.mubr.bf16.mxu0 0
        %3637 = vmatmul.mubr.bf16.gmra.mxu0 %v3512
        %v3638 = vpop.f32.mrf.mxu0
        %v3639 = vadd.f32 %v3482, %v3638
        %v3640 = vpop.f32.mrf.mxu0
        %v3641 = vpop.f32.mrf.mxu0
        %v3642 = vadd.f32 %v3482, %v3641
        %v3643 = vpop.f32.mrf.mxu0
        %3644 = vmatprep.mubr.bf16.mxu0 0
        %3645 = vmatmul.mubr.bf16.gmra.mxu0 %v3515
        %v3646 = vpop.f32.mrf.mxu0
        %v3647 = vadd.f32 %v3482, %v3646
        %v3648 = vpop.f32.mrf.mxu0
        %v3649 = vpop.f32.mrf.mxu0
        %v3650 = vadd.f32 %v3482, %v3649
        %v3651 = vpop.f32.mrf.mxu0
        %3652 = vmatprep.mubr.bf16.mxu0 0
        %3653 = vmatmul.mubr.bf16.gmra.mxu0 %v3518
        %v3654 = vpop.f32.mrf.mxu0
        %v3655 = vadd.f32 %v3482, %v3654
        %v3656 = vpop.f32.mrf.mxu0
        %v3657 = vpop.f32.mrf.mxu0
        %v3658 = vadd.f32 %v3482, %v3657
        %v3659 = vpop.f32.mrf.mxu0
        %3660 = vmatprep.mubr.bf16.mxu0 0
        %3661 = vmatmul.mubr.bf16.gmra.mxu0 %v3521
        %v3662 = vpop.f32.mrf.mxu0
        %v3663 = vadd.f32 %v3482, %v3662
        %v3664 = vpop.f32.mrf.mxu0
        %v3665 = vpop.f32.mrf.mxu0
        %v3666 = vadd.f32 %v3482, %v3665
        %v3667 = vpop.f32.mrf.mxu0
        %3668 = vmatprep.mubr.bf16.mxu0 0
        %3669 = vmatmul.mubr.bf16.gmra.mxu0 %v3524
        %v3670 = vpop.f32.mrf.mxu0
        %v3671 = vadd.f32 %v3482, %v3670
        %v3672 = vpop.f32.mrf.mxu0
        %v3673 = vpop.f32.mrf.mxu0
        %v3674 = vadd.f32 %v3482, %v3673
        %v3675 = vpop.f32.mrf.mxu0
        %3676 = vmatprep.mubr.bf16.mxu0 0
        %3677 = vmatmul.mubr.bf16.gmra.mxu0 %v3527
        %v3678 = vpop.f32.mrf.mxu0
        %v3679 = vadd.f32 %v3482, %v3678
        %v3680 = vpop.f32.mrf.mxu0
        %v3681 = vpop.f32.mrf.mxu0
        %v3682 = vadd.f32 %v3482, %v3681
        %v3683 = vpop.f32.mrf.mxu0
        %3684 = vmatprep.mubr.bf16.mxu0 0
        %3685 = vmatmul.mubr.bf16.gmra.mxu0 %v3530
        %v3686 = vpop.f32.mrf.mxu0
        %v3687 = vadd.f32 %v3482, %v3686
        %v3688 = vpop.f32.mrf.mxu0
        %v3689 = vpop.f32.mrf.mxu0
        %v3690 = vadd.f32 %v3482, %v3689
        %v3691 = vpop.f32.mrf.mxu0
        %3692 = vdwg.mxu0
        %3693 = vst.msk [vmem:[%s285] sm:$0xff] %vm343, %v3567
        %3694 = vst.msk [vmem:[%s285 + $0x8] sm:$0xff] %vm343, %v3570
        %3695 = vst.msk [vmem:[%s285 + $0x10] sm:$0xff] %vm343, %v3575
        %3696 = vst.msk [vmem:[%s285 + $0x18] sm:$0xff] %vm343, %v3578
        %3697 = vst.msk [vmem:[%s285 + $0x20] sm:$0xff] %vm343, %v3583
        %3698 = vst.msk [vmem:[%s285 + $0x28] sm:$0xff] %vm343, %v3586
        %3699 = vst.msk [vmem:[%s285 + $0x30] sm:$0xff] %vm343, %v3591
        %3700 = vst.msk [vmem:[%s285 + $0x38] sm:$0xff] %vm343, %v3594
        %3701 = vst.msk [vmem:[%s285 + $0x40] sm:$0xff] %vm343, %v3599
        %3702 = vst.msk [vmem:[%s285 + $0x48] sm:$0xff] %vm343, %v3602
        %3703 = vst.msk [vmem:[%s285 + $0x50] sm:$0xff] %vm343, %v3607
        %3704 = vst.msk [vmem:[%s285 + $0x58] sm:$0xff] %vm343, %v3610
        %3705 = vst.msk [vmem:[%s285 + $0x60] sm:$0xff] %vm343, %v3615
        %3706 = vst.msk [vmem:[%s285 + $0x68] sm:$0xff] %vm343, %v3618
        %3707 = vst.msk [vmem:[%s285 + $0x70] sm:$0xff] %vm343, %v3623
        %3708 = vst.msk [vmem:[%s285 + $0x78] sm:$0xff] %vm343, %v3626
        %3709 = vst.msk [vmem:[%s285 + $0x80] sm:$0xff] %vm343, %v3631
        %3710 = vst.msk [vmem:[%s285 + $0x88] sm:$0xff] %vm343, %v3634
        %3711 = vst.msk [vmem:[%s285 + $0x90] sm:$0xff] %vm343, %v3639
        %3712 = vst.msk [vmem:[%s285 + $0x98] sm:$0xff] %vm343, %v3642
        %3713 = vst.msk [vmem:[%s285 + $0xa0] sm:$0xff] %vm343, %v3647
        %3714 = vst.msk [vmem:[%s285 + $0xa8] sm:$0xff] %vm343, %v3650
        %3715 = vst.msk [vmem:[%s285 + $0xb0] sm:$0xff] %vm343, %v3655
        %3716 = vst.msk [vmem:[%s285 + $0xb8] sm:$0xff] %vm343, %v3658
        %3717 = vst.msk [vmem:[%s285 + $0xc0] sm:$0xff] %vm343, %v3663
        %3718 = vst.msk [vmem:[%s285 + $0xc8] sm:$0xff] %vm343, %v3666
        %3719 = vst.msk [vmem:[%s285 + $0xd0] sm:$0xff] %vm343, %v3671
        %3720 = vst.msk [vmem:[%s285 + $0xd8] sm:$0xff] %vm343, %v3674
        %3721 = vst.msk [vmem:[%s285 + $0xe0] sm:$0xff] %vm343, %v3679
        %3722 = vst.msk [vmem:[%s285 + $0xe8] sm:$0xff] %vm343, %v3682
        %3723 = vst.msk [vmem:[%s285 + $0xf0] sm:$0xff] %vm343, %v3687
        %3724 = vst.msk [vmem:[%s285 + $0xf8] sm:$0xff] %vm343, %v3690
        %s3725 = sand.u32 %s163, 1
        %s3726 = scalar_lea.sflag [#allocation4], %s3725
        %s3727 = sand.u32 %s163, 1
        %s3728 = smul.addr %s3727, 256
        %s3729 = scalar_lea.vmem [#allocation7], %s3728
        // Predicated region
        $region53: #{tpu_custom_call.1} parent=43 // pred_check
          %p3730 = pneg %p173
        $region54: #{tpu_custom_call.1} parent=43 // pred_check_branch
          %3732 = sbr.rel (%p3730) target = $region56
        $region55: #{tpu_custom_call.1} parent=43 // pred_region
          %s3733 = smul.u32 8, %s24
          %s3735 = ssub.s32 4096, 4096
          %3736 = vsyncadd %s3726, %s3735
          %s3737 = smul.addr %s3733, 4
          %s3738 = smul.addr %s3737, 128
          %s3739 = scalar_lea.hbm %s6, %s3738
          %s3740 = sshll.u32 %s3729, 4
          %s3741 = int_to_ptr.vmem [resolvable:$true] %s3740
          %3746 = dma.vmem_to_hbm [thread:$0]  %s3741, 4096, %s3739, %s3726, 128, 128, 8
        $region56: #{tpu_custom_call.1} parent=43 // pred_fallthru
          _
      $region44: #{tpu_custom_call.1} parent=5 // pred_fallthru
        _
      %p3747 = scmp.le.s32.totalorder 2, %s19
      // Predicated region
      $region57: #{tpu_custom_call.1} parent=5 // pred_check
        %p3748 = pneg %p3747
      $region58: #{tpu_custom_call.1} parent=5 // pred_check_branch
        %3750 = sbr.rel (%p3748) target = $region60
      $region59: #{tpu_custom_call.1} parent=5 // pred_region
        %s3751 = ssub.s32 %s19, 2
        // Predicated region
        $region61: #{tpu_custom_call.1} parent=59 // pred_check
          %p3752 = pneg %p179
        $region62: #{tpu_custom_call.1} parent=59 // pred_check_branch
          %3754 = sbr.rel (%p3752) target = $region64
        $region63: #{tpu_custom_call.1} parent=59 // pred_region
          %s3755 = sand.u32 %s164, 1
          %s3756 = scalar_lea.sflag [#allocation4], %s3755
          %s3757 = sand.u32 %s164, 1
          %s3758 = smul.addr %s3757, 256
          %s3759 = scalar_lea.vmem [#allocation7], %s3758
          %3760 = dma.done %s3756, 4096
        $region64: #{tpu_custom_call.1} parent=59 // pred_fallthru
          _
      $region60: #{tpu_custom_call.1} parent=5 // pred_fallthru
        _
    $region6: #{tpu_custom_call.1} parent=1 // loop_footer
      %s23 = sadd.s32 1, %s19
    $region7: #{tpu_custom_call.1} parent=1 // loop_footer_branch
      %18 = sbr.rel target = $region3
    $region8: #{tpu_custom_call.1} parent=1 // loop_exit
      _
    %3761 = vsyncpa [#allocation3], 1
    %s3762 = scalar_lea.sflag [#allocation3], 1
    %3763 = vsyncpa %s3762, 1
    %3764 = vsyncpa [#allocation6], 1
    %3765 = vsyncpa [#allocation4], 1
    %s3766 = scalar_lea.sflag [#allocation4], 1
    %3767 = vsyncpa %s3766, 1

</llo_original>
